<compile_context>
chip_gen: v7x
topology: tpu7x:2x2x1
jax: 0.10.0
libtpu: 0.0.40
codegen_flags: <defaults>
</compile_context>

<pallas_src>
import functools

import jax
import jax.numpy as jnp
from jax import lax
from jax.experimental import pallas as pl
from jax.experimental.pallas import tpu as pltpu

IMAGENET_MEAN = jnp.array([0.485, 0.456, 0.406], jnp.float32)
IMAGENET_STD = jnp.array([0.229, 0.224, 0.225], jnp.float32)

MSE_WEIGHT = 1.0
PERCEPTUAL_WEIGHT = 0.01


# ----------------------------------------------------------------------------
# VMEM-aware sizing (v5e/v6e: 128 MiB physical, v7x: 64 MiB)
# ----------------------------------------------------------------------------
def _vmem_capacity_bytes():
    try:
        return int(pltpu.get_tpu_info().vmem_capacity_bytes)
    except Exception:
        return 64 * 1024 * 1024  # conservative fallback (v7x-sized)


_VMEM_LIMIT = max(32 * 1024 * 1024,
                  min((_vmem_capacity_bytes() * 3) // 4, 96 * 1024 * 1024))
_CONV_VMEM_BUDGET = (_VMEM_LIMIT * 3) // 5     # per-step resident target
_MSE_TILE_BYTES = 4 * 1024 * 1024              # per-input block budget


def _pick_tile(dim, target, granule=8):
    """Largest divisor of `dim` that is <= target and a multiple of `granule`;
    falls back to `dim` itself (a full-extent block is always legal)."""
    if dim <= target:
        return dim
    t = (target // granule) * granule
    while t >= granule:
        if dim % t == 0:
            return t
        t -= granule
    return dim


# ----------------------------------------------------------------------------
# Pallas kernel 1: fused im2col + 3x3 conv (+ bias + ReLU), row-slab tiles
# ----------------------------------------------------------------------------
def _conv_slab_kernel(slab_ref, w_ref, b_ref, o_ref, *, th, w_out, relu):
    # slab_ref: (1, th+2, W+2, Cin) bf16 zero-padded halo'd row slab
    # w_ref:    (9, Cin, Cout)      bf16 taps, t = 3*dy + dx
    # b_ref:    (1, Cout)           f32
    # o_ref:    (1, th, W, Cout)    bf16
    cin = slab_ref.shape[-1]
    cout = o_ref.shape[-1]
    bias = b_ref[...]  # (1, Cout) f32

    def row_body(r, carry):
        acc = jnp.zeros((w_out, cout), jnp.float32)
        for t in range(9):
            dy, dx = divmod(t, 3)
            v = slab_ref[0, r + dy, dx:dx + w_out, :]          # (W, Cin) bf16
            acc = acc + jnp.dot(v, w_ref[t],
                                preferred_element_type=jnp.float32)
        acc = acc + bias
        if relu:
            acc = jnp.maximum(acc, 0.0)
        o_ref[0, r] = acc.astype(o_ref.dtype)
        return carry

    lax.fori_loop(0, th, row_body, 0)


def _pick_row_tile(h, w, cin, cout, n_imgs, budget):
    """Largest divisor-of-H row-tile whose VMEM footprint fits `budget`,
    preferring >=2 total slabs so both v7x TensorCores get work."""
    wp = w + 2
    fitting = []
    for th in sorted([d for d in range(1, h + 1) if h % d == 0], reverse=True):
        resident = (2 * (th + 2) * wp * cin * 2     # slab bf16, double-buffered
                    + 2 * th * w * cout * 2         # output bf16, double-buffered
                    + 2 * 9 * cin * cout * 2        # packed weights bf16
                    + w * cout * 4                  # per-row f32 accumulator
                    + w * cin * 2)                  # one shifted-view operand
        if resident <= budget:
            fitting.append(th)
    if not fitting:
        return 1
    for th in fitting:
        if n_imgs * (h // th) >= 2:
            return th
    return fitting[0]


def _make_row_slabs(x_bf16, th):
    """[N,H,W,C] -> [N*(H/th), th+2, W+2, C] zero-padded halo'd row slabs."""
    n, h, w, c = x_bf16.shape
    xp = jnp.pad(x_bf16, ((0, 0), (1, 1), (1, 1), (0, 0)))
    nb = h // th
    row_idx = jnp.arange(nb)[:, None] * th + jnp.arange(th + 2)[None, :]
    slabs = xp[:, row_idx]                           # [N, nb, th+2, W+2, C]
    return slabs.reshape(n * nb, th + 2, w + 2, c)


def _conv3x3_fused(x_bf16, w9, bias2d, *, relu):
    n, h, w, cin = x_bf16.shape
    cout = w9.shape[-1]
    th = _pick_row_tile(h, w, cin, cout, n, _CONV_VMEM_BUDGET)
    nb = h // th
    n_slabs = n * nb
    slabs = _make_row_slabs(x_bf16, th)

    out = pl.pallas_call(
        functools.partial(_conv_slab_kernel, th=th, w_out=w, relu=relu),
        out_shape=jax.ShapeDtypeStruct((n_slabs, th, w, cout), jnp.bfloat16),
        grid_spec=pltpu.PrefetchScalarGridSpec(
            num_scalar_prefetch=0,
            grid=(n_slabs,),
            in_specs=[
                pl.BlockSpec((1, th + 2, w + 2, cin), lambda i: (i, 0, 0, 0)),
                pl.BlockSpec((9, cin, cout), lambda i: (0, 0, 0)),
                pl.BlockSpec((1, cout), lambda i: (0, 0)),
            ],
            out_specs=pl.BlockSpec((1, th, w, cout), lambda i: (i, 0, 0, 0)),
        ),
        compiler_params=pltpu.CompilerParams(
            dimension_semantics=("parallel",),
            vmem_limit_bytes=_VMEM_LIMIT,
        ),
    )(slabs, w9, bias2d)
    return out.reshape(n, h, w, cout)


# ----------------------------------------------------------------------------
# Pallas kernel 1b: K-packed im2col GEMM (conv1 / fallback path)
# ----------------------------------------------------------------------------
def _conv_gemm_kernel(x_ref, w_ref, b_ref, o_ref, *, relu):
    acc = jnp.dot(x_ref[...], w_ref[...], preferred_element_type=jnp.float32)
    acc = acc + b_ref[...]
    if relu:
        acc = jnp.maximum(acc, 0.0)
    o_ref[...] = acc.astype(o_ref.dtype)


def _im2col(x_nhwc):
    """[N,H,W,C] -> [N*H*W, 9*C] shifted-window (pad=1) patches, bf16."""
    n, h, w, c = x_nhwc.shape
    xp = jnp.pad(x_nhwc, ((0, 0), (1, 1), (1, 1), (0, 0)))
    cols = [xp[:, dy:dy + h, dx:dx + w, :] for dy in range(3) for dx in range(3)]
    patches = jnp.concatenate(cols, axis=-1)
    return patches.reshape(n * h * w, 9 * c).astype(jnp.bfloat16)


def _conv3x3_im2col(x_bf16, w9, bias2d, *, relu):
    n, h, w, cin = x_bf16.shape
    cout = w9.shape[-1]
    k = 9 * cin
    m = n * h * w
    patches = _im2col(x_bf16)                       # [M, 9*Cin] bf16
    w_packed = w9.reshape(k, cout)                  # (ky,kx,cin) K-order

    per_row = 4 * k + 8 * cout                      # dbuf in/out + f32 acc
    tm_max = max(8, (_CONV_VMEM_BUDGET - 4 * k * cout) // per_row)
    tm = _pick_tile(m, tm_max, granule=8)

    out = pl.pallas_call(
        functools.partial(_conv_gemm_kernel, relu=relu),
        out_shape=jax.ShapeDtypeStruct((m, cout), jnp.bfloat16),
        grid_spec=pltpu.PrefetchScalarGridSpec(
            num_scalar_prefetch=0,
            grid=(m // tm,),
            in_specs=[
                pl.BlockSpec((tm, k), lambda i: (i, 0)),
                pl.BlockSpec((k, cout), lambda i: (0, 0)),
                pl.BlockSpec((1, cout), lambda i: (0, 0)),
            ],
            out_specs=pl.BlockSpec((tm, cout), lambda i: (i, 0)),
        ),
        compiler_params=pltpu.CompilerParams(
            dimension_semantics=("parallel",),
            vmem_limit_bytes=_VMEM_LIMIT,
        ),
    )(patches, w_packed, bias2d)
    return out.reshape(n, h, w, cout)


def conv3x3_relu(x_nhwc, w9, bias, *, relu=True):
    """3x3 conv, stride 1, pad 1, optional ReLU.  w9: [9, Cin, Cout] bf16."""
    cin = x_nhwc.shape[-1]
    cout = w9.shape[-1]
    x_bf16 = x_nhwc.astype(jnp.bfloat16)
    bias2d = bias.reshape(1, cout).astype(jnp.float32)
    if cin >= 8:
        return _conv3x3_fused(x_bf16, w9, bias2d, relu=relu)
    # conv1 (Cin=3): tiny; keep the K-packed im2col GEMM path.
    return _conv3x3_im2col(x_bf16, w9, bias2d, relu=relu)


# ----------------------------------------------------------------------------
# Pallas kernel 2: tiled sum-of-squared-differences with per-tile partials
# ----------------------------------------------------------------------------
def _ssd_partial_kernel(a_ref, b_ref, o_ref):
    d = a_ref[...].astype(jnp.float32) - b_ref[...].astype(jnp.float32)
    o_ref[0] = jnp.sum(d * d, axis=0, keepdims=True)   # (1, lane) lane-dense


def mse_pallas(a, b):
    """mean((a - b)^2) via an independently-tiled ("parallel") Pallas reduction."""
    e = int(a.size)
    a1 = a.reshape(-1)
    b1 = b.reshape(-1)
    lane = None
    for cand in (512, 256, 128):
        if e % cand == 0:
            lane = cand
            break
    if lane is None:
        # Zero-pad to a lane-dense tiled view; zeros add 0 to the SSD.
        lane = 512
        pad = (-e) % lane
        a1 = jnp.pad(a1, (0, pad))
        b1 = jnp.pad(b1, (0, pad))
    a2 = a1.reshape(-1, lane)
    b2 = b1.reshape(-1, lane)
    rows = a2.shape[0]
    itemsize = max(a.dtype.itemsize, b.dtype.itemsize)
    tr = _pick_tile(rows, max(8, _MSE_TILE_BYTES // (lane * itemsize)), granule=8)
    nt = rows // tr

    partials = pl.pallas_call(
        _ssd_partial_kernel,
        out_shape=jax.ShapeDtypeStruct((nt, 1, lane), jnp.float32),
        grid_spec=pltpu.PrefetchScalarGridSpec(
            num_scalar_prefetch=0,
            grid=(nt,),
            in_specs=[
                pl.BlockSpec((tr, lane), lambda i: (i, 0)),
                pl.BlockSpec((tr, lane), lambda i: (i, 0)),
            ],
            out_specs=pl.BlockSpec((1, 1, lane), lambda i: (i, 0, 0)),
        ),
        compiler_params=pltpu.CompilerParams(
            dimension_semantics=("parallel",),
            vmem_limit_bytes=_VMEM_LIMIT,
        ),
    )(a2, b2)
    return jnp.sum(partials) / jnp.float32(e)


# ----------------------------------------------------------------------------
# VGG16 (first 3 blocks) feature extractor — convs in Pallas, pool as glue
# ----------------------------------------------------------------------------
def _maxpool2x2(x_nhwc):
    n, h, w, c = x_nhwc.shape
    x = x_nhwc[:, :(h // 2) * 2, :(w // 2) * 2, :]
    return x.reshape(n, h // 2, 2, w // 2, 2, c).max(axis=(2, 4))


def vgg16_features(x_nhwc, params):
    """Returns [enc_1, enc_2, enc_3] outputs (each block ends with MaxPool)."""
    feats = []
    h = x_nhwc
    for block in params:
        for w9, b in block:
            h = conv3x3_relu(h, w9, b, relu=True)
        h = _maxpool2x2(h)
        feats.append(h)
    return feats


def init_vgg_params(key):
    # VGG16 blocks 1..3 channel config (all 3x3 convs, each followed by ReLU)
    cfg = [
        [(3, 64), (64, 64)],
        [(64, 128), (128, 128)],
        [(128, 256), (256, 256), (256, 256)],
    ]
    params = []
    for block in cfg:
        bp = []
        for cin, cout in block:
            key, kw, kb = jax.random.split(key, 3)
            scale = (2.0 / (9.0 * cin)) ** 0.5
            w = jax.random.normal(kw, (3, 3, cin, cout), jnp.float32) * scale
            b = jax.random.normal(kb, (cout,), jnp.float32) * 0.01
            # Taps packed as [9, Cin, Cout] bf16, t = 3*ky + kx.
            bp.append((w.reshape(9, cin, cout).astype(jnp.bfloat16), b))
        params.append(bp)
    return params


# ----------------------------------------------------------------------------
# SkeletLoss forward
# ----------------------------------------------------------------------------
def _preprocess(x_nchw):
    """(x/2+0.5).clamp(0,1), repeat 1->3 channels, ImageNet normalize; ->NHWC."""
    x01 = jnp.clip(x_nchw / 2.0 + 0.5, 0.0, 1.0)             # [N,1,H,W]
    x_nhwc = jnp.transpose(x01, (0, 2, 3, 1))                 # [N,H,W,1]
    x3 = jnp.broadcast_to(x_nhwc, x_nhwc.shape[:3] + (3,))    # repeat(1,3,1,1)
    return (x3 - IMAGENET_MEAN) / IMAGENET_STD


def skelet_loss(preds, targets, params):
    """preds, targets: [N, 1, H, W] float32 (NCHW, matching the PyTorch module)."""
    # Pixel MSE
    mse = mse_pallas(preds, targets) * MSE_WEIGHT

    # Perceptual loss: run gen and tgt through VGG in ONE batched pass.
    gen = _preprocess(preds)
    tgt = _preprocess(targets)
    both = jnp.concatenate([gen, tgt], axis=0)                # [2N,H,W,3]
    feats = vgg16_features(both, params)

    n = preds.shape[0]
    percep = jnp.float32(0.0)
    for f in feats:
        percep = percep + mse_pallas(f[n:], f[:n])
    percep = percep / 3.0 * PERCEPTUAL_WEIGHT

    return mse + percep


if __name__ == "__main__":
    key = jax.random.PRNGKey(0)
    k_pred, k_tgt, k_par = jax.random.split(key, 3)

    preds = jax.random.normal(k_pred, (2, 1, 16, 16), jnp.float32)
    targets = jax.random.normal(k_tgt, (2, 1, 16, 16), jnp.float32)
    params = init_vgg_params(k_par)

    loss_fn = jax.jit(skelet_loss)
    loss = loss_fn(preds, targets, params)
    loss = jax.block_until_ready(loss)
    assert loss.shape == () and bool(jnp.isfinite(loss))
    print("KERNEL_OK")
</pallas_src>

<mosaic_0001>
module attributes {stable_mosaic.version = 11 : i64} {
  func.func @_conv_gemm_kernel(%arg0: i32, %arg1: memref<1024x27xbf16, #tpu.memory_space<vmem>>, %arg2: memref<27x64xbf16, #tpu.memory_space<vmem>>, %arg3: memref<1x64xf32, #tpu.memory_space<vmem>>, %arg4: memref<1024x64xbf16, #tpu.memory_space<vmem>>) attributes {dimension_semantics = [#tpu.dimension_semantics<parallel>], iteration_bounds = array<i64: 1>, scalar_prefetch = 0 : i64, scratch_operands = 0 : i64, tpu.core_type = #tpu.core_type<tc>, window_params = [{transform_indices = @transform_0, window_bounds = array<i64: 1024, 27>}, {pipeline_mode = #tpu.pipeline_mode<synchronous>, transform_indices = @transform_1, window_bounds = array<i64: 27, 64>}, {pipeline_mode = #tpu.pipeline_mode<synchronous>, transform_indices = @transform_2, window_bounds = array<i64: 1, 64>}, {transform_indices = @transform_3, window_bounds = array<i64: 1024, 64>}]} {
    %c0 = arith.constant 0 : index
    %c0_0 = arith.constant 0 : index
    %0 = vector.load %arg1[%c0, %c0_0] : memref<1024x27xbf16, #tpu.memory_space<vmem>>, vector<1024x27xbf16>
    %c0_1 = arith.constant 0 : index
    %c0_2 = arith.constant 0 : index
    %1 = vector.load %arg2[%c0_1, %c0_2] : memref<27x64xbf16, #tpu.memory_space<vmem>>, vector<27x64xbf16>
    %cst = arith.constant dense<0.000000e+00> : vector<1024x64xf32>
    %2 = tpu.matmul %0, %1, %cst {dimension_numbers = #tpu.dot_dimension_numbers<[1], [0], [0], [1], [0, 0, 1, 1], [], []>} : vector<1024x27xbf16>, vector<27x64xbf16>, vector<1024x64xf32> -> vector<1024x64xf32>
    %c0_3 = arith.constant 0 : index
    %c0_4 = arith.constant 0 : index
    %3 = vector.load %arg3[%c0_3, %c0_4] : memref<1x64xf32, #tpu.memory_space<vmem>>, vector<1x64xf32>
    %4 = vector.broadcast %3 : vector<1x64xf32> to vector<1024x64xf32>
    %5 = arith.addf %2, %4 : vector<1024x64xf32>
    %cst_5 = arith.constant 0.000000e+00 : f32
    %6 = vector.broadcast %cst_5 : f32 to vector<1024x64xf32>
    %7 = arith.maximumf %5, %6 : vector<1024x64xf32>
    %8 = arith.truncf %7 : vector<1024x64xf32> to vector<1024x64xbf16>
    %c0_6 = arith.constant 0 : index
    %c0_7 = arith.constant 0 : index
    %9 = vector.load %arg4[%c0_6, %c0_7] : memref<1024x64xbf16, #tpu.memory_space<vmem>>, vector<1024x64xbf16>
    tpu.vector_store %arg4[%c0_6, %c0_7], %8 {strides = array<i32>} : memref<1024x64xbf16, #tpu.memory_space<vmem>>, vector<1024x64xbf16>,
    return
  }
  func.func @transform_0(%arg0: i32) -> (i32, i32) {
    %c0_i32 = arith.constant 0 : i32
    %c0_i32_0 = arith.constant 0 : i32
    return %arg0, %c0_i32 : i32, i32
  }
  func.func @transform_1(%arg0: i32) -> (i32, i32) {
    %c0_i32 = arith.constant 0 : i32
    %c0_i32_0 = arith.constant 0 : i32
    %c0_i32_1 = arith.constant 0 : i32
    return %c0_i32, %c0_i32_0 : i32, i32
  }
  func.func @transform_2(%arg0: i32) -> (i32, i32) {
    %c0_i32 = arith.constant 0 : i32
    %c0_i32_0 = arith.constant 0 : i32
    %c0_i32_1 = arith.constant 0 : i32
    return %c0_i32, %c0_i32_0 : i32, i32
  }
  func.func @transform_3(%arg0: i32) -> (i32, i32) {
    %c0_i32 = arith.constant 0 : i32
    %c0_i32_0 = arith.constant 0 : i32
    return %arg0, %c0_i32 : i32, i32
  }
}

module attributes {stable_mosaic.version = 11 : i64} {
  func.func @_conv_slab_kernel(%arg0: i32, %arg1: memref<1x18x18x64xbf16, #tpu.memory_space<vmem>>, %arg2: memref<9x64x64xbf16, #tpu.memory_space<vmem>>, %arg3: memref<1x64xf32, #tpu.memory_space<vmem>>, %arg4: memref<1x16x16x64xbf16, #tpu.memory_space<vmem>>) attributes {dimension_semantics = [#tpu.dimension_semantics<parallel>], iteration_bounds = array<i64: 4>, scalar_prefetch = 0 : i64, scratch_operands = 0 : i64, tpu.core_type = #tpu.core_type<tc>, window_params = [{transform_indices = @transform_0, window_bounds = array<i64: 1, 18, 18, 64>}, {pipeline_mode = #tpu.pipeline_mode<synchronous>, transform_indices = @transform_1, window_bounds = array<i64: 9, 64, 64>}, {pipeline_mode = #tpu.pipeline_mode<synchronous>, transform_indices = @transform_2, window_bounds = array<i64: 1, 64>}, {transform_indices = @transform_3, window_bounds = array<i64: 1, 16, 16, 64>}]} {
    %c0 = arith.constant 0 : index
    %c0_0 = arith.constant 0 : index
    %0 = vector.load %arg3[%c0, %c0_0] : memref<1x64xf32, #tpu.memory_space<vmem>>, vector<1x64xf32>
    %c0_i32 = arith.constant 0 : i32
    %c16_i32 = arith.constant 16 : i32
    %1 = arith.addi %c0_i32, %c16_i32 : i32
    %c1_i32 = arith.constant 1 : i32
    scf.for %arg5 = %c0_i32 to %1 step %c1_i32  : i32 {
      %cst = arith.constant 0.000000e+00 : f32
      %2 = vector.broadcast %cst : f32 to vector<16x64xf32>
      %c0_i32_2 = arith.constant 0 : i32
      %3 = arith.addi %arg5, %c0_i32_2 : i32
      %c0_3 = arith.constant 0 : index
      %4 = arith.index_cast %3 : i32 to index
      %c0_4 = arith.constant 0 : index
      %c0_5 = arith.constant 0 : index
      %5 = vector.load %arg1[%c0_3, %4, %c0_4, %c0_5] : memref<1x18x18x64xbf16, #tpu.memory_space<vmem>>, vector<1x1x16x64xbf16>
      %6 = vector.shape_cast %5 : vector<1x1x16x64xbf16> to vector<16x64xbf16>
      %c0_6 = arith.constant 0 : index
      %c0_7 = arith.constant 0 : index
      %c0_8 = arith.constant 0 : index
      %7 = vector.load %arg2[%c0_6, %c0_7, %c0_8] : memref<9x64x64xbf16, #tpu.memory_space<vmem>>, vector<1x64x64xbf16>
      %8 = vector.shape_cast %7 : vector<1x64x64xbf16> to vector<64x64xbf16>
      %cst_9 = arith.constant dense<0.000000e+00> : vector<16x64xf32>
      %9 = tpu.matmul %6, %8, %cst_9 {dimension_numbers = #tpu.dot_dimension_numbers<[1], [0], [0], [1], [0, 0, 1, 1], [], []>} : vector<16x64xbf16>, vector<64x64xbf16>, vector<16x64xf32> -> vector<16x64xf32>
      %10 = arith.addf %2, %9 : vector<16x64xf32>
      %c0_i32_10 = arith.constant 0 : i32
      %11 = arith.addi %arg5, %c0_i32_10 : i32
      %c0_11 = arith.constant 0 : index
      %12 = arith.index_cast %11 : i32 to index
      %c1 = arith.constant 1 : index
      %c0_12 = arith.constant 0 : index
      %13 = vector.load %arg1[%c0_11, %12, %c1, %c0_12] : memref<1x18x18x64xbf16, #tpu.memory_space<vmem>>, vector<1x1x16x64xbf16>
      %14 = vector.shape_cast %13 : vector<1x1x16x64xbf16> to vector<16x64xbf16>
      %c1_13 = arith.constant 1 : index
      %c0_14 = arith.constant 0 : index
      %c0_15 = arith.constant 0 : index
      %15 = vector.load %arg2[%c1_13, %c0_14, %c0_15] : memref<9x64x64xbf16, #tpu.memory_space<vmem>>, vector<1x64x64xbf16>
      %16 = vector.shape_cast %15 : vector<1x64x64xbf16> to vector<64x64xbf16>
      %cst_16 = arith.constant dense<0.000000e+00> : vector<16x64xf32>
      %17 = tpu.matmul %14, %16, %cst_16 {dimension_numbers = #tpu.dot_dimension_numbers<[1], [0], [0], [1], [0, 0, 1, 1], [], []>} : vector<16x64xbf16>, vector<64x64xbf16>, vector<16x64xf32> -> vector<16x64xf32>
      %18 = arith.addf %10, %17 : vector<16x64xf32>
      %c0_i32_17 = arith.constant 0 : i32
      %19 = arith.addi %arg5, %c0_i32_17 : i32
      %c0_18 = arith.constant 0 : index
      %20 = arith.index_cast %19 : i32 to index
      %c2 = arith.constant 2 : index
      %c0_19 = arith.constant 0 : index
      %21 = vector.load %arg1[%c0_18, %20, %c2, %c0_19] : memref<1x18x18x64xbf16, #tpu.memory_space<vmem>>, vector<1x1x16x64xbf16>
      %22 = vector.shape_cast %21 : vector<1x1x16x64xbf16> to vector<16x64xbf16>
      %c2_20 = arith.constant 2 : index
      %c0_21 = arith.constant 0 : index
      %c0_22 = arith.constant 0 : index
      %23 = vector.load %arg2[%c2_20, %c0_21, %c0_22] : memref<9x64x64xbf16, #tpu.memory_space<vmem>>, vector<1x64x64xbf16>
      %24 = vector.shape_cast %23 : vector<1x64x64xbf16> to vector<64x64xbf16>
      %cst_23 = arith.constant dense<0.000000e+00> : vector<16x64xf32>
      %25 = tpu.matmul %22, %24, %cst_23 {dimension_numbers = #tpu.dot_dimension_numbers<[1], [0], [0], [1], [0, 0, 1, 1], [], []>} : vector<16x64xbf16>, vector<64x64xbf16>, vector<16x64xf32> -> vector<16x64xf32>
      %26 = arith.addf %18, %25 : vector<16x64xf32>
      %c1_i32_24 = arith.constant 1 : i32
      %27 = arith.addi %arg5, %c1_i32_24 : i32
      %c0_25 = arith.constant 0 : index
      %28 = arith.index_cast %27 : i32 to index
      %c0_26 = arith.constant 0 : index
      %c0_27 = arith.constant 0 : index
      %29 = vector.load %arg1[%c0_25, %28, %c0_26, %c0_27] : memref<1x18x18x64xbf16, #tpu.memory_space<vmem>>, vector<1x1x16x64xbf16>
      %30 = vector.shape_cast %29 : vector<1x1x16x64xbf16> to vector<16x64xbf16>
      %c3 = arith.constant 3 : index
      %c0_28 = arith.constant 0 : index
      %c0_29 = arith.constant 0 : index
      %31 = vector.load %arg2[%c3, %c0_28, %c0_29] : memref<9x64x64xbf16, #tpu.memory_space<vmem>>, vector<1x64x64xbf16>
      %32 = vector.shape_cast %31 : vector<1x64x64xbf16> to vector<64x64xbf16>
      %cst_30 = arith.constant dense<0.000000e+00> : vector<16x64xf32>
      %33 = tpu.matmul %30, %32, %cst_30 {dimension_numbers = #tpu.dot_dimension_numbers<[1], [0], [0], [1], [0, 0, 1, 1], [], []>} : vector<16x64xbf16>, vector<64x64xbf16>, vector<16x64xf32> -> vector<16x64xf32>
      %34 = arith.addf %26, %33 : vector<16x64xf32>
      %c1_i32_31 = arith.constant 1 : i32
      %35 = arith.addi %arg5, %c1_i32_31 : i32
      %c0_32 = arith.constant 0 : index
      %36 = arith.index_cast %35 : i32 to index
      %c1_33 = arith.constant 1 : index
      %c0_34 = arith.constant 0 : index
      %37 = vector.load %arg1[%c0_32, %36, %c1_33, %c0_34] : memref<1x18x18x64xbf16, #tpu.memory_space<vmem>>, vector<1x1x16x64xbf16>
      %38 = vector.shape_cast %37 : vector<1x1x16x64xbf16> to vector<16x64xbf16>
      %c4 = arith.constant 4 : index
      %c0_35 = arith.constant 0 : index
      %c0_36 = arith.constant 0 : index
      %39 = vector.load %arg2[%c4, %c0_35, %c0_36] : memref<9x64x64xbf16, #tpu.memory_space<vmem>>, vector<1x64x64xbf16>
      %40 = vector.shape_cast %39 : vector<1x64x64xbf16> to vector<64x64xbf16>
      %cst_37 = arith.constant dense<0.000000e+00> : vector<16x64xf32>
      %41 = tpu.matmul %38, %40, %cst_37 {dimension_numbers = #tpu.dot_dimension_numbers<[1], [0], [0], [1], [0, 0, 1, 1], [], []>} : vector<16x64xbf16>, vector<64x64xbf16>, vector<16x64xf32> -> vector<16x64xf32>
      %42 = arith.addf %34, %41 : vector<16x64xf32>
      %c1_i32_38 = arith.constant 1 : i32
      %43 = arith.addi %arg5, %c1_i32_38 : i32
      %c0_39 = arith.constant 0 : index
      %44 = arith.index_cast %43 : i32 to index
      %c2_40 = arith.constant 2 : index
      %c0_41 = arith.constant 0 : index
      %45 = vector.load %arg1[%c0_39, %44, %c2_40, %c0_41] : memref<1x18x18x64xbf16, #tpu.memory_space<vmem>>, vector<1x1x16x64xbf16>
      %46 = vector.shape_cast %45 : vector<1x1x16x64xbf16> to vector<16x64xbf16>
      %c5 = arith.constant 5 : index
      %c0_42 = arith.constant 0 : index
      %c0_43 = arith.constant 0 : index
      %47 = vector.load %arg2[%c5, %c0_42, %c0_43] : memref<9x64x64xbf16, #tpu.memory_space<vmem>>, vector<1x64x64xbf16>
      %48 = vector.shape_cast %47 : vector<1x64x64xbf16> to vector<64x64xbf16>
      %cst_44 = arith.constant dense<0.000000e+00> : vector<16x64xf32>
      %49 = tpu.matmul %46, %48, %cst_44 {dimension_numbers = #tpu.dot_dimension_numbers<[1], [0], [0], [1], [0, 0, 1, 1], [], []>} : vector<16x64xbf16>, vector<64x64xbf16>, vector<16x64xf32> -> vector<16x64xf32>
      %50 = arith.addf %42, %49 : vector<16x64xf32>
      %c2_i32 = arith.constant 2 : i32
      %51 = arith.addi %arg5, %c2_i32 : i32
      %c0_45 = arith.constant 0 : index
      %52 = arith.index_cast %51 : i32 to index
      %c0_46 = arith.constant 0 : index
      %c0_47 = arith.constant 0 : index
      %53 = vector.load %arg1[%c0_45, %52, %c0_46, %c0_47] : memref<1x18x18x64xbf16, #tpu.memory_space<vmem>>, vector<1x1x16x64xbf16>
      %54 = vector.shape_cast %53 : vector<1x1x16x64xbf16> to vector<16x64xbf16>
      %c6 = arith.constant 6 : index
      %c0_48 = arith.constant 0 : index
      %c0_49 = arith.constant 0 : index
      %55 = vector.load %arg2[%c6, %c0_48, %c0_49] : memref<9x64x64xbf16, #tpu.memory_space<vmem>>, vector<1x64x64xbf16>
      %56 = vector.shape_cast %55 : vector<1x64x64xbf16> to vector<64x64xbf16>
      %cst_50 = arith.constant dense<0.000000e+00> : vector<16x64xf32>
      %57 = tpu.matmul %54, %56, %cst_50 {dimension_numbers = #tpu.dot_dimension_numbers<[1], [0], [0], [1], [0, 0, 1, 1], [], []>} : vector<16x64xbf16>, vector<64x64xbf16>, vector<16x64xf32> -> vector<16x64xf32>
      %58 = arith.addf %50, %57 : vector<16x64xf32>
      %c2_i32_51 = arith.constant 2 : i32
      %59 = arith.addi %arg5, %c2_i32_51 : i32
      %c0_52 = arith.constant 0 : index
      %60 = arith.index_cast %59 : i32 to index
      %c1_53 = arith.constant 1 : index
      %c0_54 = arith.constant 0 : index
      %61 = vector.load %arg1[%c0_52, %60, %c1_53, %c0_54] : memref<1x18x18x64xbf16, #tpu.memory_space<vmem>>, vector<1x1x16x64xbf16>
      %62 = vector.shape_cast %61 : vector<1x1x16x64xbf16> to vector<16x64xbf16>
      %c7 = arith.constant 7 : index
      %c0_55 = arith.constant 0 : index
      %c0_56 = arith.constant 0 : index
      %63 = vector.load %arg2[%c7, %c0_55, %c0_56] : memref<9x64x64xbf16, #tpu.memory_space<vmem>>, vector<1x64x64xbf16>
      %64 = vector.shape_cast %63 : vector<1x64x64xbf16> to vector<64x64xbf16>
      %cst_57 = arith.constant dense<0.000000e+00> : vector<16x64xf32>
      %65 = tpu.matmul %62, %64, %cst_57 {dimension_numbers = #tpu.dot_dimension_numbers<[1], [0], [0], [1], [0, 0, 1, 1], [], []>} : vector<16x64xbf16>, vector<64x64xbf16>, vector<16x64xf32> -> vector<16x64xf32>
      %66 = arith.addf %58, %65 : vector<16x64xf32>
      %c2_i32_58 = arith.constant 2 : i32
      %67 = arith.addi %arg5, %c2_i32_58 : i32
      %c0_59 = arith.constant 0 : index
      %68 = arith.index_cast %67 : i32 to index
      %c2_60 = arith.constant 2 : index
      %c0_61 = arith.constant 0 : index
      %69 = vector.load %arg1[%c0_59, %68, %c2_60, %c0_61] : memref<1x18x18x64xbf16, #tpu.memory_space<vmem>>, vector<1x1x16x64xbf16>
      %70 = vector.shape_cast %69 : vector<1x1x16x64xbf16> to vector<16x64xbf16>
      %c8 = arith.constant 8 : index
      %c0_62 = arith.constant 0 : index
      %c0_63 = arith.constant 0 : index
      %71 = vector.load %arg2[%c8, %c0_62, %c0_63] : memref<9x64x64xbf16, #tpu.memory_space<vmem>>, vector<1x64x64xbf16>
      %72 = vector.shape_cast %71 : vector<1x64x64xbf16> to vector<64x64xbf16>
      %cst_64 = arith.constant dense<0.000000e+00> : vector<16x64xf32>
      %73 = tpu.matmul %70, %72, %cst_64 {dimension_numbers = #tpu.dot_dimension_numbers<[1], [0], [0], [1], [0, 0, 1, 1], [], []>} : vector<16x64xbf16>, vector<64x64xbf16>, vector<16x64xf32> -> vector<16x64xf32>
      %74 = arith.addf %66, %73 : vector<16x64xf32>
      %75 = vector.broadcast %0 : vector<1x64xf32> to vector<16x64xf32>
      %76 = arith.addf %74, %75 : vector<16x64xf32>
      %cst_65 = arith.constant 0.000000e+00 : f32
      %77 = vector.broadcast %cst_65 : f32 to vector<16x64xf32>
      %78 = arith.maximumf %76, %77 : vector<16x64xf32>
      %79 = arith.truncf %78 : vector<16x64xf32> to vector<16x64xbf16>
      %c0_66 = arith.constant 0 : index
      %80 = arith.index_cast %arg5 : i32 to index
      %c0_67 = arith.constant 0 : index
      %c0_68 = arith.constant 0 : index
      %81 = vector.load %arg4[%c0_66, %80, %c0_67, %c0_68] : memref<1x16x16x64xbf16, #tpu.memory_space<vmem>>, vector<1x1x16x64xbf16>
      %82 = vector.shape_cast %81 : vector<1x1x16x64xbf16> to vector<16x64xbf16>
      %83 = vector.shape_cast %79 : vector<16x64xbf16> to vector<1x1x16x64xbf16>
      tpu.vector_store %arg4[%c0_66, %80, %c0_67, %c0_68], %83 {strides = array<i32>} : memref<1x16x16x64xbf16, #tpu.memory_space<vmem>>, vector<1x1x16x64xbf16>,
    }
    %c16_i32_1 = arith.constant 16 : i32
    return
  }
  func.func @transform_0(%arg0: i32) -> (i32, i32, i32, i32) {
    %c0_i32 = arith.constant 0 : i32
    %c0_i32_0 = arith.constant 0 : i32
    %c0_i32_1 = arith.constant 0 : i32
    %c0_i32_2 = arith.constant 0 : i32
    return %arg0, %c0_i32, %c0_i32_0, %c0_i32_1 : i32, i32, i32, i32
  }
  func.func @transform_1(%arg0: i32) -> (i32, i32, i32) {
    %c0_i32 = arith.constant 0 : i32
    %c0_i32_0 = arith.constant 0 : i32
    %c0_i32_1 = arith.constant 0 : i32
    %c0_i32_2 = arith.constant 0 : i32
    return %c0_i32, %c0_i32_0, %c0_i32_1 : i32, i32, i32
  }
  func.func @transform_2(%arg0: i32) -> (i32, i32) {
    %c0_i32 = arith.constant 0 : i32
    %c0_i32_0 = arith.constant 0 : i32
    %c0_i32_1 = arith.constant 0 : i32
    return %c0_i32, %c0_i32_0 : i32, i32
  }
  func.func @transform_3(%arg0: i32) -> (i32, i32, i32, i32) {
    %c0_i32 = arith.constant 0 : i32
    %c0_i32_0 = arith.constant 0 : i32
    %c0_i32_1 = arith.constant 0 : i32
    %c0_i32_2 = arith.constant 0 : i32
    return %arg0, %c0_i32, %c0_i32_0, %c0_i32_1 : i32, i32, i32, i32
  }
}

module attributes {stable_mosaic.version = 11 : i64} {
  func.func @_conv_slab_kernel(%arg0: i32, %arg1: memref<1x10x10x64xbf16, #tpu.memory_space<vmem>>, %arg2: memref<9x64x128xbf16, #tpu.memory_space<vmem>>, %arg3: memref<1x128xf32, #tpu.memory_space<vmem>>, %arg4: memref<1x8x8x128xbf16, #tpu.memory_space<vmem>>) attributes {dimension_semantics = [#tpu.dimension_semantics<parallel>], iteration_bounds = array<i64: 4>, scalar_prefetch = 0 : i64, scratch_operands = 0 : i64, tpu.core_type = #tpu.core_type<tc>, window_params = [{transform_indices = @transform_0, window_bounds = array<i64: 1, 10, 10, 64>}, {pipeline_mode = #tpu.pipeline_mode<synchronous>, transform_indices = @transform_1, window_bounds = array<i64: 9, 64, 128>}, {pipeline_mode = #tpu.pipeline_mode<synchronous>, transform_indices = @transform_2, window_bounds = array<i64: 1, 128>}, {transform_indices = @transform_3, window_bounds = array<i64: 1, 8, 8, 128>}]} {
    %c0 = arith.constant 0 : index
    %c0_0 = arith.constant 0 : index
    %0 = vector.load %arg3[%c0, %c0_0] : memref<1x128xf32, #tpu.memory_space<vmem>>, vector<1x128xf32>
    %c0_i32 = arith.constant 0 : i32
    %c8_i32 = arith.constant 8 : i32
    %1 = arith.addi %c0_i32, %c8_i32 : i32
    %c1_i32 = arith.constant 1 : i32
    scf.for %arg5 = %c0_i32 to %1 step %c1_i32  : i32 {
      %cst = arith.constant 0.000000e+00 : f32
      %2 = vector.broadcast %cst : f32 to vector<8x128xf32>
      %c0_i32_2 = arith.constant 0 : i32
      %3 = arith.addi %arg5, %c0_i32_2 : i32
      %c0_3 = arith.constant 0 : index
      %4 = arith.index_cast %3 : i32 to index
      %c0_4 = arith.constant 0 : index
      %c0_5 = arith.constant 0 : index
      %5 = vector.load %arg1[%c0_3, %4, %c0_4, %c0_5] : memref<1x10x10x64xbf16, #tpu.memory_space<vmem>>, vector<1x1x8x64xbf16>
      %6 = vector.shape_cast %5 : vector<1x1x8x64xbf16> to vector<8x64xbf16>
      %c0_6 = arith.constant 0 : index
      %c0_7 = arith.constant 0 : index
      %c0_8 = arith.constant 0 : index
      %7 = vector.load %arg2[%c0_6, %c0_7, %c0_8] : memref<9x64x128xbf16, #tpu.memory_space<vmem>>, vector<1x64x128xbf16>
      %8 = vector.shape_cast %7 : vector<1x64x128xbf16> to vector<64x128xbf16>
      %cst_9 = arith.constant dense<0.000000e+00> : vector<8x128xf32>
      %9 = tpu.matmul %6, %8, %cst_9 {dimension_numbers = #tpu.dot_dimension_numbers<[1], [0], [0], [1], [0, 0, 1, 1], [], []>} : vector<8x64xbf16>, vector<64x128xbf16>, vector<8x128xf32> -> vector<8x128xf32>
      %10 = arith.addf %2, %9 : vector<8x128xf32>
      %c0_i32_10 = arith.constant 0 : i32
      %11 = arith.addi %arg5, %c0_i32_10 : i32
      %c0_11 = arith.constant 0 : index
      %12 = arith.index_cast %11 : i32 to index
      %c1 = arith.constant 1 : index
      %c0_12 = arith.constant 0 : index
      %13 = vector.load %arg1[%c0_11, %12, %c1, %c0_12] : memref<1x10x10x64xbf16, #tpu.memory_space<vmem>>, vector<1x1x8x64xbf16>
      %14 = vector.shape_cast %13 : vector<1x1x8x64xbf16> to vector<8x64xbf16>
      %c1_13 = arith.constant 1 : index
      %c0_14 = arith.constant 0 : index
      %c0_15 = arith.constant 0 : index
      %15 = vector.load %arg2[%c1_13, %c0_14, %c0_15] : memref<9x64x128xbf16, #tpu.memory_space<vmem>>, vector<1x64x128xbf16>
      %16 = vector.shape_cast %15 : vector<1x64x128xbf16> to vector<64x128xbf16>
      %cst_16 = arith.constant dense<0.000000e+00> : vector<8x128xf32>
      %17 = tpu.matmul %14, %16, %cst_16 {dimension_numbers = #tpu.dot_dimension_numbers<[1], [0], [0], [1], [0, 0, 1, 1], [], []>} : vector<8x64xbf16>, vector<64x128xbf16>, vector<8x128xf32> -> vector<8x128xf32>
      %18 = arith.addf %10, %17 : vector<8x128xf32>
      %c0_i32_17 = arith.constant 0 : i32
      %19 = arith.addi %arg5, %c0_i32_17 : i32
      %c0_18 = arith.constant 0 : index
      %20 = arith.index_cast %19 : i32 to index
      %c2 = arith.constant 2 : index
      %c0_19 = arith.constant 0 : index
      %21 = vector.load %arg1[%c0_18, %20, %c2, %c0_19] : memref<1x10x10x64xbf16, #tpu.memory_space<vmem>>, vector<1x1x8x64xbf16>
      %22 = vector.shape_cast %21 : vector<1x1x8x64xbf16> to vector<8x64xbf16>
      %c2_20 = arith.constant 2 : index
      %c0_21 = arith.constant 0 : index
      %c0_22 = arith.constant 0 : index
      %23 = vector.load %arg2[%c2_20, %c0_21, %c0_22] : memref<9x64x128xbf16, #tpu.memory_space<vmem>>, vector<1x64x128xbf16>
      %24 = vector.shape_cast %23 : vector<1x64x128xbf16> to vector<64x128xbf16>
      %cst_23 = arith.constant dense<0.000000e+00> : vector<8x128xf32>
      %25 = tpu.matmul %22, %24, %cst_23 {dimension_numbers = #tpu.dot_dimension_numbers<[1], [0], [0], [1], [0, 0, 1, 1], [], []>} : vector<8x64xbf16>, vector<64x128xbf16>, vector<8x128xf32> -> vector<8x128xf32>
      %26 = arith.addf %18, %25 : vector<8x128xf32>
      %c1_i32_24 = arith.constant 1 : i32
      %27 = arith.addi %arg5, %c1_i32_24 : i32
      %c0_25 = arith.constant 0 : index
      %28 = arith.index_cast %27 : i32 to index
      %c0_26 = arith.constant 0 : index
      %c0_27 = arith.constant 0 : index
      %29 = vector.load %arg1[%c0_25, %28, %c0_26, %c0_27] : memref<1x10x10x64xbf16, #tpu.memory_space<vmem>>, vector<1x1x8x64xbf16>
      %30 = vector.shape_cast %29 : vector<1x1x8x64xbf16> to vector<8x64xbf16>
      %c3 = arith.constant 3 : index
      %c0_28 = arith.constant 0 : index
      %c0_29 = arith.constant 0 : index
      %31 = vector.load %arg2[%c3, %c0_28, %c0_29] : memref<9x64x128xbf16, #tpu.memory_space<vmem>>, vector<1x64x128xbf16>
      %32 = vector.shape_cast %31 : vector<1x64x128xbf16> to vector<64x128xbf16>
      %cst_30 = arith.constant dense<0.000000e+00> : vector<8x128xf32>
      %33 = tpu.matmul %30, %32, %cst_30 {dimension_numbers = #tpu.dot_dimension_numbers<[1], [0], [0], [1], [0, 0, 1, 1], [], []>} : vector<8x64xbf16>, vector<64x128xbf16>, vector<8x128xf32> -> vector<8x128xf32>
      %34 = arith.addf %26, %33 : vector<8x128xf32>
      %c1_i32_31 = arith.constant 1 : i32
      %35 = arith.addi %arg5, %c1_i32_31 : i32
      %c0_32 = arith.constant 0 : index
      %36 = arith.index_cast %35 : i32 to index
      %c1_33 = arith.constant 1 : index
      %c0_34 = arith.constant 0 : index
      %37 = vector.load %arg1[%c0_32, %36, %c1_33, %c0_34] : memref<1x10x10x64xbf16, #tpu.memory_space<vmem>>, vector<1x1x8x64xbf16>
      %38 = vector.shape_cast %37 : vector<1x1x8x64xbf16> to vector<8x64xbf16>
      %c4 = arith.constant 4 : index
      %c0_35 = arith.constant 0 : index
      %c0_36 = arith.constant 0 : index
      %39 = vector.load %arg2[%c4, %c0_35, %c0_36] : memref<9x64x128xbf16, #tpu.memory_space<vmem>>, vector<1x64x128xbf16>
      %40 = vector.shape_cast %39 : vector<1x64x128xbf16> to vector<64x128xbf16>
      %cst_37 = arith.constant dense<0.000000e+00> : vector<8x128xf32>
      %41 = tpu.matmul %38, %40, %cst_37 {dimension_numbers = #tpu.dot_dimension_numbers<[1], [0], [0], [1], [0, 0, 1, 1], [], []>} : vector<8x64xbf16>, vector<64x128xbf16>, vector<8x128xf32> -> vector<8x128xf32>
      %42 = arith.addf %34, %41 : vector<8x128xf32>
      %c1_i32_38 = arith.constant 1 : i32
      %43 = arith.addi %arg5, %c1_i32_38 : i32
      %c0_39 = arith.constant 0 : index
      %44 = arith.index_cast %43 : i32 to index
      %c2_40 = arith.constant 2 : index
      %c0_41 = arith.constant 0 : index
      %45 = vector.load %arg1[%c0_39, %44, %c2_40, %c0_41] : memref<1x10x10x64xbf16, #tpu.memory_space<vmem>>, vector<1x1x8x64xbf16>
      %46 = vector.shape_cast %45 : vector<1x1x8x64xbf16> to vector<8x64xbf16>
      %c5 = arith.constant 5 : index
      %c0_42 = arith.constant 0 : index
      %c0_43 = arith.constant 0 : index
      %47 = vector.load %arg2[%c5, %c0_42, %c0_43] : memref<9x64x128xbf16, #tpu.memory_space<vmem>>, vector<1x64x128xbf16>
      %48 = vector.shape_cast %47 : vector<1x64x128xbf16> to vector<64x128xbf16>
      %cst_44 = arith.constant dense<0.000000e+00> : vector<8x128xf32>
      %49 = tpu.matmul %46, %48, %cst_44 {dimension_numbers = #tpu.dot_dimension_numbers<[1], [0], [0], [1], [0, 0, 1, 1], [], []>} : vector<8x64xbf16>, vector<64x128xbf16>, vector<8x128xf32> -> vector<8x128xf32>
      %50 = arith.addf %42, %49 : vector<8x128xf32>
      %c2_i32 = arith.constant 2 : i32
      %51 = arith.addi %arg5, %c2_i32 : i32
      %c0_45 = arith.constant 0 : index
      %52 = arith.index_cast %51 : i32 to index
      %c0_46 = arith.constant 0 : index
      %c0_47 = arith.constant 0 : index
      %53 = vector.load %arg1[%c0_45, %52, %c0_46, %c0_47] : memref<1x10x10x64xbf16, #tpu.memory_space<vmem>>, vector<1x1x8x64xbf16>
      %54 = vector.shape_cast %53 : vector<1x1x8x64xbf16> to vector<8x64xbf16>
      %c6 = arith.constant 6 : index
      %c0_48 = arith.constant 0 : index
      %c0_49 = arith.constant 0 : index
      %55 = vector.load %arg2[%c6, %c0_48, %c0_49] : memref<9x64x128xbf16, #tpu.memory_space<vmem>>, vector<1x64x128xbf16>
      %56 = vector.shape_cast %55 : vector<1x64x128xbf16> to vector<64x128xbf16>
      %cst_50 = arith.constant dense<0.000000e+00> : vector<8x128xf32>
      %57 = tpu.matmul %54, %56, %cst_50 {dimension_numbers = #tpu.dot_dimension_numbers<[1], [0], [0], [1], [0, 0, 1, 1], [], []>} : vector<8x64xbf16>, vector<64x128xbf16>, vector<8x128xf32> -> vector<8x128xf32>
      %58 = arith.addf %50, %57 : vector<8x128xf32>
      %c2_i32_51 = arith.constant 2 : i32
      %59 = arith.addi %arg5, %c2_i32_51 : i32
      %c0_52 = arith.constant 0 : index
      %60 = arith.index_cast %59 : i32 to index
      %c1_53 = arith.constant 1 : index
      %c0_54 = arith.constant 0 : index
      %61 = vector.load %arg1[%c0_52, %60, %c1_53, %c0_54] : memref<1x10x10x64xbf16, #tpu.memory_space<vmem>>, vector<1x1x8x64xbf16>
      %62 = vector.shape_cast %61 : vector<1x1x8x64xbf16> to vector<8x64xbf16>
      %c7 = arith.constant 7 : index
      %c0_55 = arith.constant 0 : index
      %c0_56 = arith.constant 0 : index
      %63 = vector.load %arg2[%c7, %c0_55, %c0_56] : memref<9x64x128xbf16, #tpu.memory_space<vmem>>, vector<1x64x128xbf16>
      %64 = vector.shape_cast %63 : vector<1x64x128xbf16> to vector<64x128xbf16>
      %cst_57 = arith.constant dense<0.000000e+00> : vector<8x128xf32>
      %65 = tpu.matmul %62, %64, %cst_57 {dimension_numbers = #tpu.dot_dimension_numbers<[1], [0], [0], [1], [0, 0, 1, 1], [], []>} : vector<8x64xbf16>, vector<64x128xbf16>, vector<8x128xf32> -> vector<8x128xf32>
      %66 = arith.addf %58, %65 : vector<8x128xf32>
      %c2_i32_58 = arith.constant 2 : i32
      %67 = arith.addi %arg5, %c2_i32_58 : i32
      %c0_59 = arith.constant 0 : index
      %68 = arith.index_cast %67 : i32 to index
      %c2_60 = arith.constant 2 : index
      %c0_61 = arith.constant 0 : index
      %69 = vector.load %arg1[%c0_59, %68, %c2_60, %c0_61] : memref<1x10x10x64xbf16, #tpu.memory_space<vmem>>, vector<1x1x8x64xbf16>
      %70 = vector.shape_cast %69 : vector<1x1x8x64xbf16> to vector<8x64xbf16>
      %c8 = arith.constant 8 : index
      %c0_62 = arith.constant 0 : index
      %c0_63 = arith.constant 0 : index
      %71 = vector.load %arg2[%c8, %c0_62, %c0_63] : memref<9x64x128xbf16, #tpu.memory_space<vmem>>, vector<1x64x128xbf16>
      %72 = vector.shape_cast %71 : vector<1x64x128xbf16> to vector<64x128xbf16>
      %cst_64 = arith.constant dense<0.000000e+00> : vector<8x128xf32>
      %73 = tpu.matmul %70, %72, %cst_64 {dimension_numbers = #tpu.dot_dimension_numbers<[1], [0], [0], [1], [0, 0, 1, 1], [], []>} : vector<8x64xbf16>, vector<64x128xbf16>, vector<8x128xf32> -> vector<8x128xf32>
      %74 = arith.addf %66, %73 : vector<8x128xf32>
      %75 = vector.broadcast %0 : vector<1x128xf32> to vector<8x128xf32>
      %76 = arith.addf %74, %75 : vector<8x128xf32>
      %cst_65 = arith.constant 0.000000e+00 : f32
      %77 = vector.broadcast %cst_65 : f32 to vector<8x128xf32>
      %78 = arith.maximumf %76, %77 : vector<8x128xf32>
      %79 = arith.truncf %78 : vector<8x128xf32> to vector<8x128xbf16>
      %c0_66 = arith.constant 0 : index
      %80 = arith.index_cast %arg5 : i32 to index
      %c0_67 = arith.constant 0 : index
      %c0_68 = arith.constant 0 : index
      %81 = vector.load %arg4[%c0_66, %80, %c0_67, %c0_68] : memref<1x8x8x128xbf16, #tpu.memory_space<vmem>>, vector<1x1x8x128xbf16>
      %82 = vector.shape_cast %81 : vector<1x1x8x128xbf16> to vector<8x128xbf16>
      %83 = vector.shape_cast %79 : vector<8x128xbf16> to vector<1x1x8x128xbf16>
      tpu.vector_store %arg4[%c0_66, %80, %c0_67, %c0_68], %83 {strides = array<i32>} : memref<1x8x8x128xbf16, #tpu.memory_space<vmem>>, vector<1x1x8x128xbf16>,
    }
    %c8_i32_1 = arith.constant 8 : i32
    return
  }
  func.func @transform_0(%arg0: i32) -> (i32, i32, i32, i32) {
    %c0_i32 = arith.constant 0 : i32
    %c0_i32_0 = arith.constant 0 : i32
    %c0_i32_1 = arith.constant 0 : i32
    %c0_i32_2 = arith.constant 0 : i32
    return %arg0, %c0_i32, %c0_i32_0, %c0_i32_1 : i32, i32, i32, i32
  }
  func.func @transform_1(%arg0: i32) -> (i32, i32, i32) {
    %c0_i32 = arith.constant 0 : i32
    %c0_i32_0 = arith.constant 0 : i32
    %c0_i32_1 = arith.constant 0 : i32
    %c0_i32_2 = arith.constant 0 : i32
    return %c0_i32, %c0_i32_0, %c0_i32_1 : i32, i32, i32
  }
  func.func @transform_2(%arg0: i32) -> (i32, i32) {
    %c0_i32 = arith.constant 0 : i32
    %c0_i32_0 = arith.constant 0 : i32
    %c0_i32_1 = arith.constant 0 : i32
    return %c0_i32, %c0_i32_0 : i32, i32
  }
  func.func @transform_3(%arg0: i32) -> (i32, i32, i32, i32) {
    %c0_i32 = arith.constant 0 : i32
    %c0_i32_0 = arith.constant 0 : i32
    %c0_i32_1 = arith.constant 0 : i32
    %c0_i32_2 = arith.constant 0 : i32
    return %arg0, %c0_i32, %c0_i32_0, %c0_i32_1 : i32, i32, i32, i32
  }
}

module attributes {stable_mosaic.version = 11 : i64} {
  func.func @_conv_slab_kernel(%arg0: i32, %arg1: memref<1x10x10x128xbf16, #tpu.memory_space<vmem>>, %arg2: memref<9x128x128xbf16, #tpu.memory_space<vmem>>, %arg3: memref<1x128xf32, #tpu.memory_space<vmem>>, %arg4: memref<1x8x8x128xbf16, #tpu.memory_space<vmem>>) attributes {dimension_semantics = [#tpu.dimension_semantics<parallel>], iteration_bounds = array<i64: 4>, scalar_prefetch = 0 : i64, scratch_operands = 0 : i64, tpu.core_type = #tpu.core_type<tc>, window_params = [{transform_indices = @transform_0, window_bounds = array<i64: 1, 10, 10, 128>}, {pipeline_mode = #tpu.pipeline_mode<synchronous>, transform_indices = @transform_1, window_bounds = array<i64: 9, 128, 128>}, {pipeline_mode = #tpu.pipeline_mode<synchronous>, transform_indices = @transform_2, window_bounds = array<i64: 1, 128>}, {transform_indices = @transform_3, window_bounds = array<i64: 1, 8, 8, 128>}]} {
    %c0 = arith.constant 0 : index
    %c0_0 = arith.constant 0 : index
    %0 = vector.load %arg3[%c0, %c0_0] : memref<1x128xf32, #tpu.memory_space<vmem>>, vector<1x128xf32>
    %c0_i32 = arith.constant 0 : i32
    %c8_i32 = arith.constant 8 : i32
    %1 = arith.addi %c0_i32, %c8_i32 : i32
    %c1_i32 = arith.constant 1 : i32
    scf.for %arg5 = %c0_i32 to %1 step %c1_i32  : i32 {
      %cst = arith.constant 0.000000e+00 : f32
      %2 = vector.broadcast %cst : f32 to vector<8x128xf32>
      %c0_i32_2 = arith.constant 0 : i32
      %3 = arith.addi %arg5, %c0_i32_2 : i32
      %c0_3 = arith.constant 0 : index
      %4 = arith.index_cast %3 : i32 to index
      %c0_4 = arith.constant 0 : index
      %c0_5 = arith.constant 0 : index
      %5 = vector.load %arg1[%c0_3, %4, %c0_4, %c0_5] : memref<1x10x10x128xbf16, #tpu.memory_space<vmem>>, vector<1x1x8x128xbf16>
      %6 = vector.shape_cast %5 : vector<1x1x8x128xbf16> to vector<8x128xbf16>
      %c0_6 = arith.constant 0 : index
      %c0_7 = arith.constant 0 : index
      %c0_8 = arith.constant 0 : index
      %7 = vector.load %arg2[%c0_6, %c0_7, %c0_8] : memref<9x128x128xbf16, #tpu.memory_space<vmem>>, vector<1x128x128xbf16>
      %8 = vector.shape_cast %7 : vector<1x128x128xbf16> to vector<128x128xbf16>
      %cst_9 = arith.constant dense<0.000000e+00> : vector<8x128xf32>
      %9 = tpu.matmul %6, %8, %cst_9 {dimension_numbers = #tpu.dot_dimension_numbers<[1], [0], [0], [1], [0, 0, 1, 1], [], []>} : vector<8x128xbf16>, vector<128x128xbf16>, vector<8x128xf32> -> vector<8x128xf32>
      %10 = arith.addf %2, %9 : vector<8x128xf32>
      %c0_i32_10 = arith.constant 0 : i32
      %11 = arith.addi %arg5, %c0_i32_10 : i32
      %c0_11 = arith.constant 0 : index
      %12 = arith.index_cast %11 : i32 to index
      %c1 = arith.constant 1 : index
      %c0_12 = arith.constant 0 : index
      %13 = vector.load %arg1[%c0_11, %12, %c1, %c0_12] : memref<1x10x10x128xbf16, #tpu.memory_space<vmem>>, vector<1x1x8x128xbf16>
      %14 = vector.shape_cast %13 : vector<1x1x8x128xbf16> to vector<8x128xbf16>
      %c1_13 = arith.constant 1 : index
      %c0_14 = arith.constant 0 : index
      %c0_15 = arith.constant 0 : index
      %15 = vector.load %arg2[%c1_13, %c0_14, %c0_15] : memref<9x128x128xbf16, #tpu.memory_space<vmem>>, vector<1x128x128xbf16>
      %16 = vector.shape_cast %15 : vector<1x128x128xbf16> to vector<128x128xbf16>
      %cst_16 = arith.constant dense<0.000000e+00> : vector<8x128xf32>
      %17 = tpu.matmul %14, %16, %cst_16 {dimension_numbers = #tpu.dot_dimension_numbers<[1], [0], [0], [1], [0, 0, 1, 1], [], []>} : vector<8x128xbf16>, vector<128x128xbf16>, vector<8x128xf32> -> vector<8x128xf32>
      %18 = arith.addf %10, %17 : vector<8x128xf32>
      %c0_i32_17 = arith.constant 0 : i32
      %19 = arith.addi %arg5, %c0_i32_17 : i32
      %c0_18 = arith.constant 0 : index
      %20 = arith.index_cast %19 : i32 to index
      %c2 = arith.constant 2 : index
      %c0_19 = arith.constant 0 : index
      %21 = vector.load %arg1[%c0_18, %20, %c2, %c0_19] : memref<1x10x10x128xbf16, #tpu.memory_space<vmem>>, vector<1x1x8x128xbf16>
      %22 = vector.shape_cast %21 : vector<1x1x8x128xbf16> to vector<8x128xbf16>
      %c2_20 = arith.constant 2 : index
      %c0_21 = arith.constant 0 : index
      %c0_22 = arith.constant 0 : index
      %23 = vector.load %arg2[%c2_20, %c0_21, %c0_22] : memref<9x128x128xbf16, #tpu.memory_space<vmem>>, vector<1x128x128xbf16>
      %24 = vector.shape_cast %23 : vector<1x128x128xbf16> to vector<128x128xbf16>
      %cst_23 = arith.constant dense<0.000000e+00> : vector<8x128xf32>
      %25 = tpu.matmul %22, %24, %cst_23 {dimension_numbers = #tpu.dot_dimension_numbers<[1], [0], [0], [1], [0, 0, 1, 1], [], []>} : vector<8x128xbf16>, vector<128x128xbf16>, vector<8x128xf32> -> vector<8x128xf32>
      %26 = arith.addf %18, %25 : vector<8x128xf32>
      %c1_i32_24 = arith.constant 1 : i32
      %27 = arith.addi %arg5, %c1_i32_24 : i32
      %c0_25 = arith.constant 0 : index
      %28 = arith.index_cast %27 : i32 to index
      %c0_26 = arith.constant 0 : index
      %c0_27 = arith.constant 0 : index
      %29 = vector.load %arg1[%c0_25, %28, %c0_26, %c0_27] : memref<1x10x10x128xbf16, #tpu.memory_space<vmem>>, vector<1x1x8x128xbf16>
      %30 = vector.shape_cast %29 : vector<1x1x8x128xbf16> to vector<8x128xbf16>
      %c3 = arith.constant 3 : index
      %c0_28 = arith.constant 0 : index
      %c0_29 = arith.constant 0 : index
      %31 = vector.load %arg2[%c3, %c0_28, %c0_29] : memref<9x128x128xbf16, #tpu.memory_space<vmem>>, vector<1x128x128xbf16>
      %32 = vector.shape_cast %31 : vector<1x128x128xbf16> to vector<128x128xbf16>
      %cst_30 = arith.constant dense<0.000000e+00> : vector<8x128xf32>
      %33 = tpu.matmul %30, %32, %cst_30 {dimension_numbers = #tpu.dot_dimension_numbers<[1], [0], [0], [1], [0, 0, 1, 1], [], []>} : vector<8x128xbf16>, vector<128x128xbf16>, vector<8x128xf32> -> vector<8x128xf32>
      %34 = arith.addf %26, %33 : vector<8x128xf32>
      %c1_i32_31 = arith.constant 1 : i32
      %35 = arith.addi %arg5, %c1_i32_31 : i32
      %c0_32 = arith.constant 0 : index
      %36 = arith.index_cast %35 : i32 to index
      %c1_33 = arith.constant 1 : index
      %c0_34 = arith.constant 0 : index
      %37 = vector.load %arg1[%c0_32, %36, %c1_33, %c0_34] : memref<1x10x10x128xbf16, #tpu.memory_space<vmem>>, vector<1x1x8x128xbf16>
      %38 = vector.shape_cast %37 : vector<1x1x8x128xbf16> to vector<8x128xbf16>
      %c4 = arith.constant 4 : index
      %c0_35 = arith.constant 0 : index
      %c0_36 = arith.constant 0 : index
      %39 = vector.load %arg2[%c4, %c0_35, %c0_36] : memref<9x128x128xbf16, #tpu.memory_space<vmem>>, vector<1x128x128xbf16>
      %40 = vector.shape_cast %39 : vector<1x128x128xbf16> to vector<128x128xbf16>
      %cst_37 = arith.constant dense<0.000000e+00> : vector<8x128xf32>
      %41 = tpu.matmul %38, %40, %cst_37 {dimension_numbers = #tpu.dot_dimension_numbers<[1], [0], [0], [1], [0, 0, 1, 1], [], []>} : vector<8x128xbf16>, vector<128x128xbf16>, vector<8x128xf32> -> vector<8x128xf32>
      %42 = arith.addf %34, %41 : vector<8x128xf32>
      %c1_i32_38 = arith.constant 1 : i32
      %43 = arith.addi %arg5, %c1_i32_38 : i32
      %c0_39 = arith.constant 0 : index
      %44 = arith.index_cast %43 : i32 to index
      %c2_40 = arith.constant 2 : index
      %c0_41 = arith.constant 0 : index
      %45 = vector.load %arg1[%c0_39, %44, %c2_40, %c0_41] : memref<1x10x10x128xbf16, #tpu.memory_space<vmem>>, vector<1x1x8x128xbf16>
      %46 = vector.shape_cast %45 : vector<1x1x8x128xbf16> to vector<8x128xbf16>
      %c5 = arith.constant 5 : index
      %c0_42 = arith.constant 0 : index
      %c0_43 = arith.constant 0 : index
      %47 = vector.load %arg2[%c5, %c0_42, %c0_43] : memref<9x128x128xbf16, #tpu.memory_space<vmem>>, vector<1x128x128xbf16>
      %48 = vector.shape_cast %47 : vector<1x128x128xbf16> to vector<128x128xbf16>
      %cst_44 = arith.constant dense<0.000000e+00> : vector<8x128xf32>
      %49 = tpu.matmul %46, %48, %cst_44 {dimension_numbers = #tpu.dot_dimension_numbers<[1], [0], [0], [1], [0, 0, 1, 1], [], []>} : vector<8x128xbf16>, vector<128x128xbf16>, vector<8x128xf32> -> vector<8x128xf32>
      %50 = arith.addf %42, %49 : vector<8x128xf32>
      %c2_i32 = arith.constant 2 : i32
      %51 = arith.addi %arg5, %c2_i32 : i32
      %c0_45 = arith.constant 0 : index
      %52 = arith.index_cast %51 : i32 to index
      %c0_46 = arith.constant 0 : index
      %c0_47 = arith.constant 0 : index
      %53 = vector.load %arg1[%c0_45, %52, %c0_46, %c0_47] : memref<1x10x10x128xbf16, #tpu.memory_space<vmem>>, vector<1x1x8x128xbf16>
      %54 = vector.shape_cast %53 : vector<1x1x8x128xbf16> to vector<8x128xbf16>
      %c6 = arith.constant 6 : index
      %c0_48 = arith.constant 0 : index
      %c0_49 = arith.constant 0 : index
      %55 = vector.load %arg2[%c6, %c0_48, %c0_49] : memref<9x128x128xbf16, #tpu.memory_space<vmem>>, vector<1x128x128xbf16>
      %56 = vector.shape_cast %55 : vector<1x128x128xbf16> to vector<128x128xbf16>
      %cst_50 = arith.constant dense<0.000000e+00> : vector<8x128xf32>
      %57 = tpu.matmul %54, %56, %cst_50 {dimension_numbers = #tpu.dot_dimension_numbers<[1], [0], [0], [1], [0, 0, 1, 1], [], []>} : vector<8x128xbf16>, vector<128x128xbf16>, vector<8x128xf32> -> vector<8x128xf32>
      %58 = arith.addf %50, %57 : vector<8x128xf32>
      %c2_i32_51 = arith.constant 2 : i32
      %59 = arith.addi %arg5, %c2_i32_51 : i32
      %c0_52 = arith.constant 0 : index
      %60 = arith.index_cast %59 : i32 to index
      %c1_53 = arith.constant 1 : index
      %c0_54 = arith.constant 0 : index
      %61 = vector.load %arg1[%c0_52, %60, %c1_53, %c0_54] : memref<1x10x10x128xbf16, #tpu.memory_space<vmem>>, vector<1x1x8x128xbf16>
      %62 = vector.shape_cast %61 : vector<1x1x8x128xbf16> to vector<8x128xbf16>
      %c7 = arith.constant 7 : index
      %c0_55 = arith.constant 0 : index
      %c0_56 = arith.constant 0 : index
      %63 = vector.load %arg2[%c7, %c0_55, %c0_56] : memref<9x128x128xbf16, #tpu.memory_space<vmem>>, vector<1x128x128xbf16>
      %64 = vector.shape_cast %63 : vector<1x128x128xbf16> to vector<128x128xbf16>
      %cst_57 = arith.constant dense<0.000000e+00> : vector<8x128xf32>
      %65 = tpu.matmul %62, %64, %cst_57 {dimension_numbers = #tpu.dot_dimension_numbers<[1], [0], [0], [1], [0, 0, 1, 1], [], []>} : vector<8x128xbf16>, vector<128x128xbf16>, vector<8x128xf32> -> vector<8x128xf32>
      %66 = arith.addf %58, %65 : vector<8x128xf32>
      %c2_i32_58 = arith.constant 2 : i32
      %67 = arith.addi %arg5, %c2_i32_58 : i32
      %c0_59 = arith.constant 0 : index
      %68 = arith.index_cast %67 : i32 to index
      %c2_60 = arith.constant 2 : index
      %c0_61 = arith.constant 0 : index
      %69 = vector.load %arg1[%c0_59, %68, %c2_60, %c0_61] : memref<1x10x10x128xbf16, #tpu.memory_space<vmem>>, vector<1x1x8x128xbf16>
      %70 = vector.shape_cast %69 : vector<1x1x8x128xbf16> to vector<8x128xbf16>
      %c8 = arith.constant 8 : index
      %c0_62 = arith.constant 0 : index
      %c0_63 = arith.constant 0 : index
      %71 = vector.load %arg2[%c8, %c0_62, %c0_63] : memref<9x128x128xbf16, #tpu.memory_space<vmem>>, vector<1x128x128xbf16>
      %72 = vector.shape_cast %71 : vector<1x128x128xbf16> to vector<128x128xbf16>
      %cst_64 = arith.constant dense<0.000000e+00> : vector<8x128xf32>
      %73 = tpu.matmul %70, %72, %cst_64 {dimension_numbers = #tpu.dot_dimension_numbers<[1], [0], [0], [1], [0, 0, 1, 1], [], []>} : vector<8x128xbf16>, vector<128x128xbf16>, vector<8x128xf32> -> vector<8x128xf32>
      %74 = arith.addf %66, %73 : vector<8x128xf32>
      %75 = vector.broadcast %0 : vector<1x128xf32> to vector<8x128xf32>
      %76 = arith.addf %74, %75 : vector<8x128xf32>
      %cst_65 = arith.constant 0.000000e+00 : f32
      %77 = vector.broadcast %cst_65 : f32 to vector<8x128xf32>
      %78 = arith.maximumf %76, %77 : vector<8x128xf32>
      %79 = arith.truncf %78 : vector<8x128xf32> to vector<8x128xbf16>
      %c0_66 = arith.constant 0 : index
      %80 = arith.index_cast %arg5 : i32 to index
      %c0_67 = arith.constant 0 : index
      %c0_68 = arith.constant 0 : index
      %81 = vector.load %arg4[%c0_66, %80, %c0_67, %c0_68] : memref<1x8x8x128xbf16, #tpu.memory_space<vmem>>, vector<1x1x8x128xbf16>
      %82 = vector.shape_cast %81 : vector<1x1x8x128xbf16> to vector<8x128xbf16>
      %83 = vector.shape_cast %79 : vector<8x128xbf16> to vector<1x1x8x128xbf16>
      tpu.vector_store %arg4[%c0_66, %80, %c0_67, %c0_68], %83 {strides = array<i32>} : memref<1x8x8x128xbf16, #tpu.memory_space<vmem>>, vector<1x1x8x128xbf16>,
    }
    %c8_i32_1 = arith.constant 8 : i32
    return
  }
  func.func @transform_0(%arg0: i32) -> (i32, i32, i32, i32) {
    %c0_i32 = arith.constant 0 : i32
    %c0_i32_0 = arith.constant 0 : i32
    %c0_i32_1 = arith.constant 0 : i32
    %c0_i32_2 = arith.constant 0 : i32
    return %arg0, %c0_i32, %c0_i32_0, %c0_i32_1 : i32, i32, i32, i32
  }
  func.func @transform_1(%arg0: i32) -> (i32, i32, i32) {
    %c0_i32 = arith.constant 0 : i32
    %c0_i32_0 = arith.constant 0 : i32
    %c0_i32_1 = arith.constant 0 : i32
    %c0_i32_2 = arith.constant 0 : i32
    return %c0_i32, %c0_i32_0, %c0_i32_1 : i32, i32, i32
  }
  func.func @transform_2(%arg0: i32) -> (i32, i32) {
    %c0_i32 = arith.constant 0 : i32
    %c0_i32_0 = arith.constant 0 : i32
    %c0_i32_1 = arith.constant 0 : i32
    return %c0_i32, %c0_i32_0 : i32, i32
  }
  func.func @transform_3(%arg0: i32) -> (i32, i32, i32, i32) {
    %c0_i32 = arith.constant 0 : i32
    %c0_i32_0 = arith.constant 0 : i32
    %c0_i32_1 = arith.constant 0 : i32
    %c0_i32_2 = arith.constant 0 : i32
    return %arg0, %c0_i32, %c0_i32_0, %c0_i32_1 : i32, i32, i32, i32
  }
}

module attributes {stable_mosaic.version = 11 : i64} {
  func.func @_conv_slab_kernel(%arg0: i32, %arg1: memref<1x6x6x128xbf16, #tpu.memory_space<vmem>>, %arg2: memref<9x128x256xbf16, #tpu.memory_space<vmem>>, %arg3: memref<1x256xf32, #tpu.memory_space<vmem>>, %arg4: memref<1x4x4x256xbf16, #tpu.memory_space<vmem>>) attributes {dimension_semantics = [#tpu.dimension_semantics<parallel>], iteration_bounds = array<i64: 4>, scalar_prefetch = 0 : i64, scratch_operands = 0 : i64, tpu.core_type = #tpu.core_type<tc>, window_params = [{transform_indices = @transform_0, window_bounds = array<i64: 1, 6, 6, 128>}, {pipeline_mode = #tpu.pipeline_mode<synchronous>, transform_indices = @transform_1, window_bounds = array<i64: 9, 128, 256>}, {pipeline_mode = #tpu.pipeline_mode<synchronous>, transform_indices = @transform_2, window_bounds = array<i64: 1, 256>}, {transform_indices = @transform_3, window_bounds = array<i64: 1, 4, 4, 256>}]} {
    %c0 = arith.constant 0 : index
    %c0_0 = arith.constant 0 : index
    %0 = vector.load %arg3[%c0, %c0_0] : memref<1x256xf32, #tpu.memory_space<vmem>>, vector<1x256xf32>
    %c0_i32 = arith.constant 0 : i32
    %c4_i32 = arith.constant 4 : i32
    %1 = arith.addi %c0_i32, %c4_i32 : i32
    %c1_i32 = arith.constant 1 : i32
    scf.for %arg5 = %c0_i32 to %1 step %c1_i32  : i32 {
      %cst = arith.constant 0.000000e+00 : f32
      %2 = vector.broadcast %cst : f32 to vector<4x256xf32>
      %c0_i32_2 = arith.constant 0 : i32
      %3 = arith.addi %arg5, %c0_i32_2 : i32
      %c0_3 = arith.constant 0 : index
      %4 = arith.index_cast %3 : i32 to index
      %c0_4 = arith.constant 0 : index
      %c0_5 = arith.constant 0 : index
      %5 = vector.load %arg1[%c0_3, %4, %c0_4, %c0_5] : memref<1x6x6x128xbf16, #tpu.memory_space<vmem>>, vector<1x1x4x128xbf16>
      %6 = vector.shape_cast %5 : vector<1x1x4x128xbf16> to vector<4x128xbf16>
      %c0_6 = arith.constant 0 : index
      %c0_7 = arith.constant 0 : index
      %c0_8 = arith.constant 0 : index
      %7 = vector.load %arg2[%c0_6, %c0_7, %c0_8] : memref<9x128x256xbf16, #tpu.memory_space<vmem>>, vector<1x128x256xbf16>
      %8 = vector.shape_cast %7 : vector<1x128x256xbf16> to vector<128x256xbf16>
      %cst_9 = arith.constant dense<0.000000e+00> : vector<4x256xf32>
      %9 = tpu.matmul %6, %8, %cst_9 {dimension_numbers = #tpu.dot_dimension_numbers<[1], [0], [0], [1], [0, 0, 1, 1], [], []>} : vector<4x128xbf16>, vector<128x256xbf16>, vector<4x256xf32> -> vector<4x256xf32>
      %10 = arith.addf %2, %9 : vector<4x256xf32>
      %c0_i32_10 = arith.constant 0 : i32
      %11 = arith.addi %arg5, %c0_i32_10 : i32
      %c0_11 = arith.constant 0 : index
      %12 = arith.index_cast %11 : i32 to index
      %c1 = arith.constant 1 : index
      %c0_12 = arith.constant 0 : index
      %13 = vector.load %arg1[%c0_11, %12, %c1, %c0_12] : memref<1x6x6x128xbf16, #tpu.memory_space<vmem>>, vector<1x1x4x128xbf16>
      %14 = vector.shape_cast %13 : vector<1x1x4x128xbf16> to vector<4x128xbf16>
      %c1_13 = arith.constant 1 : index
      %c0_14 = arith.constant 0 : index
      %c0_15 = arith.constant 0 : index
      %15 = vector.load %arg2[%c1_13, %c0_14, %c0_15] : memref<9x128x256xbf16, #tpu.memory_space<vmem>>, vector<1x128x256xbf16>
      %16 = vector.shape_cast %15 : vector<1x128x256xbf16> to vector<128x256xbf16>
      %cst_16 = arith.constant dense<0.000000e+00> : vector<4x256xf32>
      %17 = tpu.matmul %14, %16, %cst_16 {dimension_numbers = #tpu.dot_dimension_numbers<[1], [0], [0], [1], [0, 0, 1, 1], [], []>} : vector<4x128xbf16>, vector<128x256xbf16>, vector<4x256xf32> -> vector<4x256xf32>
      %18 = arith.addf %10, %17 : vector<4x256xf32>
      %c0_i32_17 = arith.constant 0 : i32
      %19 = arith.addi %arg5, %c0_i32_17 : i32
      %c0_18 = arith.constant 0 : index
      %20 = arith.index_cast %19 : i32 to index
      %c2 = arith.constant 2 : index
      %c0_19 = arith.constant 0 : index
      %21 = vector.load %arg1[%c0_18, %20, %c2, %c0_19] : memref<1x6x6x128xbf16, #tpu.memory_space<vmem>>, vector<1x1x4x128xbf16>
      %22 = vector.shape_cast %21 : vector<1x1x4x128xbf16> to vector<4x128xbf16>
      %c2_20 = arith.constant 2 : index
      %c0_21 = arith.constant 0 : index
      %c0_22 = arith.constant 0 : index
      %23 = vector.load %arg2[%c2_20, %c0_21, %c0_22] : memref<9x128x256xbf16, #tpu.memory_space<vmem>>, vector<1x128x256xbf16>
      %24 = vector.shape_cast %23 : vector<1x128x256xbf16> to vector<128x256xbf16>
      %cst_23 = arith.constant dense<0.000000e+00> : vector<4x256xf32>
      %25 = tpu.matmul %22, %24, %cst_23 {dimension_numbers = #tpu.dot_dimension_numbers<[1], [0], [0], [1], [0, 0, 1, 1], [], []>} : vector<4x128xbf16>, vector<128x256xbf16>, vector<4x256xf32> -> vector<4x256xf32>
      %26 = arith.addf %18, %25 : vector<4x256xf32>
      %c1_i32_24 = arith.constant 1 : i32
      %27 = arith.addi %arg5, %c1_i32_24 : i32
      %c0_25 = arith.constant 0 : index
      %28 = arith.index_cast %27 : i32 to index
      %c0_26 = arith.constant 0 : index
      %c0_27 = arith.constant 0 : index
      %29 = vector.load %arg1[%c0_25, %28, %c0_26, %c0_27] : memref<1x6x6x128xbf16, #tpu.memory_space<vmem>>, vector<1x1x4x128xbf16>
      %30 = vector.shape_cast %29 : vector<1x1x4x128xbf16> to vector<4x128xbf16>
      %c3 = arith.constant 3 : index
      %c0_28 = arith.constant 0 : index
      %c0_29 = arith.constant 0 : index
      %31 = vector.load %arg2[%c3, %c0_28, %c0_29] : memref<9x128x256xbf16, #tpu.memory_space<vmem>>, vector<1x128x256xbf16>
      %32 = vector.shape_cast %31 : vector<1x128x256xbf16> to vector<128x256xbf16>
      %cst_30 = arith.constant dense<0.000000e+00> : vector<4x256xf32>
      %33 = tpu.matmul %30, %32, %cst_30 {dimension_numbers = #tpu.dot_dimension_numbers<[1], [0], [0], [1], [0, 0, 1, 1], [], []>} : vector<4x128xbf16>, vector<128x256xbf16>, vector<4x256xf32> -> vector<4x256xf32>
      %34 = arith.addf %26, %33 : vector<4x256xf32>
      %c1_i32_31 = arith.constant 1 : i32
      %35 = arith.addi %arg5, %c1_i32_31 : i32
      %c0_32 = arith.constant 0 : index
      %36 = arith.index_cast %35 : i32 to index
      %c1_33 = arith.constant 1 : index
      %c0_34 = arith.constant 0 : index
      %37 = vector.load %arg1[%c0_32, %36, %c1_33, %c0_34] : memref<1x6x6x128xbf16, #tpu.memory_space<vmem>>, vector<1x1x4x128xbf16>
      %38 = vector.shape_cast %37 : vector<1x1x4x128xbf16> to vector<4x128xbf16>
      %c4 = arith.constant 4 : index
      %c0_35 = arith.constant 0 : index
      %c0_36 = arith.constant 0 : index
      %39 = vector.load %arg2[%c4, %c0_35, %c0_36] : memref<9x128x256xbf16, #tpu.memory_space<vmem>>, vector<1x128x256xbf16>
      %40 = vector.shape_cast %39 : vector<1x128x256xbf16> to vector<128x256xbf16>
      %cst_37 = arith.constant dense<0.000000e+00> : vector<4x256xf32>
      %41 = tpu.matmul %38, %40, %cst_37 {dimension_numbers = #tpu.dot_dimension_numbers<[1], [0], [0], [1], [0, 0, 1, 1], [], []>} : vector<4x128xbf16>, vector<128x256xbf16>, vector<4x256xf32> -> vector<4x256xf32>
      %42 = arith.addf %34, %41 : vector<4x256xf32>
      %c1_i32_38 = arith.constant 1 : i32
      %43 = arith.addi %arg5, %c1_i32_38 : i32
      %c0_39 = arith.constant 0 : index
      %44 = arith.index_cast %43 : i32 to index
      %c2_40 = arith.constant 2 : index
      %c0_41 = arith.constant 0 : index
      %45 = vector.load %arg1[%c0_39, %44, %c2_40, %c0_41] : memref<1x6x6x128xbf16, #tpu.memory_space<vmem>>, vector<1x1x4x128xbf16>
      %46 = vector.shape_cast %45 : vector<1x1x4x128xbf16> to vector<4x128xbf16>
      %c5 = arith.constant 5 : index
      %c0_42 = arith.constant 0 : index
      %c0_43 = arith.constant 0 : index
      %47 = vector.load %arg2[%c5, %c0_42, %c0_43] : memref<9x128x256xbf16, #tpu.memory_space<vmem>>, vector<1x128x256xbf16>
      %48 = vector.shape_cast %47 : vector<1x128x256xbf16> to vector<128x256xbf16>
      %cst_44 = arith.constant dense<0.000000e+00> : vector<4x256xf32>
      %49 = tpu.matmul %46, %48, %cst_44 {dimension_numbers = #tpu.dot_dimension_numbers<[1], [0], [0], [1], [0, 0, 1, 1], [], []>} : vector<4x128xbf16>, vector<128x256xbf16>, vector<4x256xf32> -> vector<4x256xf32>
      %50 = arith.addf %42, %49 : vector<4x256xf32>
      %c2_i32 = arith.constant 2 : i32
      %51 = arith.addi %arg5, %c2_i32 : i32
      %c0_45 = arith.constant 0 : index
      %52 = arith.index_cast %51 : i32 to index
      %c0_46 = arith.constant 0 : index
      %c0_47 = arith.constant 0 : index
      %53 = vector.load %arg1[%c0_45, %52, %c0_46, %c0_47] : memref<1x6x6x128xbf16, #tpu.memory_space<vmem>>, vector<1x1x4x128xbf16>
      %54 = vector.shape_cast %53 : vector<1x1x4x128xbf16> to vector<4x128xbf16>
      %c6 = arith.constant 6 : index
      %c0_48 = arith.constant 0 : index
      %c0_49 = arith.constant 0 : index
      %55 = vector.load %arg2[%c6, %c0_48, %c0_49] : memref<9x128x256xbf16, #tpu.memory_space<vmem>>, vector<1x128x256xbf16>
      %56 = vector.shape_cast %55 : vector<1x128x256xbf16> to vector<128x256xbf16>
      %cst_50 = arith.constant dense<0.000000e+00> : vector<4x256xf32>
      %57 = tpu.matmul %54, %56, %cst_50 {dimension_numbers = #tpu.dot_dimension_numbers<[1], [0], [0], [1], [0, 0, 1, 1], [], []>} : vector<4x128xbf16>, vector<128x256xbf16>, vector<4x256xf32> -> vector<4x256xf32>
      %58 = arith.addf %50, %57 : vector<4x256xf32>
      %c2_i32_51 = arith.constant 2 : i32
      %59 = arith.addi %arg5, %c2_i32_51 : i32
      %c0_52 = arith.constant 0 : index
      %60 = arith.index_cast %59 : i32 to index
      %c1_53 = arith.constant 1 : index
      %c0_54 = arith.constant 0 : index
      %61 = vector.load %arg1[%c0_52, %60, %c1_53, %c0_54] : memref<1x6x6x128xbf16, #tpu.memory_space<vmem>>, vector<1x1x4x128xbf16>
      %62 = vector.shape_cast %61 : vector<1x1x4x128xbf16> to vector<4x128xbf16>
      %c7 = arith.constant 7 : index
      %c0_55 = arith.constant 0 : index
      %c0_56 = arith.constant 0 : index
      %63 = vector.load %arg2[%c7, %c0_55, %c0_56] : memref<9x128x256xbf16, #tpu.memory_space<vmem>>, vector<1x128x256xbf16>
      %64 = vector.shape_cast %63 : vector<1x128x256xbf16> to vector<128x256xbf16>
      %cst_57 = arith.constant dense<0.000000e+00> : vector<4x256xf32>
      %65 = tpu.matmul %62, %64, %cst_57 {dimension_numbers = #tpu.dot_dimension_numbers<[1], [0], [0], [1], [0, 0, 1, 1], [], []>} : vector<4x128xbf16>, vector<128x256xbf16>, vector<4x256xf32> -> vector<4x256xf32>
      %66 = arith.addf %58, %65 : vector<4x256xf32>
      %c2_i32_58 = arith.constant 2 : i32
      %67 = arith.addi %arg5, %c2_i32_58 : i32
      %c0_59 = arith.constant 0 : index
      %68 = arith.index_cast %67 : i32 to index
      %c2_60 = arith.constant 2 : index
      %c0_61 = arith.constant 0 : index
      %69 = vector.load %arg1[%c0_59, %68, %c2_60, %c0_61] : memref<1x6x6x128xbf16, #tpu.memory_space<vmem>>, vector<1x1x4x128xbf16>
      %70 = vector.shape_cast %69 : vector<1x1x4x128xbf16> to vector<4x128xbf16>
      %c8 = arith.constant 8 : index
      %c0_62 = arith.constant 0 : index
      %c0_63 = arith.constant 0 : index
      %71 = vector.load %arg2[%c8, %c0_62, %c0_63] : memref<9x128x256xbf16, #tpu.memory_space<vmem>>, vector<1x128x256xbf16>
      %72 = vector.shape_cast %71 : vector<1x128x256xbf16> to vector<128x256xbf16>
      %cst_64 = arith.constant dense<0.000000e+00> : vector<4x256xf32>
      %73 = tpu.matmul %70, %72, %cst_64 {dimension_numbers = #tpu.dot_dimension_numbers<[1], [0], [0], [1], [0, 0, 1, 1], [], []>} : vector<4x128xbf16>, vector<128x256xbf16>, vector<4x256xf32> -> vector<4x256xf32>
      %74 = arith.addf %66, %73 : vector<4x256xf32>
      %75 = vector.broadcast %0 : vector<1x256xf32> to vector<4x256xf32>
      %76 = arith.addf %74, %75 : vector<4x256xf32>
      %cst_65 = arith.constant 0.000000e+00 : f32
      %77 = vector.broadcast %cst_65 : f32 to vector<4x256xf32>
      %78 = arith.maximumf %76, %77 : vector<4x256xf32>
      %79 = arith.truncf %78 : vector<4x256xf32> to vector<4x256xbf16>
      %c0_66 = arith.constant 0 : index
      %80 = arith.index_cast %arg5 : i32 to index
      %c0_67 = arith.constant 0 : index
      %c0_68 = arith.constant 0 : index
      %81 = vector.load %arg4[%c0_66, %80, %c0_67, %c0_68] : memref<1x4x4x256xbf16, #tpu.memory_space<vmem>>, vector<1x1x4x256xbf16>
      %82 = vector.shape_cast %81 : vector<1x1x4x256xbf16> to vector<4x256xbf16>
      %83 = vector.shape_cast %79 : vector<4x256xbf16> to vector<1x1x4x256xbf16>
      tpu.vector_store %arg4[%c0_66, %80, %c0_67, %c0_68], %83 {strides = array<i32>} : memref<1x4x4x256xbf16, #tpu.memory_space<vmem>>, vector<1x1x4x256xbf16>,
    }
    %c4_i32_1 = arith.constant 4 : i32
    return
  }
  func.func @transform_0(%arg0: i32) -> (i32, i32, i32, i32) {
    %c0_i32 = arith.constant 0 : i32
    %c0_i32_0 = arith.constant 0 : i32
    %c0_i32_1 = arith.constant 0 : i32
    %c0_i32_2 = arith.constant 0 : i32
    return %arg0, %c0_i32, %c0_i32_0, %c0_i32_1 : i32, i32, i32, i32
  }
  func.func @transform_1(%arg0: i32) -> (i32, i32, i32) {
    %c0_i32 = arith.constant 0 : i32
    %c0_i32_0 = arith.constant 0 : i32
    %c0_i32_1 = arith.constant 0 : i32
    %c0_i32_2 = arith.constant 0 : i32
    return %c0_i32, %c0_i32_0, %c0_i32_1 : i32, i32, i32
  }
  func.func @transform_2(%arg0: i32) -> (i32, i32) {
    %c0_i32 = arith.constant 0 : i32
    %c0_i32_0 = arith.constant 0 : i32
    %c0_i32_1 = arith.constant 0 : i32
    return %c0_i32, %c0_i32_0 : i32, i32
  }
  func.func @transform_3(%arg0: i32) -> (i32, i32, i32, i32) {
    %c0_i32 = arith.constant 0 : i32
    %c0_i32_0 = arith.constant 0 : i32
    %c0_i32_1 = arith.constant 0 : i32
    %c0_i32_2 = arith.constant 0 : i32
    return %arg0, %c0_i32, %c0_i32_0, %c0_i32_1 : i32, i32, i32, i32
  }
}

module attributes {stable_mosaic.version = 11 : i64} {
  func.func @_conv_slab_kernel(%arg0: i32, %arg1: memref<1x6x6x256xbf16, #tpu.memory_space<vmem>>, %arg2: memref<9x256x256xbf16, #tpu.memory_space<vmem>>, %arg3: memref<1x256xf32, #tpu.memory_space<vmem>>, %arg4: memref<1x4x4x256xbf16, #tpu.memory_space<vmem>>) attributes {dimension_semantics = [#tpu.dimension_semantics<parallel>], iteration_bounds = array<i64: 4>, scalar_prefetch = 0 : i64, scratch_operands = 0 : i64, tpu.core_type = #tpu.core_type<tc>, window_params = [{transform_indices = @transform_0, window_bounds = array<i64: 1, 6, 6, 256>}, {pipeline_mode = #tpu.pipeline_mode<synchronous>, transform_indices = @transform_1, window_bounds = array<i64: 9, 256, 256>}, {pipeline_mode = #tpu.pipeline_mode<synchronous>, transform_indices = @transform_2, window_bounds = array<i64: 1, 256>}, {transform_indices = @transform_3, window_bounds = array<i64: 1, 4, 4, 256>}]} {
    %c0 = arith.constant 0 : index
    %c0_0 = arith.constant 0 : index
    %0 = vector.load %arg3[%c0, %c0_0] : memref<1x256xf32, #tpu.memory_space<vmem>>, vector<1x256xf32>
    %c0_i32 = arith.constant 0 : i32
    %c4_i32 = arith.constant 4 : i32
    %1 = arith.addi %c0_i32, %c4_i32 : i32
    %c1_i32 = arith.constant 1 : i32
    scf.for %arg5 = %c0_i32 to %1 step %c1_i32  : i32 {
      %cst = arith.constant 0.000000e+00 : f32
      %2 = vector.broadcast %cst : f32 to vector<4x256xf32>
      %c0_i32_2 = arith.constant 0 : i32
      %3 = arith.addi %arg5, %c0_i32_2 : i32
      %c0_3 = arith.constant 0 : index
      %4 = arith.index_cast %3 : i32 to index
      %c0_4 = arith.constant 0 : index
      %c0_5 = arith.constant 0 : index
      %5 = vector.load %arg1[%c0_3, %4, %c0_4, %c0_5] : memref<1x6x6x256xbf16, #tpu.memory_space<vmem>>, vector<1x1x4x256xbf16>
      %6 = vector.shape_cast %5 : vector<1x1x4x256xbf16> to vector<4x256xbf16>
      %c0_6 = arith.constant 0 : index
      %c0_7 = arith.constant 0 : index
      %c0_8 = arith.constant 0 : index
      %7 = vector.load %arg2[%c0_6, %c0_7, %c0_8] : memref<9x256x256xbf16, #tpu.memory_space<vmem>>, vector<1x256x256xbf16>
      %8 = vector.shape_cast %7 : vector<1x256x256xbf16> to vector<256x256xbf16>
      %cst_9 = arith.constant dense<0.000000e+00> : vector<4x256xf32>
      %9 = tpu.matmul %6, %8, %cst_9 {dimension_numbers = #tpu.dot_dimension_numbers<[1], [0], [0], [1], [0, 0, 1, 1], [], []>} : vector<4x256xbf16>, vector<256x256xbf16>, vector<4x256xf32> -> vector<4x256xf32>
      %10 = arith.addf %2, %9 : vector<4x256xf32>
      %c0_i32_10 = arith.constant 0 : i32
      %11 = arith.addi %arg5, %c0_i32_10 : i32
      %c0_11 = arith.constant 0 : index
      %12 = arith.index_cast %11 : i32 to index
      %c1 = arith.constant 1 : index
      %c0_12 = arith.constant 0 : index
      %13 = vector.load %arg1[%c0_11, %12, %c1, %c0_12] : memref<1x6x6x256xbf16, #tpu.memory_space<vmem>>, vector<1x1x4x256xbf16>
      %14 = vector.shape_cast %13 : vector<1x1x4x256xbf16> to vector<4x256xbf16>
      %c1_13 = arith.constant 1 : index
      %c0_14 = arith.constant 0 : index
      %c0_15 = arith.constant 0 : index
      %15 = vector.load %arg2[%c1_13, %c0_14, %c0_15] : memref<9x256x256xbf16, #tpu.memory_space<vmem>>, vector<1x256x256xbf16>
      %16 = vector.shape_cast %15 : vector<1x256x256xbf16> to vector<256x256xbf16>
      %cst_16 = arith.constant dense<0.000000e+00> : vector<4x256xf32>
      %17 = tpu.matmul %14, %16, %cst_16 {dimension_numbers = #tpu.dot_dimension_numbers<[1], [0], [0], [1], [0, 0, 1, 1], [], []>} : vector<4x256xbf16>, vector<256x256xbf16>, vector<4x256xf32> -> vector<4x256xf32>
      %18 = arith.addf %10, %17 : vector<4x256xf32>
      %c0_i32_17 = arith.constant 0 : i32
      %19 = arith.addi %arg5, %c0_i32_17 : i32
      %c0_18 = arith.constant 0 : index
      %20 = arith.index_cast %19 : i32 to index
      %c2 = arith.constant 2 : index
      %c0_19 = arith.constant 0 : index
      %21 = vector.load %arg1[%c0_18, %20, %c2, %c0_19] : memref<1x6x6x256xbf16, #tpu.memory_space<vmem>>, vector<1x1x4x256xbf16>
      %22 = vector.shape_cast %21 : vector<1x1x4x256xbf16> to vector<4x256xbf16>
      %c2_20 = arith.constant 2 : index
      %c0_21 = arith.constant 0 : index
      %c0_22 = arith.constant 0 : index
      %23 = vector.load %arg2[%c2_20, %c0_21, %c0_22] : memref<9x256x256xbf16, #tpu.memory_space<vmem>>, vector<1x256x256xbf16>
      %24 = vector.shape_cast %23 : vector<1x256x256xbf16> to vector<256x256xbf16>
      %cst_23 = arith.constant dense<0.000000e+00> : vector<4x256xf32>
      %25 = tpu.matmul %22, %24, %cst_23 {dimension_numbers = #tpu.dot_dimension_numbers<[1], [0], [0], [1], [0, 0, 1, 1], [], []>} : vector<4x256xbf16>, vector<256x256xbf16>, vector<4x256xf32> -> vector<4x256xf32>
      %26 = arith.addf %18, %25 : vector<4x256xf32>
      %c1_i32_24 = arith.constant 1 : i32
      %27 = arith.addi %arg5, %c1_i32_24 : i32
      %c0_25 = arith.constant 0 : index
      %28 = arith.index_cast %27 : i32 to index
      %c0_26 = arith.constant 0 : index
      %c0_27 = arith.constant 0 : index
      %29 = vector.load %arg1[%c0_25, %28, %c0_26, %c0_27] : memref<1x6x6x256xbf16, #tpu.memory_space<vmem>>, vector<1x1x4x256xbf16>
      %30 = vector.shape_cast %29 : vector<1x1x4x256xbf16> to vector<4x256xbf16>
      %c3 = arith.constant 3 : index
      %c0_28 = arith.constant 0 : index
      %c0_29 = arith.constant 0 : index
      %31 = vector.load %arg2[%c3, %c0_28, %c0_29] : memref<9x256x256xbf16, #tpu.memory_space<vmem>>, vector<1x256x256xbf16>
      %32 = vector.shape_cast %31 : vector<1x256x256xbf16> to vector<256x256xbf16>
      %cst_30 = arith.constant dense<0.000000e+00> : vector<4x256xf32>
      %33 = tpu.matmul %30, %32, %cst_30 {dimension_numbers = #tpu.dot_dimension_numbers<[1], [0], [0], [1], [0, 0, 1, 1], [], []>} : vector<4x256xbf16>, vector<256x256xbf16>, vector<4x256xf32> -> vector<4x256xf32>
      %34 = arith.addf %26, %33 : vector<4x256xf32>
      %c1_i32_31 = arith.constant 1 : i32
      %35 = arith.addi %arg5, %c1_i32_31 : i32
      %c0_32 = arith.constant 0 : index
      %36 = arith.index_cast %35 : i32 to index
      %c1_33 = arith.constant 1 : index
      %c0_34 = arith.constant 0 : index
      %37 = vector.load %arg1[%c0_32, %36, %c1_33, %c0_34] : memref<1x6x6x256xbf16, #tpu.memory_space<vmem>>, vector<1x1x4x256xbf16>
      %38 = vector.shape_cast %37 : vector<1x1x4x256xbf16> to vector<4x256xbf16>
      %c4 = arith.constant 4 : index
      %c0_35 = arith.constant 0 : index
      %c0_36 = arith.constant 0 : index
      %39 = vector.load %arg2[%c4, %c0_35, %c0_36] : memref<9x256x256xbf16, #tpu.memory_space<vmem>>, vector<1x256x256xbf16>
      %40 = vector.shape_cast %39 : vector<1x256x256xbf16> to vector<256x256xbf16>
      %cst_37 = arith.constant dense<0.000000e+00> : vector<4x256xf32>
      %41 = tpu.matmul %38, %40, %cst_37 {dimension_numbers = #tpu.dot_dimension_numbers<[1], [0], [0], [1], [0, 0, 1, 1], [], []>} : vector<4x256xbf16>, vector<256x256xbf16>, vector<4x256xf32> -> vector<4x256xf32>
      %42 = arith.addf %34, %41 : vector<4x256xf32>
      %c1_i32_38 = arith.constant 1 : i32
      %43 = arith.addi %arg5, %c1_i32_38 : i32
      %c0_39 = arith.constant 0 : index
      %44 = arith.index_cast %43 : i32 to index
      %c2_40 = arith.constant 2 : index
      %c0_41 = arith.constant 0 : index
      %45 = vector.load %arg1[%c0_39, %44, %c2_40, %c0_41] : memref<1x6x6x256xbf16, #tpu.memory_space<vmem>>, vector<1x1x4x256xbf16>
      %46 = vector.shape_cast %45 : vector<1x1x4x256xbf16> to vector<4x256xbf16>
      %c5 = arith.constant 5 : index
      %c0_42 = arith.constant 0 : index
      %c0_43 = arith.constant 0 : index
      %47 = vector.load %arg2[%c5, %c0_42, %c0_43] : memref<9x256x256xbf16, #tpu.memory_space<vmem>>, vector<1x256x256xbf16>
      %48 = vector.shape_cast %47 : vector<1x256x256xbf16> to vector<256x256xbf16>
      %cst_44 = arith.constant dense<0.000000e+00> : vector<4x256xf32>
      %49 = tpu.matmul %46, %48, %cst_44 {dimension_numbers = #tpu.dot_dimension_numbers<[1], [0], [0], [1], [0, 0, 1, 1], [], []>} : vector<4x256xbf16>, vector<256x256xbf16>, vector<4x256xf32> -> vector<4x256xf32>
      %50 = arith.addf %42, %49 : vector<4x256xf32>
      %c2_i32 = arith.constant 2 : i32
      %51 = arith.addi %arg5, %c2_i32 : i32
      %c0_45 = arith.constant 0 : index
      %52 = arith.index_cast %51 : i32 to index
      %c0_46 = arith.constant 0 : index
      %c0_47 = arith.constant 0 : index
      %53 = vector.load %arg1[%c0_45, %52, %c0_46, %c0_47] : memref<1x6x6x256xbf16, #tpu.memory_space<vmem>>, vector<1x1x4x256xbf16>
      %54 = vector.shape_cast %53 : vector<1x1x4x256xbf16> to vector<4x256xbf16>
      %c6 = arith.constant 6 : index
      %c0_48 = arith.constant 0 : index
      %c0_49 = arith.constant 0 : index
      %55 = vector.load %arg2[%c6, %c0_48, %c0_49] : memref<9x256x256xbf16, #tpu.memory_space<vmem>>, vector<1x256x256xbf16>
      %56 = vector.shape_cast %55 : vector<1x256x256xbf16> to vector<256x256xbf16>
      %cst_50 = arith.constant dense<0.000000e+00> : vector<4x256xf32>
      %57 = tpu.matmul %54, %56, %cst_50 {dimension_numbers = #tpu.dot_dimension_numbers<[1], [0], [0], [1], [0, 0, 1, 1], [], []>} : vector<4x256xbf16>, vector<256x256xbf16>, vector<4x256xf32> -> vector<4x256xf32>
      %58 = arith.addf %50, %57 : vector<4x256xf32>
      %c2_i32_51 = arith.constant 2 : i32
      %59 = arith.addi %arg5, %c2_i32_51 : i32
      %c0_52 = arith.constant 0 : index
      %60 = arith.index_cast %59 : i32 to index
      %c1_53 = arith.constant 1 : index
      %c0_54 = arith.constant 0 : index
      %61 = vector.load %arg1[%c0_52, %60, %c1_53, %c0_54] : memref<1x6x6x256xbf16, #tpu.memory_space<vmem>>, vector<1x1x4x256xbf16>
      %62 = vector.shape_cast %61 : vector<1x1x4x256xbf16> to vector<4x256xbf16>
      %c7 = arith.constant 7 : index
      %c0_55 = arith.constant 0 : index
      %c0_56 = arith.constant 0 : index
      %63 = vector.load %arg2[%c7, %c0_55, %c0_56] : memref<9x256x256xbf16, #tpu.memory_space<vmem>>, vector<1x256x256xbf16>
      %64 = vector.shape_cast %63 : vector<1x256x256xbf16> to vector<256x256xbf16>
      %cst_57 = arith.constant dense<0.000000e+00> : vector<4x256xf32>
      %65 = tpu.matmul %62, %64, %cst_57 {dimension_numbers = #tpu.dot_dimension_numbers<[1], [0], [0], [1], [0, 0, 1, 1], [], []>} : vector<4x256xbf16>, vector<256x256xbf16>, vector<4x256xf32> -> vector<4x256xf32>
      %66 = arith.addf %58, %65 : vector<4x256xf32>
      %c2_i32_58 = arith.constant 2 : i32
      %67 = arith.addi %arg5, %c2_i32_58 : i32
      %c0_59 = arith.constant 0 : index
      %68 = arith.index_cast %67 : i32 to index
      %c2_60 = arith.constant 2 : index
      %c0_61 = arith.constant 0 : index
      %69 = vector.load %arg1[%c0_59, %68, %c2_60, %c0_61] : memref<1x6x6x256xbf16, #tpu.memory_space<vmem>>, vector<1x1x4x256xbf16>
      %70 = vector.shape_cast %69 : vector<1x1x4x256xbf16> to vector<4x256xbf16>
      %c8 = arith.constant 8 : index
      %c0_62 = arith.constant 0 : index
      %c0_63 = arith.constant 0 : index
      %71 = vector.load %arg2[%c8, %c0_62, %c0_63] : memref<9x256x256xbf16, #tpu.memory_space<vmem>>, vector<1x256x256xbf16>
      %72 = vector.shape_cast %71 : vector<1x256x256xbf16> to vector<256x256xbf16>
      %cst_64 = arith.constant dense<0.000000e+00> : vector<4x256xf32>
      %73 = tpu.matmul %70, %72, %cst_64 {dimension_numbers = #tpu.dot_dimension_numbers<[1], [0], [0], [1], [0, 0, 1, 1], [], []>} : vector<4x256xbf16>, vector<256x256xbf16>, vector<4x256xf32> -> vector<4x256xf32>
      %74 = arith.addf %66, %73 : vector<4x256xf32>
      %75 = vector.broadcast %0 : vector<1x256xf32> to vector<4x256xf32>
      %76 = arith.addf %74, %75 : vector<4x256xf32>
      %cst_65 = arith.constant 0.000000e+00 : f32
      %77 = vector.broadcast %cst_65 : f32 to vector<4x256xf32>
      %78 = arith.maximumf %76, %77 : vector<4x256xf32>
      %79 = arith.truncf %78 : vector<4x256xf32> to vector<4x256xbf16>
      %c0_66 = arith.constant 0 : index
      %80 = arith.index_cast %arg5 : i32 to index
      %c0_67 = arith.constant 0 : index
      %c0_68 = arith.constant 0 : index
      %81 = vector.load %arg4[%c0_66, %80, %c0_67, %c0_68] : memref<1x4x4x256xbf16, #tpu.memory_space<vmem>>, vector<1x1x4x256xbf16>
      %82 = vector.shape_cast %81 : vector<1x1x4x256xbf16> to vector<4x256xbf16>
      %83 = vector.shape_cast %79 : vector<4x256xbf16> to vector<1x1x4x256xbf16>
      tpu.vector_store %arg4[%c0_66, %80, %c0_67, %c0_68], %83 {strides = array<i32>} : memref<1x4x4x256xbf16, #tpu.memory_space<vmem>>, vector<1x1x4x256xbf16>,
    }
    %c4_i32_1 = arith.constant 4 : i32
    return
  }
  func.func @transform_0(%arg0: i32) -> (i32, i32, i32, i32) {
    %c0_i32 = arith.constant 0 : i32
    %c0_i32_0 = arith.constant 0 : i32
    %c0_i32_1 = arith.constant 0 : i32
    %c0_i32_2 = arith.constant 0 : i32
    return %arg0, %c0_i32, %c0_i32_0, %c0_i32_1 : i32, i32, i32, i32
  }
  func.func @transform_1(%arg0: i32) -> (i32, i32, i32) {
    %c0_i32 = arith.constant 0 : i32
    %c0_i32_0 = arith.constant 0 : i32
    %c0_i32_1 = arith.constant 0 : i32
    %c0_i32_2 = arith.constant 0 : i32
    return %c0_i32, %c0_i32_0, %c0_i32_1 : i32, i32, i32
  }
  func.func @transform_2(%arg0: i32) -> (i32, i32) {
    %c0_i32 = arith.constant 0 : i32
    %c0_i32_0 = arith.constant 0 : i32
    %c0_i32_1 = arith.constant 0 : i32
    return %c0_i32, %c0_i32_0 : i32, i32
  }
  func.func @transform_3(%arg0: i32) -> (i32, i32, i32, i32) {
    %c0_i32 = arith.constant 0 : i32
    %c0_i32_0 = arith.constant 0 : i32
    %c0_i32_1 = arith.constant 0 : i32
    %c0_i32_2 = arith.constant 0 : i32
    return %arg0, %c0_i32, %c0_i32_0, %c0_i32_1 : i32, i32, i32, i32
  }
}

module attributes {stable_mosaic.version = 11 : i64} {
  func.func @_ssd_partial_kernel(%arg0: i32, %arg1: memref<4x512xbf16, #tpu.memory_space<vmem>>, %arg2: memref<4x512xbf16, #tpu.memory_space<vmem>>, %arg3: memref<1x1x512xf32, #tpu.memory_space<vmem>>) attributes {dimension_semantics = [#tpu.dimension_semantics<parallel>], iteration_bounds = array<i64: 1>, scalar_prefetch = 0 : i64, scratch_operands = 0 : i64, tpu.core_type = #tpu.core_type<tc>, window_params = [{transform_indices = @transform_0, window_bounds = array<i64: 4, 512>}, {transform_indices = @transform_1, window_bounds = array<i64: 4, 512>}, {transform_indices = @transform_2, window_bounds = array<i64: 1, 1, 512>}]} {
    %c0 = arith.constant 0 : index
    %c0_0 = arith.constant 0 : index
    %0 = vector.load %arg1[%c0, %c0_0] : memref<4x512xbf16, #tpu.memory_space<vmem>>, vector<4x512xbf16>
    %1 = arith.extf %0 : vector<4x512xbf16> to vector<4x512xf32>
    %c0_1 = arith.constant 0 : index
    %c0_2 = arith.constant 0 : index
    %2 = vector.load %arg2[%c0_1, %c0_2] : memref<4x512xbf16, #tpu.memory_space<vmem>>, vector<4x512xbf16>
    %3 = arith.extf %2 : vector<4x512xbf16> to vector<4x512xf32>
    %4 = arith.subf %1, %3 : vector<4x512xf32>
    %5 = arith.mulf %4, %4 : vector<4x512xf32>
    %cst = arith.constant dense<0.000000e+00> : vector<512xf32>
    %6 = vector.multi_reduction <add>, %5, %cst [0] : vector<4x512xf32> to vector<512xf32>
    %7 = vector.shape_cast %6 : vector<512xf32> to vector<1x512xf32>
    %c0_3 = arith.constant 0 : index
    %c0_4 = arith.constant 0 : index
    %c0_5 = arith.constant 0 : index
    %8 = vector.load %arg3[%c0_3, %c0_4, %c0_5] : memref<1x1x512xf32, #tpu.memory_space<vmem>>, vector<1x1x512xf32>
    %9 = vector.shape_cast %8 : vector<1x1x512xf32> to vector<1x512xf32>
    %10 = vector.shape_cast %7 : vector<1x512xf32> to vector<1x1x512xf32>
    tpu.vector_store %arg3[%c0_3, %c0_4, %c0_5], %10 {strides = array<i32>} : memref<1x1x512xf32, #tpu.memory_space<vmem>>, vector<1x1x512xf32>,
    return
  }
  func.func @transform_0(%arg0: i32) -> (i32, i32) {
    %c0_i32 = arith.constant 0 : i32
    %c0_i32_0 = arith.constant 0 : i32
    return %arg0, %c0_i32 : i32, i32
  }
  func.func @transform_1(%arg0: i32) -> (i32, i32) {
    %c0_i32 = arith.constant 0 : i32
    %c0_i32_0 = arith.constant 0 : i32
    return %arg0, %c0_i32 : i32, i32
  }
  func.func @transform_2(%arg0: i32) -> (i32, i32, i32) {
    %c0_i32 = arith.constant 0 : i32
    %c0_i32_0 = arith.constant 0 : i32
    %c0_i32_1 = arith.constant 0 : i32
    return %arg0, %c0_i32, %c0_i32_0 : i32, i32, i32
  }
}

module attributes {stable_mosaic.version = 11 : i64} {
  func.func @_ssd_partial_kernel(%arg0: i32, %arg1: memref<8x512xbf16, #tpu.memory_space<vmem>>, %arg2: memref<8x512xbf16, #tpu.memory_space<vmem>>, %arg3: memref<1x1x512xf32, #tpu.memory_space<vmem>>) attributes {dimension_semantics = [#tpu.dimension_semantics<parallel>], iteration_bounds = array<i64: 1>, scalar_prefetch = 0 : i64, scratch_operands = 0 : i64, tpu.core_type = #tpu.core_type<tc>, window_params = [{transform_indices = @transform_0, window_bounds = array<i64: 8, 512>}, {transform_indices = @transform_1, window_bounds = array<i64: 8, 512>}, {transform_indices = @transform_2, window_bounds = array<i64: 1, 1, 512>}]} {
    %c0 = arith.constant 0 : index
    %c0_0 = arith.constant 0 : index
    %0 = vector.load %arg1[%c0, %c0_0] : memref<8x512xbf16, #tpu.memory_space<vmem>>, vector<8x512xbf16>
    %1 = arith.extf %0 : vector<8x512xbf16> to vector<8x512xf32>
    %c0_1 = arith.constant 0 : index
    %c0_2 = arith.constant 0 : index
    %2 = vector.load %arg2[%c0_1, %c0_2] : memref<8x512xbf16, #tpu.memory_space<vmem>>, vector<8x512xbf16>
    %3 = arith.extf %2 : vector<8x512xbf16> to vector<8x512xf32>
    %4 = arith.subf %1, %3 : vector<8x512xf32>
    %5 = arith.mulf %4, %4 : vector<8x512xf32>
    %cst = arith.constant dense<0.000000e+00> : vector<512xf32>
    %6 = vector.multi_reduction <add>, %5, %cst [0] : vector<8x512xf32> to vector<512xf32>
    %7 = vector.shape_cast %6 : vector<512xf32> to vector<1x512xf32>
    %c0_3 = arith.constant 0 : index
    %c0_4 = arith.constant 0 : index
    %c0_5 = arith.constant 0 : index
    %8 = vector.load %arg3[%c0_3, %c0_4, %c0_5] : memref<1x1x512xf32, #tpu.memory_space<vmem>>, vector<1x1x512xf32>
    %9 = vector.shape_cast %8 : vector<1x1x512xf32> to vector<1x512xf32>
    %10 = vector.shape_cast %7 : vector<1x512xf32> to vector<1x1x512xf32>
    tpu.vector_store %arg3[%c0_3, %c0_4, %c0_5], %10 {strides = array<i32>} : memref<1x1x512xf32, #tpu.memory_space<vmem>>, vector<1x1x512xf32>,
    return
  }
  func.func @transform_0(%arg0: i32) -> (i32, i32) {
    %c0_i32 = arith.constant 0 : i32
    %c0_i32_0 = arith.constant 0 : i32
    return %arg0, %c0_i32 : i32, i32
  }
  func.func @transform_1(%arg0: i32) -> (i32, i32) {
    %c0_i32 = arith.constant 0 : i32
    %c0_i32_0 = arith.constant 0 : i32
    return %arg0, %c0_i32 : i32, i32
  }
  func.func @transform_2(%arg0: i32) -> (i32, i32, i32) {
    %c0_i32 = arith.constant 0 : i32
    %c0_i32_0 = arith.constant 0 : i32
    %c0_i32_1 = arith.constant 0 : i32
    return %arg0, %c0_i32, %c0_i32_0 : i32, i32, i32
  }
}

module attributes {stable_mosaic.version = 11 : i64} {
  func.func @_ssd_partial_kernel(%arg0: i32, %arg1: memref<16x512xbf16, #tpu.memory_space<vmem>>, %arg2: memref<16x512xbf16, #tpu.memory_space<vmem>>, %arg3: memref<1x1x512xf32, #tpu.memory_space<vmem>>) attributes {dimension_semantics = [#tpu.dimension_semantics<parallel>], iteration_bounds = array<i64: 1>, scalar_prefetch = 0 : i64, scratch_operands = 0 : i64, tpu.core_type = #tpu.core_type<tc>, window_params = [{transform_indices = @transform_0, window_bounds = array<i64: 16, 512>}, {transform_indices = @transform_1, window_bounds = array<i64: 16, 512>}, {transform_indices = @transform_2, window_bounds = array<i64: 1, 1, 512>}]} {
    %c0 = arith.constant 0 : index
    %c0_0 = arith.constant 0 : index
    %0 = vector.load %arg1[%c0, %c0_0] : memref<16x512xbf16, #tpu.memory_space<vmem>>, vector<16x512xbf16>
    %1 = arith.extf %0 : vector<16x512xbf16> to vector<16x512xf32>
    %c0_1 = arith.constant 0 : index
    %c0_2 = arith.constant 0 : index
    %2 = vector.load %arg2[%c0_1, %c0_2] : memref<16x512xbf16, #tpu.memory_space<vmem>>, vector<16x512xbf16>
    %3 = arith.extf %2 : vector<16x512xbf16> to vector<16x512xf32>
    %4 = arith.subf %1, %3 : vector<16x512xf32>
    %5 = arith.mulf %4, %4 : vector<16x512xf32>
    %cst = arith.constant dense<0.000000e+00> : vector<512xf32>
    %6 = vector.multi_reduction <add>, %5, %cst [0] : vector<16x512xf32> to vector<512xf32>
    %7 = vector.shape_cast %6 : vector<512xf32> to vector<1x512xf32>
    %c0_3 = arith.constant 0 : index
    %c0_4 = arith.constant 0 : index
    %c0_5 = arith.constant 0 : index
    %8 = vector.load %arg3[%c0_3, %c0_4, %c0_5] : memref<1x1x512xf32, #tpu.memory_space<vmem>>, vector<1x1x512xf32>
    %9 = vector.shape_cast %8 : vector<1x1x512xf32> to vector<1x512xf32>
    %10 = vector.shape_cast %7 : vector<1x512xf32> to vector<1x1x512xf32>
    tpu.vector_store %arg3[%c0_3, %c0_4, %c0_5], %10 {strides = array<i32>} : memref<1x1x512xf32, #tpu.memory_space<vmem>>, vector<1x1x512xf32>,
    return
  }
  func.func @transform_0(%arg0: i32) -> (i32, i32) {
    %c0_i32 = arith.constant 0 : i32
    %c0_i32_0 = arith.constant 0 : i32
    return %arg0, %c0_i32 : i32, i32
  }
  func.func @transform_1(%arg0: i32) -> (i32, i32) {
    %c0_i32 = arith.constant 0 : i32
    %c0_i32_0 = arith.constant 0 : i32
    return %arg0, %c0_i32 : i32, i32
  }
  func.func @transform_2(%arg0: i32) -> (i32, i32, i32) {
    %c0_i32 = arith.constant 0 : i32
    %c0_i32_0 = arith.constant 0 : i32
    %c0_i32_1 = arith.constant 0 : i32
    return %arg0, %c0_i32, %c0_i32_0 : i32, i32, i32
  }
}

module attributes {stable_mosaic.version = 11 : i64} {
  func.func @_ssd_partial_kernel(%arg0: i32, %arg1: memref<1x512xf32, #tpu.memory_space<vmem>>, %arg2: memref<1x512xf32, #tpu.memory_space<vmem>>, %arg3: memref<1x1x512xf32, #tpu.memory_space<vmem>>) attributes {dimension_semantics = [#tpu.dimension_semantics<parallel>], iteration_bounds = array<i64: 1>, scalar_prefetch = 0 : i64, scratch_operands = 0 : i64, tpu.core_type = #tpu.core_type<tc>, window_params = [{transform_indices = @transform_0, window_bounds = array<i64: 1, 512>}, {transform_indices = @transform_1, window_bounds = array<i64: 1, 512>}, {transform_indices = @transform_2, window_bounds = array<i64: 1, 1, 512>}]} {
    %c0 = arith.constant 0 : index
    %c0_0 = arith.constant 0 : index
    %0 = vector.load %arg1[%c0, %c0_0] : memref<1x512xf32, #tpu.memory_space<vmem>>, vector<1x512xf32>
    %c0_1 = arith.constant 0 : index
    %c0_2 = arith.constant 0 : index
    %1 = vector.load %arg2[%c0_1, %c0_2] : memref<1x512xf32, #tpu.memory_space<vmem>>, vector<1x512xf32>
    %2 = arith.subf %0, %1 : vector<1x512xf32>
    %3 = arith.mulf %2, %2 : vector<1x512xf32>
    %cst = arith.constant dense<0.000000e+00> : vector<512xf32>
    %4 = vector.multi_reduction <add>, %3, %cst [0] : vector<1x512xf32> to vector<512xf32>
    %5 = vector.shape_cast %4 : vector<512xf32> to vector<1x512xf32>
    %c0_3 = arith.constant 0 : index
    %c0_4 = arith.constant 0 : index
    %c0_5 = arith.constant 0 : index
    %6 = vector.load %arg3[%c0_3, %c0_4, %c0_5] : memref<1x1x512xf32, #tpu.memory_space<vmem>>, vector<1x1x512xf32>
    %7 = vector.shape_cast %6 : vector<1x1x512xf32> to vector<1x512xf32>
    %8 = vector.shape_cast %5 : vector<1x512xf32> to vector<1x1x512xf32>
    tpu.vector_store %arg3[%c0_3, %c0_4, %c0_5], %8 {strides = array<i32>} : memref<1x1x512xf32, #tpu.memory_space<vmem>>, vector<1x1x512xf32>,
    return
  }
  func.func @transform_0(%arg0: i32) -> (i32, i32) {
    %c0_i32 = arith.constant 0 : i32
    %c0_i32_0 = arith.constant 0 : i32
    return %arg0, %c0_i32 : i32, i32
  }
  func.func @transform_1(%arg0: i32) -> (i32, i32) {
    %c0_i32 = arith.constant 0 : i32
    %c0_i32_0 = arith.constant 0 : i32
    return %arg0, %c0_i32 : i32, i32
  }
  func.func @transform_2(%arg0: i32) -> (i32, i32, i32) {
    %c0_i32 = arith.constant 0 : i32
    %c0_i32_0 = arith.constant 0 : i32
    %c0_i32_1 = arith.constant 0 : i32
    return %arg0, %c0_i32, %c0_i32_0 : i32, i32, i32
  }
}

</mosaic_0001>

<llo_original>
// kernel: skelet_loss.12
$region0: #{skelet_loss.12}
  #allocation0 [shape = 'u32[]', space=smem, size = 0x4, offset = 0x4, fixed_abs, tag = 'smem constant byte address 0x4 - core index']
  #allocation1 [shape = 'u32[144,128]{1,0:T(1,128)}', space=vmem, size = 0x12000, scoped, tag = 'internal scratch']
  %s0 = inlined_call_operand.vmem [shape: bf16[1024,27], index: 0, kind: input, shape index: {}]
  %s1 = inlined_call_operand.vmem [shape: bf16[27,64], index: 1, kind: input, shape index: {}]
  %s2 = inlined_call_operand.vmem [shape: f32[1,64], index: 2, kind: input, shape index: {}]
  %s3 = inlined_call_operand.vmem [shape: bf16[1024,64], index: 3, kind: output, shape index: {}]
  %s4 = sld [smem:[#allocation0]]
  $region22: #{skelet_loss.12} parent=0
    _
  %s6 = ssub.s32 1, %s4
  %s7 = scalar_select 0, %s6, %s4
  // Predicated region
  $region2: #{skelet_loss.12} parent=0 // pred_check
    _
  $region3: #{skelet_loss.12} parent=0 // pred_check_branch
    %9 = sbr.rel (0) target = $region5
  $region4: #{skelet_loss.12} parent=0 // pred_region
    _
  $region5: #{skelet_loss.12} parent=0 // pred_fallthru
    _
  // Predicated region
  $region6: #{skelet_loss.12} parent=0 // pred_check
    _
  $region7: #{skelet_loss.12} parent=0 // pred_check_branch
    %11 = sbr.rel (0) target = $region9
  $region8: #{skelet_loss.12} parent=0 // pred_region
    _
  $region9: #{skelet_loss.12} parent=0 // pred_fallthru
    _
  // Predicated region
  $region10: #{skelet_loss.12} parent=0 // pred_check
    _
  $region11: #{skelet_loss.12} parent=0 // pred_check_branch
    %13 = sbr.rel (0) target = $region13
  $region12: #{skelet_loss.12} parent=0 // pred_region
    _
  $region13: #{skelet_loss.12} parent=0 // pred_fallthru
    _
  %v15 = vld [vmem:[%s0] sm:$0xf]
  %v16 = vld [vmem:[%s0 + $0x4] sm:$0xf]
  %v17 = vld [vmem:[%s0 + $0x8] sm:$0xf]
  %v18 = vld [vmem:[%s0 + $0xc] sm:$0xf]
  %v19 = vld [vmem:[%s0 + $0x10] sm:$0xf]
  %v20 = vld [vmem:[%s0 + $0x14] sm:$0xf]
  %v21 = vld [vmem:[%s0 + $0x18] sm:$0xf]
  %v22 = vld [vmem:[%s0 + $0x1c] sm:$0xf]
  %v23 = vld [vmem:[%s0 + $0x20] sm:$0xf]
  %v24 = vld [vmem:[%s0 + $0x24] sm:$0xf]
  %v25 = vld [vmem:[%s0 + $0x28] sm:$0xf]
  %v26 = vld [vmem:[%s0 + $0x2c] sm:$0xf]
  %v27 = vld [vmem:[%s0 + $0x30] sm:$0xf]
  %v28 = vld [vmem:[%s0 + $0x34] sm:$0xf]
  %v29 = vld [vmem:[%s0 + $0x38] sm:$0xf]
  %v30 = vld [vmem:[%s0 + $0x3c] sm:$0xf]
  %v31 = vld [vmem:[%s0 + $0x40] sm:$0xf]
  %v32 = vld [vmem:[%s0 + $0x44] sm:$0xf]
  %v33 = vld [vmem:[%s0 + $0x48] sm:$0xf]
  %v34 = vld [vmem:[%s0 + $0x4c] sm:$0xf]
  %v35 = vld [vmem:[%s0 + $0x50] sm:$0xf]
  %v36 = vld [vmem:[%s0 + $0x54] sm:$0xf]
  %v37 = vld [vmem:[%s0 + $0x58] sm:$0xf]
  %v38 = vld [vmem:[%s0 + $0x5c] sm:$0xf]
  %v39 = vld [vmem:[%s0 + $0x60] sm:$0xf]
  %v40 = vld [vmem:[%s0 + $0x64] sm:$0xf]
  %v41 = vld [vmem:[%s0 + $0x68] sm:$0xf]
  %v42 = vld [vmem:[%s0 + $0x6c] sm:$0xf]
  %v43 = vld [vmem:[%s0 + $0x70] sm:$0xf]
  %v44 = vld [vmem:[%s0 + $0x74] sm:$0xf]
  %v45 = vld [vmem:[%s0 + $0x78] sm:$0xf]
  %v46 = vld [vmem:[%s0 + $0x7c] sm:$0xf]
  %v47 = vld [vmem:[%s0 + $0x80] sm:$0xf]
  %v48 = vld [vmem:[%s0 + $0x84] sm:$0xf]
  %v49 = vld [vmem:[%s0 + $0x88] sm:$0xf]
  %v50 = vld [vmem:[%s0 + $0x8c] sm:$0xf]
  %v51 = vld [vmem:[%s0 + $0x90] sm:$0xf]
  %v52 = vld [vmem:[%s0 + $0x94] sm:$0xf]
  %v53 = vld [vmem:[%s0 + $0x98] sm:$0xf]
  %v54 = vld [vmem:[%s0 + $0x9c] sm:$0xf]
  %v55 = vld [vmem:[%s0 + $0xa0] sm:$0xf]
  %v56 = vld [vmem:[%s0 + $0xa4] sm:$0xf]
  %v57 = vld [vmem:[%s0 + $0xa8] sm:$0xf]
  %v58 = vld [vmem:[%s0 + $0xac] sm:$0xf]
  %v59 = vld [vmem:[%s0 + $0xb0] sm:$0xf]
  %v60 = vld [vmem:[%s0 + $0xb4] sm:$0xf]
  %v61 = vld [vmem:[%s0 + $0xb8] sm:$0xf]
  %v62 = vld [vmem:[%s0 + $0xbc] sm:$0xf]
  %v63 = vld [vmem:[%s0 + $0xc0] sm:$0xf]
  %v64 = vld [vmem:[%s0 + $0xc4] sm:$0xf]
  %v65 = vld [vmem:[%s0 + $0xc8] sm:$0xf]
  %v66 = vld [vmem:[%s0 + $0xcc] sm:$0xf]
  %v67 = vld [vmem:[%s0 + $0xd0] sm:$0xf]
  %v68 = vld [vmem:[%s0 + $0xd4] sm:$0xf]
  %v69 = vld [vmem:[%s0 + $0xd8] sm:$0xf]
  %v70 = vld [vmem:[%s0 + $0xdc] sm:$0xf]
  %v71 = vld [vmem:[%s0 + $0xe0] sm:$0xf]
  %v72 = vld [vmem:[%s0 + $0xe4] sm:$0xf]
  %v73 = vld [vmem:[%s0 + $0xe8] sm:$0xf]
  %v74 = vld [vmem:[%s0 + $0xec] sm:$0xf]
  %v75 = vld [vmem:[%s0 + $0xf0] sm:$0xf]
  %v76 = vld [vmem:[%s0 + $0xf4] sm:$0xf]
  %v77 = vld [vmem:[%s0 + $0xf8] sm:$0xf]
  %v78 = vld [vmem:[%s0 + $0xfc] sm:$0xf]
  %v79 = vld [vmem:[%s0 + $0x100] sm:$0xf]
  %v80 = vld [vmem:[%s0 + $0x104] sm:$0xf]
  %v81 = vld [vmem:[%s0 + $0x108] sm:$0xf]
  %v82 = vld [vmem:[%s0 + $0x10c] sm:$0xf]
  %v83 = vld [vmem:[%s0 + $0x110] sm:$0xf]
  %v84 = vld [vmem:[%s0 + $0x114] sm:$0xf]
  %v85 = vld [vmem:[%s0 + $0x118] sm:$0xf]
  %v86 = vld [vmem:[%s0 + $0x11c] sm:$0xf]
  %v87 = vld [vmem:[%s0 + $0x120] sm:$0xf]
  %v88 = vld [vmem:[%s0 + $0x124] sm:$0xf]
  %v89 = vld [vmem:[%s0 + $0x128] sm:$0xf]
  %v90 = vld [vmem:[%s0 + $0x12c] sm:$0xf]
  %v91 = vld [vmem:[%s0 + $0x130] sm:$0xf]
  %v92 = vld [vmem:[%s0 + $0x134] sm:$0xf]
  %v93 = vld [vmem:[%s0 + $0x138] sm:$0xf]
  %v94 = vld [vmem:[%s0 + $0x13c] sm:$0xf]
  %v95 = vld [vmem:[%s0 + $0x140] sm:$0xf]
  %v96 = vld [vmem:[%s0 + $0x144] sm:$0xf]
  %v97 = vld [vmem:[%s0 + $0x148] sm:$0xf]
  %v98 = vld [vmem:[%s0 + $0x14c] sm:$0xf]
  %v99 = vld [vmem:[%s0 + $0x150] sm:$0xf]
  %v100 = vld [vmem:[%s0 + $0x154] sm:$0xf]
  %v101 = vld [vmem:[%s0 + $0x158] sm:$0xf]
  %v102 = vld [vmem:[%s0 + $0x15c] sm:$0xf]
  %v103 = vld [vmem:[%s0 + $0x160] sm:$0xf]
  %v104 = vld [vmem:[%s0 + $0x164] sm:$0xf]
  %v105 = vld [vmem:[%s0 + $0x168] sm:$0xf]
  %v106 = vld [vmem:[%s0 + $0x16c] sm:$0xf]
  %v107 = vld [vmem:[%s0 + $0x170] sm:$0xf]
  %v108 = vld [vmem:[%s0 + $0x174] sm:$0xf]
  %v109 = vld [vmem:[%s0 + $0x178] sm:$0xf]
  %v110 = vld [vmem:[%s0 + $0x17c] sm:$0xf]
  %v111 = vld [vmem:[%s0 + $0x180] sm:$0xf]
  %v112 = vld [vmem:[%s0 + $0x184] sm:$0xf]
  %v113 = vld [vmem:[%s0 + $0x188] sm:$0xf]
  %v114 = vld [vmem:[%s0 + $0x18c] sm:$0xf]
  %v115 = vld [vmem:[%s0 + $0x190] sm:$0xf]
  %v116 = vld [vmem:[%s0 + $0x194] sm:$0xf]
  %v117 = vld [vmem:[%s0 + $0x198] sm:$0xf]
  %v118 = vld [vmem:[%s0 + $0x19c] sm:$0xf]
  %v119 = vld [vmem:[%s0 + $0x1a0] sm:$0xf]
  %v120 = vld [vmem:[%s0 + $0x1a4] sm:$0xf]
  %v121 = vld [vmem:[%s0 + $0x1a8] sm:$0xf]
  %v122 = vld [vmem:[%s0 + $0x1ac] sm:$0xf]
  %v123 = vld [vmem:[%s0 + $0x1b0] sm:$0xf]
  %v124 = vld [vmem:[%s0 + $0x1b4] sm:$0xf]
  %v125 = vld [vmem:[%s0 + $0x1b8] sm:$0xf]
  %v126 = vld [vmem:[%s0 + $0x1bc] sm:$0xf]
  %v127 = vld [vmem:[%s0 + $0x1c0] sm:$0xf]
  %v128 = vld [vmem:[%s0 + $0x1c4] sm:$0xf]
  %v129 = vld [vmem:[%s0 + $0x1c8] sm:$0xf]
  %v130 = vld [vmem:[%s0 + $0x1cc] sm:$0xf]
  %v131 = vld [vmem:[%s0 + $0x1d0] sm:$0xf]
  %v132 = vld [vmem:[%s0 + $0x1d4] sm:$0xf]
  %v133 = vld [vmem:[%s0 + $0x1d8] sm:$0xf]
  %v134 = vld [vmem:[%s0 + $0x1dc] sm:$0xf]
  %v135 = vld [vmem:[%s0 + $0x1e0] sm:$0xf]
  %v136 = vld [vmem:[%s0 + $0x1e4] sm:$0xf]
  %v137 = vld [vmem:[%s0 + $0x1e8] sm:$0xf]
  %v138 = vld [vmem:[%s0 + $0x1ec] sm:$0xf]
  %v139 = vld [vmem:[%s0 + $0x1f0] sm:$0xf]
  %v140 = vld [vmem:[%s0 + $0x1f4] sm:$0xf]
  %v141 = vld [vmem:[%s0 + $0x1f8] sm:$0xf]
  %v142 = vld [vmem:[%s0 + $0x1fc] sm:$0xf]
  %v143 = vld [vmem:[%s1] sm:$0xf]
  %v144 = vld [vmem:[%s1 + $0x4] sm:$0xf]
  %v145 = vld [vmem:[%s1 + $0x8] sm:$0xf]
  %v146 = vld [vmem:[%s1 + $0xc] sm:$0x3]
  %v147 = vld [vmem:[%s2] sm:$0x1]
  %v149 = vlaneseq
  %v150 = vshrl.u32 %v149, 7
  %v151 = vsub.s32 0, %v150
  %v152 = vrot.slane %v147, %v151
  %v282 = vunpack.c.l.b16 %v15
  %v283 = vunpack.c.l.b16 %v16
  %v284 = vunpack.c.l.b16 %v17
  %v285 = vunpack.c.l.b16 %v18
  %v286 = vunpack.c.l.b16 %v19
  %v287 = vunpack.c.l.b16 %v20
  %v288 = vunpack.c.l.b16 %v21
  %v289 = vunpack.c.l.b16 %v22
  %v290 = vunpack.c.l.b16 %v23
  %v291 = vunpack.c.l.b16 %v24
  %v292 = vunpack.c.l.b16 %v25
  %v293 = vunpack.c.l.b16 %v26
  %v294 = vunpack.c.l.b16 %v27
  %v295 = vunpack.c.l.b16 %v28
  %v296 = vunpack.c.l.b16 %v29
  %v297 = vunpack.c.l.b16 %v30
  %v298 = vunpack.c.l.b16 %v31
  %v299 = vunpack.c.l.b16 %v32
  %v300 = vunpack.c.l.b16 %v33
  %v301 = vunpack.c.l.b16 %v34
  %v302 = vunpack.c.l.b16 %v35
  %v303 = vunpack.c.l.b16 %v36
  %v304 = vunpack.c.l.b16 %v37
  %v305 = vunpack.c.l.b16 %v38
  %v306 = vunpack.c.l.b16 %v39
  %v307 = vunpack.c.l.b16 %v40
  %v308 = vunpack.c.l.b16 %v41
  %v309 = vunpack.c.l.b16 %v42
  %v310 = vunpack.c.l.b16 %v43
  %v311 = vunpack.c.l.b16 %v44
  %v312 = vunpack.c.l.b16 %v45
  %v313 = vunpack.c.l.b16 %v46
  %v314 = vunpack.c.l.b16 %v47
  %v315 = vunpack.c.l.b16 %v48
  %v316 = vunpack.c.l.b16 %v49
  %v317 = vunpack.c.l.b16 %v50
  %v318 = vunpack.c.l.b16 %v51
  %v319 = vunpack.c.l.b16 %v52
  %v320 = vunpack.c.l.b16 %v53
  %v321 = vunpack.c.l.b16 %v54
  %v322 = vunpack.c.l.b16 %v55
  %v323 = vunpack.c.l.b16 %v56
  %v324 = vunpack.c.l.b16 %v57
  %v325 = vunpack.c.l.b16 %v58
  %v326 = vunpack.c.l.b16 %v59
  %v327 = vunpack.c.l.b16 %v60
  %v328 = vunpack.c.l.b16 %v61
  %v329 = vunpack.c.l.b16 %v62
  %v330 = vunpack.c.l.b16 %v63
  %v331 = vunpack.c.l.b16 %v64
  %v332 = vunpack.c.l.b16 %v65
  %v333 = vunpack.c.l.b16 %v66
  %v334 = vunpack.c.l.b16 %v67
  %v335 = vunpack.c.l.b16 %v68
  %v336 = vunpack.c.l.b16 %v69
  %v337 = vunpack.c.l.b16 %v70
  %v338 = vunpack.c.l.b16 %v71
  %v339 = vunpack.c.l.b16 %v72
  %v340 = vunpack.c.l.b16 %v73
  %v341 = vunpack.c.l.b16 %v74
  %v342 = vunpack.c.l.b16 %v75
  %v343 = vunpack.c.l.b16 %v76
  %v344 = vunpack.c.l.b16 %v77
  %v345 = vunpack.c.l.b16 %v78
  %v346 = vunpack.c.l.b16 %v79
  %v347 = vunpack.c.l.b16 %v80
  %v348 = vunpack.c.l.b16 %v81
  %v349 = vunpack.c.l.b16 %v82
  %v350 = vunpack.c.l.b16 %v83
  %v351 = vunpack.c.l.b16 %v84
  %v352 = vunpack.c.l.b16 %v85
  %v353 = vunpack.c.l.b16 %v86
  %v354 = vunpack.c.l.b16 %v87
  %v355 = vunpack.c.l.b16 %v88
  %v356 = vunpack.c.l.b16 %v89
  %v357 = vunpack.c.l.b16 %v90
  %v358 = vunpack.c.l.b16 %v91
  %v359 = vunpack.c.l.b16 %v92
  %v360 = vunpack.c.l.b16 %v93
  %v361 = vunpack.c.l.b16 %v94
  %v362 = vunpack.c.l.b16 %v95
  %v363 = vunpack.c.l.b16 %v96
  %v364 = vunpack.c.l.b16 %v97
  %v365 = vunpack.c.l.b16 %v98
  %v366 = vunpack.c.l.b16 %v99
  %v367 = vunpack.c.l.b16 %v100
  %v368 = vunpack.c.l.b16 %v101
  %v369 = vunpack.c.l.b16 %v102
  %v370 = vunpack.c.l.b16 %v103
  %v371 = vunpack.c.l.b16 %v104
  %v372 = vunpack.c.l.b16 %v105
  %v373 = vunpack.c.l.b16 %v106
  %v374 = vunpack.c.l.b16 %v107
  %v375 = vunpack.c.l.b16 %v108
  %v376 = vunpack.c.l.b16 %v109
  %v377 = vunpack.c.l.b16 %v110
  %v378 = vunpack.c.l.b16 %v111
  %v379 = vunpack.c.l.b16 %v112
  %v380 = vunpack.c.l.b16 %v113
  %v381 = vunpack.c.l.b16 %v114
  %v382 = vunpack.c.l.b16 %v115
  %v383 = vunpack.c.l.b16 %v116
  %v384 = vunpack.c.l.b16 %v117
  %v385 = vunpack.c.l.b16 %v118
  %v386 = vunpack.c.l.b16 %v119
  %v387 = vunpack.c.l.b16 %v120
  %v388 = vunpack.c.l.b16 %v121
  %v389 = vunpack.c.l.b16 %v122
  %v390 = vunpack.c.l.b16 %v123
  %v391 = vunpack.c.l.b16 %v124
  %v392 = vunpack.c.l.b16 %v125
  %v393 = vunpack.c.l.b16 %v126
  %v394 = vunpack.c.l.b16 %v127
  %v395 = vunpack.c.l.b16 %v128
  %v396 = vunpack.c.l.b16 %v129
  %v397 = vunpack.c.l.b16 %v130
  %v398 = vunpack.c.l.b16 %v131
  %v399 = vunpack.c.l.b16 %v132
  %v400 = vunpack.c.l.b16 %v133
  %v401 = vunpack.c.l.b16 %v134
  %v402 = vunpack.c.l.b16 %v135
  %v403 = vunpack.c.l.b16 %v136
  %v404 = vunpack.c.l.b16 %v137
  %v405 = vunpack.c.l.b16 %v138
  %v406 = vunpack.c.l.b16 %v139
  %v407 = vunpack.c.l.b16 %v140
  %v408 = vunpack.c.l.b16 %v141
  %v409 = vunpack.c.l.b16 %v142
  %v410 = vpack.c.b16 %v283, %v282
  %v411 = vpack.c.b16 %v285, %v284
  %v412 = vpack.c.b16 %v287, %v286
  %v413 = vpack.c.b16 %v289, %v288
  %v414 = vpack.c.b16 %v291, %v290
  %v415 = vpack.c.b16 %v293, %v292
  %v416 = vpack.c.b16 %v295, %v294
  %v417 = vpack.c.b16 %v297, %v296
  %v418 = vpack.c.b16 %v299, %v298
  %v419 = vpack.c.b16 %v301, %v300
  %v420 = vpack.c.b16 %v303, %v302
  %v421 = vpack.c.b16 %v305, %v304
  %v422 = vpack.c.b16 %v307, %v306
  %v423 = vpack.c.b16 %v309, %v308
  %v424 = vpack.c.b16 %v311, %v310
  %v425 = vpack.c.b16 %v313, %v312
  %v426 = vpack.c.b16 %v315, %v314
  %v427 = vpack.c.b16 %v317, %v316
  %v428 = vpack.c.b16 %v319, %v318
  %v429 = vpack.c.b16 %v321, %v320
  %v430 = vpack.c.b16 %v323, %v322
  %v431 = vpack.c.b16 %v325, %v324
  %v432 = vpack.c.b16 %v327, %v326
  %v433 = vpack.c.b16 %v329, %v328
  %v434 = vpack.c.b16 %v331, %v330
  %v435 = vpack.c.b16 %v333, %v332
  %v436 = vpack.c.b16 %v335, %v334
  %v437 = vpack.c.b16 %v337, %v336
  %v438 = vpack.c.b16 %v339, %v338
  %v439 = vpack.c.b16 %v341, %v340
  %v440 = vpack.c.b16 %v343, %v342
  %v441 = vpack.c.b16 %v345, %v344
  %v442 = vpack.c.b16 %v347, %v346
  %v443 = vpack.c.b16 %v349, %v348
  %v444 = vpack.c.b16 %v351, %v350
  %v445 = vpack.c.b16 %v353, %v352
  %v446 = vpack.c.b16 %v355, %v354
  %v447 = vpack.c.b16 %v357, %v356
  %v448 = vpack.c.b16 %v359, %v358
  %v449 = vpack.c.b16 %v361, %v360
  %v450 = vpack.c.b16 %v363, %v362
  %v451 = vpack.c.b16 %v365, %v364
  %v452 = vpack.c.b16 %v367, %v366
  %v453 = vpack.c.b16 %v369, %v368
  %v454 = vpack.c.b16 %v371, %v370
  %v455 = vpack.c.b16 %v373, %v372
  %v456 = vpack.c.b16 %v375, %v374
  %v457 = vpack.c.b16 %v377, %v376
  %v458 = vpack.c.b16 %v379, %v378
  %v459 = vpack.c.b16 %v381, %v380
  %v460 = vpack.c.b16 %v383, %v382
  %v461 = vpack.c.b16 %v385, %v384
  %v462 = vpack.c.b16 %v387, %v386
  %v463 = vpack.c.b16 %v389, %v388
  %v464 = vpack.c.b16 %v391, %v390
  %v465 = vpack.c.b16 %v393, %v392
  %v466 = vpack.c.b16 %v395, %v394
  %v467 = vpack.c.b16 %v397, %v396
  %v468 = vpack.c.b16 %v399, %v398
  %v469 = vpack.c.b16 %v401, %v400
  %v470 = vpack.c.b16 %v403, %v402
  %v471 = vpack.c.b16 %v405, %v404
  %v472 = vpack.c.b16 %v407, %v406
  %v473 = vpack.c.b16 %v409, %v408
  %v478 = vunpack.c.l.b16 %v143
  %v479 = vunpack.c.l.b16 %v144
  %v480 = vunpack.c.l.b16 %v145
  %v481 = vunpack.c.l.b16 %v146
  %v482 = vpack.c.b16 %v479, %v478
  %v483 = vpack.c.b16 %v481, %v480
  %vm485 = vcmask 220160
  %v487 = vsel %vm485, %v410, 0
  %v490 = vsel %vm485, %v411, 0
  %v493 = vsel %vm485, %v412, 0
  %v496 = vsel %vm485, %v413, 0
  %v499 = vsel %vm485, %v414, 0
  %v502 = vsel %vm485, %v415, 0
  %v505 = vsel %vm485, %v416, 0
  %v508 = vsel %vm485, %v417, 0
  %v511 = vsel %vm485, %v418, 0
  %v514 = vsel %vm485, %v419, 0
  %v517 = vsel %vm485, %v420, 0
  %v520 = vsel %vm485, %v421, 0
  %v523 = vsel %vm485, %v422, 0
  %v526 = vsel %vm485, %v423, 0
  %v529 = vsel %vm485, %v424, 0
  %v532 = vsel %vm485, %v425, 0
  %v535 = vsel %vm485, %v426, 0
  %v538 = vsel %vm485, %v427, 0
  %v541 = vsel %vm485, %v428, 0
  %v544 = vsel %vm485, %v429, 0
  %v547 = vsel %vm485, %v430, 0
  %v550 = vsel %vm485, %v431, 0
  %v553 = vsel %vm485, %v432, 0
  %v556 = vsel %vm485, %v433, 0
  %v559 = vsel %vm485, %v434, 0
  %v562 = vsel %vm485, %v435, 0
  %v565 = vsel %vm485, %v436, 0
  %v568 = vsel %vm485, %v437, 0
  %v571 = vsel %vm485, %v438, 0
  %v574 = vsel %vm485, %v439, 0
  %v577 = vsel %vm485, %v440, 0
  %v580 = vsel %vm485, %v441, 0
  %v583 = vsel %vm485, %v442, 0
  %v586 = vsel %vm485, %v443, 0
  %v589 = vsel %vm485, %v444, 0
  %v592 = vsel %vm485, %v445, 0
  %v595 = vsel %vm485, %v446, 0
  %v598 = vsel %vm485, %v447, 0
  %v601 = vsel %vm485, %v448, 0
  %v604 = vsel %vm485, %v449, 0
  %v607 = vsel %vm485, %v450, 0
  %v610 = vsel %vm485, %v451, 0
  %v613 = vsel %vm485, %v452, 0
  %v616 = vsel %vm485, %v453, 0
  %v619 = vsel %vm485, %v454, 0
  %v622 = vsel %vm485, %v455, 0
  %v625 = vsel %vm485, %v456, 0
  %v628 = vsel %vm485, %v457, 0
  %v631 = vsel %vm485, %v458, 0
  %v634 = vsel %vm485, %v459, 0
  %v637 = vsel %vm485, %v460, 0
  %v640 = vsel %vm485, %v461, 0
  %v643 = vsel %vm485, %v462, 0
  %v646 = vsel %vm485, %v463, 0
  %v649 = vsel %vm485, %v464, 0
  %v652 = vsel %vm485, %v465, 0
  %v655 = vsel %vm485, %v466, 0
  %v658 = vsel %vm485, %v467, 0
  %v661 = vsel %vm485, %v468, 0
  %v664 = vsel %vm485, %v469, 0
  %v667 = vsel %vm485, %v470, 0
  %v670 = vsel %vm485, %v471, 0
  %v673 = vsel %vm485, %v472, 0
  %v676 = vsel %vm485, %v473, 0
  %vm678 = vcmask 1044480
  %vm679 = vcmask 1045504
  %v680 = vsel %vm678, 4294967295, 65535
  %v681 = vsel %vm679, %v680, 0
  %v683 = vand.u32 %v483, %v681
  %685 = vmatprep.subr.bf16.mxu0 0
  %686 = vmatpush1.bf16.msra.mxu0 %v482
  %687 = vmatprep.subr.bf16.mxu0 0
  %688 = vmatpush1.bf16.msra.mxu0 %v683
  %689 = vmatprep.subr.bf16.mxu0 0
  %690 = vmatpush1.bf16.msra.mxu0 0
  %691 = vmatprep.subr.bf16.mxu0 0
  %692 = vmatpush1.bf16.msra.mxu0 0
  %693 = vmatprep.subr.bf16.mxu0 0
  %694 = vmatpush1.bf16.msra.mxu0 0
  %695 = vmatprep.subr.bf16.mxu0 0
  %696 = vmatpush1.bf16.msra.mxu0 0
  %697 = vmatprep.subr.bf16.mxu0 0
  %698 = vmatpush1.bf16.msra.mxu0 0
  %699 = vmatprep.subr.bf16.mxu0 0
  %700 = vmatpush1.bf16.msra.mxu0 0
  %701 = vmatprep.subr.bf16.mxu0 0
  %702 = vmatpush1.bf16.msra.mxu0 0
  %703 = vmatprep.subr.bf16.mxu0 0
  %704 = vmatpush1.bf16.msra.mxu0 0
  %705 = vmatprep.subr.bf16.mxu0 0
  %706 = vmatpush1.bf16.msra.mxu0 0
  %707 = vmatprep.subr.bf16.mxu0 0
  %708 = vmatpush1.bf16.msra.mxu0 0
  %709 = vmatprep.subr.bf16.mxu0 0
  %710 = vmatpush1.bf16.msra.mxu0 0
  %711 = vmatprep.subr.bf16.mxu0 0
  %712 = vmatpush1.bf16.msra.mxu0 0
  %713 = vmatprep.subr.bf16.mxu0 0
  %714 = vmatpush1.bf16.msra.mxu0 0
  %715 = vmatprep.subr.bf16.mxu0 0
  %716 = vmatpush1.bf16.msra.mxu0 0
  %717 = vmatprep.mubr.bf16.mxu0 0
  %718 = vmatmul.mubr.bf16.gmra.mrb[0].mxu0 %v487
  %v719 = vpop.f32.mrb[0].mxu0
  %v720 = vadd.f32 %v152, %v719
  %v721 = vpop.f32.mrb[0].mxu0
  %v722 = vpop.f32.mrb[0].mxu0
  %v723 = vadd.f32 %v152, %v722
  %v724 = vpop.f32.mrb[0].mxu0
  %725 = vmatprep.mubr.bf16.mxu0 0
  %726 = vmatmul.mubr.bf16.gmra.mrb[0].mxu0 %v490
  %v727 = vpop.f32.mrb[0].mxu0
  %v728 = vadd.f32 %v152, %v727
  %v729 = vpop.f32.mrb[0].mxu0
  %v730 = vpop.f32.mrb[0].mxu0
  %v731 = vadd.f32 %v152, %v730
  %v732 = vpop.f32.mrb[0].mxu0
  %733 = vmatprep.mubr.bf16.mxu0 0
  %734 = vmatmul.mubr.bf16.gmra.mrb[0].mxu0 %v493
  %v735 = vpop.f32.mrb[0].mxu0
  %v736 = vadd.f32 %v152, %v735
  %v737 = vpop.f32.mrb[0].mxu0
  %v738 = vpop.f32.mrb[0].mxu0
  %v739 = vadd.f32 %v152, %v738
  %v740 = vpop.f32.mrb[0].mxu0
  %741 = vmatprep.mubr.bf16.mxu0 0
  %742 = vmatmul.mubr.bf16.gmra.mrb[0].mxu0 %v496
  %v743 = vpop.f32.mrb[0].mxu0
  %v744 = vadd.f32 %v152, %v743
  %v745 = vpop.f32.mrb[0].mxu0
  %v746 = vpop.f32.mrb[0].mxu0
  %v747 = vadd.f32 %v152, %v746
  %v748 = vpop.f32.mrb[0].mxu0
  %749 = vmatprep.mubr.bf16.mxu0 0
  %750 = vmatmul.mubr.bf16.gmra.mrb[0].mxu0 %v499
  %v751 = vpop.f32.mrb[0].mxu0
  %v752 = vadd.f32 %v152, %v751
  %v753 = vpop.f32.mrb[0].mxu0
  %v754 = vpop.f32.mrb[0].mxu0
  %v755 = vadd.f32 %v152, %v754
  %v756 = vpop.f32.mrb[0].mxu0
  %757 = vmatprep.mubr.bf16.mxu0 0
  %758 = vmatmul.mubr.bf16.gmra.mrb[0].mxu0 %v502
  %v759 = vpop.f32.mrb[0].mxu0
  %v760 = vadd.f32 %v152, %v759
  %v761 = vpop.f32.mrb[0].mxu0
  %v762 = vpop.f32.mrb[0].mxu0
  %v763 = vadd.f32 %v152, %v762
  %v764 = vpop.f32.mrb[0].mxu0
  %765 = vmatprep.mubr.bf16.mxu0 0
  %766 = vmatmul.mubr.bf16.gmra.mrb[0].mxu0 %v505
  %v767 = vpop.f32.mrb[0].mxu0
  %v768 = vadd.f32 %v152, %v767
  %v769 = vpop.f32.mrb[0].mxu0
  %v770 = vpop.f32.mrb[0].mxu0
  %v771 = vadd.f32 %v152, %v770
  %v772 = vpop.f32.mrb[0].mxu0
  %773 = vmatprep.mubr.bf16.mxu0 0
  %774 = vmatmul.mubr.bf16.gmra.mrb[0].mxu0 %v508
  %v775 = vpop.f32.mrb[0].mxu0
  %v776 = vadd.f32 %v152, %v775
  %v777 = vpop.f32.mrb[0].mxu0
  %v778 = vpop.f32.mrb[0].mxu0
  %v779 = vadd.f32 %v152, %v778
  %v780 = vpop.f32.mrb[0].mxu0
  %781 = vmatprep.mubr.bf16.mxu0 0
  %782 = vmatmul.mubr.bf16.gmra.mrb[0].mxu0 %v511
  %v783 = vpop.f32.mrb[0].mxu0
  %v784 = vadd.f32 %v152, %v783
  %v785 = vpop.f32.mrb[0].mxu0
  %v786 = vpop.f32.mrb[0].mxu0
  %v787 = vadd.f32 %v152, %v786
  %v788 = vpop.f32.mrb[0].mxu0
  %789 = vmatprep.mubr.bf16.mxu0 0
  %790 = vmatmul.mubr.bf16.gmra.mrb[0].mxu0 %v514
  %v791 = vpop.f32.mrb[0].mxu0
  %v792 = vadd.f32 %v152, %v791
  %v793 = vpop.f32.mrb[0].mxu0
  %v794 = vpop.f32.mrb[0].mxu0
  %v795 = vadd.f32 %v152, %v794
  %v796 = vpop.f32.mrb[0].mxu0
  %797 = vmatprep.mubr.bf16.mxu0 0
  %798 = vmatmul.mubr.bf16.gmra.mrb[0].mxu0 %v517
  %v799 = vpop.f32.mrb[0].mxu0
  %v800 = vadd.f32 %v152, %v799
  %v801 = vpop.f32.mrb[0].mxu0
  %v802 = vpop.f32.mrb[0].mxu0
  %v803 = vadd.f32 %v152, %v802
  %v804 = vpop.f32.mrb[0].mxu0
  %805 = vmatprep.mubr.bf16.mxu0 0
  %806 = vmatmul.mubr.bf16.gmra.mrb[0].mxu0 %v520
  %v807 = vpop.f32.mrb[0].mxu0
  %v808 = vadd.f32 %v152, %v807
  %v809 = vpop.f32.mrb[0].mxu0
  %v810 = vpop.f32.mrb[0].mxu0
  %v811 = vadd.f32 %v152, %v810
  %v812 = vpop.f32.mrb[0].mxu0
  %813 = vmatprep.mubr.bf16.mxu0 0
  %814 = vmatmul.mubr.bf16.gmra.mrb[0].mxu0 %v523
  %v815 = vpop.f32.mrb[0].mxu0
  %v816 = vadd.f32 %v152, %v815
  %v817 = vpop.f32.mrb[0].mxu0
  %v818 = vpop.f32.mrb[0].mxu0
  %v819 = vadd.f32 %v152, %v818
  %v820 = vpop.f32.mrb[0].mxu0
  %821 = vmatprep.mubr.bf16.mxu0 0
  %822 = vmatmul.mubr.bf16.gmra.mrb[0].mxu0 %v526
  %v823 = vpop.f32.mrb[0].mxu0
  %v824 = vadd.f32 %v152, %v823
  %v825 = vpop.f32.mrb[0].mxu0
  %v826 = vpop.f32.mrb[0].mxu0
  %v827 = vadd.f32 %v152, %v826
  %v828 = vpop.f32.mrb[0].mxu0
  %829 = vmatprep.mubr.bf16.mxu0 0
  %830 = vmatmul.mubr.bf16.gmra.mrb[0].mxu0 %v529
  %v831 = vpop.f32.mrb[0].mxu0
  %v832 = vadd.f32 %v152, %v831
  %v833 = vpop.f32.mrb[0].mxu0
  %v834 = vpop.f32.mrb[0].mxu0
  %v835 = vadd.f32 %v152, %v834
  %v836 = vpop.f32.mrb[0].mxu0
  %837 = vmatprep.mubr.bf16.mxu0 0
  %838 = vmatmul.mubr.bf16.gmra.mrb[0].mxu0 %v532
  %v839 = vpop.f32.mrb[0].mxu0
  %v840 = vadd.f32 %v152, %v839
  %v841 = vpop.f32.mrb[0].mxu0
  %v842 = vpop.f32.mrb[0].mxu0
  %v843 = vadd.f32 %v152, %v842
  %v844 = vpop.f32.mrb[0].mxu0
  %845 = vmatprep.mubr.bf16.mxu0 0
  %846 = vmatmul.mubr.bf16.gmra.mrb[0].mxu0 %v535
  %v847 = vpop.f32.mrb[0].mxu0
  %v848 = vadd.f32 %v152, %v847
  %v849 = vpop.f32.mrb[0].mxu0
  %v850 = vpop.f32.mrb[0].mxu0
  %v851 = vadd.f32 %v152, %v850
  %v852 = vpop.f32.mrb[0].mxu0
  %853 = vmatprep.mubr.bf16.mxu0 0
  %854 = vmatmul.mubr.bf16.gmra.mrb[0].mxu0 %v538
  %v855 = vpop.f32.mrb[0].mxu0
  %v856 = vadd.f32 %v152, %v855
  %v857 = vpop.f32.mrb[0].mxu0
  %v858 = vpop.f32.mrb[0].mxu0
  %v859 = vadd.f32 %v152, %v858
  %v860 = vpop.f32.mrb[0].mxu0
  %861 = vmatprep.mubr.bf16.mxu0 0
  %862 = vmatmul.mubr.bf16.gmra.mrb[0].mxu0 %v541
  %v863 = vpop.f32.mrb[0].mxu0
  %v864 = vadd.f32 %v152, %v863
  %v865 = vpop.f32.mrb[0].mxu0
  %v866 = vpop.f32.mrb[0].mxu0
  %v867 = vadd.f32 %v152, %v866
  %v868 = vpop.f32.mrb[0].mxu0
  %869 = vmatprep.mubr.bf16.mxu0 0
  %870 = vmatmul.mubr.bf16.gmra.mrb[0].mxu0 %v544
  %v871 = vpop.f32.mrb[0].mxu0
  %v872 = vadd.f32 %v152, %v871
  %v873 = vpop.f32.mrb[0].mxu0
  %v874 = vpop.f32.mrb[0].mxu0
  %v875 = vadd.f32 %v152, %v874
  %v876 = vpop.f32.mrb[0].mxu0
  %877 = vmatprep.mubr.bf16.mxu0 0
  %878 = vmatmul.mubr.bf16.gmra.mrb[0].mxu0 %v547
  %v879 = vpop.f32.mrb[0].mxu0
  %v880 = vadd.f32 %v152, %v879
  %v881 = vpop.f32.mrb[0].mxu0
  %v882 = vpop.f32.mrb[0].mxu0
  %v883 = vadd.f32 %v152, %v882
  %v884 = vpop.f32.mrb[0].mxu0
  %885 = vmatprep.mubr.bf16.mxu0 0
  %886 = vmatmul.mubr.bf16.gmra.mrb[0].mxu0 %v550
  %v887 = vpop.f32.mrb[0].mxu0
  %v888 = vadd.f32 %v152, %v887
  %v889 = vpop.f32.mrb[0].mxu0
  %v890 = vpop.f32.mrb[0].mxu0
  %v891 = vadd.f32 %v152, %v890
  %v892 = vpop.f32.mrb[0].mxu0
  %893 = vmatprep.mubr.bf16.mxu0 0
  %894 = vmatmul.mubr.bf16.gmra.mrb[0].mxu0 %v553
  %v895 = vpop.f32.mrb[0].mxu0
  %v896 = vadd.f32 %v152, %v895
  %v897 = vpop.f32.mrb[0].mxu0
  %v898 = vpop.f32.mrb[0].mxu0
  %v899 = vadd.f32 %v152, %v898
  %v900 = vpop.f32.mrb[0].mxu0
  %901 = vmatprep.mubr.bf16.mxu0 0
  %902 = vmatmul.mubr.bf16.gmra.mrb[0].mxu0 %v556
  %v903 = vpop.f32.mrb[0].mxu0
  %v904 = vadd.f32 %v152, %v903
  %v905 = vpop.f32.mrb[0].mxu0
  %v906 = vpop.f32.mrb[0].mxu0
  %v907 = vadd.f32 %v152, %v906
  %v908 = vpop.f32.mrb[0].mxu0
  %909 = vmatprep.mubr.bf16.mxu0 0
  %910 = vmatmul.mubr.bf16.gmra.mrb[0].mxu0 %v559
  %v911 = vpop.f32.mrb[0].mxu0
  %v912 = vadd.f32 %v152, %v911
  %v913 = vpop.f32.mrb[0].mxu0
  %v914 = vpop.f32.mrb[0].mxu0
  %v915 = vadd.f32 %v152, %v914
  %v916 = vpop.f32.mrb[0].mxu0
  %917 = vmatprep.mubr.bf16.mxu0 0
  %918 = vmatmul.mubr.bf16.gmra.mrb[0].mxu0 %v562
  %v919 = vpop.f32.mrb[0].mxu0
  %v920 = vadd.f32 %v152, %v919
  %v921 = vpop.f32.mrb[0].mxu0
  %v922 = vpop.f32.mrb[0].mxu0
  %v923 = vadd.f32 %v152, %v922
  %v924 = vpop.f32.mrb[0].mxu0
  %925 = vmatprep.mubr.bf16.mxu0 0
  %926 = vmatmul.mubr.bf16.gmra.mrb[0].mxu0 %v565
  %v927 = vpop.f32.mrb[0].mxu0
  %v928 = vadd.f32 %v152, %v927
  %v929 = vpop.f32.mrb[0].mxu0
  %v930 = vpop.f32.mrb[0].mxu0
  %v931 = vadd.f32 %v152, %v930
  %v932 = vpop.f32.mrb[0].mxu0
  %933 = vmatprep.mubr.bf16.mxu0 0
  %934 = vmatmul.mubr.bf16.gmra.mrb[0].mxu0 %v568
  %v935 = vpop.f32.mrb[0].mxu0
  %v936 = vadd.f32 %v152, %v935
  %v937 = vpop.f32.mrb[0].mxu0
  %v938 = vpop.f32.mrb[0].mxu0
  %v939 = vadd.f32 %v152, %v938
  %v940 = vpop.f32.mrb[0].mxu0
  %941 = vmatprep.mubr.bf16.mxu0 0
  %942 = vmatmul.mubr.bf16.gmra.mrb[0].mxu0 %v571
  %v943 = vpop.f32.mrb[0].mxu0
  %v944 = vadd.f32 %v152, %v943
  %v945 = vpop.f32.mrb[0].mxu0
  %v946 = vpop.f32.mrb[0].mxu0
  %v947 = vadd.f32 %v152, %v946
  %v948 = vpop.f32.mrb[0].mxu0
  %949 = vmatprep.mubr.bf16.mxu0 0
  %950 = vmatmul.mubr.bf16.gmra.mrb[0].mxu0 %v574
  %v951 = vpop.f32.mrb[0].mxu0
  %v952 = vadd.f32 %v152, %v951
  %v953 = vpop.f32.mrb[0].mxu0
  %v954 = vpop.f32.mrb[0].mxu0
  %v955 = vadd.f32 %v152, %v954
  %v956 = vpop.f32.mrb[0].mxu0
  %957 = vmatprep.mubr.bf16.mxu0 0
  %958 = vmatmul.mubr.bf16.gmra.mrb[0].mxu0 %v577
  %v959 = vpop.f32.mrb[0].mxu0
  %v960 = vadd.f32 %v152, %v959
  %v961 = vpop.f32.mrb[0].mxu0
  %v962 = vpop.f32.mrb[0].mxu0
  %v963 = vadd.f32 %v152, %v962
  %v964 = vpop.f32.mrb[0].mxu0
  %965 = vmatprep.mubr.bf16.mxu0 0
  %966 = vmatmul.mubr.bf16.gmra.mrb[0].mxu0 %v580
  %v967 = vpop.f32.mrb[0].mxu0
  %v968 = vadd.f32 %v152, %v967
  %v969 = vpop.f32.mrb[0].mxu0
  %v970 = vpop.f32.mrb[0].mxu0
  %v971 = vadd.f32 %v152, %v970
  %v972 = vpop.f32.mrb[0].mxu0
  %973 = vmatprep.mubr.bf16.mxu0 0
  %974 = vmatmul.mubr.bf16.gmra.mrb[0].mxu0 %v583
  %v975 = vpop.f32.mrb[0].mxu0
  %v976 = vadd.f32 %v152, %v975
  %v977 = vpop.f32.mrb[0].mxu0
  %v978 = vpop.f32.mrb[0].mxu0
  %v979 = vadd.f32 %v152, %v978
  %v980 = vpop.f32.mrb[0].mxu0
  %981 = vmatprep.mubr.bf16.mxu0 0
  %982 = vmatmul.mubr.bf16.gmra.mrb[0].mxu0 %v586
  %v983 = vpop.f32.mrb[0].mxu0
  %v984 = vadd.f32 %v152, %v983
  %v985 = vpop.f32.mrb[0].mxu0
  %v986 = vpop.f32.mrb[0].mxu0
  %v987 = vadd.f32 %v152, %v986
  %v988 = vpop.f32.mrb[0].mxu0
  %989 = vmatprep.mubr.bf16.mxu0 0
  %990 = vmatmul.mubr.bf16.gmra.mrb[0].mxu0 %v589
  %v991 = vpop.f32.mrb[0].mxu0
  %v992 = vadd.f32 %v152, %v991
  %v993 = vpop.f32.mrb[0].mxu0
  %v994 = vpop.f32.mrb[0].mxu0
  %v995 = vadd.f32 %v152, %v994
  %v996 = vpop.f32.mrb[0].mxu0
  %997 = vmatprep.mubr.bf16.mxu0 0
  %998 = vmatmul.mubr.bf16.gmra.mrb[0].mxu0 %v592
  %v999 = vpop.f32.mrb[0].mxu0
  %v1000 = vadd.f32 %v152, %v999
  %v1001 = vpop.f32.mrb[0].mxu0
  %v1002 = vpop.f32.mrb[0].mxu0
  %v1003 = vadd.f32 %v152, %v1002
  %v1004 = vpop.f32.mrb[0].mxu0
  %1005 = vmatprep.mubr.bf16.mxu0 0
  %1006 = vmatmul.mubr.bf16.gmra.mrb[0].mxu0 %v595
  %v1007 = vpop.f32.mrb[0].mxu0
  %v1008 = vadd.f32 %v152, %v1007
  %v1009 = vpop.f32.mrb[0].mxu0
  %v1010 = vpop.f32.mrb[0].mxu0
  %v1011 = vadd.f32 %v152, %v1010
  %v1012 = vpop.f32.mrb[0].mxu0
  %1013 = vmatprep.mubr.bf16.mxu0 0
  %1014 = vmatmul.mubr.bf16.gmra.mrb[0].mxu0 %v598
  %v1015 = vpop.f32.mrb[0].mxu0
  %v1016 = vadd.f32 %v152, %v1015
  %v1017 = vpop.f32.mrb[0].mxu0
  %v1018 = vpop.f32.mrb[0].mxu0
  %v1019 = vadd.f32 %v152, %v1018
  %v1020 = vpop.f32.mrb[0].mxu0
  %1021 = vmatprep.mubr.bf16.mxu0 0
  %1022 = vmatmul.mubr.bf16.gmra.mrb[0].mxu0 %v601
  %v1023 = vpop.f32.mrb[0].mxu0
  %v1024 = vadd.f32 %v152, %v1023
  %v1025 = vpop.f32.mrb[0].mxu0
  %v1026 = vpop.f32.mrb[0].mxu0
  %v1027 = vadd.f32 %v152, %v1026
  %v1028 = vpop.f32.mrb[0].mxu0
  %1029 = vmatprep.mubr.bf16.mxu0 0
  %1030 = vmatmul.mubr.bf16.gmra.mrb[0].mxu0 %v604
  %v1031 = vpop.f32.mrb[0].mxu0
  %v1032 = vadd.f32 %v152, %v1031
  %v1033 = vpop.f32.mrb[0].mxu0
  %v1034 = vpop.f32.mrb[0].mxu0
  %v1035 = vadd.f32 %v152, %v1034
  %v1036 = vpop.f32.mrb[0].mxu0
  %1037 = vmatprep.mubr.bf16.mxu0 0
  %1038 = vmatmul.mubr.bf16.gmra.mrb[0].mxu0 %v607
  %v1039 = vpop.f32.mrb[0].mxu0
  %v1040 = vadd.f32 %v152, %v1039
  %v1041 = vpop.f32.mrb[0].mxu0
  %v1042 = vpop.f32.mrb[0].mxu0
  %v1043 = vadd.f32 %v152, %v1042
  %v1044 = vpop.f32.mrb[0].mxu0
  %1045 = vmatprep.mubr.bf16.mxu0 0
  %1046 = vmatmul.mubr.bf16.gmra.mrb[0].mxu0 %v610
  %v1047 = vpop.f32.mrb[0].mxu0
  %v1048 = vadd.f32 %v152, %v1047
  %v1049 = vpop.f32.mrb[0].mxu0
  %v1050 = vpop.f32.mrb[0].mxu0
  %v1051 = vadd.f32 %v152, %v1050
  %v1052 = vpop.f32.mrb[0].mxu0
  %1053 = vmatprep.mubr.bf16.mxu0 0
  %1054 = vmatmul.mubr.bf16.gmra.mrb[0].mxu0 %v613
  %v1055 = vpop.f32.mrb[0].mxu0
  %v1056 = vadd.f32 %v152, %v1055
  %v1057 = vpop.f32.mrb[0].mxu0
  %v1058 = vpop.f32.mrb[0].mxu0
  %v1059 = vadd.f32 %v152, %v1058
  %v1060 = vpop.f32.mrb[0].mxu0
  %1061 = vmatprep.mubr.bf16.mxu0 0
  %1062 = vmatmul.mubr.bf16.gmra.mrb[0].mxu0 %v616
  %v1063 = vpop.f32.mrb[0].mxu0
  %v1064 = vadd.f32 %v152, %v1063
  %v1065 = vpop.f32.mrb[0].mxu0
  %v1066 = vpop.f32.mrb[0].mxu0
  %v1067 = vadd.f32 %v152, %v1066
  %v1068 = vpop.f32.mrb[0].mxu0
  %1069 = vmatprep.mubr.bf16.mxu0 0
  %1070 = vmatmul.mubr.bf16.gmra.mrb[0].mxu0 %v619
  %v1071 = vpop.f32.mrb[0].mxu0
  %v1072 = vadd.f32 %v152, %v1071
  %v1073 = vpop.f32.mrb[0].mxu0
  %v1074 = vpop.f32.mrb[0].mxu0
  %v1075 = vadd.f32 %v152, %v1074
  %v1076 = vpop.f32.mrb[0].mxu0
  %1077 = vmatprep.mubr.bf16.mxu0 0
  %1078 = vmatmul.mubr.bf16.gmra.mrb[0].mxu0 %v622
  %v1079 = vpop.f32.mrb[0].mxu0
  %v1080 = vadd.f32 %v152, %v1079
  %v1081 = vpop.f32.mrb[0].mxu0
  %v1082 = vpop.f32.mrb[0].mxu0
  %v1083 = vadd.f32 %v152, %v1082
  %v1084 = vpop.f32.mrb[0].mxu0
  %1085 = vmatprep.mubr.bf16.mxu0 0
  %1086 = vmatmul.mubr.bf16.gmra.mrb[0].mxu0 %v625
  %v1087 = vpop.f32.mrb[0].mxu0
  %v1088 = vadd.f32 %v152, %v1087
  %v1089 = vpop.f32.mrb[0].mxu0
  %v1090 = vpop.f32.mrb[0].mxu0
  %v1091 = vadd.f32 %v152, %v1090
  %v1092 = vpop.f32.mrb[0].mxu0
  %1093 = vmatprep.mubr.bf16.mxu0 0
  %1094 = vmatmul.mubr.bf16.gmra.mrb[0].mxu0 %v628
  %v1095 = vpop.f32.mrb[0].mxu0
  %v1096 = vadd.f32 %v152, %v1095
  %v1097 = vpop.f32.mrb[0].mxu0
  %v1098 = vpop.f32.mrb[0].mxu0
  %v1099 = vadd.f32 %v152, %v1098
  %v1100 = vpop.f32.mrb[0].mxu0
  %1101 = vmatprep.mubr.bf16.mxu0 0
  %1102 = vmatmul.mubr.bf16.gmra.mrb[0].mxu0 %v631
  %v1103 = vpop.f32.mrb[0].mxu0
  %v1104 = vadd.f32 %v152, %v1103
  %v1105 = vpop.f32.mrb[0].mxu0
  %v1106 = vpop.f32.mrb[0].mxu0
  %v1107 = vadd.f32 %v152, %v1106
  %v1108 = vpop.f32.mrb[0].mxu0
  %1109 = vmatprep.mubr.bf16.mxu0 0
  %1110 = vmatmul.mubr.bf16.gmra.mrb[0].mxu0 %v634
  %v1111 = vpop.f32.mrb[0].mxu0
  %v1112 = vadd.f32 %v152, %v1111
  %v1113 = vpop.f32.mrb[0].mxu0
  %v1114 = vpop.f32.mrb[0].mxu0
  %v1115 = vadd.f32 %v152, %v1114
  %v1116 = vpop.f32.mrb[0].mxu0
  %1117 = vmatprep.mubr.bf16.mxu0 0
  %1118 = vmatmul.mubr.bf16.gmra.mrb[0].mxu0 %v637
  %v1119 = vpop.f32.mrb[0].mxu0
  %v1120 = vadd.f32 %v152, %v1119
  %v1121 = vpop.f32.mrb[0].mxu0
  %v1122 = vpop.f32.mrb[0].mxu0
  %v1123 = vadd.f32 %v152, %v1122
  %v1124 = vpop.f32.mrb[0].mxu0
  %1125 = vmatprep.mubr.bf16.mxu0 0
  %1126 = vmatmul.mubr.bf16.gmra.mrb[0].mxu0 %v640
  %v1127 = vpop.f32.mrb[0].mxu0
  %v1128 = vadd.f32 %v152, %v1127
  %v1129 = vpop.f32.mrb[0].mxu0
  %v1130 = vpop.f32.mrb[0].mxu0
  %v1131 = vadd.f32 %v152, %v1130
  %v1132 = vpop.f32.mrb[0].mxu0
  %1133 = vmatprep.mubr.bf16.mxu0 0
  %1134 = vmatmul.mubr.bf16.gmra.mrb[0].mxu0 %v643
  %v1135 = vpop.f32.mrb[0].mxu0
  %v1136 = vadd.f32 %v152, %v1135
  %v1137 = vpop.f32.mrb[0].mxu0
  %v1138 = vpop.f32.mrb[0].mxu0
  %v1139 = vadd.f32 %v152, %v1138
  %v1140 = vpop.f32.mrb[0].mxu0
  %1141 = vmatprep.mubr.bf16.mxu0 0
  %1142 = vmatmul.mubr.bf16.gmra.mrb[0].mxu0 %v646
  %v1143 = vpop.f32.mrb[0].mxu0
  %v1144 = vadd.f32 %v152, %v1143
  %v1145 = vpop.f32.mrb[0].mxu0
  %v1146 = vpop.f32.mrb[0].mxu0
  %v1147 = vadd.f32 %v152, %v1146
  %v1148 = vpop.f32.mrb[0].mxu0
  %1149 = vmatprep.mubr.bf16.mxu0 0
  %1150 = vmatmul.mubr.bf16.gmra.mrb[0].mxu0 %v649
  %v1151 = vpop.f32.mrb[0].mxu0
  %v1152 = vadd.f32 %v152, %v1151
  %v1153 = vpop.f32.mrb[0].mxu0
  %v1154 = vpop.f32.mrb[0].mxu0
  %v1155 = vadd.f32 %v152, %v1154
  %v1156 = vpop.f32.mrb[0].mxu0
  %1157 = vmatprep.mubr.bf16.mxu0 0
  %1158 = vmatmul.mubr.bf16.gmra.mrb[0].mxu0 %v652
  %v1159 = vpop.f32.mrb[0].mxu0
  %v1160 = vadd.f32 %v152, %v1159
  %v1161 = vpop.f32.mrb[0].mxu0
  %v1162 = vpop.f32.mrb[0].mxu0
  %v1163 = vadd.f32 %v152, %v1162
  %v1164 = vpop.f32.mrb[0].mxu0
  %1165 = vmatprep.mubr.bf16.mxu0 0
  %1166 = vmatmul.mubr.bf16.gmra.mrb[0].mxu0 %v655
  %v1167 = vpop.f32.mrb[0].mxu0
  %v1168 = vadd.f32 %v152, %v1167
  %v1169 = vpop.f32.mrb[0].mxu0
  %v1170 = vpop.f32.mrb[0].mxu0
  %v1171 = vadd.f32 %v152, %v1170
  %v1172 = vpop.f32.mrb[0].mxu0
  %1173 = vmatprep.mubr.bf16.mxu0 0
  %1174 = vmatmul.mubr.bf16.gmra.mrb[0].mxu0 %v658
  %v1175 = vpop.f32.mrb[0].mxu0
  %v1176 = vadd.f32 %v152, %v1175
  %v1177 = vpop.f32.mrb[0].mxu0
  %v1178 = vpop.f32.mrb[0].mxu0
  %v1179 = vadd.f32 %v152, %v1178
  %v1180 = vpop.f32.mrb[0].mxu0
  %1181 = vmatprep.mubr.bf16.mxu0 0
  %1182 = vmatmul.mubr.bf16.gmra.mrb[0].mxu0 %v661
  %v1183 = vpop.f32.mrb[0].mxu0
  %v1184 = vadd.f32 %v152, %v1183
  %v1185 = vpop.f32.mrb[0].mxu0
  %v1186 = vpop.f32.mrb[0].mxu0
  %v1187 = vadd.f32 %v152, %v1186
  %v1188 = vpop.f32.mrb[0].mxu0
  %1189 = vmatprep.mubr.bf16.mxu0 0
  %1190 = vmatmul.mubr.bf16.gmra.mrb[0].mxu0 %v664
  %v1191 = vpop.f32.mrb[0].mxu0
  %v1192 = vadd.f32 %v152, %v1191
  %v1193 = vpop.f32.mrb[0].mxu0
  %v1194 = vpop.f32.mrb[0].mxu0
  %v1195 = vadd.f32 %v152, %v1194
  %v1196 = vpop.f32.mrb[0].mxu0
  %1197 = vmatprep.mubr.bf16.mxu0 0
  %1198 = vmatmul.mubr.bf16.gmra.mrb[0].mxu0 %v667
  %v1199 = vpop.f32.mrb[0].mxu0
  %v1200 = vadd.f32 %v152, %v1199
  %v1201 = vpop.f32.mrb[0].mxu0
  %v1202 = vpop.f32.mrb[0].mxu0
  %v1203 = vadd.f32 %v152, %v1202
  %v1204 = vpop.f32.mrb[0].mxu0
  %1205 = vmatprep.mubr.bf16.mxu0 0
  %1206 = vmatmul.mubr.bf16.gmra.mrb[0].mxu0 %v670
  %v1207 = vpop.f32.mrb[0].mxu0
  %v1208 = vadd.f32 %v152, %v1207
  %v1209 = vpop.f32.mrb[0].mxu0
  %v1210 = vpop.f32.mrb[0].mxu0
  %v1211 = vadd.f32 %v152, %v1210
  %v1212 = vpop.f32.mrb[0].mxu0
  %1213 = vmatprep.mubr.bf16.mxu0 0
  %1214 = vmatmul.mubr.bf16.gmra.mrb[0].mxu0 %v673
  %v1215 = vpop.f32.mrb[0].mxu0
  %v1216 = vadd.f32 %v152, %v1215
  %v1217 = vpop.f32.mrb[0].mxu0
  %v1218 = vpop.f32.mrb[0].mxu0
  %v1219 = vadd.f32 %v152, %v1218
  %v1220 = vpop.f32.mrb[0].mxu0
  %1221 = vmatprep.mubr.bf16.mxu0 0
  %1222 = vmatmul.mubr.bf16.gmra.mrb[0].mxu0 %v676
  %v1223 = vpop.f32.mrb[0].mxu0
  %v1224 = vadd.f32 %v152, %v1223
  %v1225 = vpop.f32.mrb[0].mxu0
  %v1226 = vpop.f32.mrb[0].mxu0
  %v1227 = vadd.f32 %v152, %v1226
  %v1228 = vpop.f32.mrb[0].mxu0
  %1229 = vdwg.mxu0
  %v1230 = vmax.f32 %v720, 0.0
  %v1231 = vmax.f32 %v723, 0.0
  %v1232 = vmax.f32 %v728, 0.0
  %v1233 = vmax.f32 %v731, 0.0
  %v1234 = vmax.f32 %v736, 0.0
  %v1235 = vmax.f32 %v739, 0.0
  %v1236 = vmax.f32 %v744, 0.0
  %v1237 = vmax.f32 %v747, 0.0
  %v1238 = vmax.f32 %v752, 0.0
  %v1239 = vmax.f32 %v755, 0.0
  %v1240 = vmax.f32 %v760, 0.0
  %v1241 = vmax.f32 %v763, 0.0
  %v1242 = vmax.f32 %v768, 0.0
  %v1243 = vmax.f32 %v771, 0.0
  %v1244 = vmax.f32 %v776, 0.0
  %v1245 = vmax.f32 %v779, 0.0
  %v1246 = vmax.f32 %v784, 0.0
  %v1247 = vmax.f32 %v787, 0.0
  %v1248 = vmax.f32 %v792, 0.0
  %v1249 = vmax.f32 %v795, 0.0
  %v1250 = vmax.f32 %v800, 0.0
  %v1251 = vmax.f32 %v803, 0.0
  %v1252 = vmax.f32 %v808, 0.0
  %v1253 = vmax.f32 %v811, 0.0
  %v1254 = vmax.f32 %v816, 0.0
  %v1255 = vmax.f32 %v819, 0.0
  %v1256 = vmax.f32 %v824, 0.0
  %v1257 = vmax.f32 %v827, 0.0
  %v1258 = vmax.f32 %v832, 0.0
  %v1259 = vmax.f32 %v835, 0.0
  %v1260 = vmax.f32 %v840, 0.0
  %v1261 = vmax.f32 %v843, 0.0
  %v1262 = vmax.f32 %v848, 0.0
  %v1263 = vmax.f32 %v851, 0.0
  %v1264 = vmax.f32 %v856, 0.0
  %v1265 = vmax.f32 %v859, 0.0
  %v1266 = vmax.f32 %v864, 0.0
  %v1267 = vmax.f32 %v867, 0.0
  %v1268 = vmax.f32 %v872, 0.0
  %v1269 = vmax.f32 %v875, 0.0
  %v1270 = vmax.f32 %v880, 0.0
  %v1271 = vmax.f32 %v883, 0.0
  %v1272 = vmax.f32 %v888, 0.0
  %v1273 = vmax.f32 %v891, 0.0
  %v1274 = vmax.f32 %v896, 0.0
  %v1275 = vmax.f32 %v899, 0.0
  %v1276 = vmax.f32 %v904, 0.0
  %v1277 = vmax.f32 %v907, 0.0
  %v1278 = vmax.f32 %v912, 0.0
  %v1279 = vmax.f32 %v915, 0.0
  %v1280 = vmax.f32 %v920, 0.0
  %v1281 = vmax.f32 %v923, 0.0
  %v1282 = vmax.f32 %v928, 0.0
  %v1283 = vmax.f32 %v931, 0.0
  %v1284 = vmax.f32 %v936, 0.0
  %v1285 = vmax.f32 %v939, 0.0
  %v1286 = vmax.f32 %v944, 0.0
  %v1287 = vmax.f32 %v947, 0.0
  %v1288 = vmax.f32 %v952, 0.0
  %v1289 = vmax.f32 %v955, 0.0
  %v1290 = vmax.f32 %v960, 0.0
  %v1291 = vmax.f32 %v963, 0.0
  %v1292 = vmax.f32 %v968, 0.0
  %v1293 = vmax.f32 %v971, 0.0
  %v1294 = vmax.f32 %v976, 0.0
  %v1295 = vmax.f32 %v979, 0.0
  %v1296 = vmax.f32 %v984, 0.0
  %v1297 = vmax.f32 %v987, 0.0
  %v1298 = vmax.f32 %v992, 0.0
  %v1299 = vmax.f32 %v995, 0.0
  %v1300 = vmax.f32 %v1000, 0.0
  %v1301 = vmax.f32 %v1003, 0.0
  %v1302 = vmax.f32 %v1008, 0.0
  %v1303 = vmax.f32 %v1011, 0.0
  %v1304 = vmax.f32 %v1016, 0.0
  %v1305 = vmax.f32 %v1019, 0.0
  %v1306 = vmax.f32 %v1024, 0.0
  %v1307 = vmax.f32 %v1027, 0.0
  %v1308 = vmax.f32 %v1032, 0.0
  %v1309 = vmax.f32 %v1035, 0.0
  %v1310 = vmax.f32 %v1040, 0.0
  %v1311 = vmax.f32 %v1043, 0.0
  %v1312 = vmax.f32 %v1048, 0.0
  %v1313 = vmax.f32 %v1051, 0.0
  %v1314 = vmax.f32 %v1056, 0.0
  %v1315 = vmax.f32 %v1059, 0.0
  %v1316 = vmax.f32 %v1064, 0.0
  %v1317 = vmax.f32 %v1067, 0.0
  %v1318 = vmax.f32 %v1072, 0.0
  %v1319 = vmax.f32 %v1075, 0.0
  %v1320 = vmax.f32 %v1080, 0.0
  %v1321 = vmax.f32 %v1083, 0.0
  %v1322 = vmax.f32 %v1088, 0.0
  %v1323 = vmax.f32 %v1091, 0.0
  %v1324 = vmax.f32 %v1096, 0.0
  %v1325 = vmax.f32 %v1099, 0.0
  %v1326 = vmax.f32 %v1104, 0.0
  %v1327 = vmax.f32 %v1107, 0.0
  %v1328 = vmax.f32 %v1112, 0.0
  %v1329 = vmax.f32 %v1115, 0.0
  %v1330 = vmax.f32 %v1120, 0.0
  %v1331 = vmax.f32 %v1123, 0.0
  %v1332 = vmax.f32 %v1128, 0.0
  %v1333 = vmax.f32 %v1131, 0.0
  %v1334 = vmax.f32 %v1136, 0.0
  %v1335 = vmax.f32 %v1139, 0.0
  %v1336 = vmax.f32 %v1144, 0.0
  %v1337 = vmax.f32 %v1147, 0.0
  %v1338 = vmax.f32 %v1152, 0.0
  %v1339 = vmax.f32 %v1155, 0.0
  %v1340 = vmax.f32 %v1160, 0.0
  %v1341 = vmax.f32 %v1163, 0.0
  %v1342 = vmax.f32 %v1168, 0.0
  %v1343 = vmax.f32 %v1171, 0.0
  %v1344 = vmax.f32 %v1176, 0.0
  %v1345 = vmax.f32 %v1179, 0.0
  %v1346 = vmax.f32 %v1184, 0.0
  %v1347 = vmax.f32 %v1187, 0.0
  %v1348 = vmax.f32 %v1192, 0.0
  %v1349 = vmax.f32 %v1195, 0.0
  %v1350 = vmax.f32 %v1200, 0.0
  %v1351 = vmax.f32 %v1203, 0.0
  %v1352 = vmax.f32 %v1208, 0.0
  %v1353 = vmax.f32 %v1211, 0.0
  %v1354 = vmax.f32 %v1216, 0.0
  %v1355 = vmax.f32 %v1219, 0.0
  %v1356 = vmax.f32 %v1224, 0.0
  %v1357 = vmax.f32 %v1227, 0.0
  %v1358 = vpack.c.bf16 %v1231, %v1230
  %v1359 = vpack.c.bf16 %v1233, %v1232
  %v1360 = vpack.c.bf16 %v1235, %v1234
  %v1361 = vpack.c.bf16 %v1237, %v1236
  %v1362 = vpack.c.bf16 %v1239, %v1238
  %v1363 = vpack.c.bf16 %v1241, %v1240
  %v1364 = vpack.c.bf16 %v1243, %v1242
  %v1365 = vpack.c.bf16 %v1245, %v1244
  %v1366 = vpack.c.bf16 %v1247, %v1246
  %v1367 = vpack.c.bf16 %v1249, %v1248
  %v1368 = vpack.c.bf16 %v1251, %v1250
  %v1369 = vpack.c.bf16 %v1253, %v1252
  %v1370 = vpack.c.bf16 %v1255, %v1254
  %v1371 = vpack.c.bf16 %v1257, %v1256
  %v1372 = vpack.c.bf16 %v1259, %v1258
  %v1373 = vpack.c.bf16 %v1261, %v1260
  %v1374 = vpack.c.bf16 %v1263, %v1262
  %v1375 = vpack.c.bf16 %v1265, %v1264
  %v1376 = vpack.c.bf16 %v1267, %v1266
  %v1377 = vpack.c.bf16 %v1269, %v1268
  %v1378 = vpack.c.bf16 %v1271, %v1270
  %v1379 = vpack.c.bf16 %v1273, %v1272
  %v1380 = vpack.c.bf16 %v1275, %v1274
  %v1381 = vpack.c.bf16 %v1277, %v1276
  %v1382 = vpack.c.bf16 %v1279, %v1278
  %v1383 = vpack.c.bf16 %v1281, %v1280
  %v1384 = vpack.c.bf16 %v1283, %v1282
  %v1385 = vpack.c.bf16 %v1285, %v1284
  %v1386 = vpack.c.bf16 %v1287, %v1286
  %v1387 = vpack.c.bf16 %v1289, %v1288
  %v1388 = vpack.c.bf16 %v1291, %v1290
  %v1389 = vpack.c.bf16 %v1293, %v1292
  %v1390 = vpack.c.bf16 %v1295, %v1294
  %v1391 = vpack.c.bf16 %v1297, %v1296
  %v1392 = vpack.c.bf16 %v1299, %v1298
  %v1393 = vpack.c.bf16 %v1301, %v1300
  %v1394 = vpack.c.bf16 %v1303, %v1302
  %v1395 = vpack.c.bf16 %v1305, %v1304
  %v1396 = vpack.c.bf16 %v1307, %v1306
  %v1397 = vpack.c.bf16 %v1309, %v1308
  %v1398 = vpack.c.bf16 %v1311, %v1310
  %v1399 = vpack.c.bf16 %v1313, %v1312
  %v1400 = vpack.c.bf16 %v1315, %v1314
  %v1401 = vpack.c.bf16 %v1317, %v1316
  %v1402 = vpack.c.bf16 %v1319, %v1318
  %v1403 = vpack.c.bf16 %v1321, %v1320
  %v1404 = vpack.c.bf16 %v1323, %v1322
  %v1405 = vpack.c.bf16 %v1325, %v1324
  %v1406 = vpack.c.bf16 %v1327, %v1326
  %v1407 = vpack.c.bf16 %v1329, %v1328
  %v1408 = vpack.c.bf16 %v1331, %v1330
  %v1409 = vpack.c.bf16 %v1333, %v1332
  %v1410 = vpack.c.bf16 %v1335, %v1334
  %v1411 = vpack.c.bf16 %v1337, %v1336
  %v1412 = vpack.c.bf16 %v1339, %v1338
  %v1413 = vpack.c.bf16 %v1341, %v1340
  %v1414 = vpack.c.bf16 %v1343, %v1342
  %v1415 = vpack.c.bf16 %v1345, %v1344
  %v1416 = vpack.c.bf16 %v1347, %v1346
  %v1417 = vpack.c.bf16 %v1349, %v1348
  %v1418 = vpack.c.bf16 %v1351, %v1350
  %v1419 = vpack.c.bf16 %v1353, %v1352
  %v1420 = vpack.c.bf16 %v1355, %v1354
  %v1421 = vpack.c.bf16 %v1357, %v1356
  %v1486 = vunpack.c.l.b16 %v1358
  %v1487 = vunpack.c.h.b16 %v1358
  %v1488 = vunpack.c.l.b16 %v1359
  %v1489 = vunpack.c.h.b16 %v1359
  %v1490 = vunpack.c.l.b16 %v1360
  %v1491 = vunpack.c.h.b16 %v1360
  %v1492 = vunpack.c.l.b16 %v1361
  %v1493 = vunpack.c.h.b16 %v1361
  %v1494 = vunpack.c.l.b16 %v1362
  %v1495 = vunpack.c.h.b16 %v1362
  %v1496 = vunpack.c.l.b16 %v1363
  %v1497 = vunpack.c.h.b16 %v1363
  %v1498 = vunpack.c.l.b16 %v1364
  %v1499 = vunpack.c.h.b16 %v1364
  %v1500 = vunpack.c.l.b16 %v1365
  %v1501 = vunpack.c.h.b16 %v1365
  %v1502 = vunpack.c.l.b16 %v1366
  %v1503 = vunpack.c.h.b16 %v1366
  %v1504 = vunpack.c.l.b16 %v1367
  %v1505 = vunpack.c.h.b16 %v1367
  %v1506 = vunpack.c.l.b16 %v1368
  %v1507 = vunpack.c.h.b16 %v1368
  %v1508 = vunpack.c.l.b16 %v1369
  %v1509 = vunpack.c.h.b16 %v1369
  %v1510 = vunpack.c.l.b16 %v1370
  %v1511 = vunpack.c.h.b16 %v1370
  %v1512 = vunpack.c.l.b16 %v1371
  %v1513 = vunpack.c.h.b16 %v1371
  %v1514 = vunpack.c.l.b16 %v1372
  %v1515 = vunpack.c.h.b16 %v1372
  %v1516 = vunpack.c.l.b16 %v1373
  %v1517 = vunpack.c.h.b16 %v1373
  %v1518 = vunpack.c.l.b16 %v1374
  %v1519 = vunpack.c.h.b16 %v1374
  %v1520 = vunpack.c.l.b16 %v1375
  %v1521 = vunpack.c.h.b16 %v1375
  %v1522 = vunpack.c.l.b16 %v1376
  %v1523 = vunpack.c.h.b16 %v1376
  %v1524 = vunpack.c.l.b16 %v1377
  %v1525 = vunpack.c.h.b16 %v1377
  %v1526 = vunpack.c.l.b16 %v1378
  %v1527 = vunpack.c.h.b16 %v1378
  %v1528 = vunpack.c.l.b16 %v1379
  %v1529 = vunpack.c.h.b16 %v1379
  %v1530 = vunpack.c.l.b16 %v1380
  %v1531 = vunpack.c.h.b16 %v1380
  %v1532 = vunpack.c.l.b16 %v1381
  %v1533 = vunpack.c.h.b16 %v1381
  %v1534 = vunpack.c.l.b16 %v1382
  %v1535 = vunpack.c.h.b16 %v1382
  %v1536 = vunpack.c.l.b16 %v1383
  %v1537 = vunpack.c.h.b16 %v1383
  %v1538 = vunpack.c.l.b16 %v1384
  %v1539 = vunpack.c.h.b16 %v1384
  %v1540 = vunpack.c.l.b16 %v1385
  %v1541 = vunpack.c.h.b16 %v1385
  %v1542 = vunpack.c.l.b16 %v1386
  %v1543 = vunpack.c.h.b16 %v1386
  %v1544 = vunpack.c.l.b16 %v1387
  %v1545 = vunpack.c.h.b16 %v1387
  %v1546 = vunpack.c.l.b16 %v1388
  %v1547 = vunpack.c.h.b16 %v1388
  %v1548 = vunpack.c.l.b16 %v1389
  %v1549 = vunpack.c.h.b16 %v1389
  %v1550 = vunpack.c.l.b16 %v1390
  %v1551 = vunpack.c.h.b16 %v1390
  %v1552 = vunpack.c.l.b16 %v1391
  %v1553 = vunpack.c.h.b16 %v1391
  %v1554 = vunpack.c.l.b16 %v1392
  %v1555 = vunpack.c.h.b16 %v1392
  %v1556 = vunpack.c.l.b16 %v1393
  %v1557 = vunpack.c.h.b16 %v1393
  %v1558 = vunpack.c.l.b16 %v1394
  %v1559 = vunpack.c.h.b16 %v1394
  %v1560 = vunpack.c.l.b16 %v1395
  %v1561 = vunpack.c.h.b16 %v1395
  %v1562 = vunpack.c.l.b16 %v1396
  %v1563 = vunpack.c.h.b16 %v1396
  %v1564 = vunpack.c.l.b16 %v1397
  %v1565 = vunpack.c.h.b16 %v1397
  %v1566 = vunpack.c.l.b16 %v1398
  %v1567 = vunpack.c.h.b16 %v1398
  %v1568 = vunpack.c.l.b16 %v1399
  %v1569 = vunpack.c.h.b16 %v1399
  %v1570 = vunpack.c.l.b16 %v1400
  %v1571 = vunpack.c.h.b16 %v1400
  %v1572 = vunpack.c.l.b16 %v1401
  %v1573 = vunpack.c.h.b16 %v1401
  %v1574 = vunpack.c.l.b16 %v1402
  %v1575 = vunpack.c.h.b16 %v1402
  %v1576 = vunpack.c.l.b16 %v1403
  %v1577 = vunpack.c.h.b16 %v1403
  %v1578 = vunpack.c.l.b16 %v1404
  %v1579 = vunpack.c.h.b16 %v1404
  %v1580 = vunpack.c.l.b16 %v1405
  %v1581 = vunpack.c.h.b16 %v1405
  %v1582 = vunpack.c.l.b16 %v1406
  %v1583 = vunpack.c.h.b16 %v1406
  %v1584 = vunpack.c.l.b16 %v1407
  %v1585 = vunpack.c.h.b16 %v1407
  %v1586 = vunpack.c.l.b16 %v1408
  %v1587 = vunpack.c.h.b16 %v1408
  %v1588 = vunpack.c.l.b16 %v1409
  %v1589 = vunpack.c.h.b16 %v1409
  %v1590 = vunpack.c.l.b16 %v1410
  %v1591 = vunpack.c.h.b16 %v1410
  %v1592 = vunpack.c.l.b16 %v1411
  %v1593 = vunpack.c.h.b16 %v1411
  %v1594 = vunpack.c.l.b16 %v1412
  %v1595 = vunpack.c.h.b16 %v1412
  %v1596 = vunpack.c.l.b16 %v1413
  %v1597 = vunpack.c.h.b16 %v1413
  %v1598 = vunpack.c.l.b16 %v1414
  %v1599 = vunpack.c.h.b16 %v1414
  %v1600 = vunpack.c.l.b16 %v1415
  %v1601 = vunpack.c.h.b16 %v1415
  %v1602 = vunpack.c.l.b16 %v1416
  %v1603 = vunpack.c.h.b16 %v1416
  %v1604 = vunpack.c.l.b16 %v1417
  %v1605 = vunpack.c.h.b16 %v1417
  %v1606 = vunpack.c.l.b16 %v1418
  %v1607 = vunpack.c.h.b16 %v1418
  %v1608 = vunpack.c.l.b16 %v1419
  %v1609 = vunpack.c.h.b16 %v1419
  %v1610 = vunpack.c.l.b16 %v1420
  %v1611 = vunpack.c.h.b16 %v1420
  %v1612 = vunpack.c.l.b16 %v1421
  %v1613 = vunpack.c.h.b16 %v1421
  %v1614 = vpack.c.b16 %v1486, %v1486
  %v1615 = vpack.c.b16 %v1487, %v1487
  %v1616 = vpack.c.b16 %v1488, %v1488
  %v1617 = vpack.c.b16 %v1489, %v1489
  %v1618 = vpack.c.b16 %v1490, %v1490
  %v1619 = vpack.c.b16 %v1491, %v1491
  %v1620 = vpack.c.b16 %v1492, %v1492
  %v1621 = vpack.c.b16 %v1493, %v1493
  %v1622 = vpack.c.b16 %v1494, %v1494
  %v1623 = vpack.c.b16 %v1495, %v1495
  %v1624 = vpack.c.b16 %v1496, %v1496
  %v1625 = vpack.c.b16 %v1497, %v1497
  %v1626 = vpack.c.b16 %v1498, %v1498
  %v1627 = vpack.c.b16 %v1499, %v1499
  %v1628 = vpack.c.b16 %v1500, %v1500
  %v1629 = vpack.c.b16 %v1501, %v1501
  %v1630 = vpack.c.b16 %v1502, %v1502
  %v1631 = vpack.c.b16 %v1503, %v1503
  %v1632 = vpack.c.b16 %v1504, %v1504
  %v1633 = vpack.c.b16 %v1505, %v1505
  %v1634 = vpack.c.b16 %v1506, %v1506
  %v1635 = vpack.c.b16 %v1507, %v1507
  %v1636 = vpack.c.b16 %v1508, %v1508
  %v1637 = vpack.c.b16 %v1509, %v1509
  %v1638 = vpack.c.b16 %v1510, %v1510
  %v1639 = vpack.c.b16 %v1511, %v1511
  %v1640 = vpack.c.b16 %v1512, %v1512
  %v1641 = vpack.c.b16 %v1513, %v1513
  %v1642 = vpack.c.b16 %v1514, %v1514
  %v1643 = vpack.c.b16 %v1515, %v1515
  %v1644 = vpack.c.b16 %v1516, %v1516
  %v1645 = vpack.c.b16 %v1517, %v1517
  %v1646 = vpack.c.b16 %v1518, %v1518
  %v1647 = vpack.c.b16 %v1519, %v1519
  %v1648 = vpack.c.b16 %v1520, %v1520
  %v1649 = vpack.c.b16 %v1521, %v1521
  %v1650 = vpack.c.b16 %v1522, %v1522
  %v1651 = vpack.c.b16 %v1523, %v1523
  %v1652 = vpack.c.b16 %v1524, %v1524
  %v1653 = vpack.c.b16 %v1525, %v1525
  %v1654 = vpack.c.b16 %v1526, %v1526
  %v1655 = vpack.c.b16 %v1527, %v1527
  %v1656 = vpack.c.b16 %v1528, %v1528
  %v1657 = vpack.c.b16 %v1529, %v1529
  %v1658 = vpack.c.b16 %v1530, %v1530
  %v1659 = vpack.c.b16 %v1531, %v1531
  %v1660 = vpack.c.b16 %v1532, %v1532
  %v1661 = vpack.c.b16 %v1533, %v1533
  %v1662 = vpack.c.b16 %v1534, %v1534
  %v1663 = vpack.c.b16 %v1535, %v1535
  %v1664 = vpack.c.b16 %v1536, %v1536
  %v1665 = vpack.c.b16 %v1537, %v1537
  %v1666 = vpack.c.b16 %v1538, %v1538
  %v1667 = vpack.c.b16 %v1539, %v1539
  %v1668 = vpack.c.b16 %v1540, %v1540
  %v1669 = vpack.c.b16 %v1541, %v1541
  %v1670 = vpack.c.b16 %v1542, %v1542
  %v1671 = vpack.c.b16 %v1543, %v1543
  %v1672 = vpack.c.b16 %v1544, %v1544
  %v1673 = vpack.c.b16 %v1545, %v1545
  %v1674 = vpack.c.b16 %v1546, %v1546
  %v1675 = vpack.c.b16 %v1547, %v1547
  %v1676 = vpack.c.b16 %v1548, %v1548
  %v1677 = vpack.c.b16 %v1549, %v1549
  %v1678 = vpack.c.b16 %v1550, %v1550
  %v1679 = vpack.c.b16 %v1551, %v1551
  %v1680 = vpack.c.b16 %v1552, %v1552
  %v1681 = vpack.c.b16 %v1553, %v1553
  %v1682 = vpack.c.b16 %v1554, %v1554
  %v1683 = vpack.c.b16 %v1555, %v1555
  %v1684 = vpack.c.b16 %v1556, %v1556
  %v1685 = vpack.c.b16 %v1557, %v1557
  %v1686 = vpack.c.b16 %v1558, %v1558
  %v1687 = vpack.c.b16 %v1559, %v1559
  %v1688 = vpack.c.b16 %v1560, %v1560
  %v1689 = vpack.c.b16 %v1561, %v1561
  %v1690 = vpack.c.b16 %v1562, %v1562
  %v1691 = vpack.c.b16 %v1563, %v1563
  %v1692 = vpack.c.b16 %v1564, %v1564
  %v1693 = vpack.c.b16 %v1565, %v1565
  %v1694 = vpack.c.b16 %v1566, %v1566
  %v1695 = vpack.c.b16 %v1567, %v1567
  %v1696 = vpack.c.b16 %v1568, %v1568
  %v1697 = vpack.c.b16 %v1569, %v1569
  %v1698 = vpack.c.b16 %v1570, %v1570
  %v1699 = vpack.c.b16 %v1571, %v1571
  %v1700 = vpack.c.b16 %v1572, %v1572
  %v1701 = vpack.c.b16 %v1573, %v1573
  %v1702 = vpack.c.b16 %v1574, %v1574
  %v1703 = vpack.c.b16 %v1575, %v1575
  %v1704 = vpack.c.b16 %v1576, %v1576
  %v1705 = vpack.c.b16 %v1577, %v1577
  %v1706 = vpack.c.b16 %v1578, %v1578
  %v1707 = vpack.c.b16 %v1579, %v1579
  %v1708 = vpack.c.b16 %v1580, %v1580
  %v1709 = vpack.c.b16 %v1581, %v1581
  %v1710 = vpack.c.b16 %v1582, %v1582
  %v1711 = vpack.c.b16 %v1583, %v1583
  %v1712 = vpack.c.b16 %v1584, %v1584
  %v1713 = vpack.c.b16 %v1585, %v1585
  %v1714 = vpack.c.b16 %v1586, %v1586
  %v1715 = vpack.c.b16 %v1587, %v1587
  %v1716 = vpack.c.b16 %v1588, %v1588
  %v1717 = vpack.c.b16 %v1589, %v1589
  %v1718 = vpack.c.b16 %v1590, %v1590
  %v1719 = vpack.c.b16 %v1591, %v1591
  %v1720 = vpack.c.b16 %v1592, %v1592
  %v1721 = vpack.c.b16 %v1593, %v1593
  %v1722 = vpack.c.b16 %v1594, %v1594
  %v1723 = vpack.c.b16 %v1595, %v1595
  %v1724 = vpack.c.b16 %v1596, %v1596
  %v1725 = vpack.c.b16 %v1597, %v1597
  %v1726 = vpack.c.b16 %v1598, %v1598
  %v1727 = vpack.c.b16 %v1599, %v1599
  %v1728 = vpack.c.b16 %v1600, %v1600
  %v1729 = vpack.c.b16 %v1601, %v1601
  %v1730 = vpack.c.b16 %v1602, %v1602
  %v1731 = vpack.c.b16 %v1603, %v1603
  %v1732 = vpack.c.b16 %v1604, %v1604
  %v1733 = vpack.c.b16 %v1605, %v1605
  %v1734 = vpack.c.b16 %v1606, %v1606
  %v1735 = vpack.c.b16 %v1607, %v1607
  %v1736 = vpack.c.b16 %v1608, %v1608
  %v1737 = vpack.c.b16 %v1609, %v1609
  %v1738 = vpack.c.b16 %v1610, %v1610
  %v1739 = vpack.c.b16 %v1611, %v1611
  %v1740 = vpack.c.b16 %v1612, %v1612
  %v1741 = vpack.c.b16 %v1613, %v1613
  %vm1870 = vcmask 519168
  %1871 = vst.msk [vmem:[%s3] sm:$0xf] %vm1870, %v1614
  %1872 = vst.msk [vmem:[%s3 + $0x4] sm:$0xf] %vm1870, %v1615
  %1873 = vst.msk [vmem:[%s3 + $0x8] sm:$0xf] %vm1870, %v1616
  %1874 = vst.msk [vmem:[%s3 + $0xc] sm:$0xf] %vm1870, %v1617
  %1875 = vst.msk [vmem:[%s3 + $0x10] sm:$0xf] %vm1870, %v1618
  %1876 = vst.msk [vmem:[%s3 + $0x14] sm:$0xf] %vm1870, %v1619
  %1877 = vst.msk [vmem:[%s3 + $0x18] sm:$0xf] %vm1870, %v1620
  %1878 = vst.msk [vmem:[%s3 + $0x1c] sm:$0xf] %vm1870, %v1621
  %1879 = vst.msk [vmem:[%s3 + $0x20] sm:$0xf] %vm1870, %v1622
  %1880 = vst.msk [vmem:[%s3 + $0x24] sm:$0xf] %vm1870, %v1623
  %1881 = vst.msk [vmem:[%s3 + $0x28] sm:$0xf] %vm1870, %v1624
  %1882 = vst.msk [vmem:[%s3 + $0x2c] sm:$0xf] %vm1870, %v1625
  %1883 = vst.msk [vmem:[%s3 + $0x30] sm:$0xf] %vm1870, %v1626
  %1884 = vst.msk [vmem:[%s3 + $0x34] sm:$0xf] %vm1870, %v1627
  %1885 = vst.msk [vmem:[%s3 + $0x38] sm:$0xf] %vm1870, %v1628
  %1886 = vst.msk [vmem:[%s3 + $0x3c] sm:$0xf] %vm1870, %v1629
  %1887 = vst.msk [vmem:[%s3 + $0x40] sm:$0xf] %vm1870, %v1630
  %1888 = vst.msk [vmem:[%s3 + $0x44] sm:$0xf] %vm1870, %v1631
  %1889 = vst.msk [vmem:[%s3 + $0x48] sm:$0xf] %vm1870, %v1632
  %1890 = vst.msk [vmem:[%s3 + $0x4c] sm:$0xf] %vm1870, %v1633
  %1891 = vst.msk [vmem:[%s3 + $0x50] sm:$0xf] %vm1870, %v1634
  %1892 = vst.msk [vmem:[%s3 + $0x54] sm:$0xf] %vm1870, %v1635
  %1893 = vst.msk [vmem:[%s3 + $0x58] sm:$0xf] %vm1870, %v1636
  %1894 = vst.msk [vmem:[%s3 + $0x5c] sm:$0xf] %vm1870, %v1637
  %1895 = vst.msk [vmem:[%s3 + $0x60] sm:$0xf] %vm1870, %v1638
  %1896 = vst.msk [vmem:[%s3 + $0x64] sm:$0xf] %vm1870, %v1639
  %1897 = vst.msk [vmem:[%s3 + $0x68] sm:$0xf] %vm1870, %v1640
  %1898 = vst.msk [vmem:[%s3 + $0x6c] sm:$0xf] %vm1870, %v1641
  %1899 = vst.msk [vmem:[%s3 + $0x70] sm:$0xf] %vm1870, %v1642
  %1900 = vst.msk [vmem:[%s3 + $0x74] sm:$0xf] %vm1870, %v1643
  %1901 = vst.msk [vmem:[%s3 + $0x78] sm:$0xf] %vm1870, %v1644
  %1902 = vst.msk [vmem:[%s3 + $0x7c] sm:$0xf] %vm1870, %v1645
  %1903 = vst.msk [vmem:[%s3 + $0x80] sm:$0xf] %vm1870, %v1646
  %1904 = vst.msk [vmem:[%s3 + $0x84] sm:$0xf] %vm1870, %v1647
  %1905 = vst.msk [vmem:[%s3 + $0x88] sm:$0xf] %vm1870, %v1648
  %1906 = vst.msk [vmem:[%s3 + $0x8c] sm:$0xf] %vm1870, %v1649
  %1907 = vst.msk [vmem:[%s3 + $0x90] sm:$0xf] %vm1870, %v1650
  %1908 = vst.msk [vmem:[%s3 + $0x94] sm:$0xf] %vm1870, %v1651
  %1909 = vst.msk [vmem:[%s3 + $0x98] sm:$0xf] %vm1870, %v1652
  %1910 = vst.msk [vmem:[%s3 + $0x9c] sm:$0xf] %vm1870, %v1653
  %1911 = vst.msk [vmem:[%s3 + $0xa0] sm:$0xf] %vm1870, %v1654
  %1912 = vst.msk [vmem:[%s3 + $0xa4] sm:$0xf] %vm1870, %v1655
  %1913 = vst.msk [vmem:[%s3 + $0xa8] sm:$0xf] %vm1870, %v1656
  %1914 = vst.msk [vmem:[%s3 + $0xac] sm:$0xf] %vm1870, %v1657
  %1915 = vst.msk [vmem:[%s3 + $0xb0] sm:$0xf] %vm1870, %v1658
  %1916 = vst.msk [vmem:[%s3 + $0xb4] sm:$0xf] %vm1870, %v1659
  %1917 = vst.msk [vmem:[%s3 + $0xb8] sm:$0xf] %vm1870, %v1660
  %1918 = vst.msk [vmem:[%s3 + $0xbc] sm:$0xf] %vm1870, %v1661
  %1919 = vst.msk [vmem:[%s3 + $0xc0] sm:$0xf] %vm1870, %v1662
  %1920 = vst.msk [vmem:[%s3 + $0xc4] sm:$0xf] %vm1870, %v1663
  %1921 = vst.msk [vmem:[%s3 + $0xc8] sm:$0xf] %vm1870, %v1664
  %1922 = vst.msk [vmem:[%s3 + $0xcc] sm:$0xf] %vm1870, %v1665
  %1923 = vst.msk [vmem:[%s3 + $0xd0] sm:$0xf] %vm1870, %v1666
  %1924 = vst.msk [vmem:[%s3 + $0xd4] sm:$0xf] %vm1870, %v1667
  %1925 = vst.msk [vmem:[%s3 + $0xd8] sm:$0xf] %vm1870, %v1668
  %1926 = vst.msk [vmem:[%s3 + $0xdc] sm:$0xf] %vm1870, %v1669
  %1927 = vst.msk [vmem:[%s3 + $0xe0] sm:$0xf] %vm1870, %v1670
  %1928 = vst.msk [vmem:[%s3 + $0xe4] sm:$0xf] %vm1870, %v1671
  %1929 = vst.msk [vmem:[%s3 + $0xe8] sm:$0xf] %vm1870, %v1672
  %1930 = vst.msk [vmem:[%s3 + $0xec] sm:$0xf] %vm1870, %v1673
  %1931 = vst.msk [vmem:[%s3 + $0xf0] sm:$0xf] %vm1870, %v1674
  %1932 = vst.msk [vmem:[%s3 + $0xf4] sm:$0xf] %vm1870, %v1675
  %1933 = vst.msk [vmem:[%s3 + $0xf8] sm:$0xf] %vm1870, %v1676
  %1934 = vst.msk [vmem:[%s3 + $0xfc] sm:$0xf] %vm1870, %v1677
  %1935 = vst.msk [vmem:[%s3 + $0x100] sm:$0xf] %vm1870, %v1678
  %1936 = vst.msk [vmem:[%s3 + $0x104] sm:$0xf] %vm1870, %v1679
  %1937 = vst.msk [vmem:[%s3 + $0x108] sm:$0xf] %vm1870, %v1680
  %1938 = vst.msk [vmem:[%s3 + $0x10c] sm:$0xf] %vm1870, %v1681
  %1939 = vst.msk [vmem:[%s3 + $0x110] sm:$0xf] %vm1870, %v1682
  %1940 = vst.msk [vmem:[%s3 + $0x114] sm:$0xf] %vm1870, %v1683
  %1941 = vst.msk [vmem:[%s3 + $0x118] sm:$0xf] %vm1870, %v1684
  %1942 = vst.msk [vmem:[%s3 + $0x11c] sm:$0xf] %vm1870, %v1685
  %1943 = vst.msk [vmem:[%s3 + $0x120] sm:$0xf] %vm1870, %v1686
  %1944 = vst.msk [vmem:[%s3 + $0x124] sm:$0xf] %vm1870, %v1687
  %1945 = vst.msk [vmem:[%s3 + $0x128] sm:$0xf] %vm1870, %v1688
  %1946 = vst.msk [vmem:[%s3 + $0x12c] sm:$0xf] %vm1870, %v1689
  %1947 = vst.msk [vmem:[%s3 + $0x130] sm:$0xf] %vm1870, %v1690
  %1948 = vst.msk [vmem:[%s3 + $0x134] sm:$0xf] %vm1870, %v1691
  %1949 = vst.msk [vmem:[%s3 + $0x138] sm:$0xf] %vm1870, %v1692
  %1950 = vst.msk [vmem:[%s3 + $0x13c] sm:$0xf] %vm1870, %v1693
  %1951 = vst.msk [vmem:[%s3 + $0x140] sm:$0xf] %vm1870, %v1694
  %1952 = vst.msk [vmem:[%s3 + $0x144] sm:$0xf] %vm1870, %v1695
  %1953 = vst.msk [vmem:[%s3 + $0x148] sm:$0xf] %vm1870, %v1696
  %1954 = vst.msk [vmem:[%s3 + $0x14c] sm:$0xf] %vm1870, %v1697
  %1955 = vst.msk [vmem:[%s3 + $0x150] sm:$0xf] %vm1870, %v1698
  %1956 = vst.msk [vmem:[%s3 + $0x154] sm:$0xf] %vm1870, %v1699
  %1957 = vst.msk [vmem:[%s3 + $0x158] sm:$0xf] %vm1870, %v1700
  %1958 = vst.msk [vmem:[%s3 + $0x15c] sm:$0xf] %vm1870, %v1701
  %1959 = vst.msk [vmem:[%s3 + $0x160] sm:$0xf] %vm1870, %v1702
  %1960 = vst.msk [vmem:[%s3 + $0x164] sm:$0xf] %vm1870, %v1703
  %1961 = vst.msk [vmem:[%s3 + $0x168] sm:$0xf] %vm1870, %v1704
  %1962 = vst.msk [vmem:[%s3 + $0x16c] sm:$0xf] %vm1870, %v1705
  %1963 = vst.msk [vmem:[%s3 + $0x170] sm:$0xf] %vm1870, %v1706
  %1964 = vst.msk [vmem:[%s3 + $0x174] sm:$0xf] %vm1870, %v1707
  %1965 = vst.msk [vmem:[%s3 + $0x178] sm:$0xf] %vm1870, %v1708
  %1966 = vst.msk [vmem:[%s3 + $0x17c] sm:$0xf] %vm1870, %v1709
  %1967 = vst.msk [vmem:[%s3 + $0x180] sm:$0xf] %vm1870, %v1710
  %1968 = vst.msk [vmem:[%s3 + $0x184] sm:$0xf] %vm1870, %v1711
  %1969 = vst.msk [vmem:[%s3 + $0x188] sm:$0xf] %vm1870, %v1712
  %1970 = vst.msk [vmem:[%s3 + $0x18c] sm:$0xf] %vm1870, %v1713
  %1971 = vst.msk [vmem:[%s3 + $0x190] sm:$0xf] %vm1870, %v1714
  %1972 = vst.msk [vmem:[%s3 + $0x194] sm:$0xf] %vm1870, %v1715
  %1973 = vst.msk [vmem:[%s3 + $0x198] sm:$0xf] %vm1870, %v1716
  %1974 = vst.msk [vmem:[%s3 + $0x19c] sm:$0xf] %vm1870, %v1717
  %1975 = vst.msk [vmem:[%s3 + $0x1a0] sm:$0xf] %vm1870, %v1718
  %1976 = vst.msk [vmem:[%s3 + $0x1a4] sm:$0xf] %vm1870, %v1719
  %1977 = vst.msk [vmem:[%s3 + $0x1a8] sm:$0xf] %vm1870, %v1720
  %1978 = vst.msk [vmem:[%s3 + $0x1ac] sm:$0xf] %vm1870, %v1721
  %1979 = vst.msk [vmem:[%s3 + $0x1b0] sm:$0xf] %vm1870, %v1722
  %1980 = vst.msk [vmem:[%s3 + $0x1b4] sm:$0xf] %vm1870, %v1723
  %1981 = vst.msk [vmem:[%s3 + $0x1b8] sm:$0xf] %vm1870, %v1724
  %1982 = vst.msk [vmem:[%s3 + $0x1bc] sm:$0xf] %vm1870, %v1725
  %1983 = vst.msk [vmem:[%s3 + $0x1c0] sm:$0xf] %vm1870, %v1726
  %1984 = vst.msk [vmem:[%s3 + $0x1c4] sm:$0xf] %vm1870, %v1727
  %1985 = vst.msk [vmem:[%s3 + $0x1c8] sm:$0xf] %vm1870, %v1728
  %1986 = vst.msk [vmem:[%s3 + $0x1cc] sm:$0xf] %vm1870, %v1729
  %1987 = vst.msk [vmem:[%s3 + $0x1d0] sm:$0xf] %vm1870, %v1730
  %1988 = vst.msk [vmem:[%s3 + $0x1d4] sm:$0xf] %vm1870, %v1731
  %1989 = vst.msk [vmem:[%s3 + $0x1d8] sm:$0xf] %vm1870, %v1732
  %1990 = vst.msk [vmem:[%s3 + $0x1dc] sm:$0xf] %vm1870, %v1733
  %1991 = vst.msk [vmem:[%s3 + $0x1e0] sm:$0xf] %vm1870, %v1734
  %1992 = vst.msk [vmem:[%s3 + $0x1e4] sm:$0xf] %vm1870, %v1735
  %1993 = vst.msk [vmem:[%s3 + $0x1e8] sm:$0xf] %vm1870, %v1736
  %1994 = vst.msk [vmem:[%s3 + $0x1ec] sm:$0xf] %vm1870, %v1737
  %1995 = vst.msk [vmem:[%s3 + $0x1f0] sm:$0xf] %vm1870, %v1738
  %1996 = vst.msk [vmem:[%s3 + $0x1f4] sm:$0xf] %vm1870, %v1739
  %1997 = vst.msk [vmem:[%s3 + $0x1f8] sm:$0xf] %vm1870, %v1740
  %1998 = vst.msk [vmem:[%s3 + $0x1fc] sm:$0xf] %vm1870, %v1741
  // Predicated region
  $region14: #{skelet_loss.12} parent=0 // pred_check
    _
  $region15: #{skelet_loss.12} parent=0 // pred_check_branch
    %2000 = sbr.rel (0) target = $region17
  $region16: #{skelet_loss.12} parent=0 // pred_region
    _
  $region17: #{skelet_loss.12} parent=0 // pred_fallthru
    _
  // Predicated region
  $region18: #{skelet_loss.12} parent=0 // pred_check
    _
  $region19: #{skelet_loss.12} parent=0 // pred_check_branch
    %2002 = sbr.rel (0) target = $region21
  $region20: #{skelet_loss.12} parent=0 // pred_region
    _
  $region21: #{skelet_loss.12} parent=0 // pred_fallthru
    _

// kernel: skelet_loss.13
$region0: #{skelet_loss.13}
  #allocation0 [shape = 'u32[]', space=smem, size = 0x4, offset = 0x4, fixed_abs, tag = 'smem constant byte address 0x4 - core index']
  #allocation1 [shape = 'u32[144,128]{1,0:T(1,128)}', space=vmem, size = 0x12000, scoped, tag = 'internal scratch']
  %s0 = inlined_call_operand.vmem [shape: bf16[4,18,18,64], index: 0, kind: input, shape index: {}]
  %s1 = inlined_call_operand.vmem [shape: bf16[9,64,64], index: 1, kind: input, shape index: {}]
  %s2 = inlined_call_operand.vmem [shape: f32[1,64], index: 2, kind: input, shape index: {}]
  %s3 = inlined_call_operand.vmem [shape: bf16[4,16,16,64], index: 3, kind: output, shape index: {}]
  %s4 = sld [smem:[#allocation0]]
  $region52: #{skelet_loss.13} parent=0
    _
  %s6 = ssub.s32 1, %s4
  %s7 = scalar_select 0, %s6, %s4
  loop: start=0, step=1, limit=6
  $region2: #{skelet_loss.13} parent=0 // loop_pre_header
    _
  $region3: #{skelet_loss.13} parent=0 // loop_header
    %s9 = sphi 0, %s13
    %p10 = scmp.ge.s32.totalorder %s9, 6
    %s19 = sphi 0, %s21
    %s22 = sphi 0, %s19
    %s23 = sphi 0, %s22
    %s39 = sphi 0, %s23
    %s43 = sphi 0, %s43
    %s45 = sphi 0, %s43
    %s46 = sphi 0, %s45
    %s60 = sphi 0, %s46
    %s64 = sphi 0, %s64
    %s66 = sphi 0, %s64
    %s67 = sphi 0, %s66
    %s81 = sphi 0, %s67
    %s87 = sphi 0, %s89
    %s90 = sphi 0, %s87
    %s91 = sphi 0, %s90
    %s107 = sphi 0, %s91
  $region4: #{skelet_loss.13} parent=0 // loop_header_branch
    %12 = sbr.rel (%p10) target = $region8
  $region5: #{skelet_loss.13} parent=0 // loop_body
    %s14 = ssub.s32 %s9, 1
    %s15 = ssub.s32 %s9, 2
    %s16 = sadd.s32 %s9, 1
    %s17 = ssub.s32 %s9, %s16
    %p18 = scmp.eq.s32.totalorder %s17, 0
    %s20 = sadd.s32 %s19, 1
    %s21 = scalar_select %p18, %s19, %s20
    %p24 = pneg %p18
    %p25 = scmp.eq.s32.totalorder %s9, 3
    %p26 = por %p24, %p25
    %p27 = scmp.ne.s32.totalorder %s19, %s22
    %p28 = scmp.eq.s32.totalorder %s9, 0
    %p29 = por %p27, %p28
    %p30 = scmp.ne.s32.totalorder %s19, %s22
    %p31 = scmp.eq.s32.totalorder %s14, 3
    %p32 = por %p30, %p31
    %p33 = scmp.ne.s32.totalorder %s22, %s23
    %p34 = scmp.eq.s32.totalorder %s14, 0
    %p35 = por %p33, %p34
    %p36 = scmp.ne.s32.totalorder %s22, %s23
    %p37 = scmp.eq.s32.totalorder %s15, 3
    %p38 = por %p36, %p37
    %p40 = scmp.ne.s32.totalorder %s23, %s39
    %p41 = scmp.eq.s32.totalorder %s15, 0
    %p42 = por %p40, %p41
    %s44 = sadd.s32 %s43, 1
    %p47 = scmp.eq.s32.totalorder %s9, 3
    %p48 = scmp.ne.s32.totalorder %s43, %s45
    %p49 = scmp.eq.s32.totalorder %s9, 0
    %p50 = por %p48, %p49
    %p51 = scmp.ne.s32.totalorder %s43, %s45
    %p52 = scmp.eq.s32.totalorder %s14, 3
    %p53 = por %p51, %p52
    %p54 = scmp.ne.s32.totalorder %s45, %s46
    %p55 = scmp.eq.s32.totalorder %s14, 0
    %p56 = por %p54, %p55
    %p57 = scmp.ne.s32.totalorder %s45, %s46
    %p58 = scmp.eq.s32.totalorder %s15, 3
    %p59 = por %p57, %p58
    %p61 = scmp.ne.s32.totalorder %s46, %s60
    %p62 = scmp.eq.s32.totalorder %s15, 0
    %p63 = por %p61, %p62
    %s65 = sadd.s32 %s64, 1
    %p68 = scmp.eq.s32.totalorder %s9, 3
    %p69 = scmp.ne.s32.totalorder %s64, %s66
    %p70 = scmp.eq.s32.totalorder %s9, 0
    %p71 = por %p69, %p70
    %p72 = scmp.ne.s32.totalorder %s64, %s66
    %p73 = scmp.eq.s32.totalorder %s14, 3
    %p74 = por %p72, %p73
    %p75 = scmp.ne.s32.totalorder %s66, %s67
    %p76 = scmp.eq.s32.totalorder %s14, 0
    %p77 = por %p75, %p76
    %p78 = scmp.ne.s32.totalorder %s66, %s67
    %p79 = scmp.eq.s32.totalorder %s15, 3
    %p80 = por %p78, %p79
    %p82 = scmp.ne.s32.totalorder %s67, %s81
    %p83 = scmp.eq.s32.totalorder %s15, 0
    %p84 = por %p82, %p83
    %s85 = ssub.s32 %s9, %s16
    %p86 = scmp.eq.s32.totalorder %s85, 0
    %s88 = sadd.s32 %s87, 1
    %s89 = scalar_select %p86, %s87, %s88
    %p92 = pneg %p86
    %p93 = scmp.eq.s32.totalorder %s9, 3
    %p94 = por %p92, %p93
    %p95 = scmp.ne.s32.totalorder %s87, %s90
    %p96 = scmp.eq.s32.totalorder %s9, 0
    %p97 = por %p95, %p96
    %p98 = scmp.ne.s32.totalorder %s87, %s90
    %p99 = scmp.eq.s32.totalorder %s14, 3
    %p100 = por %p98, %p99
    %p101 = scmp.ne.s32.totalorder %s90, %s91
    %p102 = scmp.eq.s32.totalorder %s14, 0
    %p103 = por %p101, %p102
    %p104 = scmp.ne.s32.totalorder %s90, %s91
    %p105 = scmp.eq.s32.totalorder %s15, 3
    %p106 = por %p104, %p105
    %p108 = scmp.ne.s32.totalorder %s91, %s107
    %p109 = scmp.eq.s32.totalorder %s15, 0
    %p110 = por %p108, %p109
    %p111 = scmp.le.s32.totalorder 1, %s9
    %p112 = scmp.lt.s32.totalorder %s9, 5
    %p113 = pnand %p111, %p112
    %p114 = pneg %p113
    // Predicated region
    $region9: #{skelet_loss.13} parent=5 // pred_check
      _
    $region10: #{skelet_loss.13} parent=5 // pred_check_branch
      %116 = sbr.rel (%p113) target = $region12
    $region11: #{skelet_loss.13} parent=5 // pred_region
      %s117 = ssub.s32 %s9, 1
      // Predicated region
      $region13: #{skelet_loss.13} parent=11 // pred_check
        %p118 = pneg %p56
      $region14: #{skelet_loss.13} parent=11 // pred_check_branch
        %120 = sbr.rel (%p118) target = $region16
      $region15: #{skelet_loss.13} parent=11 // pred_region
        _
      $region16: #{skelet_loss.13} parent=11 // pred_fallthru
        _
      // Predicated region
      $region17: #{skelet_loss.13} parent=11 // pred_check
        %p121 = pneg %p77
      $region18: #{skelet_loss.13} parent=11 // pred_check_branch
        %123 = sbr.rel (%p121) target = $region20
      $region19: #{skelet_loss.13} parent=11 // pred_region
        _
      $region20: #{skelet_loss.13} parent=11 // pred_fallthru
        _
    $region12: #{skelet_loss.13} parent=5 // pred_fallthru
      _
    %p124 = scmp.lt.s32.totalorder %s9, 4
    // Predicated region
    $region21: #{skelet_loss.13} parent=5 // pred_check
      %p125 = pneg %p124
    $region22: #{skelet_loss.13} parent=5 // pred_check_branch
      %127 = sbr.rel (%p125) target = $region24
    $region23: #{skelet_loss.13} parent=5 // pred_region
      // Predicated region
      $region25: #{skelet_loss.13} parent=23 // pred_check
        %p128 = pneg %p29
      $region26: #{skelet_loss.13} parent=23 // pred_check_branch
        %130 = sbr.rel (%p128) target = $region28
      $region27: #{skelet_loss.13} parent=23 // pred_region
        %p131 = scmp.lt.s32.totalorder %s9, 3
        %s132 = scalar_select %p131, %s9, 3
        %s133 = smul.addr %s132, 54
        %s134 = smul.addr %s133, 4
        %s135 = scalar_lea.vmem %s0, %s134
      $region28: #{skelet_loss.13} parent=23 // pred_fallthru
        _
    $region24: #{skelet_loss.13} parent=5 // pred_fallthru
      _
    %p136 = scmp.le.s32.totalorder 1, %s9
    %p137 = scmp.lt.s32.totalorder %s9, 5
    %p138 = pnand %p136, %p137
    %p139 = pneg %p138
    // Predicated region
    $region29: #{skelet_loss.13} parent=5 // pred_check
      _
    $region30: #{skelet_loss.13} parent=5 // pred_check_branch
      %141 = sbr.rel (%p138) target = $region32
    $region31: #{skelet_loss.13} parent=5 // pred_region
      %s142 = ssub.s32 %s9, 1
      %p143 = scmp.lt.s32.totalorder %s14, 3
      %s144 = scalar_select %p143, %s14, 3
      %s145 = smul.addr %s144, 54
      %s146 = smul.addr %s145, 4
      %s147 = scalar_lea.vmem %s0, %s146
      %p148 = pneg %p35
      %p149 = pneg %p32
      %p150 = pneg %p56
      %p151 = pneg %p53
      %p152 = pneg %p77
      %p153 = pneg %p74
      %p154 = pneg %p103
      %p155 = pneg %p100
      %p156 = scmp.lt.s32.totalorder %s14, 3
      %s157 = scalar_select %p156, %s14, 3
      %s158 = smul.addr %s157, 32
      %s159 = smul.addr %s158, 4
      %s160 = scalar_lea.vmem %s3, %s159
      %p161 = scmp.lt.s32.totalorder %s14, 3
      %s162 = scalar_select %p161, %s14, 3
      %s163 = smul.addr %s162, 54
      %s164 = smul.addr %s163, 4
      %s165 = scalar_lea.vmem %s0, %s164
      %p166 = scmp.lt.s32.totalorder %s14, 3
      %s167 = scalar_select %p166, %s14, 3
      %s168 = smul.addr %s167, 32
      %s169 = smul.addr %s168, 4
      %s170 = scalar_lea.vmem %s3, %s169
      %v172 = vld [vmem:[%s2] sm:$0x1]
      loop: start=0, step=1, limit=16
      $region33: #{skelet_loss.13} parent=31 // loop_pre_header
        _
      $region34: #{skelet_loss.13} parent=31 // loop_header
        %s174 = sphi 0, %s178
        %p175 = scmp.ge.s32.totalorder %s174, 16
      $region35: #{skelet_loss.13} parent=31 // loop_header_branch
        %177 = sbr.rel (%p175) target = $region39
      $region36: #{skelet_loss.13} parent=31 // loop_body
        %s179 = smul.u32 %s174, 3
        %s180 = smul.addr %s179, 4
        %s181 = scalar_lea.vmem %s165, %s180
        %v182 = vld [vmem:[%s181] sm:$0xf]
        %v183 = vld [vmem:[%s181 + $0x4] sm:$0xf]
        %v184 = vld [vmem:[%s1] sm:$0xf]
        %v185 = vld [vmem:[%s1 + $0x4] sm:$0xf]
        %v186 = vld [vmem:[%s1 + $0x8] sm:$0xf]
        %v187 = vld [vmem:[%s1 + $0xc] sm:$0xf]
        %v188 = vld [vmem:[%s1 + $0x10] sm:$0xf]
        %v189 = vld [vmem:[%s1 + $0x14] sm:$0xf]
        %v190 = vld [vmem:[%s1 + $0x18] sm:$0xf]
        %v191 = vld [vmem:[%s1 + $0x1c] sm:$0xf]
        %v192 = vld [vmem:[%s181 + $0x8] sm:$0x1]
        %s193 = scalar_lea.vmem %s1, 32
        %v194 = vld [vmem:[%s193] sm:$0xf]
        %v195 = vld [vmem:[%s193 + $0x4] sm:$0xf]
        %v196 = vld [vmem:[%s193 + $0x8] sm:$0xf]
        %v197 = vld [vmem:[%s193 + $0xc] sm:$0xf]
        %v198 = vld [vmem:[%s193 + $0x10] sm:$0xf]
        %v199 = vld [vmem:[%s193 + $0x14] sm:$0xf]
        %v200 = vld [vmem:[%s193 + $0x18] sm:$0xf]
        %v201 = vld [vmem:[%s193 + $0x1c] sm:$0xf]
        %v205 = vunpack.c.l.b16 %v182
        %v206 = vunpack.c.l.b16 %v183
        %v207 = vunpack.c.l.b16 %v192
        %v208 = vpack.c.b16 %v206, %v205
        %v209 = vpack.c.b16 %v207, %v207
        %vm210 = vsmask.f32 7424
        %v212 = vshrl.u32 %v208, 16
        %v214 = vshll.u32 %v208, 16
        %v216 = vrot.slane %v214, 1
        %v217 = vor.u32 %v212, %v216
        %v219 = vshll.u32 %v209, 16
        %v221 = vrot.slane %v219, 1
        %v222 = vsel %vm210, %v217, %v221
        %v231 = vunpack.c.l.b16 %v194
        %v232 = vunpack.c.l.b16 %v195
        %v233 = vunpack.c.l.b16 %v196
        %v234 = vunpack.c.l.b16 %v197
        %v235 = vunpack.c.l.b16 %v198
        %v236 = vunpack.c.l.b16 %v199
        %v237 = vunpack.c.l.b16 %v200
        %v238 = vunpack.c.l.b16 %v201
        %v239 = vpack.c.b16 %v232, %v231
        %v240 = vpack.c.b16 %v234, %v233
        %v241 = vpack.c.b16 %v236, %v235
        %v242 = vpack.c.b16 %v238, %v237
        %vm247 = vcmask 523264
        %v249 = vsel %vm247, %v222, 0
        %251 = vmatprep.subr.bf16.mxu0 0
        %252 = vmatpush1.bf16.msra.mxu0 %v239
        %253 = vmatprep.subr.bf16.mxu0 0
        %254 = vmatpush1.bf16.msra.mxu0 %v240
        %255 = vmatprep.subr.bf16.mxu0 0
        %256 = vmatpush1.bf16.msra.mxu0 %v241
        %257 = vmatprep.subr.bf16.mxu0 0
        %258 = vmatpush1.bf16.msra.mxu0 %v242
        %259 = vmatprep.subr.bf16.mxu0 0
        %260 = vmatpush1.bf16.msra.mxu0 0
        %261 = vmatprep.subr.bf16.mxu0 0
        %262 = vmatpush1.bf16.msra.mxu0 0
        %263 = vmatprep.subr.bf16.mxu0 0
        %264 = vmatpush1.bf16.msra.mxu0 0
        %265 = vmatprep.subr.bf16.mxu0 0
        %266 = vmatpush1.bf16.msra.mxu0 0
        %267 = vmatprep.subr.bf16.mxu0 0
        %268 = vmatpush1.bf16.msra.mxu0 0
        %269 = vmatprep.subr.bf16.mxu0 0
        %270 = vmatpush1.bf16.msra.mxu0 0
        %271 = vmatprep.subr.bf16.mxu0 0
        %272 = vmatpush1.bf16.msra.mxu0 0
        %273 = vmatprep.subr.bf16.mxu0 0
        %274 = vmatpush1.bf16.msra.mxu0 0
        %275 = vmatprep.subr.bf16.mxu0 0
        %276 = vmatpush1.bf16.msra.mxu0 0
        %277 = vmatprep.subr.bf16.mxu0 0
        %278 = vmatpush1.bf16.msra.mxu0 0
        %279 = vmatprep.subr.bf16.mxu0 0
        %280 = vmatpush1.bf16.msra.mxu0 0
        %281 = vmatprep.subr.bf16.mxu0 0
        %282 = vmatpush1.bf16.msra.mxu0 0
        %283 = vmatprep.mubr.bf16.mxu0 0
        %284 = vmatmul.mubr.bf16.gmra.mrb[0].mxu0 %v249
        %v285 = vpop.f32.mrb[0].mxu0
        %v286 = vadd.f32 0.0, %v285
        %v287 = vpop.f32.mrb[0].mxu0
        %v288 = vpop.f32.mrb[0].mxu0
        %v289 = vadd.f32 0.0, %v288
        %v290 = vpop.f32.mrb[0].mxu0
        %291 = vdwg.mxu0
        %v300 = vunpack.c.l.b16 %v184
        %v301 = vunpack.c.l.b16 %v185
        %v302 = vunpack.c.l.b16 %v186
        %v303 = vunpack.c.l.b16 %v187
        %v304 = vunpack.c.l.b16 %v188
        %v305 = vunpack.c.l.b16 %v189
        %v306 = vunpack.c.l.b16 %v190
        %v307 = vunpack.c.l.b16 %v191
        %v308 = vpack.c.b16 %v301, %v300
        %v309 = vpack.c.b16 %v303, %v302
        %v310 = vpack.c.b16 %v305, %v304
        %v311 = vpack.c.b16 %v307, %v306
        %v316 = vsel %vm247, %v208, 0
        %318 = vmatprep.subr.bf16.mxu0 0
        %319 = vmatpush1.bf16.msra.mxu0 %v308
        %320 = vmatprep.subr.bf16.mxu0 0
        %321 = vmatpush1.bf16.msra.mxu0 %v309
        %322 = vmatprep.subr.bf16.mxu0 0
        %323 = vmatpush1.bf16.msra.mxu0 %v310
        %324 = vmatprep.subr.bf16.mxu0 0
        %325 = vmatpush1.bf16.msra.mxu0 %v311
        %326 = vmatprep.subr.bf16.mxu0 0
        %327 = vmatpush1.bf16.msra.mxu0 0
        %328 = vmatprep.subr.bf16.mxu0 0
        %329 = vmatpush1.bf16.msra.mxu0 0
        %330 = vmatprep.subr.bf16.mxu0 0
        %331 = vmatpush1.bf16.msra.mxu0 0
        %332 = vmatprep.subr.bf16.mxu0 0
        %333 = vmatpush1.bf16.msra.mxu0 0
        %334 = vmatprep.subr.bf16.mxu0 0
        %335 = vmatpush1.bf16.msra.mxu0 0
        %336 = vmatprep.subr.bf16.mxu0 0
        %337 = vmatpush1.bf16.msra.mxu0 0
        %338 = vmatprep.subr.bf16.mxu0 0
        %339 = vmatpush1.bf16.msra.mxu0 0
        %340 = vmatprep.subr.bf16.mxu0 0
        %341 = vmatpush1.bf16.msra.mxu0 0
        %342 = vmatprep.subr.bf16.mxu0 0
        %343 = vmatpush1.bf16.msra.mxu0 0
        %344 = vmatprep.subr.bf16.mxu0 0
        %345 = vmatpush1.bf16.msra.mxu0 0
        %346 = vmatprep.subr.bf16.mxu0 0
        %347 = vmatpush1.bf16.msra.mxu0 0
        %348 = vmatprep.subr.bf16.mxu0 0
        %349 = vmatpush1.bf16.msra.mxu0 0
        %350 = vmatprep.mubr.bf16.mxu0 0
        %351 = vmatmul.mubr.bf16.gmra.mrb[0].mxu0 %v316
        %v352 = vpop.f32.mrb[0].mxu0
        %v353 = vadd.f32 %v286, %v352
        %v354 = vpop.f32.mrb[0].mxu0
        %v355 = vpop.f32.mrb[0].mxu0
        %v356 = vadd.f32 %v289, %v355
        %v357 = vpop.f32.mrb[0].mxu0
        %358 = vdwg.mxu0
        %v359 = vld [vmem:[%s181] sm:$0xe]
        %s360 = scalar_lea.vmem %s1, 64
        %v361 = vld [vmem:[%s360] sm:$0xf]
        %v362 = vld [vmem:[%s360 + $0x4] sm:$0xf]
        %v363 = vld [vmem:[%s360 + $0x8] sm:$0xf]
        %v364 = vld [vmem:[%s360 + $0xc] sm:$0xf]
        %v365 = vld [vmem:[%s360 + $0x10] sm:$0xf]
        %v366 = vld [vmem:[%s360 + $0x14] sm:$0xf]
        %v367 = vld [vmem:[%s360 + $0x18] sm:$0xf]
        %v368 = vld [vmem:[%s360 + $0x1c] sm:$0xf]
        %v370 = vunpack.c.l.b16 %v359
        %v371 = vpack.c.b16 %v206, %v370
        %vm372 = vcmask 1046528
        %v373 = vrot.slane %v371, 1
        %v374 = vrot.slane %v209, 1
        %v375 = vsel %vm372, %v373, %v374
        %v384 = vunpack.c.l.b16 %v361
        %v385 = vunpack.c.l.b16 %v362
        %v386 = vunpack.c.l.b16 %v363
        %v387 = vunpack.c.l.b16 %v364
        %v388 = vunpack.c.l.b16 %v365
        %v389 = vunpack.c.l.b16 %v366
        %v390 = vunpack.c.l.b16 %v367
        %v391 = vunpack.c.l.b16 %v368
        %v392 = vpack.c.b16 %v385, %v384
        %v393 = vpack.c.b16 %v387, %v386
        %v394 = vpack.c.b16 %v389, %v388
        %v395 = vpack.c.b16 %v391, %v390
        %v401 = vsel %vm247, %v375, 0
        %403 = vmatprep.subr.bf16.mxu0 0
        %404 = vmatpush1.bf16.msra.mxu0 %v392
        %405 = vmatprep.subr.bf16.mxu0 0
        %406 = vmatpush1.bf16.msra.mxu0 %v393
        %407 = vmatprep.subr.bf16.mxu0 0
        %408 = vmatpush1.bf16.msra.mxu0 %v394
        %409 = vmatprep.subr.bf16.mxu0 0
        %410 = vmatpush1.bf16.msra.mxu0 %v395
        %411 = vmatprep.subr.bf16.mxu0 0
        %412 = vmatpush1.bf16.msra.mxu0 0
        %413 = vmatprep.subr.bf16.mxu0 0
        %414 = vmatpush1.bf16.msra.mxu0 0
        %415 = vmatprep.subr.bf16.mxu0 0
        %416 = vmatpush1.bf16.msra.mxu0 0
        %417 = vmatprep.subr.bf16.mxu0 0
        %418 = vmatpush1.bf16.msra.mxu0 0
        %419 = vmatprep.subr.bf16.mxu0 0
        %420 = vmatpush1.bf16.msra.mxu0 0
        %421 = vmatprep.subr.bf16.mxu0 0
        %422 = vmatpush1.bf16.msra.mxu0 0
        %423 = vmatprep.subr.bf16.mxu0 0
        %424 = vmatpush1.bf16.msra.mxu0 0
        %425 = vmatprep.subr.bf16.mxu0 0
        %426 = vmatpush1.bf16.msra.mxu0 0
        %427 = vmatprep.subr.bf16.mxu0 0
        %428 = vmatpush1.bf16.msra.mxu0 0
        %429 = vmatprep.subr.bf16.mxu0 0
        %430 = vmatpush1.bf16.msra.mxu0 0
        %431 = vmatprep.subr.bf16.mxu0 0
        %432 = vmatpush1.bf16.msra.mxu0 0
        %433 = vmatprep.subr.bf16.mxu0 0
        %434 = vmatpush1.bf16.msra.mxu0 0
        %435 = vmatprep.mubr.bf16.mxu0 0
        %436 = vmatmul.mubr.bf16.gmra.mrb[0].mxu0 %v401
        %v437 = vpop.f32.mrb[0].mxu0
        %v438 = vadd.f32 0.0, %v437
        %v439 = vpop.f32.mrb[0].mxu0
        %v440 = vpop.f32.mrb[0].mxu0
        %v441 = vadd.f32 0.0, %v440
        %v442 = vpop.f32.mrb[0].mxu0
        %443 = vdwg.mxu0
        %v444 = vadd.f32 %v353, %v438
        %v445 = vadd.f32 %v356, %v441
        %s446 = sadd.s32 %s174, 1
        %s447 = smul.u32 %s446, 3
        %s448 = smul.addr %s447, 4
        %s449 = scalar_lea.vmem %s165, %s448
        %v450 = vld [vmem:[%s449] sm:$0xf]
        %v451 = vld [vmem:[%s449 + $0x4] sm:$0xf]
        %s452 = scalar_lea.vmem %s1, 96
        %v453 = vld [vmem:[%s452] sm:$0xf]
        %v454 = vld [vmem:[%s452 + $0x4] sm:$0xf]
        %v455 = vld [vmem:[%s452 + $0x8] sm:$0xf]
        %v456 = vld [vmem:[%s452 + $0xc] sm:$0xf]
        %v457 = vld [vmem:[%s452 + $0x10] sm:$0xf]
        %v458 = vld [vmem:[%s452 + $0x14] sm:$0xf]
        %v459 = vld [vmem:[%s452 + $0x18] sm:$0xf]
        %v460 = vld [vmem:[%s452 + $0x1c] sm:$0xf]
        %v463 = vunpack.c.l.b16 %v450
        %v464 = vunpack.c.l.b16 %v451
        %v465 = vpack.c.b16 %v464, %v463
        %v474 = vunpack.c.l.b16 %v453
        %v475 = vunpack.c.l.b16 %v454
        %v476 = vunpack.c.l.b16 %v455
        %v477 = vunpack.c.l.b16 %v456
        %v478 = vunpack.c.l.b16 %v457
        %v479 = vunpack.c.l.b16 %v458
        %v480 = vunpack.c.l.b16 %v459
        %v481 = vunpack.c.l.b16 %v460
        %v482 = vpack.c.b16 %v475, %v474
        %v483 = vpack.c.b16 %v477, %v476
        %v484 = vpack.c.b16 %v479, %v478
        %v485 = vpack.c.b16 %v481, %v480
        %v491 = vsel %vm247, %v465, 0
        %493 = vmatprep.subr.bf16.mxu0 0
        %494 = vmatpush1.bf16.msra.mxu0 %v482
        %495 = vmatprep.subr.bf16.mxu0 0
        %496 = vmatpush1.bf16.msra.mxu0 %v483
        %497 = vmatprep.subr.bf16.mxu0 0
        %498 = vmatpush1.bf16.msra.mxu0 %v484
        %499 = vmatprep.subr.bf16.mxu0 0
        %500 = vmatpush1.bf16.msra.mxu0 %v485
        %501 = vmatprep.subr.bf16.mxu0 0
        %502 = vmatpush1.bf16.msra.mxu0 0
        %503 = vmatprep.subr.bf16.mxu0 0
        %504 = vmatpush1.bf16.msra.mxu0 0
        %505 = vmatprep.subr.bf16.mxu0 0
        %506 = vmatpush1.bf16.msra.mxu0 0
        %507 = vmatprep.subr.bf16.mxu0 0
        %508 = vmatpush1.bf16.msra.mxu0 0
        %509 = vmatprep.subr.bf16.mxu0 0
        %510 = vmatpush1.bf16.msra.mxu0 0
        %511 = vmatprep.subr.bf16.mxu0 0
        %512 = vmatpush1.bf16.msra.mxu0 0
        %513 = vmatprep.subr.bf16.mxu0 0
        %514 = vmatpush1.bf16.msra.mxu0 0
        %515 = vmatprep.subr.bf16.mxu0 0
        %516 = vmatpush1.bf16.msra.mxu0 0
        %517 = vmatprep.subr.bf16.mxu0 0
        %518 = vmatpush1.bf16.msra.mxu0 0
        %519 = vmatprep.subr.bf16.mxu0 0
        %520 = vmatpush1.bf16.msra.mxu0 0
        %521 = vmatprep.subr.bf16.mxu0 0
        %522 = vmatpush1.bf16.msra.mxu0 0
        %523 = vmatprep.subr.bf16.mxu0 0
        %524 = vmatpush1.bf16.msra.mxu0 0
        %525 = vmatprep.mubr.bf16.mxu0 0
        %526 = vmatmul.mubr.bf16.gmra.mrb[0].mxu0 %v491
        %v527 = vpop.f32.mrb[0].mxu0
        %v528 = vadd.f32 0.0, %v527
        %v529 = vpop.f32.mrb[0].mxu0
        %v530 = vpop.f32.mrb[0].mxu0
        %v531 = vadd.f32 0.0, %v530
        %v532 = vpop.f32.mrb[0].mxu0
        %533 = vdwg.mxu0
        %v534 = vadd.f32 %v444, %v528
        %v535 = vadd.f32 %v445, %v531
        %v536 = vld [vmem:[%s449] sm:$0xf]
        %v537 = vld [vmem:[%s449 + $0x4] sm:$0xf]
        %v538 = vld [vmem:[%s449 + $0x8] sm:$0x1]
        %s539 = scalar_lea.vmem %s1, 128
        %v540 = vld [vmem:[%s539] sm:$0xf]
        %v541 = vld [vmem:[%s539 + $0x4] sm:$0xf]
        %v542 = vld [vmem:[%s539 + $0x8] sm:$0xf]
        %v543 = vld [vmem:[%s539 + $0xc] sm:$0xf]
        %v544 = vld [vmem:[%s539 + $0x10] sm:$0xf]
        %v545 = vld [vmem:[%s539 + $0x14] sm:$0xf]
        %v546 = vld [vmem:[%s539 + $0x18] sm:$0xf]
        %v547 = vld [vmem:[%s539 + $0x1c] sm:$0xf]
        %v551 = vunpack.c.l.b16 %v536
        %v552 = vunpack.c.l.b16 %v537
        %v553 = vunpack.c.l.b16 %v538
        %v554 = vpack.c.b16 %v552, %v551
        %v555 = vpack.c.b16 %v553, %v553
        %v557 = vshrl.u32 %v554, 16
        %v559 = vshll.u32 %v554, 16
        %v561 = vrot.slane %v559, 1
        %v562 = vor.u32 %v557, %v561
        %v564 = vshll.u32 %v555, 16
        %v566 = vrot.slane %v564, 1
        %v567 = vsel %vm210, %v562, %v566
        %v576 = vunpack.c.l.b16 %v540
        %v577 = vunpack.c.l.b16 %v541
        %v578 = vunpack.c.l.b16 %v542
        %v579 = vunpack.c.l.b16 %v543
        %v580 = vunpack.c.l.b16 %v544
        %v581 = vunpack.c.l.b16 %v545
        %v582 = vunpack.c.l.b16 %v546
        %v583 = vunpack.c.l.b16 %v547
        %v584 = vpack.c.b16 %v577, %v576
        %v585 = vpack.c.b16 %v579, %v578
        %v586 = vpack.c.b16 %v581, %v580
        %v587 = vpack.c.b16 %v583, %v582
        %v593 = vsel %vm247, %v567, 0
        %595 = vmatprep.subr.bf16.mxu0 0
        %596 = vmatpush1.bf16.msra.mxu0 %v584
        %597 = vmatprep.subr.bf16.mxu0 0
        %598 = vmatpush1.bf16.msra.mxu0 %v585
        %599 = vmatprep.subr.bf16.mxu0 0
        %600 = vmatpush1.bf16.msra.mxu0 %v586
        %601 = vmatprep.subr.bf16.mxu0 0
        %602 = vmatpush1.bf16.msra.mxu0 %v587
        %603 = vmatprep.subr.bf16.mxu0 0
        %604 = vmatpush1.bf16.msra.mxu0 0
        %605 = vmatprep.subr.bf16.mxu0 0
        %606 = vmatpush1.bf16.msra.mxu0 0
        %607 = vmatprep.subr.bf16.mxu0 0
        %608 = vmatpush1.bf16.msra.mxu0 0
        %609 = vmatprep.subr.bf16.mxu0 0
        %610 = vmatpush1.bf16.msra.mxu0 0
        %611 = vmatprep.subr.bf16.mxu0 0
        %612 = vmatpush1.bf16.msra.mxu0 0
        %613 = vmatprep.subr.bf16.mxu0 0
        %614 = vmatpush1.bf16.msra.mxu0 0
        %615 = vmatprep.subr.bf16.mxu0 0
        %616 = vmatpush1.bf16.msra.mxu0 0
        %617 = vmatprep.subr.bf16.mxu0 0
        %618 = vmatpush1.bf16.msra.mxu0 0
        %619 = vmatprep.subr.bf16.mxu0 0
        %620 = vmatpush1.bf16.msra.mxu0 0
        %621 = vmatprep.subr.bf16.mxu0 0
        %622 = vmatpush1.bf16.msra.mxu0 0
        %623 = vmatprep.subr.bf16.mxu0 0
        %624 = vmatpush1.bf16.msra.mxu0 0
        %625 = vmatprep.subr.bf16.mxu0 0
        %626 = vmatpush1.bf16.msra.mxu0 0
        %627 = vmatprep.mubr.bf16.mxu0 0
        %628 = vmatmul.mubr.bf16.gmra.mrb[0].mxu0 %v593
        %v629 = vpop.f32.mrb[0].mxu0
        %v630 = vadd.f32 0.0, %v629
        %v631 = vpop.f32.mrb[0].mxu0
        %v632 = vpop.f32.mrb[0].mxu0
        %v633 = vadd.f32 0.0, %v632
        %v634 = vpop.f32.mrb[0].mxu0
        %635 = vdwg.mxu0
        %v636 = vadd.f32 %v534, %v630
        %v637 = vadd.f32 %v535, %v633
        %v638 = vld [vmem:[%s449] sm:$0xe]
        %s639 = scalar_lea.vmem %s1, 160
        %v640 = vld [vmem:[%s639] sm:$0xf]
        %v641 = vld [vmem:[%s639 + $0x4] sm:$0xf]
        %v642 = vld [vmem:[%s639 + $0x8] sm:$0xf]
        %v643 = vld [vmem:[%s639 + $0xc] sm:$0xf]
        %v644 = vld [vmem:[%s639 + $0x10] sm:$0xf]
        %v645 = vld [vmem:[%s639 + $0x14] sm:$0xf]
        %v646 = vld [vmem:[%s639 + $0x18] sm:$0xf]
        %v647 = vld [vmem:[%s639 + $0x1c] sm:$0xf]
        %v649 = vunpack.c.l.b16 %v638
        %v650 = vpack.c.b16 %v552, %v649
        %v651 = vrot.slane %v650, 1
        %v652 = vrot.slane %v555, 1
        %v653 = vsel %vm372, %v651, %v652
        %v662 = vunpack.c.l.b16 %v640
        %v663 = vunpack.c.l.b16 %v641
        %v664 = vunpack.c.l.b16 %v642
        %v665 = vunpack.c.l.b16 %v643
        %v666 = vunpack.c.l.b16 %v644
        %v667 = vunpack.c.l.b16 %v645
        %v668 = vunpack.c.l.b16 %v646
        %v669 = vunpack.c.l.b16 %v647
        %v670 = vpack.c.b16 %v663, %v662
        %v671 = vpack.c.b16 %v665, %v664
        %v672 = vpack.c.b16 %v667, %v666
        %v673 = vpack.c.b16 %v669, %v668
        %v679 = vsel %vm247, %v653, 0
        %681 = vmatprep.subr.bf16.mxu0 0
        %682 = vmatpush1.bf16.msra.mxu0 %v670
        %683 = vmatprep.subr.bf16.mxu0 0
        %684 = vmatpush1.bf16.msra.mxu0 %v671
        %685 = vmatprep.subr.bf16.mxu0 0
        %686 = vmatpush1.bf16.msra.mxu0 %v672
        %687 = vmatprep.subr.bf16.mxu0 0
        %688 = vmatpush1.bf16.msra.mxu0 %v673
        %689 = vmatprep.subr.bf16.mxu0 0
        %690 = vmatpush1.bf16.msra.mxu0 0
        %691 = vmatprep.subr.bf16.mxu0 0
        %692 = vmatpush1.bf16.msra.mxu0 0
        %693 = vmatprep.subr.bf16.mxu0 0
        %694 = vmatpush1.bf16.msra.mxu0 0
        %695 = vmatprep.subr.bf16.mxu0 0
        %696 = vmatpush1.bf16.msra.mxu0 0
        %697 = vmatprep.subr.bf16.mxu0 0
        %698 = vmatpush1.bf16.msra.mxu0 0
        %699 = vmatprep.subr.bf16.mxu0 0
        %700 = vmatpush1.bf16.msra.mxu0 0
        %701 = vmatprep.subr.bf16.mxu0 0
        %702 = vmatpush1.bf16.msra.mxu0 0
        %703 = vmatprep.subr.bf16.mxu0 0
        %704 = vmatpush1.bf16.msra.mxu0 0
        %705 = vmatprep.subr.bf16.mxu0 0
        %706 = vmatpush1.bf16.msra.mxu0 0
        %707 = vmatprep.subr.bf16.mxu0 0
        %708 = vmatpush1.bf16.msra.mxu0 0
        %709 = vmatprep.subr.bf16.mxu0 0
        %710 = vmatpush1.bf16.msra.mxu0 0
        %711 = vmatprep.subr.bf16.mxu0 0
        %712 = vmatpush1.bf16.msra.mxu0 0
        %713 = vmatprep.mubr.bf16.mxu0 0
        %714 = vmatmul.mubr.bf16.gmra.mrb[0].mxu0 %v679
        %v715 = vpop.f32.mrb[0].mxu0
        %v716 = vadd.f32 0.0, %v715
        %v717 = vpop.f32.mrb[0].mxu0
        %v718 = vpop.f32.mrb[0].mxu0
        %v719 = vadd.f32 0.0, %v718
        %v720 = vpop.f32.mrb[0].mxu0
        %721 = vdwg.mxu0
        %v722 = vadd.f32 %v636, %v716
        %v723 = vadd.f32 %v637, %v719
        %s724 = sadd.s32 %s174, 2
        %s725 = smul.u32 %s724, 3
        %s726 = smul.addr %s725, 4
        %s727 = scalar_lea.vmem %s165, %s726
        %v728 = vld [vmem:[%s727] sm:$0xf]
        %v729 = vld [vmem:[%s727 + $0x4] sm:$0xf]
        %s730 = scalar_lea.vmem %s1, 192
        %v731 = vld [vmem:[%s730] sm:$0xf]
        %v732 = vld [vmem:[%s730 + $0x4] sm:$0xf]
        %v733 = vld [vmem:[%s730 + $0x8] sm:$0xf]
        %v734 = vld [vmem:[%s730 + $0xc] sm:$0xf]
        %v735 = vld [vmem:[%s730 + $0x10] sm:$0xf]
        %v736 = vld [vmem:[%s730 + $0x14] sm:$0xf]
        %v737 = vld [vmem:[%s730 + $0x18] sm:$0xf]
        %v738 = vld [vmem:[%s730 + $0x1c] sm:$0xf]
        %v741 = vunpack.c.l.b16 %v728
        %v742 = vunpack.c.l.b16 %v729
        %v743 = vpack.c.b16 %v742, %v741
        %v752 = vunpack.c.l.b16 %v731
        %v753 = vunpack.c.l.b16 %v732
        %v754 = vunpack.c.l.b16 %v733
        %v755 = vunpack.c.l.b16 %v734
        %v756 = vunpack.c.l.b16 %v735
        %v757 = vunpack.c.l.b16 %v736
        %v758 = vunpack.c.l.b16 %v737
        %v759 = vunpack.c.l.b16 %v738
        %v760 = vpack.c.b16 %v753, %v752
        %v761 = vpack.c.b16 %v755, %v754
        %v762 = vpack.c.b16 %v757, %v756
        %v763 = vpack.c.b16 %v759, %v758
        %v769 = vsel %vm247, %v743, 0
        %771 = vmatprep.subr.bf16.mxu0 0
        %772 = vmatpush1.bf16.msra.mxu0 %v760
        %773 = vmatprep.subr.bf16.mxu0 0
        %774 = vmatpush1.bf16.msra.mxu0 %v761
        %775 = vmatprep.subr.bf16.mxu0 0
        %776 = vmatpush1.bf16.msra.mxu0 %v762
        %777 = vmatprep.subr.bf16.mxu0 0
        %778 = vmatpush1.bf16.msra.mxu0 %v763
        %779 = vmatprep.subr.bf16.mxu0 0
        %780 = vmatpush1.bf16.msra.mxu0 0
        %781 = vmatprep.subr.bf16.mxu0 0
        %782 = vmatpush1.bf16.msra.mxu0 0
        %783 = vmatprep.subr.bf16.mxu0 0
        %784 = vmatpush1.bf16.msra.mxu0 0
        %785 = vmatprep.subr.bf16.mxu0 0
        %786 = vmatpush1.bf16.msra.mxu0 0
        %787 = vmatprep.subr.bf16.mxu0 0
        %788 = vmatpush1.bf16.msra.mxu0 0
        %789 = vmatprep.subr.bf16.mxu0 0
        %790 = vmatpush1.bf16.msra.mxu0 0
        %791 = vmatprep.subr.bf16.mxu0 0
        %792 = vmatpush1.bf16.msra.mxu0 0
        %793 = vmatprep.subr.bf16.mxu0 0
        %794 = vmatpush1.bf16.msra.mxu0 0
        %795 = vmatprep.subr.bf16.mxu0 0
        %796 = vmatpush1.bf16.msra.mxu0 0
        %797 = vmatprep.subr.bf16.mxu0 0
        %798 = vmatpush1.bf16.msra.mxu0 0
        %799 = vmatprep.subr.bf16.mxu0 0
        %800 = vmatpush1.bf16.msra.mxu0 0
        %801 = vmatprep.subr.bf16.mxu0 0
        %802 = vmatpush1.bf16.msra.mxu0 0
        %803 = vmatprep.mubr.bf16.mxu0 0
        %804 = vmatmul.mubr.bf16.gmra.mrb[0].mxu0 %v769
        %v805 = vpop.f32.mrb[0].mxu0
        %v806 = vadd.f32 0.0, %v805
        %v807 = vpop.f32.mrb[0].mxu0
        %v808 = vpop.f32.mrb[0].mxu0
        %v809 = vadd.f32 0.0, %v808
        %v810 = vpop.f32.mrb[0].mxu0
        %811 = vdwg.mxu0
        %v812 = vadd.f32 %v722, %v806
        %v813 = vadd.f32 %v723, %v809
        %v814 = vld [vmem:[%s727] sm:$0xf]
        %v815 = vld [vmem:[%s727 + $0x4] sm:$0xf]
        %v816 = vld [vmem:[%s727 + $0x8] sm:$0x1]
        %s817 = scalar_lea.vmem %s1, 224
        %v818 = vld [vmem:[%s817] sm:$0xf]
        %v819 = vld [vmem:[%s817 + $0x4] sm:$0xf]
        %v820 = vld [vmem:[%s817 + $0x8] sm:$0xf]
        %v821 = vld [vmem:[%s817 + $0xc] sm:$0xf]
        %v822 = vld [vmem:[%s817 + $0x10] sm:$0xf]
        %v823 = vld [vmem:[%s817 + $0x14] sm:$0xf]
        %v824 = vld [vmem:[%s817 + $0x18] sm:$0xf]
        %v825 = vld [vmem:[%s817 + $0x1c] sm:$0xf]
        %v829 = vunpack.c.l.b16 %v814
        %v830 = vunpack.c.l.b16 %v815
        %v831 = vunpack.c.l.b16 %v816
        %v832 = vpack.c.b16 %v830, %v829
        %v833 = vpack.c.b16 %v831, %v831
        %v835 = vshrl.u32 %v832, 16
        %v837 = vshll.u32 %v832, 16
        %v839 = vrot.slane %v837, 1
        %v840 = vor.u32 %v835, %v839
        %v842 = vshll.u32 %v833, 16
        %v844 = vrot.slane %v842, 1
        %v845 = vsel %vm210, %v840, %v844
        %v854 = vunpack.c.l.b16 %v818
        %v855 = vunpack.c.l.b16 %v819
        %v856 = vunpack.c.l.b16 %v820
        %v857 = vunpack.c.l.b16 %v821
        %v858 = vunpack.c.l.b16 %v822
        %v859 = vunpack.c.l.b16 %v823
        %v860 = vunpack.c.l.b16 %v824
        %v861 = vunpack.c.l.b16 %v825
        %v862 = vpack.c.b16 %v855, %v854
        %v863 = vpack.c.b16 %v857, %v856
        %v864 = vpack.c.b16 %v859, %v858
        %v865 = vpack.c.b16 %v861, %v860
        %v871 = vsel %vm247, %v845, 0
        %873 = vmatprep.subr.bf16.mxu0 0
        %874 = vmatpush1.bf16.msra.mxu0 %v862
        %875 = vmatprep.subr.bf16.mxu0 0
        %876 = vmatpush1.bf16.msra.mxu0 %v863
        %877 = vmatprep.subr.bf16.mxu0 0
        %878 = vmatpush1.bf16.msra.mxu0 %v864
        %879 = vmatprep.subr.bf16.mxu0 0
        %880 = vmatpush1.bf16.msra.mxu0 %v865
        %881 = vmatprep.subr.bf16.mxu0 0
        %882 = vmatpush1.bf16.msra.mxu0 0
        %883 = vmatprep.subr.bf16.mxu0 0
        %884 = vmatpush1.bf16.msra.mxu0 0
        %885 = vmatprep.subr.bf16.mxu0 0
        %886 = vmatpush1.bf16.msra.mxu0 0
        %887 = vmatprep.subr.bf16.mxu0 0
        %888 = vmatpush1.bf16.msra.mxu0 0
        %889 = vmatprep.subr.bf16.mxu0 0
        %890 = vmatpush1.bf16.msra.mxu0 0
        %891 = vmatprep.subr.bf16.mxu0 0
        %892 = vmatpush1.bf16.msra.mxu0 0
        %893 = vmatprep.subr.bf16.mxu0 0
        %894 = vmatpush1.bf16.msra.mxu0 0
        %895 = vmatprep.subr.bf16.mxu0 0
        %896 = vmatpush1.bf16.msra.mxu0 0
        %897 = vmatprep.subr.bf16.mxu0 0
        %898 = vmatpush1.bf16.msra.mxu0 0
        %899 = vmatprep.subr.bf16.mxu0 0
        %900 = vmatpush1.bf16.msra.mxu0 0
        %901 = vmatprep.subr.bf16.mxu0 0
        %902 = vmatpush1.bf16.msra.mxu0 0
        %903 = vmatprep.subr.bf16.mxu0 0
        %904 = vmatpush1.bf16.msra.mxu0 0
        %905 = vmatprep.mubr.bf16.mxu0 0
        %906 = vmatmul.mubr.bf16.gmra.mrb[0].mxu0 %v871
        %v907 = vpop.f32.mrb[0].mxu0
        %v908 = vadd.f32 0.0, %v907
        %v909 = vpop.f32.mrb[0].mxu0
        %v910 = vpop.f32.mrb[0].mxu0
        %v911 = vadd.f32 0.0, %v910
        %v912 = vpop.f32.mrb[0].mxu0
        %913 = vdwg.mxu0
        %v914 = vadd.f32 %v812, %v908
        %v915 = vadd.f32 %v813, %v911
        %v916 = vld [vmem:[%s727] sm:$0xe]
        %s917 = scalar_lea.vmem %s1, 256
        %v918 = vld [vmem:[%s917] sm:$0xf]
        %v919 = vld [vmem:[%s917 + $0x4] sm:$0xf]
        %v920 = vld [vmem:[%s917 + $0x8] sm:$0xf]
        %v921 = vld [vmem:[%s917 + $0xc] sm:$0xf]
        %v922 = vld [vmem:[%s917 + $0x10] sm:$0xf]
        %v923 = vld [vmem:[%s917 + $0x14] sm:$0xf]
        %v924 = vld [vmem:[%s917 + $0x18] sm:$0xf]
        %v925 = vld [vmem:[%s917 + $0x1c] sm:$0xf]
        %v927 = vunpack.c.l.b16 %v916
        %v928 = vpack.c.b16 %v830, %v927
        %v929 = vrot.slane %v928, 1
        %v930 = vrot.slane %v833, 1
        %v931 = vsel %vm372, %v929, %v930
        %v940 = vunpack.c.l.b16 %v918
        %v941 = vunpack.c.l.b16 %v919
        %v942 = vunpack.c.l.b16 %v920
        %v943 = vunpack.c.l.b16 %v921
        %v944 = vunpack.c.l.b16 %v922
        %v945 = vunpack.c.l.b16 %v923
        %v946 = vunpack.c.l.b16 %v924
        %v947 = vunpack.c.l.b16 %v925
        %v948 = vpack.c.b16 %v941, %v940
        %v949 = vpack.c.b16 %v943, %v942
        %v950 = vpack.c.b16 %v945, %v944
        %v951 = vpack.c.b16 %v947, %v946
        %v957 = vsel %vm247, %v931, 0
        %959 = vmatprep.subr.bf16.mxu0 0
        %960 = vmatpush1.bf16.msra.mxu0 %v948
        %961 = vmatprep.subr.bf16.mxu0 0
        %962 = vmatpush1.bf16.msra.mxu0 %v949
        %963 = vmatprep.subr.bf16.mxu0 0
        %964 = vmatpush1.bf16.msra.mxu0 %v950
        %965 = vmatprep.subr.bf16.mxu0 0
        %966 = vmatpush1.bf16.msra.mxu0 %v951
        %967 = vmatprep.subr.bf16.mxu0 0
        %968 = vmatpush1.bf16.msra.mxu0 0
        %969 = vmatprep.subr.bf16.mxu0 0
        %970 = vmatpush1.bf16.msra.mxu0 0
        %971 = vmatprep.subr.bf16.mxu0 0
        %972 = vmatpush1.bf16.msra.mxu0 0
        %973 = vmatprep.subr.bf16.mxu0 0
        %974 = vmatpush1.bf16.msra.mxu0 0
        %975 = vmatprep.subr.bf16.mxu0 0
        %976 = vmatpush1.bf16.msra.mxu0 0
        %977 = vmatprep.subr.bf16.mxu0 0
        %978 = vmatpush1.bf16.msra.mxu0 0
        %979 = vmatprep.subr.bf16.mxu0 0
        %980 = vmatpush1.bf16.msra.mxu0 0
        %981 = vmatprep.subr.bf16.mxu0 0
        %982 = vmatpush1.bf16.msra.mxu0 0
        %983 = vmatprep.subr.bf16.mxu0 0
        %984 = vmatpush1.bf16.msra.mxu0 0
        %985 = vmatprep.subr.bf16.mxu0 0
        %986 = vmatpush1.bf16.msra.mxu0 0
        %987 = vmatprep.subr.bf16.mxu0 0
        %988 = vmatpush1.bf16.msra.mxu0 0
        %989 = vmatprep.subr.bf16.mxu0 0
        %990 = vmatpush1.bf16.msra.mxu0 0
        %991 = vmatprep.mubr.bf16.mxu0 0
        %992 = vmatmul.mubr.bf16.gmra.mrb[0].mxu0 %v957
        %v993 = vpop.f32.mrb[0].mxu0
        %v994 = vadd.f32 0.0, %v993
        %v995 = vpop.f32.mrb[0].mxu0
        %v996 = vpop.f32.mrb[0].mxu0
        %v997 = vadd.f32 0.0, %v996
        %v998 = vpop.f32.mrb[0].mxu0
        %999 = vdwg.mxu0
        %v1000 = vadd.f32 %v914, %v994
        %v1001 = vadd.f32 %v915, %v997
        %v1003 = vlaneseq
        %v1004 = vshrl.u32 %v1003, 7
        %v1005 = vsub.s32 0, %v1004
        %v1006 = vrot.slane %v172, %v1005
        %v1008 = vadd.f32 %v1000, %v1006
        %v1009 = vadd.f32 %v1001, %v1006
        %v1010 = vmax.f32 %v1008, 0.0
        %v1011 = vmax.f32 %v1009, 0.0
        %v1012 = vpack.c.bf16 %v1011, %v1010
        %v1014 = vunpack.c.l.b16 %v1012
        %v1015 = vunpack.c.h.b16 %v1012
        %v1016 = vpack.c.b16 %v1014, %v1014
        %v1017 = vpack.c.b16 %v1015, %v1015
        %s1020 = smul.u32 %s174, 2
        %s1021 = smul.addr %s1020, 4
        %s1022 = scalar_lea.vmem %s170, %s1021
        %vm1023 = vcmask 519168
        %1024 = vst.msk [vmem:[%s1022] sm:$0xf] %vm1023, %v1016
        %1025 = vst.msk [vmem:[%s1022 + $0x4] sm:$0xf] %vm1023, %v1017
      $region37: #{skelet_loss.13} parent=31 // loop_footer
        %s178 = sadd.s32 1, %s174
      $region38: #{skelet_loss.13} parent=31 // loop_footer_branch
        %173 = sbr.rel target = $region34
      $region39: #{skelet_loss.13} parent=31 // loop_exit
        _
      %p1026 = scmp.lt.s32.totalorder %s14, 3
      %s1027 = scalar_select %p1026, %s14, 3
      %s1028 = smul.addr %s1027, 32
      %s1029 = smul.addr %s1028, 4
      %s1030 = scalar_lea.vmem %s3, %s1029
      // Predicated region
      $region40: #{skelet_loss.13} parent=31 // pred_check
        %p1031 = pneg %p100
      $region41: #{skelet_loss.13} parent=31 // pred_check_branch
        %1033 = sbr.rel (%p1031) target = $region43
      $region42: #{skelet_loss.13} parent=31 // pred_region
        _
      $region43: #{skelet_loss.13} parent=31 // pred_fallthru
        _
    $region32: #{skelet_loss.13} parent=5 // pred_fallthru
      _
    %p1034 = scmp.le.s32.totalorder 2, %s9
    // Predicated region
    $region44: #{skelet_loss.13} parent=5 // pred_check
      %p1035 = pneg %p1034
    $region45: #{skelet_loss.13} parent=5 // pred_check_branch
      %1037 = sbr.rel (%p1035) target = $region47
    $region46: #{skelet_loss.13} parent=5 // pred_region
      %s1038 = ssub.s32 %s9, 2
      // Predicated region
      $region48: #{skelet_loss.13} parent=46 // pred_check
        %p1039 = pneg %p106
      $region49: #{skelet_loss.13} parent=46 // pred_check_branch
        %1041 = sbr.rel (%p1039) target = $region51
      $region50: #{skelet_loss.13} parent=46 // pred_region
        %p1042 = scmp.lt.s32.totalorder %s15, 3
        %s1043 = scalar_select %p1042, %s15, 3
        %s1044 = smul.addr %s1043, 32
        %s1045 = smul.addr %s1044, 4
        %s1046 = scalar_lea.vmem %s3, %s1045
      $region51: #{skelet_loss.13} parent=46 // pred_fallthru
        _
    $region47: #{skelet_loss.13} parent=5 // pred_fallthru
      _
  $region6: #{skelet_loss.13} parent=0 // loop_footer
    %s13 = sadd.s32 1, %s9
  $region7: #{skelet_loss.13} parent=0 // loop_footer_branch
    %8 = sbr.rel target = $region3
  $region8: #{skelet_loss.13} parent=0 // loop_exit
    _

// kernel: skelet_loss.14
$region0: #{skelet_loss.14}
  #allocation0 [shape = 'u32[]', space=smem, size = 0x4, offset = 0x4, fixed_abs, tag = 'smem constant byte address 0x4 - core index']
  #allocation1 [shape = 'u32[144,128]{1,0:T(1,128)}', space=vmem, size = 0x12000, scoped, tag = 'internal scratch']
  %s0 = inlined_call_operand.vmem [shape: bf16[4,10,10,64], index: 0, kind: input, shape index: {}]
  %s1 = inlined_call_operand.vmem [shape: bf16[9,64,128], index: 1, kind: input, shape index: {}]
  %s2 = inlined_call_operand.vmem [shape: f32[1,128], index: 2, kind: input, shape index: {}]
  %s3 = inlined_call_operand.vmem [shape: bf16[4,8,8,128], index: 3, kind: output, shape index: {}]
  %s4 = sld [smem:[#allocation0]]
  $region52: #{skelet_loss.14} parent=0
    _
  %s6 = ssub.s32 1, %s4
  %s7 = scalar_select 0, %s6, %s4
  loop: start=0, step=1, limit=6
  $region2: #{skelet_loss.14} parent=0 // loop_pre_header
    _
  $region3: #{skelet_loss.14} parent=0 // loop_header
    %s9 = sphi 0, %s13
    %p10 = scmp.ge.s32.totalorder %s9, 6
    %s19 = sphi 0, %s21
    %s22 = sphi 0, %s19
    %s23 = sphi 0, %s22
    %s39 = sphi 0, %s23
    %s43 = sphi 0, %s43
    %s45 = sphi 0, %s43
    %s46 = sphi 0, %s45
    %s60 = sphi 0, %s46
    %s64 = sphi 0, %s64
    %s66 = sphi 0, %s64
    %s67 = sphi 0, %s66
    %s81 = sphi 0, %s67
    %s87 = sphi 0, %s89
    %s90 = sphi 0, %s87
    %s91 = sphi 0, %s90
    %s107 = sphi 0, %s91
  $region4: #{skelet_loss.14} parent=0 // loop_header_branch
    %12 = sbr.rel (%p10) target = $region8
  $region5: #{skelet_loss.14} parent=0 // loop_body
    %s14 = ssub.s32 %s9, 1
    %s15 = ssub.s32 %s9, 2
    %s16 = sadd.s32 %s9, 1
    %s17 = ssub.s32 %s9, %s16
    %p18 = scmp.eq.s32.totalorder %s17, 0
    %s20 = sadd.s32 %s19, 1
    %s21 = scalar_select %p18, %s19, %s20
    %p24 = pneg %p18
    %p25 = scmp.eq.s32.totalorder %s9, 3
    %p26 = por %p24, %p25
    %p27 = scmp.ne.s32.totalorder %s19, %s22
    %p28 = scmp.eq.s32.totalorder %s9, 0
    %p29 = por %p27, %p28
    %p30 = scmp.ne.s32.totalorder %s19, %s22
    %p31 = scmp.eq.s32.totalorder %s14, 3
    %p32 = por %p30, %p31
    %p33 = scmp.ne.s32.totalorder %s22, %s23
    %p34 = scmp.eq.s32.totalorder %s14, 0
    %p35 = por %p33, %p34
    %p36 = scmp.ne.s32.totalorder %s22, %s23
    %p37 = scmp.eq.s32.totalorder %s15, 3
    %p38 = por %p36, %p37
    %p40 = scmp.ne.s32.totalorder %s23, %s39
    %p41 = scmp.eq.s32.totalorder %s15, 0
    %p42 = por %p40, %p41
    %s44 = sadd.s32 %s43, 1
    %p47 = scmp.eq.s32.totalorder %s9, 3
    %p48 = scmp.ne.s32.totalorder %s43, %s45
    %p49 = scmp.eq.s32.totalorder %s9, 0
    %p50 = por %p48, %p49
    %p51 = scmp.ne.s32.totalorder %s43, %s45
    %p52 = scmp.eq.s32.totalorder %s14, 3
    %p53 = por %p51, %p52
    %p54 = scmp.ne.s32.totalorder %s45, %s46
    %p55 = scmp.eq.s32.totalorder %s14, 0
    %p56 = por %p54, %p55
    %p57 = scmp.ne.s32.totalorder %s45, %s46
    %p58 = scmp.eq.s32.totalorder %s15, 3
    %p59 = por %p57, %p58
    %p61 = scmp.ne.s32.totalorder %s46, %s60
    %p62 = scmp.eq.s32.totalorder %s15, 0
    %p63 = por %p61, %p62
    %s65 = sadd.s32 %s64, 1
    %p68 = scmp.eq.s32.totalorder %s9, 3
    %p69 = scmp.ne.s32.totalorder %s64, %s66
    %p70 = scmp.eq.s32.totalorder %s9, 0
    %p71 = por %p69, %p70
    %p72 = scmp.ne.s32.totalorder %s64, %s66
    %p73 = scmp.eq.s32.totalorder %s14, 3
    %p74 = por %p72, %p73
    %p75 = scmp.ne.s32.totalorder %s66, %s67
    %p76 = scmp.eq.s32.totalorder %s14, 0
    %p77 = por %p75, %p76
    %p78 = scmp.ne.s32.totalorder %s66, %s67
    %p79 = scmp.eq.s32.totalorder %s15, 3
    %p80 = por %p78, %p79
    %p82 = scmp.ne.s32.totalorder %s67, %s81
    %p83 = scmp.eq.s32.totalorder %s15, 0
    %p84 = por %p82, %p83
    %s85 = ssub.s32 %s9, %s16
    %p86 = scmp.eq.s32.totalorder %s85, 0
    %s88 = sadd.s32 %s87, 1
    %s89 = scalar_select %p86, %s87, %s88
    %p92 = pneg %p86
    %p93 = scmp.eq.s32.totalorder %s9, 3
    %p94 = por %p92, %p93
    %p95 = scmp.ne.s32.totalorder %s87, %s90
    %p96 = scmp.eq.s32.totalorder %s9, 0
    %p97 = por %p95, %p96
    %p98 = scmp.ne.s32.totalorder %s87, %s90
    %p99 = scmp.eq.s32.totalorder %s14, 3
    %p100 = por %p98, %p99
    %p101 = scmp.ne.s32.totalorder %s90, %s91
    %p102 = scmp.eq.s32.totalorder %s14, 0
    %p103 = por %p101, %p102
    %p104 = scmp.ne.s32.totalorder %s90, %s91
    %p105 = scmp.eq.s32.totalorder %s15, 3
    %p106 = por %p104, %p105
    %p108 = scmp.ne.s32.totalorder %s91, %s107
    %p109 = scmp.eq.s32.totalorder %s15, 0
    %p110 = por %p108, %p109
    %p111 = scmp.le.s32.totalorder 1, %s9
    %p112 = scmp.lt.s32.totalorder %s9, 5
    %p113 = pnand %p111, %p112
    %p114 = pneg %p113
    // Predicated region
    $region9: #{skelet_loss.14} parent=5 // pred_check
      _
    $region10: #{skelet_loss.14} parent=5 // pred_check_branch
      %116 = sbr.rel (%p113) target = $region12
    $region11: #{skelet_loss.14} parent=5 // pred_region
      %s117 = ssub.s32 %s9, 1
      // Predicated region
      $region13: #{skelet_loss.14} parent=11 // pred_check
        %p118 = pneg %p56
      $region14: #{skelet_loss.14} parent=11 // pred_check_branch
        %120 = sbr.rel (%p118) target = $region16
      $region15: #{skelet_loss.14} parent=11 // pred_region
        _
      $region16: #{skelet_loss.14} parent=11 // pred_fallthru
        _
      // Predicated region
      $region17: #{skelet_loss.14} parent=11 // pred_check
        %p121 = pneg %p77
      $region18: #{skelet_loss.14} parent=11 // pred_check_branch
        %123 = sbr.rel (%p121) target = $region20
      $region19: #{skelet_loss.14} parent=11 // pred_region
        _
      $region20: #{skelet_loss.14} parent=11 // pred_fallthru
        _
    $region12: #{skelet_loss.14} parent=5 // pred_fallthru
      _
    %p124 = scmp.lt.s32.totalorder %s9, 4
    // Predicated region
    $region21: #{skelet_loss.14} parent=5 // pred_check
      %p125 = pneg %p124
    $region22: #{skelet_loss.14} parent=5 // pred_check_branch
      %127 = sbr.rel (%p125) target = $region24
    $region23: #{skelet_loss.14} parent=5 // pred_region
      // Predicated region
      $region25: #{skelet_loss.14} parent=23 // pred_check
        %p128 = pneg %p29
      $region26: #{skelet_loss.14} parent=23 // pred_check_branch
        %130 = sbr.rel (%p128) target = $region28
      $region27: #{skelet_loss.14} parent=23 // pred_region
        %p131 = scmp.lt.s32.totalorder %s9, 3
        %s132 = scalar_select %p131, %s9, 3
        %s133 = smul.addr %s132, 20
        %s134 = smul.addr %s133, 4
        %s135 = scalar_lea.vmem %s0, %s134
      $region28: #{skelet_loss.14} parent=23 // pred_fallthru
        _
    $region24: #{skelet_loss.14} parent=5 // pred_fallthru
      _
    %p136 = scmp.le.s32.totalorder 1, %s9
    %p137 = scmp.lt.s32.totalorder %s9, 5
    %p138 = pnand %p136, %p137
    %p139 = pneg %p138
    // Predicated region
    $region29: #{skelet_loss.14} parent=5 // pred_check
      _
    $region30: #{skelet_loss.14} parent=5 // pred_check_branch
      %141 = sbr.rel (%p138) target = $region32
    $region31: #{skelet_loss.14} parent=5 // pred_region
      %s142 = ssub.s32 %s9, 1
      %p143 = scmp.lt.s32.totalorder %s14, 3
      %s144 = scalar_select %p143, %s14, 3
      %s145 = smul.addr %s144, 20
      %s146 = smul.addr %s145, 4
      %s147 = scalar_lea.vmem %s0, %s146
      %p148 = pneg %p35
      %p149 = pneg %p32
      %p150 = pneg %p56
      %p151 = pneg %p53
      %p152 = pneg %p77
      %p153 = pneg %p74
      %p154 = pneg %p103
      %p155 = pneg %p100
      %p156 = scmp.lt.s32.totalorder %s14, 3
      %s157 = scalar_select %p156, %s14, 3
      %s158 = smul.addr %s157, 8
      %s159 = smul.addr %s158, 4
      %s160 = scalar_lea.vmem %s3, %s159
      %p161 = scmp.lt.s32.totalorder %s14, 3
      %s162 = scalar_select %p161, %s14, 3
      %s163 = smul.addr %s162, 20
      %s164 = smul.addr %s163, 4
      %s165 = scalar_lea.vmem %s0, %s164
      %p166 = scmp.lt.s32.totalorder %s14, 3
      %s167 = scalar_select %p166, %s14, 3
      %s168 = smul.addr %s167, 8
      %s169 = smul.addr %s168, 4
      %s170 = scalar_lea.vmem %s3, %s169
      %v172 = vld [vmem:[%s2] sm:$0x1]
      loop: start=0, step=1, limit=8
      $region33: #{skelet_loss.14} parent=31 // loop_pre_header
        _
      $region34: #{skelet_loss.14} parent=31 // loop_header
        %s174 = sphi 0, %s178
        %p175 = scmp.ge.s32.totalorder %s174, 8
      $region35: #{skelet_loss.14} parent=31 // loop_header_branch
        %177 = sbr.rel (%p175) target = $region39
      $region36: #{skelet_loss.14} parent=31 // loop_body
        %s179 = smul.u32 %s174, 2
        %s180 = smul.addr %s179, 4
        %s181 = scalar_lea.vmem %s165, %s180
        %v182 = vld [vmem:[%s181] sm:$0xf]
        %v183 = vld [vmem:[%s1] sm:$0xf]
        %v184 = vld [vmem:[%s1 + $0x4] sm:$0xf]
        %v185 = vld [vmem:[%s1 + $0x8] sm:$0xf]
        %v186 = vld [vmem:[%s1 + $0xc] sm:$0xf]
        %v187 = vld [vmem:[%s1 + $0x10] sm:$0xf]
        %v188 = vld [vmem:[%s1 + $0x14] sm:$0xf]
        %v189 = vld [vmem:[%s1 + $0x18] sm:$0xf]
        %v190 = vld [vmem:[%s1 + $0x1c] sm:$0xf]
        %v191 = vld [vmem:[%s181 + $0x4] sm:$0x1]
        %s192 = scalar_lea.vmem %s1, 32
        %v193 = vld [vmem:[%s192] sm:$0xf]
        %v194 = vld [vmem:[%s192 + $0x4] sm:$0xf]
        %v195 = vld [vmem:[%s192 + $0x8] sm:$0xf]
        %v196 = vld [vmem:[%s192 + $0xc] sm:$0xf]
        %v197 = vld [vmem:[%s192 + $0x10] sm:$0xf]
        %v198 = vld [vmem:[%s192 + $0x14] sm:$0xf]
        %v199 = vld [vmem:[%s192 + $0x18] sm:$0xf]
        %v200 = vld [vmem:[%s192 + $0x1c] sm:$0xf]
        %v203 = vunpack.c.l.b16 %v182
        %v204 = vunpack.c.l.b16 %v191
        %v205 = vpack.c.b16 %v204, %v203
        %v207 = vshrl.u32 %v205, 16
        %v209 = vshll.u32 %v205, 16
        %v211 = vrot.slane %v209, 1
        %v212 = vor.u32 %v207, %v211
        %v221 = vunpack.c.l.b16 %v193
        %v222 = vunpack.c.l.b16 %v194
        %v223 = vunpack.c.l.b16 %v195
        %v224 = vunpack.c.l.b16 %v196
        %v225 = vunpack.c.l.b16 %v197
        %v226 = vunpack.c.l.b16 %v198
        %v227 = vunpack.c.l.b16 %v199
        %v228 = vunpack.c.l.b16 %v200
        %v229 = vpack.c.b16 %v222, %v221
        %v230 = vpack.c.b16 %v224, %v223
        %v231 = vpack.c.b16 %v226, %v225
        %v232 = vpack.c.b16 %v228, %v227
        %vm237 = vcmask 523264
        %v239 = vsel %vm237, %v212, 0
        %241 = vmatprep.subr.bf16.mxu0 0
        %242 = vmatpush1.bf16.msra.mxu0 %v229
        %243 = vmatprep.subr.bf16.mxu0 0
        %244 = vmatpush1.bf16.msra.mxu0 %v230
        %245 = vmatprep.subr.bf16.mxu0 0
        %246 = vmatpush1.bf16.msra.mxu0 %v231
        %247 = vmatprep.subr.bf16.mxu0 0
        %248 = vmatpush1.bf16.msra.mxu0 %v232
        %249 = vmatprep.subr.bf16.mxu0 0
        %250 = vmatpush1.bf16.msra.mxu0 0
        %251 = vmatprep.subr.bf16.mxu0 0
        %252 = vmatpush1.bf16.msra.mxu0 0
        %253 = vmatprep.subr.bf16.mxu0 0
        %254 = vmatpush1.bf16.msra.mxu0 0
        %255 = vmatprep.subr.bf16.mxu0 0
        %256 = vmatpush1.bf16.msra.mxu0 0
        %257 = vmatprep.subr.bf16.mxu0 0
        %258 = vmatpush1.bf16.msra.mxu0 0
        %259 = vmatprep.subr.bf16.mxu0 0
        %260 = vmatpush1.bf16.msra.mxu0 0
        %261 = vmatprep.subr.bf16.mxu0 0
        %262 = vmatpush1.bf16.msra.mxu0 0
        %263 = vmatprep.subr.bf16.mxu0 0
        %264 = vmatpush1.bf16.msra.mxu0 0
        %265 = vmatprep.subr.bf16.mxu0 0
        %266 = vmatpush1.bf16.msra.mxu0 0
        %267 = vmatprep.subr.bf16.mxu0 0
        %268 = vmatpush1.bf16.msra.mxu0 0
        %269 = vmatprep.subr.bf16.mxu0 0
        %270 = vmatpush1.bf16.msra.mxu0 0
        %271 = vmatprep.subr.bf16.mxu0 0
        %272 = vmatpush1.bf16.msra.mxu0 0
        %273 = vmatprep.mubr.bf16.mxu0 0
        %274 = vmatmul.mubr.bf16.gmra.mrb[0].mxu0 %v239
        %v275 = vpop.f32.mrb[0].mxu0
        %v276 = vadd.f32 0.0, %v275
        %v277 = vpop.f32.mrb[0].mxu0
        %v278 = vpop.f32.mrb[0].mxu0
        %v279 = vpop.f32.mrb[0].mxu0
        %280 = vdwg.mxu0
        %v289 = vunpack.c.l.b16 %v183
        %v290 = vunpack.c.l.b16 %v184
        %v291 = vunpack.c.l.b16 %v185
        %v292 = vunpack.c.l.b16 %v186
        %v293 = vunpack.c.l.b16 %v187
        %v294 = vunpack.c.l.b16 %v188
        %v295 = vunpack.c.l.b16 %v189
        %v296 = vunpack.c.l.b16 %v190
        %v297 = vpack.c.b16 %v290, %v289
        %v298 = vpack.c.b16 %v292, %v291
        %v299 = vpack.c.b16 %v294, %v293
        %v300 = vpack.c.b16 %v296, %v295
        %v306 = vsel %vm237, %v182, 0
        %308 = vmatprep.subr.bf16.mxu0 0
        %309 = vmatpush1.bf16.msra.mxu0 %v297
        %310 = vmatprep.subr.bf16.mxu0 0
        %311 = vmatpush1.bf16.msra.mxu0 %v298
        %312 = vmatprep.subr.bf16.mxu0 0
        %313 = vmatpush1.bf16.msra.mxu0 %v299
        %314 = vmatprep.subr.bf16.mxu0 0
        %315 = vmatpush1.bf16.msra.mxu0 %v300
        %316 = vmatprep.subr.bf16.mxu0 0
        %317 = vmatpush1.bf16.msra.mxu0 0
        %318 = vmatprep.subr.bf16.mxu0 0
        %319 = vmatpush1.bf16.msra.mxu0 0
        %320 = vmatprep.subr.bf16.mxu0 0
        %321 = vmatpush1.bf16.msra.mxu0 0
        %322 = vmatprep.subr.bf16.mxu0 0
        %323 = vmatpush1.bf16.msra.mxu0 0
        %324 = vmatprep.subr.bf16.mxu0 0
        %325 = vmatpush1.bf16.msra.mxu0 0
        %326 = vmatprep.subr.bf16.mxu0 0
        %327 = vmatpush1.bf16.msra.mxu0 0
        %328 = vmatprep.subr.bf16.mxu0 0
        %329 = vmatpush1.bf16.msra.mxu0 0
        %330 = vmatprep.subr.bf16.mxu0 0
        %331 = vmatpush1.bf16.msra.mxu0 0
        %332 = vmatprep.subr.bf16.mxu0 0
        %333 = vmatpush1.bf16.msra.mxu0 0
        %334 = vmatprep.subr.bf16.mxu0 0
        %335 = vmatpush1.bf16.msra.mxu0 0
        %336 = vmatprep.subr.bf16.mxu0 0
        %337 = vmatpush1.bf16.msra.mxu0 0
        %338 = vmatprep.subr.bf16.mxu0 0
        %339 = vmatpush1.bf16.msra.mxu0 0
        %340 = vmatprep.mubr.bf16.mxu0 0
        %341 = vmatmul.mubr.bf16.gmra.mrb[0].mxu0 %v306
        %v342 = vpop.f32.mrb[0].mxu0
        %v343 = vadd.f32 %v276, %v342
        %v344 = vpop.f32.mrb[0].mxu0
        %v345 = vpop.f32.mrb[0].mxu0
        %v346 = vpop.f32.mrb[0].mxu0
        %347 = vdwg.mxu0
        %v348 = vld [vmem:[%s181] sm:$0xe]
        %s349 = scalar_lea.vmem %s1, 64
        %v350 = vld [vmem:[%s349] sm:$0xf]
        %v351 = vld [vmem:[%s349 + $0x4] sm:$0xf]
        %v352 = vld [vmem:[%s349 + $0x8] sm:$0xf]
        %v353 = vld [vmem:[%s349 + $0xc] sm:$0xf]
        %v354 = vld [vmem:[%s349 + $0x10] sm:$0xf]
        %v355 = vld [vmem:[%s349 + $0x14] sm:$0xf]
        %v356 = vld [vmem:[%s349 + $0x18] sm:$0xf]
        %v357 = vld [vmem:[%s349 + $0x1c] sm:$0xf]
        %v359 = vunpack.c.l.b16 %v348
        %v360 = vpack.c.b16 %v204, %v359
        %v361 = vrot.slane %v360, 1
        %v370 = vunpack.c.l.b16 %v350
        %v371 = vunpack.c.l.b16 %v351
        %v372 = vunpack.c.l.b16 %v352
        %v373 = vunpack.c.l.b16 %v353
        %v374 = vunpack.c.l.b16 %v354
        %v375 = vunpack.c.l.b16 %v355
        %v376 = vunpack.c.l.b16 %v356
        %v377 = vunpack.c.l.b16 %v357
        %v378 = vpack.c.b16 %v371, %v370
        %v379 = vpack.c.b16 %v373, %v372
        %v380 = vpack.c.b16 %v375, %v374
        %v381 = vpack.c.b16 %v377, %v376
        %v387 = vsel %vm237, %v361, 0
        %389 = vmatprep.subr.bf16.mxu0 0
        %390 = vmatpush1.bf16.msra.mxu0 %v378
        %391 = vmatprep.subr.bf16.mxu0 0
        %392 = vmatpush1.bf16.msra.mxu0 %v379
        %393 = vmatprep.subr.bf16.mxu0 0
        %394 = vmatpush1.bf16.msra.mxu0 %v380
        %395 = vmatprep.subr.bf16.mxu0 0
        %396 = vmatpush1.bf16.msra.mxu0 %v381
        %397 = vmatprep.subr.bf16.mxu0 0
        %398 = vmatpush1.bf16.msra.mxu0 0
        %399 = vmatprep.subr.bf16.mxu0 0
        %400 = vmatpush1.bf16.msra.mxu0 0
        %401 = vmatprep.subr.bf16.mxu0 0
        %402 = vmatpush1.bf16.msra.mxu0 0
        %403 = vmatprep.subr.bf16.mxu0 0
        %404 = vmatpush1.bf16.msra.mxu0 0
        %405 = vmatprep.subr.bf16.mxu0 0
        %406 = vmatpush1.bf16.msra.mxu0 0
        %407 = vmatprep.subr.bf16.mxu0 0
        %408 = vmatpush1.bf16.msra.mxu0 0
        %409 = vmatprep.subr.bf16.mxu0 0
        %410 = vmatpush1.bf16.msra.mxu0 0
        %411 = vmatprep.subr.bf16.mxu0 0
        %412 = vmatpush1.bf16.msra.mxu0 0
        %413 = vmatprep.subr.bf16.mxu0 0
        %414 = vmatpush1.bf16.msra.mxu0 0
        %415 = vmatprep.subr.bf16.mxu0 0
        %416 = vmatpush1.bf16.msra.mxu0 0
        %417 = vmatprep.subr.bf16.mxu0 0
        %418 = vmatpush1.bf16.msra.mxu0 0
        %419 = vmatprep.subr.bf16.mxu0 0
        %420 = vmatpush1.bf16.msra.mxu0 0
        %421 = vmatprep.mubr.bf16.mxu0 0
        %422 = vmatmul.mubr.bf16.gmra.mrb[0].mxu0 %v387
        %v423 = vpop.f32.mrb[0].mxu0
        %v424 = vadd.f32 0.0, %v423
        %v425 = vpop.f32.mrb[0].mxu0
        %v426 = vpop.f32.mrb[0].mxu0
        %v427 = vpop.f32.mrb[0].mxu0
        %428 = vdwg.mxu0
        %v429 = vadd.f32 %v343, %v424
        %s430 = sadd.s32 %s174, 1
        %s431 = smul.u32 %s430, 2
        %s432 = smul.addr %s431, 4
        %s433 = scalar_lea.vmem %s165, %s432
        %v434 = vld [vmem:[%s433] sm:$0xf]
        %s435 = scalar_lea.vmem %s1, 96
        %v436 = vld [vmem:[%s435] sm:$0xf]
        %v437 = vld [vmem:[%s435 + $0x4] sm:$0xf]
        %v438 = vld [vmem:[%s435 + $0x8] sm:$0xf]
        %v439 = vld [vmem:[%s435 + $0xc] sm:$0xf]
        %v440 = vld [vmem:[%s435 + $0x10] sm:$0xf]
        %v441 = vld [vmem:[%s435 + $0x14] sm:$0xf]
        %v442 = vld [vmem:[%s435 + $0x18] sm:$0xf]
        %v443 = vld [vmem:[%s435 + $0x1c] sm:$0xf]
        %v452 = vunpack.c.l.b16 %v436
        %v453 = vunpack.c.l.b16 %v437
        %v454 = vunpack.c.l.b16 %v438
        %v455 = vunpack.c.l.b16 %v439
        %v456 = vunpack.c.l.b16 %v440
        %v457 = vunpack.c.l.b16 %v441
        %v458 = vunpack.c.l.b16 %v442
        %v459 = vunpack.c.l.b16 %v443
        %v460 = vpack.c.b16 %v453, %v452
        %v461 = vpack.c.b16 %v455, %v454
        %v462 = vpack.c.b16 %v457, %v456
        %v463 = vpack.c.b16 %v459, %v458
        %v469 = vsel %vm237, %v434, 0
        %471 = vmatprep.subr.bf16.mxu0 0
        %472 = vmatpush1.bf16.msra.mxu0 %v460
        %473 = vmatprep.subr.bf16.mxu0 0
        %474 = vmatpush1.bf16.msra.mxu0 %v461
        %475 = vmatprep.subr.bf16.mxu0 0
        %476 = vmatpush1.bf16.msra.mxu0 %v462
        %477 = vmatprep.subr.bf16.mxu0 0
        %478 = vmatpush1.bf16.msra.mxu0 %v463
        %479 = vmatprep.subr.bf16.mxu0 0
        %480 = vmatpush1.bf16.msra.mxu0 0
        %481 = vmatprep.subr.bf16.mxu0 0
        %482 = vmatpush1.bf16.msra.mxu0 0
        %483 = vmatprep.subr.bf16.mxu0 0
        %484 = vmatpush1.bf16.msra.mxu0 0
        %485 = vmatprep.subr.bf16.mxu0 0
        %486 = vmatpush1.bf16.msra.mxu0 0
        %487 = vmatprep.subr.bf16.mxu0 0
        %488 = vmatpush1.bf16.msra.mxu0 0
        %489 = vmatprep.subr.bf16.mxu0 0
        %490 = vmatpush1.bf16.msra.mxu0 0
        %491 = vmatprep.subr.bf16.mxu0 0
        %492 = vmatpush1.bf16.msra.mxu0 0
        %493 = vmatprep.subr.bf16.mxu0 0
        %494 = vmatpush1.bf16.msra.mxu0 0
        %495 = vmatprep.subr.bf16.mxu0 0
        %496 = vmatpush1.bf16.msra.mxu0 0
        %497 = vmatprep.subr.bf16.mxu0 0
        %498 = vmatpush1.bf16.msra.mxu0 0
        %499 = vmatprep.subr.bf16.mxu0 0
        %500 = vmatpush1.bf16.msra.mxu0 0
        %501 = vmatprep.subr.bf16.mxu0 0
        %502 = vmatpush1.bf16.msra.mxu0 0
        %503 = vmatprep.mubr.bf16.mxu0 0
        %504 = vmatmul.mubr.bf16.gmra.mrb[0].mxu0 %v469
        %v505 = vpop.f32.mrb[0].mxu0
        %v506 = vadd.f32 0.0, %v505
        %v507 = vpop.f32.mrb[0].mxu0
        %v508 = vpop.f32.mrb[0].mxu0
        %v509 = vpop.f32.mrb[0].mxu0
        %510 = vdwg.mxu0
        %v511 = vadd.f32 %v429, %v506
        %v512 = vld [vmem:[%s433] sm:$0xf]
        %v513 = vld [vmem:[%s433 + $0x4] sm:$0x1]
        %s514 = scalar_lea.vmem %s1, 128
        %v515 = vld [vmem:[%s514] sm:$0xf]
        %v516 = vld [vmem:[%s514 + $0x4] sm:$0xf]
        %v517 = vld [vmem:[%s514 + $0x8] sm:$0xf]
        %v518 = vld [vmem:[%s514 + $0xc] sm:$0xf]
        %v519 = vld [vmem:[%s514 + $0x10] sm:$0xf]
        %v520 = vld [vmem:[%s514 + $0x14] sm:$0xf]
        %v521 = vld [vmem:[%s514 + $0x18] sm:$0xf]
        %v522 = vld [vmem:[%s514 + $0x1c] sm:$0xf]
        %v525 = vunpack.c.l.b16 %v512
        %v526 = vunpack.c.l.b16 %v513
        %v527 = vpack.c.b16 %v526, %v525
        %v529 = vshrl.u32 %v527, 16
        %v531 = vshll.u32 %v527, 16
        %v533 = vrot.slane %v531, 1
        %v534 = vor.u32 %v529, %v533
        %v543 = vunpack.c.l.b16 %v515
        %v544 = vunpack.c.l.b16 %v516
        %v545 = vunpack.c.l.b16 %v517
        %v546 = vunpack.c.l.b16 %v518
        %v547 = vunpack.c.l.b16 %v519
        %v548 = vunpack.c.l.b16 %v520
        %v549 = vunpack.c.l.b16 %v521
        %v550 = vunpack.c.l.b16 %v522
        %v551 = vpack.c.b16 %v544, %v543
        %v552 = vpack.c.b16 %v546, %v545
        %v553 = vpack.c.b16 %v548, %v547
        %v554 = vpack.c.b16 %v550, %v549
        %v560 = vsel %vm237, %v534, 0
        %562 = vmatprep.subr.bf16.mxu0 0
        %563 = vmatpush1.bf16.msra.mxu0 %v551
        %564 = vmatprep.subr.bf16.mxu0 0
        %565 = vmatpush1.bf16.msra.mxu0 %v552
        %566 = vmatprep.subr.bf16.mxu0 0
        %567 = vmatpush1.bf16.msra.mxu0 %v553
        %568 = vmatprep.subr.bf16.mxu0 0
        %569 = vmatpush1.bf16.msra.mxu0 %v554
        %570 = vmatprep.subr.bf16.mxu0 0
        %571 = vmatpush1.bf16.msra.mxu0 0
        %572 = vmatprep.subr.bf16.mxu0 0
        %573 = vmatpush1.bf16.msra.mxu0 0
        %574 = vmatprep.subr.bf16.mxu0 0
        %575 = vmatpush1.bf16.msra.mxu0 0
        %576 = vmatprep.subr.bf16.mxu0 0
        %577 = vmatpush1.bf16.msra.mxu0 0
        %578 = vmatprep.subr.bf16.mxu0 0
        %579 = vmatpush1.bf16.msra.mxu0 0
        %580 = vmatprep.subr.bf16.mxu0 0
        %581 = vmatpush1.bf16.msra.mxu0 0
        %582 = vmatprep.subr.bf16.mxu0 0
        %583 = vmatpush1.bf16.msra.mxu0 0
        %584 = vmatprep.subr.bf16.mxu0 0
        %585 = vmatpush1.bf16.msra.mxu0 0
        %586 = vmatprep.subr.bf16.mxu0 0
        %587 = vmatpush1.bf16.msra.mxu0 0
        %588 = vmatprep.subr.bf16.mxu0 0
        %589 = vmatpush1.bf16.msra.mxu0 0
        %590 = vmatprep.subr.bf16.mxu0 0
        %591 = vmatpush1.bf16.msra.mxu0 0
        %592 = vmatprep.subr.bf16.mxu0 0
        %593 = vmatpush1.bf16.msra.mxu0 0
        %594 = vmatprep.mubr.bf16.mxu0 0
        %595 = vmatmul.mubr.bf16.gmra.mrb[0].mxu0 %v560
        %v596 = vpop.f32.mrb[0].mxu0
        %v597 = vadd.f32 0.0, %v596
        %v598 = vpop.f32.mrb[0].mxu0
        %v599 = vpop.f32.mrb[0].mxu0
        %v600 = vpop.f32.mrb[0].mxu0
        %601 = vdwg.mxu0
        %v602 = vadd.f32 %v511, %v597
        %v603 = vld [vmem:[%s433] sm:$0xe]
        %s604 = scalar_lea.vmem %s1, 160
        %v605 = vld [vmem:[%s604] sm:$0xf]
        %v606 = vld [vmem:[%s604 + $0x4] sm:$0xf]
        %v607 = vld [vmem:[%s604 + $0x8] sm:$0xf]
        %v608 = vld [vmem:[%s604 + $0xc] sm:$0xf]
        %v609 = vld [vmem:[%s604 + $0x10] sm:$0xf]
        %v610 = vld [vmem:[%s604 + $0x14] sm:$0xf]
        %v611 = vld [vmem:[%s604 + $0x18] sm:$0xf]
        %v612 = vld [vmem:[%s604 + $0x1c] sm:$0xf]
        %v614 = vunpack.c.l.b16 %v603
        %v615 = vpack.c.b16 %v526, %v614
        %v616 = vrot.slane %v615, 1
        %v625 = vunpack.c.l.b16 %v605
        %v626 = vunpack.c.l.b16 %v606
        %v627 = vunpack.c.l.b16 %v607
        %v628 = vunpack.c.l.b16 %v608
        %v629 = vunpack.c.l.b16 %v609
        %v630 = vunpack.c.l.b16 %v610
        %v631 = vunpack.c.l.b16 %v611
        %v632 = vunpack.c.l.b16 %v612
        %v633 = vpack.c.b16 %v626, %v625
        %v634 = vpack.c.b16 %v628, %v627
        %v635 = vpack.c.b16 %v630, %v629
        %v636 = vpack.c.b16 %v632, %v631
        %v642 = vsel %vm237, %v616, 0
        %644 = vmatprep.subr.bf16.mxu0 0
        %645 = vmatpush1.bf16.msra.mxu0 %v633
        %646 = vmatprep.subr.bf16.mxu0 0
        %647 = vmatpush1.bf16.msra.mxu0 %v634
        %648 = vmatprep.subr.bf16.mxu0 0
        %649 = vmatpush1.bf16.msra.mxu0 %v635
        %650 = vmatprep.subr.bf16.mxu0 0
        %651 = vmatpush1.bf16.msra.mxu0 %v636
        %652 = vmatprep.subr.bf16.mxu0 0
        %653 = vmatpush1.bf16.msra.mxu0 0
        %654 = vmatprep.subr.bf16.mxu0 0
        %655 = vmatpush1.bf16.msra.mxu0 0
        %656 = vmatprep.subr.bf16.mxu0 0
        %657 = vmatpush1.bf16.msra.mxu0 0
        %658 = vmatprep.subr.bf16.mxu0 0
        %659 = vmatpush1.bf16.msra.mxu0 0
        %660 = vmatprep.subr.bf16.mxu0 0
        %661 = vmatpush1.bf16.msra.mxu0 0
        %662 = vmatprep.subr.bf16.mxu0 0
        %663 = vmatpush1.bf16.msra.mxu0 0
        %664 = vmatprep.subr.bf16.mxu0 0
        %665 = vmatpush1.bf16.msra.mxu0 0
        %666 = vmatprep.subr.bf16.mxu0 0
        %667 = vmatpush1.bf16.msra.mxu0 0
        %668 = vmatprep.subr.bf16.mxu0 0
        %669 = vmatpush1.bf16.msra.mxu0 0
        %670 = vmatprep.subr.bf16.mxu0 0
        %671 = vmatpush1.bf16.msra.mxu0 0
        %672 = vmatprep.subr.bf16.mxu0 0
        %673 = vmatpush1.bf16.msra.mxu0 0
        %674 = vmatprep.subr.bf16.mxu0 0
        %675 = vmatpush1.bf16.msra.mxu0 0
        %676 = vmatprep.mubr.bf16.mxu0 0
        %677 = vmatmul.mubr.bf16.gmra.mrb[0].mxu0 %v642
        %v678 = vpop.f32.mrb[0].mxu0
        %v679 = vadd.f32 0.0, %v678
        %v680 = vpop.f32.mrb[0].mxu0
        %v681 = vpop.f32.mrb[0].mxu0
        %v682 = vpop.f32.mrb[0].mxu0
        %683 = vdwg.mxu0
        %v684 = vadd.f32 %v602, %v679
        %s685 = sadd.s32 %s174, 2
        %s686 = smul.u32 %s685, 2
        %s687 = smul.addr %s686, 4
        %s688 = scalar_lea.vmem %s165, %s687
        %v689 = vld [vmem:[%s688] sm:$0xf]
        %s690 = scalar_lea.vmem %s1, 192
        %v691 = vld [vmem:[%s690] sm:$0xf]
        %v692 = vld [vmem:[%s690 + $0x4] sm:$0xf]
        %v693 = vld [vmem:[%s690 + $0x8] sm:$0xf]
        %v694 = vld [vmem:[%s690 + $0xc] sm:$0xf]
        %v695 = vld [vmem:[%s690 + $0x10] sm:$0xf]
        %v696 = vld [vmem:[%s690 + $0x14] sm:$0xf]
        %v697 = vld [vmem:[%s690 + $0x18] sm:$0xf]
        %v698 = vld [vmem:[%s690 + $0x1c] sm:$0xf]
        %v707 = vunpack.c.l.b16 %v691
        %v708 = vunpack.c.l.b16 %v692
        %v709 = vunpack.c.l.b16 %v693
        %v710 = vunpack.c.l.b16 %v694
        %v711 = vunpack.c.l.b16 %v695
        %v712 = vunpack.c.l.b16 %v696
        %v713 = vunpack.c.l.b16 %v697
        %v714 = vunpack.c.l.b16 %v698
        %v715 = vpack.c.b16 %v708, %v707
        %v716 = vpack.c.b16 %v710, %v709
        %v717 = vpack.c.b16 %v712, %v711
        %v718 = vpack.c.b16 %v714, %v713
        %v724 = vsel %vm237, %v689, 0
        %726 = vmatprep.subr.bf16.mxu0 0
        %727 = vmatpush1.bf16.msra.mxu0 %v715
        %728 = vmatprep.subr.bf16.mxu0 0
        %729 = vmatpush1.bf16.msra.mxu0 %v716
        %730 = vmatprep.subr.bf16.mxu0 0
        %731 = vmatpush1.bf16.msra.mxu0 %v717
        %732 = vmatprep.subr.bf16.mxu0 0
        %733 = vmatpush1.bf16.msra.mxu0 %v718
        %734 = vmatprep.subr.bf16.mxu0 0
        %735 = vmatpush1.bf16.msra.mxu0 0
        %736 = vmatprep.subr.bf16.mxu0 0
        %737 = vmatpush1.bf16.msra.mxu0 0
        %738 = vmatprep.subr.bf16.mxu0 0
        %739 = vmatpush1.bf16.msra.mxu0 0
        %740 = vmatprep.subr.bf16.mxu0 0
        %741 = vmatpush1.bf16.msra.mxu0 0
        %742 = vmatprep.subr.bf16.mxu0 0
        %743 = vmatpush1.bf16.msra.mxu0 0
        %744 = vmatprep.subr.bf16.mxu0 0
        %745 = vmatpush1.bf16.msra.mxu0 0
        %746 = vmatprep.subr.bf16.mxu0 0
        %747 = vmatpush1.bf16.msra.mxu0 0
        %748 = vmatprep.subr.bf16.mxu0 0
        %749 = vmatpush1.bf16.msra.mxu0 0
        %750 = vmatprep.subr.bf16.mxu0 0
        %751 = vmatpush1.bf16.msra.mxu0 0
        %752 = vmatprep.subr.bf16.mxu0 0
        %753 = vmatpush1.bf16.msra.mxu0 0
        %754 = vmatprep.subr.bf16.mxu0 0
        %755 = vmatpush1.bf16.msra.mxu0 0
        %756 = vmatprep.subr.bf16.mxu0 0
        %757 = vmatpush1.bf16.msra.mxu0 0
        %758 = vmatprep.mubr.bf16.mxu0 0
        %759 = vmatmul.mubr.bf16.gmra.mrb[0].mxu0 %v724
        %v760 = vpop.f32.mrb[0].mxu0
        %v761 = vadd.f32 0.0, %v760
        %v762 = vpop.f32.mrb[0].mxu0
        %v763 = vpop.f32.mrb[0].mxu0
        %v764 = vpop.f32.mrb[0].mxu0
        %765 = vdwg.mxu0
        %v766 = vadd.f32 %v684, %v761
        %v767 = vld [vmem:[%s688] sm:$0xf]
        %v768 = vld [vmem:[%s688 + $0x4] sm:$0x1]
        %s769 = scalar_lea.vmem %s1, 224
        %v770 = vld [vmem:[%s769] sm:$0xf]
        %v771 = vld [vmem:[%s769 + $0x4] sm:$0xf]
        %v772 = vld [vmem:[%s769 + $0x8] sm:$0xf]
        %v773 = vld [vmem:[%s769 + $0xc] sm:$0xf]
        %v774 = vld [vmem:[%s769 + $0x10] sm:$0xf]
        %v775 = vld [vmem:[%s769 + $0x14] sm:$0xf]
        %v776 = vld [vmem:[%s769 + $0x18] sm:$0xf]
        %v777 = vld [vmem:[%s769 + $0x1c] sm:$0xf]
        %v780 = vunpack.c.l.b16 %v767
        %v781 = vunpack.c.l.b16 %v768
        %v782 = vpack.c.b16 %v781, %v780
        %v784 = vshrl.u32 %v782, 16
        %v786 = vshll.u32 %v782, 16
        %v788 = vrot.slane %v786, 1
        %v789 = vor.u32 %v784, %v788
        %v798 = vunpack.c.l.b16 %v770
        %v799 = vunpack.c.l.b16 %v771
        %v800 = vunpack.c.l.b16 %v772
        %v801 = vunpack.c.l.b16 %v773
        %v802 = vunpack.c.l.b16 %v774
        %v803 = vunpack.c.l.b16 %v775
        %v804 = vunpack.c.l.b16 %v776
        %v805 = vunpack.c.l.b16 %v777
        %v806 = vpack.c.b16 %v799, %v798
        %v807 = vpack.c.b16 %v801, %v800
        %v808 = vpack.c.b16 %v803, %v802
        %v809 = vpack.c.b16 %v805, %v804
        %v815 = vsel %vm237, %v789, 0
        %817 = vmatprep.subr.bf16.mxu0 0
        %818 = vmatpush1.bf16.msra.mxu0 %v806
        %819 = vmatprep.subr.bf16.mxu0 0
        %820 = vmatpush1.bf16.msra.mxu0 %v807
        %821 = vmatprep.subr.bf16.mxu0 0
        %822 = vmatpush1.bf16.msra.mxu0 %v808
        %823 = vmatprep.subr.bf16.mxu0 0
        %824 = vmatpush1.bf16.msra.mxu0 %v809
        %825 = vmatprep.subr.bf16.mxu0 0
        %826 = vmatpush1.bf16.msra.mxu0 0
        %827 = vmatprep.subr.bf16.mxu0 0
        %828 = vmatpush1.bf16.msra.mxu0 0
        %829 = vmatprep.subr.bf16.mxu0 0
        %830 = vmatpush1.bf16.msra.mxu0 0
        %831 = vmatprep.subr.bf16.mxu0 0
        %832 = vmatpush1.bf16.msra.mxu0 0
        %833 = vmatprep.subr.bf16.mxu0 0
        %834 = vmatpush1.bf16.msra.mxu0 0
        %835 = vmatprep.subr.bf16.mxu0 0
        %836 = vmatpush1.bf16.msra.mxu0 0
        %837 = vmatprep.subr.bf16.mxu0 0
        %838 = vmatpush1.bf16.msra.mxu0 0
        %839 = vmatprep.subr.bf16.mxu0 0
        %840 = vmatpush1.bf16.msra.mxu0 0
        %841 = vmatprep.subr.bf16.mxu0 0
        %842 = vmatpush1.bf16.msra.mxu0 0
        %843 = vmatprep.subr.bf16.mxu0 0
        %844 = vmatpush1.bf16.msra.mxu0 0
        %845 = vmatprep.subr.bf16.mxu0 0
        %846 = vmatpush1.bf16.msra.mxu0 0
        %847 = vmatprep.subr.bf16.mxu0 0
        %848 = vmatpush1.bf16.msra.mxu0 0
        %849 = vmatprep.mubr.bf16.mxu0 0
        %850 = vmatmul.mubr.bf16.gmra.mrb[0].mxu0 %v815
        %v851 = vpop.f32.mrb[0].mxu0
        %v852 = vadd.f32 0.0, %v851
        %v853 = vpop.f32.mrb[0].mxu0
        %v854 = vpop.f32.mrb[0].mxu0
        %v855 = vpop.f32.mrb[0].mxu0
        %856 = vdwg.mxu0
        %v857 = vadd.f32 %v766, %v852
        %v858 = vld [vmem:[%s688] sm:$0xe]
        %s859 = scalar_lea.vmem %s1, 256
        %v860 = vld [vmem:[%s859] sm:$0xf]
        %v861 = vld [vmem:[%s859 + $0x4] sm:$0xf]
        %v862 = vld [vmem:[%s859 + $0x8] sm:$0xf]
        %v863 = vld [vmem:[%s859 + $0xc] sm:$0xf]
        %v864 = vld [vmem:[%s859 + $0x10] sm:$0xf]
        %v865 = vld [vmem:[%s859 + $0x14] sm:$0xf]
        %v866 = vld [vmem:[%s859 + $0x18] sm:$0xf]
        %v867 = vld [vmem:[%s859 + $0x1c] sm:$0xf]
        %v869 = vunpack.c.l.b16 %v858
        %v870 = vpack.c.b16 %v781, %v869
        %v871 = vrot.slane %v870, 1
        %v880 = vunpack.c.l.b16 %v860
        %v881 = vunpack.c.l.b16 %v861
        %v882 = vunpack.c.l.b16 %v862
        %v883 = vunpack.c.l.b16 %v863
        %v884 = vunpack.c.l.b16 %v864
        %v885 = vunpack.c.l.b16 %v865
        %v886 = vunpack.c.l.b16 %v866
        %v887 = vunpack.c.l.b16 %v867
        %v888 = vpack.c.b16 %v881, %v880
        %v889 = vpack.c.b16 %v883, %v882
        %v890 = vpack.c.b16 %v885, %v884
        %v891 = vpack.c.b16 %v887, %v886
        %v897 = vsel %vm237, %v871, 0
        %899 = vmatprep.subr.bf16.mxu0 0
        %900 = vmatpush1.bf16.msra.mxu0 %v888
        %901 = vmatprep.subr.bf16.mxu0 0
        %902 = vmatpush1.bf16.msra.mxu0 %v889
        %903 = vmatprep.subr.bf16.mxu0 0
        %904 = vmatpush1.bf16.msra.mxu0 %v890
        %905 = vmatprep.subr.bf16.mxu0 0
        %906 = vmatpush1.bf16.msra.mxu0 %v891
        %907 = vmatprep.subr.bf16.mxu0 0
        %908 = vmatpush1.bf16.msra.mxu0 0
        %909 = vmatprep.subr.bf16.mxu0 0
        %910 = vmatpush1.bf16.msra.mxu0 0
        %911 = vmatprep.subr.bf16.mxu0 0
        %912 = vmatpush1.bf16.msra.mxu0 0
        %913 = vmatprep.subr.bf16.mxu0 0
        %914 = vmatpush1.bf16.msra.mxu0 0
        %915 = vmatprep.subr.bf16.mxu0 0
        %916 = vmatpush1.bf16.msra.mxu0 0
        %917 = vmatprep.subr.bf16.mxu0 0
        %918 = vmatpush1.bf16.msra.mxu0 0
        %919 = vmatprep.subr.bf16.mxu0 0
        %920 = vmatpush1.bf16.msra.mxu0 0
        %921 = vmatprep.subr.bf16.mxu0 0
        %922 = vmatpush1.bf16.msra.mxu0 0
        %923 = vmatprep.subr.bf16.mxu0 0
        %924 = vmatpush1.bf16.msra.mxu0 0
        %925 = vmatprep.subr.bf16.mxu0 0
        %926 = vmatpush1.bf16.msra.mxu0 0
        %927 = vmatprep.subr.bf16.mxu0 0
        %928 = vmatpush1.bf16.msra.mxu0 0
        %929 = vmatprep.subr.bf16.mxu0 0
        %930 = vmatpush1.bf16.msra.mxu0 0
        %931 = vmatprep.mubr.bf16.mxu0 0
        %932 = vmatmul.mubr.bf16.gmra.mrb[0].mxu0 %v897
        %v933 = vpop.f32.mrb[0].mxu0
        %v934 = vadd.f32 0.0, %v933
        %v935 = vpop.f32.mrb[0].mxu0
        %v936 = vpop.f32.mrb[0].mxu0
        %v937 = vpop.f32.mrb[0].mxu0
        %938 = vdwg.mxu0
        %v939 = vadd.f32 %v857, %v934
        %v941 = vlaneseq
        %v942 = vshrl.u32 %v941, 7
        %v943 = vsub.s32 0, %v942
        %v944 = vrot.slane %v172, %v943
        %v946 = vadd.f32 %v939, %v944
        %v947 = vmax.f32 %v946, 0.0
        %v948 = vpack.c.bf16 %v947, %v947
        %s949 = smul.addr %s174, 4
        %s950 = scalar_lea.vmem %s170, %s949
        %951 = vst [vmem:[%s950] sm:$0xf] %v948
      $region37: #{skelet_loss.14} parent=31 // loop_footer
        %s178 = sadd.s32 1, %s174
      $region38: #{skelet_loss.14} parent=31 // loop_footer_branch
        %173 = sbr.rel target = $region34
      $region39: #{skelet_loss.14} parent=31 // loop_exit
        _
      %p952 = scmp.lt.s32.totalorder %s14, 3
      %s953 = scalar_select %p952, %s14, 3
      %s954 = smul.addr %s953, 8
      %s955 = smul.addr %s954, 4
      %s956 = scalar_lea.vmem %s3, %s955
      // Predicated region
      $region40: #{skelet_loss.14} parent=31 // pred_check
        %p957 = pneg %p100
      $region41: #{skelet_loss.14} parent=31 // pred_check_branch
        %959 = sbr.rel (%p957) target = $region43
      $region42: #{skelet_loss.14} parent=31 // pred_region
        _
      $region43: #{skelet_loss.14} parent=31 // pred_fallthru
        _
    $region32: #{skelet_loss.14} parent=5 // pred_fallthru
      _
    %p960 = scmp.le.s32.totalorder 2, %s9
    // Predicated region
    $region44: #{skelet_loss.14} parent=5 // pred_check
      %p961 = pneg %p960
    $region45: #{skelet_loss.14} parent=5 // pred_check_branch
      %963 = sbr.rel (%p961) target = $region47
    $region46: #{skelet_loss.14} parent=5 // pred_region
      %s964 = ssub.s32 %s9, 2
      // Predicated region
      $region48: #{skelet_loss.14} parent=46 // pred_check
        %p965 = pneg %p106
      $region49: #{skelet_loss.14} parent=46 // pred_check_branch
        %967 = sbr.rel (%p965) target = $region51
      $region50: #{skelet_loss.14} parent=46 // pred_region
        %p968 = scmp.lt.s32.totalorder %s15, 3
        %s969 = scalar_select %p968, %s15, 3
        %s970 = smul.addr %s969, 8
        %s971 = smul.addr %s970, 4
        %s972 = scalar_lea.vmem %s3, %s971
      $region51: #{skelet_loss.14} parent=46 // pred_fallthru
        _
    $region47: #{skelet_loss.14} parent=5 // pred_fallthru
      _
  $region6: #{skelet_loss.14} parent=0 // loop_footer
    %s13 = sadd.s32 1, %s9
  $region7: #{skelet_loss.14} parent=0 // loop_footer_branch
    %8 = sbr.rel target = $region3
  $region8: #{skelet_loss.14} parent=0 // loop_exit
    _

// kernel: skelet_loss.15
$region0: #{skelet_loss.15}
  #allocation0 [shape = 'u32[]', space=smem, size = 0x4, offset = 0x4, fixed_abs, tag = 'smem constant byte address 0x4 - core index']
  #allocation1 [shape = 'u32[144,128]{1,0:T(1,128)}', space=vmem, size = 0x12000, scoped, tag = 'internal scratch']
  %s0 = inlined_call_operand.vmem [shape: bf16[4,10,10,128], index: 0, kind: input, shape index: {}]
  %s1 = inlined_call_operand.vmem [shape: bf16[9,128,128], index: 1, kind: input, shape index: {}]
  %s2 = inlined_call_operand.vmem [shape: f32[1,128], index: 2, kind: input, shape index: {}]
  %s3 = inlined_call_operand.vmem [shape: bf16[4,8,8,128], index: 3, kind: output, shape index: {}]
  %s4 = sld [smem:[#allocation0]]
  $region52: #{skelet_loss.15} parent=0
    _
  %s6 = ssub.s32 1, %s4
  %s7 = scalar_select 0, %s6, %s4
  loop: start=0, step=1, limit=6
  $region2: #{skelet_loss.15} parent=0 // loop_pre_header
    _
  $region3: #{skelet_loss.15} parent=0 // loop_header
    %s9 = sphi 0, %s13
    %p10 = scmp.ge.s32.totalorder %s9, 6
    %s19 = sphi 0, %s21
    %s22 = sphi 0, %s19
    %s23 = sphi 0, %s22
    %s39 = sphi 0, %s23
    %s43 = sphi 0, %s43
    %s45 = sphi 0, %s43
    %s46 = sphi 0, %s45
    %s60 = sphi 0, %s46
    %s64 = sphi 0, %s64
    %s66 = sphi 0, %s64
    %s67 = sphi 0, %s66
    %s81 = sphi 0, %s67
    %s87 = sphi 0, %s89
    %s90 = sphi 0, %s87
    %s91 = sphi 0, %s90
    %s107 = sphi 0, %s91
  $region4: #{skelet_loss.15} parent=0 // loop_header_branch
    %12 = sbr.rel (%p10) target = $region8
  $region5: #{skelet_loss.15} parent=0 // loop_body
    %s14 = ssub.s32 %s9, 1
    %s15 = ssub.s32 %s9, 2
    %s16 = sadd.s32 %s9, 1
    %s17 = ssub.s32 %s9, %s16
    %p18 = scmp.eq.s32.totalorder %s17, 0
    %s20 = sadd.s32 %s19, 1
    %s21 = scalar_select %p18, %s19, %s20
    %p24 = pneg %p18
    %p25 = scmp.eq.s32.totalorder %s9, 3
    %p26 = por %p24, %p25
    %p27 = scmp.ne.s32.totalorder %s19, %s22
    %p28 = scmp.eq.s32.totalorder %s9, 0
    %p29 = por %p27, %p28
    %p30 = scmp.ne.s32.totalorder %s19, %s22
    %p31 = scmp.eq.s32.totalorder %s14, 3
    %p32 = por %p30, %p31
    %p33 = scmp.ne.s32.totalorder %s22, %s23
    %p34 = scmp.eq.s32.totalorder %s14, 0
    %p35 = por %p33, %p34
    %p36 = scmp.ne.s32.totalorder %s22, %s23
    %p37 = scmp.eq.s32.totalorder %s15, 3
    %p38 = por %p36, %p37
    %p40 = scmp.ne.s32.totalorder %s23, %s39
    %p41 = scmp.eq.s32.totalorder %s15, 0
    %p42 = por %p40, %p41
    %s44 = sadd.s32 %s43, 1
    %p47 = scmp.eq.s32.totalorder %s9, 3
    %p48 = scmp.ne.s32.totalorder %s43, %s45
    %p49 = scmp.eq.s32.totalorder %s9, 0
    %p50 = por %p48, %p49
    %p51 = scmp.ne.s32.totalorder %s43, %s45
    %p52 = scmp.eq.s32.totalorder %s14, 3
    %p53 = por %p51, %p52
    %p54 = scmp.ne.s32.totalorder %s45, %s46
    %p55 = scmp.eq.s32.totalorder %s14, 0
    %p56 = por %p54, %p55
    %p57 = scmp.ne.s32.totalorder %s45, %s46
    %p58 = scmp.eq.s32.totalorder %s15, 3
    %p59 = por %p57, %p58
    %p61 = scmp.ne.s32.totalorder %s46, %s60
    %p62 = scmp.eq.s32.totalorder %s15, 0
    %p63 = por %p61, %p62
    %s65 = sadd.s32 %s64, 1
    %p68 = scmp.eq.s32.totalorder %s9, 3
    %p69 = scmp.ne.s32.totalorder %s64, %s66
    %p70 = scmp.eq.s32.totalorder %s9, 0
    %p71 = por %p69, %p70
    %p72 = scmp.ne.s32.totalorder %s64, %s66
    %p73 = scmp.eq.s32.totalorder %s14, 3
    %p74 = por %p72, %p73
    %p75 = scmp.ne.s32.totalorder %s66, %s67
    %p76 = scmp.eq.s32.totalorder %s14, 0
    %p77 = por %p75, %p76
    %p78 = scmp.ne.s32.totalorder %s66, %s67
    %p79 = scmp.eq.s32.totalorder %s15, 3
    %p80 = por %p78, %p79
    %p82 = scmp.ne.s32.totalorder %s67, %s81
    %p83 = scmp.eq.s32.totalorder %s15, 0
    %p84 = por %p82, %p83
    %s85 = ssub.s32 %s9, %s16
    %p86 = scmp.eq.s32.totalorder %s85, 0
    %s88 = sadd.s32 %s87, 1
    %s89 = scalar_select %p86, %s87, %s88
    %p92 = pneg %p86
    %p93 = scmp.eq.s32.totalorder %s9, 3
    %p94 = por %p92, %p93
    %p95 = scmp.ne.s32.totalorder %s87, %s90
    %p96 = scmp.eq.s32.totalorder %s9, 0
    %p97 = por %p95, %p96
    %p98 = scmp.ne.s32.totalorder %s87, %s90
    %p99 = scmp.eq.s32.totalorder %s14, 3
    %p100 = por %p98, %p99
    %p101 = scmp.ne.s32.totalorder %s90, %s91
    %p102 = scmp.eq.s32.totalorder %s14, 0
    %p103 = por %p101, %p102
    %p104 = scmp.ne.s32.totalorder %s90, %s91
    %p105 = scmp.eq.s32.totalorder %s15, 3
    %p106 = por %p104, %p105
    %p108 = scmp.ne.s32.totalorder %s91, %s107
    %p109 = scmp.eq.s32.totalorder %s15, 0
    %p110 = por %p108, %p109
    %p111 = scmp.le.s32.totalorder 1, %s9
    %p112 = scmp.lt.s32.totalorder %s9, 5
    %p113 = pnand %p111, %p112
    %p114 = pneg %p113
    // Predicated region
    $region9: #{skelet_loss.15} parent=5 // pred_check
      _
    $region10: #{skelet_loss.15} parent=5 // pred_check_branch
      %116 = sbr.rel (%p113) target = $region12
    $region11: #{skelet_loss.15} parent=5 // pred_region
      %s117 = ssub.s32 %s9, 1
      // Predicated region
      $region13: #{skelet_loss.15} parent=11 // pred_check
        %p118 = pneg %p56
      $region14: #{skelet_loss.15} parent=11 // pred_check_branch
        %120 = sbr.rel (%p118) target = $region16
      $region15: #{skelet_loss.15} parent=11 // pred_region
        _
      $region16: #{skelet_loss.15} parent=11 // pred_fallthru
        _
      // Predicated region
      $region17: #{skelet_loss.15} parent=11 // pred_check
        %p121 = pneg %p77
      $region18: #{skelet_loss.15} parent=11 // pred_check_branch
        %123 = sbr.rel (%p121) target = $region20
      $region19: #{skelet_loss.15} parent=11 // pred_region
        _
      $region20: #{skelet_loss.15} parent=11 // pred_fallthru
        _
    $region12: #{skelet_loss.15} parent=5 // pred_fallthru
      _
    %p124 = scmp.lt.s32.totalorder %s9, 4
    // Predicated region
    $region21: #{skelet_loss.15} parent=5 // pred_check
      %p125 = pneg %p124
    $region22: #{skelet_loss.15} parent=5 // pred_check_branch
      %127 = sbr.rel (%p125) target = $region24
    $region23: #{skelet_loss.15} parent=5 // pred_region
      // Predicated region
      $region25: #{skelet_loss.15} parent=23 // pred_check
        %p128 = pneg %p29
      $region26: #{skelet_loss.15} parent=23 // pred_check_branch
        %130 = sbr.rel (%p128) target = $region28
      $region27: #{skelet_loss.15} parent=23 // pred_region
        %p131 = scmp.lt.s32.totalorder %s9, 3
        %s132 = scalar_select %p131, %s9, 3
        %s133 = smul.addr %s132, 20
        %s134 = smul.addr %s133, 4
        %s135 = scalar_lea.vmem %s0, %s134
      $region28: #{skelet_loss.15} parent=23 // pred_fallthru
        _
    $region24: #{skelet_loss.15} parent=5 // pred_fallthru
      _
    %p136 = scmp.le.s32.totalorder 1, %s9
    %p137 = scmp.lt.s32.totalorder %s9, 5
    %p138 = pnand %p136, %p137
    %p139 = pneg %p138
    // Predicated region
    $region29: #{skelet_loss.15} parent=5 // pred_check
      _
    $region30: #{skelet_loss.15} parent=5 // pred_check_branch
      %141 = sbr.rel (%p138) target = $region32
    $region31: #{skelet_loss.15} parent=5 // pred_region
      %s142 = ssub.s32 %s9, 1
      %p143 = scmp.lt.s32.totalorder %s14, 3
      %s144 = scalar_select %p143, %s14, 3
      %s145 = smul.addr %s144, 20
      %s146 = smul.addr %s145, 4
      %s147 = scalar_lea.vmem %s0, %s146
      %p148 = pneg %p35
      %p149 = pneg %p32
      %p150 = pneg %p56
      %p151 = pneg %p53
      %p152 = pneg %p77
      %p153 = pneg %p74
      %p154 = pneg %p103
      %p155 = pneg %p100
      %p156 = scmp.lt.s32.totalorder %s14, 3
      %s157 = scalar_select %p156, %s14, 3
      %s158 = smul.addr %s157, 8
      %s159 = smul.addr %s158, 4
      %s160 = scalar_lea.vmem %s3, %s159
      %p161 = scmp.lt.s32.totalorder %s14, 3
      %s162 = scalar_select %p161, %s14, 3
      %s163 = smul.addr %s162, 20
      %s164 = smul.addr %s163, 4
      %s165 = scalar_lea.vmem %s0, %s164
      %p166 = scmp.lt.s32.totalorder %s14, 3
      %s167 = scalar_select %p166, %s14, 3
      %s168 = smul.addr %s167, 8
      %s169 = smul.addr %s168, 4
      %s170 = scalar_lea.vmem %s3, %s169
      %v172 = vld [vmem:[%s2] sm:$0x1]
      loop: start=0, step=1, limit=8
      $region33: #{skelet_loss.15} parent=31 // loop_pre_header
        _
      $region34: #{skelet_loss.15} parent=31 // loop_header
        %s174 = sphi 0, %s178
        %p175 = scmp.ge.s32.totalorder %s174, 8
      $region35: #{skelet_loss.15} parent=31 // loop_header_branch
        %177 = sbr.rel (%p175) target = $region39
      $region36: #{skelet_loss.15} parent=31 // loop_body
        %s179 = smul.u32 %s174, 2
        %s180 = smul.addr %s179, 4
        %s181 = scalar_lea.vmem %s165, %s180
        %v182 = vld [vmem:[%s181] sm:$0xf]
        %v183 = vld [vmem:[%s1] sm:$0xf]
        %v184 = vld [vmem:[%s1 + $0x4] sm:$0xf]
        %v185 = vld [vmem:[%s1 + $0x8] sm:$0xf]
        %v186 = vld [vmem:[%s1 + $0xc] sm:$0xf]
        %v187 = vld [vmem:[%s1 + $0x10] sm:$0xf]
        %v188 = vld [vmem:[%s1 + $0x14] sm:$0xf]
        %v189 = vld [vmem:[%s1 + $0x18] sm:$0xf]
        %v190 = vld [vmem:[%s1 + $0x1c] sm:$0xf]
        %v191 = vld [vmem:[%s1 + $0x20] sm:$0xf]
        %v192 = vld [vmem:[%s1 + $0x24] sm:$0xf]
        %v193 = vld [vmem:[%s1 + $0x28] sm:$0xf]
        %v194 = vld [vmem:[%s1 + $0x2c] sm:$0xf]
        %v195 = vld [vmem:[%s1 + $0x30] sm:$0xf]
        %v196 = vld [vmem:[%s1 + $0x34] sm:$0xf]
        %v197 = vld [vmem:[%s1 + $0x38] sm:$0xf]
        %v198 = vld [vmem:[%s1 + $0x3c] sm:$0xf]
        %v199 = vld [vmem:[%s181 + $0x4] sm:$0x1]
        %s200 = scalar_lea.vmem %s1, 64
        %v201 = vld [vmem:[%s200] sm:$0xf]
        %v202 = vld [vmem:[%s200 + $0x4] sm:$0xf]
        %v203 = vld [vmem:[%s200 + $0x8] sm:$0xf]
        %v204 = vld [vmem:[%s200 + $0xc] sm:$0xf]
        %v205 = vld [vmem:[%s200 + $0x10] sm:$0xf]
        %v206 = vld [vmem:[%s200 + $0x14] sm:$0xf]
        %v207 = vld [vmem:[%s200 + $0x18] sm:$0xf]
        %v208 = vld [vmem:[%s200 + $0x1c] sm:$0xf]
        %v209 = vld [vmem:[%s200 + $0x20] sm:$0xf]
        %v210 = vld [vmem:[%s200 + $0x24] sm:$0xf]
        %v211 = vld [vmem:[%s200 + $0x28] sm:$0xf]
        %v212 = vld [vmem:[%s200 + $0x2c] sm:$0xf]
        %v213 = vld [vmem:[%s200 + $0x30] sm:$0xf]
        %v214 = vld [vmem:[%s200 + $0x34] sm:$0xf]
        %v215 = vld [vmem:[%s200 + $0x38] sm:$0xf]
        %v216 = vld [vmem:[%s200 + $0x3c] sm:$0xf]
        %v219 = vunpack.c.l.b16 %v182
        %v220 = vunpack.c.l.b16 %v199
        %v221 = vpack.c.b16 %v220, %v219
        %v223 = vshrl.u32 %v221, 16
        %v225 = vshll.u32 %v221, 16
        %v227 = vrot.slane %v225, 1
        %v228 = vor.u32 %v223, %v227
        %v246 = vunpack.c.l.b16 %v201
        %v247 = vunpack.c.l.b16 %v202
        %v248 = vunpack.c.l.b16 %v203
        %v249 = vunpack.c.l.b16 %v204
        %v250 = vunpack.c.l.b16 %v205
        %v251 = vunpack.c.l.b16 %v206
        %v252 = vunpack.c.l.b16 %v207
        %v253 = vunpack.c.l.b16 %v208
        %v254 = vunpack.c.l.b16 %v209
        %v255 = vunpack.c.l.b16 %v210
        %v256 = vunpack.c.l.b16 %v211
        %v257 = vunpack.c.l.b16 %v212
        %v258 = vunpack.c.l.b16 %v213
        %v259 = vunpack.c.l.b16 %v214
        %v260 = vunpack.c.l.b16 %v215
        %v261 = vunpack.c.l.b16 %v216
        %v262 = vpack.c.b16 %v247, %v246
        %v263 = vpack.c.b16 %v249, %v248
        %v264 = vpack.c.b16 %v251, %v250
        %v265 = vpack.c.b16 %v253, %v252
        %v266 = vpack.c.b16 %v255, %v254
        %v267 = vpack.c.b16 %v257, %v256
        %v268 = vpack.c.b16 %v259, %v258
        %v269 = vpack.c.b16 %v261, %v260
        %278 = vmatprep.subr.bf16.mxu0 0
        %279 = vmatpush1.bf16.msra.mxu0 %v262
        %280 = vmatprep.subr.bf16.mxu0 0
        %281 = vmatpush1.bf16.msra.mxu0 %v263
        %282 = vmatprep.subr.bf16.mxu0 0
        %283 = vmatpush1.bf16.msra.mxu0 %v264
        %284 = vmatprep.subr.bf16.mxu0 0
        %285 = vmatpush1.bf16.msra.mxu0 %v265
        %286 = vmatprep.subr.bf16.mxu0 0
        %287 = vmatpush1.bf16.msra.mxu0 %v266
        %288 = vmatprep.subr.bf16.mxu0 0
        %289 = vmatpush1.bf16.msra.mxu0 %v267
        %290 = vmatprep.subr.bf16.mxu0 0
        %291 = vmatpush1.bf16.msra.mxu0 %v268
        %292 = vmatprep.subr.bf16.mxu0 0
        %293 = vmatpush1.bf16.msra.mxu0 %v269
        %294 = vmatprep.subr.bf16.mxu0 0
        %295 = vmatpush1.bf16.msra.mxu0 0
        %296 = vmatprep.subr.bf16.mxu0 0
        %297 = vmatpush1.bf16.msra.mxu0 0
        %298 = vmatprep.subr.bf16.mxu0 0
        %299 = vmatpush1.bf16.msra.mxu0 0
        %300 = vmatprep.subr.bf16.mxu0 0
        %301 = vmatpush1.bf16.msra.mxu0 0
        %302 = vmatprep.subr.bf16.mxu0 0
        %303 = vmatpush1.bf16.msra.mxu0 0
        %304 = vmatprep.subr.bf16.mxu0 0
        %305 = vmatpush1.bf16.msra.mxu0 0
        %306 = vmatprep.subr.bf16.mxu0 0
        %307 = vmatpush1.bf16.msra.mxu0 0
        %308 = vmatprep.subr.bf16.mxu0 0
        %309 = vmatpush1.bf16.msra.mxu0 0
        %310 = vmatprep.mubr.bf16.mxu0 0
        %311 = vmatmul.mubr.bf16.gmra.mrb[0].mxu0 %v228
        %v312 = vpop.f32.mrb[0].mxu0
        %v313 = vadd.f32 0.0, %v312
        %v314 = vpop.f32.mrb[0].mxu0
        %v315 = vpop.f32.mrb[0].mxu0
        %v316 = vpop.f32.mrb[0].mxu0
        %317 = vdwg.mxu0
        %v334 = vunpack.c.l.b16 %v183
        %v335 = vunpack.c.l.b16 %v184
        %v336 = vunpack.c.l.b16 %v185
        %v337 = vunpack.c.l.b16 %v186
        %v338 = vunpack.c.l.b16 %v187
        %v339 = vunpack.c.l.b16 %v188
        %v340 = vunpack.c.l.b16 %v189
        %v341 = vunpack.c.l.b16 %v190
        %v342 = vunpack.c.l.b16 %v191
        %v343 = vunpack.c.l.b16 %v192
        %v344 = vunpack.c.l.b16 %v193
        %v345 = vunpack.c.l.b16 %v194
        %v346 = vunpack.c.l.b16 %v195
        %v347 = vunpack.c.l.b16 %v196
        %v348 = vunpack.c.l.b16 %v197
        %v349 = vunpack.c.l.b16 %v198
        %v350 = vpack.c.b16 %v335, %v334
        %v351 = vpack.c.b16 %v337, %v336
        %v352 = vpack.c.b16 %v339, %v338
        %v353 = vpack.c.b16 %v341, %v340
        %v354 = vpack.c.b16 %v343, %v342
        %v355 = vpack.c.b16 %v345, %v344
        %v356 = vpack.c.b16 %v347, %v346
        %v357 = vpack.c.b16 %v349, %v348
        %366 = vmatprep.subr.bf16.mxu0 0
        %367 = vmatpush1.bf16.msra.mxu0 %v350
        %368 = vmatprep.subr.bf16.mxu0 0
        %369 = vmatpush1.bf16.msra.mxu0 %v351
        %370 = vmatprep.subr.bf16.mxu0 0
        %371 = vmatpush1.bf16.msra.mxu0 %v352
        %372 = vmatprep.subr.bf16.mxu0 0
        %373 = vmatpush1.bf16.msra.mxu0 %v353
        %374 = vmatprep.subr.bf16.mxu0 0
        %375 = vmatpush1.bf16.msra.mxu0 %v354
        %376 = vmatprep.subr.bf16.mxu0 0
        %377 = vmatpush1.bf16.msra.mxu0 %v355
        %378 = vmatprep.subr.bf16.mxu0 0
        %379 = vmatpush1.bf16.msra.mxu0 %v356
        %380 = vmatprep.subr.bf16.mxu0 0
        %381 = vmatpush1.bf16.msra.mxu0 %v357
        %382 = vmatprep.subr.bf16.mxu0 0
        %383 = vmatpush1.bf16.msra.mxu0 0
        %384 = vmatprep.subr.bf16.mxu0 0
        %385 = vmatpush1.bf16.msra.mxu0 0
        %386 = vmatprep.subr.bf16.mxu0 0
        %387 = vmatpush1.bf16.msra.mxu0 0
        %388 = vmatprep.subr.bf16.mxu0 0
        %389 = vmatpush1.bf16.msra.mxu0 0
        %390 = vmatprep.subr.bf16.mxu0 0
        %391 = vmatpush1.bf16.msra.mxu0 0
        %392 = vmatprep.subr.bf16.mxu0 0
        %393 = vmatpush1.bf16.msra.mxu0 0
        %394 = vmatprep.subr.bf16.mxu0 0
        %395 = vmatpush1.bf16.msra.mxu0 0
        %396 = vmatprep.subr.bf16.mxu0 0
        %397 = vmatpush1.bf16.msra.mxu0 0
        %398 = vmatprep.mubr.bf16.mxu0 0
        %399 = vmatmul.mubr.bf16.gmra.mrb[0].mxu0 %v182
        %v400 = vpop.f32.mrb[0].mxu0
        %v401 = vadd.f32 %v313, %v400
        %v402 = vpop.f32.mrb[0].mxu0
        %v403 = vpop.f32.mrb[0].mxu0
        %v404 = vpop.f32.mrb[0].mxu0
        %405 = vdwg.mxu0
        %v406 = vld [vmem:[%s181] sm:$0xe]
        %s407 = scalar_lea.vmem %s1, 128
        %v408 = vld [vmem:[%s407] sm:$0xf]
        %v409 = vld [vmem:[%s407 + $0x4] sm:$0xf]
        %v410 = vld [vmem:[%s407 + $0x8] sm:$0xf]
        %v411 = vld [vmem:[%s407 + $0xc] sm:$0xf]
        %v412 = vld [vmem:[%s407 + $0x10] sm:$0xf]
        %v413 = vld [vmem:[%s407 + $0x14] sm:$0xf]
        %v414 = vld [vmem:[%s407 + $0x18] sm:$0xf]
        %v415 = vld [vmem:[%s407 + $0x1c] sm:$0xf]
        %v416 = vld [vmem:[%s407 + $0x20] sm:$0xf]
        %v417 = vld [vmem:[%s407 + $0x24] sm:$0xf]
        %v418 = vld [vmem:[%s407 + $0x28] sm:$0xf]
        %v419 = vld [vmem:[%s407 + $0x2c] sm:$0xf]
        %v420 = vld [vmem:[%s407 + $0x30] sm:$0xf]
        %v421 = vld [vmem:[%s407 + $0x34] sm:$0xf]
        %v422 = vld [vmem:[%s407 + $0x38] sm:$0xf]
        %v423 = vld [vmem:[%s407 + $0x3c] sm:$0xf]
        %v425 = vunpack.c.l.b16 %v406
        %v426 = vpack.c.b16 %v220, %v425
        %v427 = vrot.slane %v426, 1
        %v445 = vunpack.c.l.b16 %v408
        %v446 = vunpack.c.l.b16 %v409
        %v447 = vunpack.c.l.b16 %v410
        %v448 = vunpack.c.l.b16 %v411
        %v449 = vunpack.c.l.b16 %v412
        %v450 = vunpack.c.l.b16 %v413
        %v451 = vunpack.c.l.b16 %v414
        %v452 = vunpack.c.l.b16 %v415
        %v453 = vunpack.c.l.b16 %v416
        %v454 = vunpack.c.l.b16 %v417
        %v455 = vunpack.c.l.b16 %v418
        %v456 = vunpack.c.l.b16 %v419
        %v457 = vunpack.c.l.b16 %v420
        %v458 = vunpack.c.l.b16 %v421
        %v459 = vunpack.c.l.b16 %v422
        %v460 = vunpack.c.l.b16 %v423
        %v461 = vpack.c.b16 %v446, %v445
        %v462 = vpack.c.b16 %v448, %v447
        %v463 = vpack.c.b16 %v450, %v449
        %v464 = vpack.c.b16 %v452, %v451
        %v465 = vpack.c.b16 %v454, %v453
        %v466 = vpack.c.b16 %v456, %v455
        %v467 = vpack.c.b16 %v458, %v457
        %v468 = vpack.c.b16 %v460, %v459
        %477 = vmatprep.subr.bf16.mxu0 0
        %478 = vmatpush1.bf16.msra.mxu0 %v461
        %479 = vmatprep.subr.bf16.mxu0 0
        %480 = vmatpush1.bf16.msra.mxu0 %v462
        %481 = vmatprep.subr.bf16.mxu0 0
        %482 = vmatpush1.bf16.msra.mxu0 %v463
        %483 = vmatprep.subr.bf16.mxu0 0
        %484 = vmatpush1.bf16.msra.mxu0 %v464
        %485 = vmatprep.subr.bf16.mxu0 0
        %486 = vmatpush1.bf16.msra.mxu0 %v465
        %487 = vmatprep.subr.bf16.mxu0 0
        %488 = vmatpush1.bf16.msra.mxu0 %v466
        %489 = vmatprep.subr.bf16.mxu0 0
        %490 = vmatpush1.bf16.msra.mxu0 %v467
        %491 = vmatprep.subr.bf16.mxu0 0
        %492 = vmatpush1.bf16.msra.mxu0 %v468
        %493 = vmatprep.subr.bf16.mxu0 0
        %494 = vmatpush1.bf16.msra.mxu0 0
        %495 = vmatprep.subr.bf16.mxu0 0
        %496 = vmatpush1.bf16.msra.mxu0 0
        %497 = vmatprep.subr.bf16.mxu0 0
        %498 = vmatpush1.bf16.msra.mxu0 0
        %499 = vmatprep.subr.bf16.mxu0 0
        %500 = vmatpush1.bf16.msra.mxu0 0
        %501 = vmatprep.subr.bf16.mxu0 0
        %502 = vmatpush1.bf16.msra.mxu0 0
        %503 = vmatprep.subr.bf16.mxu0 0
        %504 = vmatpush1.bf16.msra.mxu0 0
        %505 = vmatprep.subr.bf16.mxu0 0
        %506 = vmatpush1.bf16.msra.mxu0 0
        %507 = vmatprep.subr.bf16.mxu0 0
        %508 = vmatpush1.bf16.msra.mxu0 0
        %509 = vmatprep.mubr.bf16.mxu0 0
        %510 = vmatmul.mubr.bf16.gmra.mrb[0].mxu0 %v427
        %v511 = vpop.f32.mrb[0].mxu0
        %v512 = vadd.f32 0.0, %v511
        %v513 = vpop.f32.mrb[0].mxu0
        %v514 = vpop.f32.mrb[0].mxu0
        %v515 = vpop.f32.mrb[0].mxu0
        %516 = vdwg.mxu0
        %v517 = vadd.f32 %v401, %v512
        %s518 = sadd.s32 %s174, 1
        %s519 = smul.u32 %s518, 2
        %s520 = smul.addr %s519, 4
        %s521 = scalar_lea.vmem %s165, %s520
        %v522 = vld [vmem:[%s521] sm:$0xf]
        %s523 = scalar_lea.vmem %s1, 192
        %v524 = vld [vmem:[%s523] sm:$0xf]
        %v525 = vld [vmem:[%s523 + $0x4] sm:$0xf]
        %v526 = vld [vmem:[%s523 + $0x8] sm:$0xf]
        %v527 = vld [vmem:[%s523 + $0xc] sm:$0xf]
        %v528 = vld [vmem:[%s523 + $0x10] sm:$0xf]
        %v529 = vld [vmem:[%s523 + $0x14] sm:$0xf]
        %v530 = vld [vmem:[%s523 + $0x18] sm:$0xf]
        %v531 = vld [vmem:[%s523 + $0x1c] sm:$0xf]
        %v532 = vld [vmem:[%s523 + $0x20] sm:$0xf]
        %v533 = vld [vmem:[%s523 + $0x24] sm:$0xf]
        %v534 = vld [vmem:[%s523 + $0x28] sm:$0xf]
        %v535 = vld [vmem:[%s523 + $0x2c] sm:$0xf]
        %v536 = vld [vmem:[%s523 + $0x30] sm:$0xf]
        %v537 = vld [vmem:[%s523 + $0x34] sm:$0xf]
        %v538 = vld [vmem:[%s523 + $0x38] sm:$0xf]
        %v539 = vld [vmem:[%s523 + $0x3c] sm:$0xf]
        %v556 = vunpack.c.l.b16 %v524
        %v557 = vunpack.c.l.b16 %v525
        %v558 = vunpack.c.l.b16 %v526
        %v559 = vunpack.c.l.b16 %v527
        %v560 = vunpack.c.l.b16 %v528
        %v561 = vunpack.c.l.b16 %v529
        %v562 = vunpack.c.l.b16 %v530
        %v563 = vunpack.c.l.b16 %v531
        %v564 = vunpack.c.l.b16 %v532
        %v565 = vunpack.c.l.b16 %v533
        %v566 = vunpack.c.l.b16 %v534
        %v567 = vunpack.c.l.b16 %v535
        %v568 = vunpack.c.l.b16 %v536
        %v569 = vunpack.c.l.b16 %v537
        %v570 = vunpack.c.l.b16 %v538
        %v571 = vunpack.c.l.b16 %v539
        %v572 = vpack.c.b16 %v557, %v556
        %v573 = vpack.c.b16 %v559, %v558
        %v574 = vpack.c.b16 %v561, %v560
        %v575 = vpack.c.b16 %v563, %v562
        %v576 = vpack.c.b16 %v565, %v564
        %v577 = vpack.c.b16 %v567, %v566
        %v578 = vpack.c.b16 %v569, %v568
        %v579 = vpack.c.b16 %v571, %v570
        %588 = vmatprep.subr.bf16.mxu0 0
        %589 = vmatpush1.bf16.msra.mxu0 %v572
        %590 = vmatprep.subr.bf16.mxu0 0
        %591 = vmatpush1.bf16.msra.mxu0 %v573
        %592 = vmatprep.subr.bf16.mxu0 0
        %593 = vmatpush1.bf16.msra.mxu0 %v574
        %594 = vmatprep.subr.bf16.mxu0 0
        %595 = vmatpush1.bf16.msra.mxu0 %v575
        %596 = vmatprep.subr.bf16.mxu0 0
        %597 = vmatpush1.bf16.msra.mxu0 %v576
        %598 = vmatprep.subr.bf16.mxu0 0
        %599 = vmatpush1.bf16.msra.mxu0 %v577
        %600 = vmatprep.subr.bf16.mxu0 0
        %601 = vmatpush1.bf16.msra.mxu0 %v578
        %602 = vmatprep.subr.bf16.mxu0 0
        %603 = vmatpush1.bf16.msra.mxu0 %v579
        %604 = vmatprep.subr.bf16.mxu0 0
        %605 = vmatpush1.bf16.msra.mxu0 0
        %606 = vmatprep.subr.bf16.mxu0 0
        %607 = vmatpush1.bf16.msra.mxu0 0
        %608 = vmatprep.subr.bf16.mxu0 0
        %609 = vmatpush1.bf16.msra.mxu0 0
        %610 = vmatprep.subr.bf16.mxu0 0
        %611 = vmatpush1.bf16.msra.mxu0 0
        %612 = vmatprep.subr.bf16.mxu0 0
        %613 = vmatpush1.bf16.msra.mxu0 0
        %614 = vmatprep.subr.bf16.mxu0 0
        %615 = vmatpush1.bf16.msra.mxu0 0
        %616 = vmatprep.subr.bf16.mxu0 0
        %617 = vmatpush1.bf16.msra.mxu0 0
        %618 = vmatprep.subr.bf16.mxu0 0
        %619 = vmatpush1.bf16.msra.mxu0 0
        %620 = vmatprep.mubr.bf16.mxu0 0
        %621 = vmatmul.mubr.bf16.gmra.mrb[0].mxu0 %v522
        %v622 = vpop.f32.mrb[0].mxu0
        %v623 = vadd.f32 0.0, %v622
        %v624 = vpop.f32.mrb[0].mxu0
        %v625 = vpop.f32.mrb[0].mxu0
        %v626 = vpop.f32.mrb[0].mxu0
        %627 = vdwg.mxu0
        %v628 = vadd.f32 %v517, %v623
        %v629 = vld [vmem:[%s521] sm:$0xf]
        %v630 = vld [vmem:[%s521 + $0x4] sm:$0x1]
        %s631 = scalar_lea.vmem %s1, 256
        %v632 = vld [vmem:[%s631] sm:$0xf]
        %v633 = vld [vmem:[%s631 + $0x4] sm:$0xf]
        %v634 = vld [vmem:[%s631 + $0x8] sm:$0xf]
        %v635 = vld [vmem:[%s631 + $0xc] sm:$0xf]
        %v636 = vld [vmem:[%s631 + $0x10] sm:$0xf]
        %v637 = vld [vmem:[%s631 + $0x14] sm:$0xf]
        %v638 = vld [vmem:[%s631 + $0x18] sm:$0xf]
        %v639 = vld [vmem:[%s631 + $0x1c] sm:$0xf]
        %v640 = vld [vmem:[%s631 + $0x20] sm:$0xf]
        %v641 = vld [vmem:[%s631 + $0x24] sm:$0xf]
        %v642 = vld [vmem:[%s631 + $0x28] sm:$0xf]
        %v643 = vld [vmem:[%s631 + $0x2c] sm:$0xf]
        %v644 = vld [vmem:[%s631 + $0x30] sm:$0xf]
        %v645 = vld [vmem:[%s631 + $0x34] sm:$0xf]
        %v646 = vld [vmem:[%s631 + $0x38] sm:$0xf]
        %v647 = vld [vmem:[%s631 + $0x3c] sm:$0xf]
        %v650 = vunpack.c.l.b16 %v629
        %v651 = vunpack.c.l.b16 %v630
        %v652 = vpack.c.b16 %v651, %v650
        %v654 = vshrl.u32 %v652, 16
        %v656 = vshll.u32 %v652, 16
        %v658 = vrot.slane %v656, 1
        %v659 = vor.u32 %v654, %v658
        %v677 = vunpack.c.l.b16 %v632
        %v678 = vunpack.c.l.b16 %v633
        %v679 = vunpack.c.l.b16 %v634
        %v680 = vunpack.c.l.b16 %v635
        %v681 = vunpack.c.l.b16 %v636
        %v682 = vunpack.c.l.b16 %v637
        %v683 = vunpack.c.l.b16 %v638
        %v684 = vunpack.c.l.b16 %v639
        %v685 = vunpack.c.l.b16 %v640
        %v686 = vunpack.c.l.b16 %v641
        %v687 = vunpack.c.l.b16 %v642
        %v688 = vunpack.c.l.b16 %v643
        %v689 = vunpack.c.l.b16 %v644
        %v690 = vunpack.c.l.b16 %v645
        %v691 = vunpack.c.l.b16 %v646
        %v692 = vunpack.c.l.b16 %v647
        %v693 = vpack.c.b16 %v678, %v677
        %v694 = vpack.c.b16 %v680, %v679
        %v695 = vpack.c.b16 %v682, %v681
        %v696 = vpack.c.b16 %v684, %v683
        %v697 = vpack.c.b16 %v686, %v685
        %v698 = vpack.c.b16 %v688, %v687
        %v699 = vpack.c.b16 %v690, %v689
        %v700 = vpack.c.b16 %v692, %v691
        %709 = vmatprep.subr.bf16.mxu0 0
        %710 = vmatpush1.bf16.msra.mxu0 %v693
        %711 = vmatprep.subr.bf16.mxu0 0
        %712 = vmatpush1.bf16.msra.mxu0 %v694
        %713 = vmatprep.subr.bf16.mxu0 0
        %714 = vmatpush1.bf16.msra.mxu0 %v695
        %715 = vmatprep.subr.bf16.mxu0 0
        %716 = vmatpush1.bf16.msra.mxu0 %v696
        %717 = vmatprep.subr.bf16.mxu0 0
        %718 = vmatpush1.bf16.msra.mxu0 %v697
        %719 = vmatprep.subr.bf16.mxu0 0
        %720 = vmatpush1.bf16.msra.mxu0 %v698
        %721 = vmatprep.subr.bf16.mxu0 0
        %722 = vmatpush1.bf16.msra.mxu0 %v699
        %723 = vmatprep.subr.bf16.mxu0 0
        %724 = vmatpush1.bf16.msra.mxu0 %v700
        %725 = vmatprep.subr.bf16.mxu0 0
        %726 = vmatpush1.bf16.msra.mxu0 0
        %727 = vmatprep.subr.bf16.mxu0 0
        %728 = vmatpush1.bf16.msra.mxu0 0
        %729 = vmatprep.subr.bf16.mxu0 0
        %730 = vmatpush1.bf16.msra.mxu0 0
        %731 = vmatprep.subr.bf16.mxu0 0
        %732 = vmatpush1.bf16.msra.mxu0 0
        %733 = vmatprep.subr.bf16.mxu0 0
        %734 = vmatpush1.bf16.msra.mxu0 0
        %735 = vmatprep.subr.bf16.mxu0 0
        %736 = vmatpush1.bf16.msra.mxu0 0
        %737 = vmatprep.subr.bf16.mxu0 0
        %738 = vmatpush1.bf16.msra.mxu0 0
        %739 = vmatprep.subr.bf16.mxu0 0
        %740 = vmatpush1.bf16.msra.mxu0 0
        %741 = vmatprep.mubr.bf16.mxu0 0
        %742 = vmatmul.mubr.bf16.gmra.mrb[0].mxu0 %v659
        %v743 = vpop.f32.mrb[0].mxu0
        %v744 = vadd.f32 0.0, %v743
        %v745 = vpop.f32.mrb[0].mxu0
        %v746 = vpop.f32.mrb[0].mxu0
        %v747 = vpop.f32.mrb[0].mxu0
        %748 = vdwg.mxu0
        %v749 = vadd.f32 %v628, %v744
        %v750 = vld [vmem:[%s521] sm:$0xe]
        %s751 = scalar_lea.vmem %s1, 320
        %v752 = vld [vmem:[%s751] sm:$0xf]
        %v753 = vld [vmem:[%s751 + $0x4] sm:$0xf]
        %v754 = vld [vmem:[%s751 + $0x8] sm:$0xf]
        %v755 = vld [vmem:[%s751 + $0xc] sm:$0xf]
        %v756 = vld [vmem:[%s751 + $0x10] sm:$0xf]
        %v757 = vld [vmem:[%s751 + $0x14] sm:$0xf]
        %v758 = vld [vmem:[%s751 + $0x18] sm:$0xf]
        %v759 = vld [vmem:[%s751 + $0x1c] sm:$0xf]
        %v760 = vld [vmem:[%s751 + $0x20] sm:$0xf]
        %v761 = vld [vmem:[%s751 + $0x24] sm:$0xf]
        %v762 = vld [vmem:[%s751 + $0x28] sm:$0xf]
        %v763 = vld [vmem:[%s751 + $0x2c] sm:$0xf]
        %v764 = vld [vmem:[%s751 + $0x30] sm:$0xf]
        %v765 = vld [vmem:[%s751 + $0x34] sm:$0xf]
        %v766 = vld [vmem:[%s751 + $0x38] sm:$0xf]
        %v767 = vld [vmem:[%s751 + $0x3c] sm:$0xf]
        %v769 = vunpack.c.l.b16 %v750
        %v770 = vpack.c.b16 %v651, %v769
        %v771 = vrot.slane %v770, 1
        %v789 = vunpack.c.l.b16 %v752
        %v790 = vunpack.c.l.b16 %v753
        %v791 = vunpack.c.l.b16 %v754
        %v792 = vunpack.c.l.b16 %v755
        %v793 = vunpack.c.l.b16 %v756
        %v794 = vunpack.c.l.b16 %v757
        %v795 = vunpack.c.l.b16 %v758
        %v796 = vunpack.c.l.b16 %v759
        %v797 = vunpack.c.l.b16 %v760
        %v798 = vunpack.c.l.b16 %v761
        %v799 = vunpack.c.l.b16 %v762
        %v800 = vunpack.c.l.b16 %v763
        %v801 = vunpack.c.l.b16 %v764
        %v802 = vunpack.c.l.b16 %v765
        %v803 = vunpack.c.l.b16 %v766
        %v804 = vunpack.c.l.b16 %v767
        %v805 = vpack.c.b16 %v790, %v789
        %v806 = vpack.c.b16 %v792, %v791
        %v807 = vpack.c.b16 %v794, %v793
        %v808 = vpack.c.b16 %v796, %v795
        %v809 = vpack.c.b16 %v798, %v797
        %v810 = vpack.c.b16 %v800, %v799
        %v811 = vpack.c.b16 %v802, %v801
        %v812 = vpack.c.b16 %v804, %v803
        %821 = vmatprep.subr.bf16.mxu0 0
        %822 = vmatpush1.bf16.msra.mxu0 %v805
        %823 = vmatprep.subr.bf16.mxu0 0
        %824 = vmatpush1.bf16.msra.mxu0 %v806
        %825 = vmatprep.subr.bf16.mxu0 0
        %826 = vmatpush1.bf16.msra.mxu0 %v807
        %827 = vmatprep.subr.bf16.mxu0 0
        %828 = vmatpush1.bf16.msra.mxu0 %v808
        %829 = vmatprep.subr.bf16.mxu0 0
        %830 = vmatpush1.bf16.msra.mxu0 %v809
        %831 = vmatprep.subr.bf16.mxu0 0
        %832 = vmatpush1.bf16.msra.mxu0 %v810
        %833 = vmatprep.subr.bf16.mxu0 0
        %834 = vmatpush1.bf16.msra.mxu0 %v811
        %835 = vmatprep.subr.bf16.mxu0 0
        %836 = vmatpush1.bf16.msra.mxu0 %v812
        %837 = vmatprep.subr.bf16.mxu0 0
        %838 = vmatpush1.bf16.msra.mxu0 0
        %839 = vmatprep.subr.bf16.mxu0 0
        %840 = vmatpush1.bf16.msra.mxu0 0
        %841 = vmatprep.subr.bf16.mxu0 0
        %842 = vmatpush1.bf16.msra.mxu0 0
        %843 = vmatprep.subr.bf16.mxu0 0
        %844 = vmatpush1.bf16.msra.mxu0 0
        %845 = vmatprep.subr.bf16.mxu0 0
        %846 = vmatpush1.bf16.msra.mxu0 0
        %847 = vmatprep.subr.bf16.mxu0 0
        %848 = vmatpush1.bf16.msra.mxu0 0
        %849 = vmatprep.subr.bf16.mxu0 0
        %850 = vmatpush1.bf16.msra.mxu0 0
        %851 = vmatprep.subr.bf16.mxu0 0
        %852 = vmatpush1.bf16.msra.mxu0 0
        %853 = vmatprep.mubr.bf16.mxu0 0
        %854 = vmatmul.mubr.bf16.gmra.mrb[0].mxu0 %v771
        %v855 = vpop.f32.mrb[0].mxu0
        %v856 = vadd.f32 0.0, %v855
        %v857 = vpop.f32.mrb[0].mxu0
        %v858 = vpop.f32.mrb[0].mxu0
        %v859 = vpop.f32.mrb[0].mxu0
        %860 = vdwg.mxu0
        %v861 = vadd.f32 %v749, %v856
        %s862 = sadd.s32 %s174, 2
        %s863 = smul.u32 %s862, 2
        %s864 = smul.addr %s863, 4
        %s865 = scalar_lea.vmem %s165, %s864
        %v866 = vld [vmem:[%s865] sm:$0xf]
        %s867 = scalar_lea.vmem %s1, 384
        %v868 = vld [vmem:[%s867] sm:$0xf]
        %v869 = vld [vmem:[%s867 + $0x4] sm:$0xf]
        %v870 = vld [vmem:[%s867 + $0x8] sm:$0xf]
        %v871 = vld [vmem:[%s867 + $0xc] sm:$0xf]
        %v872 = vld [vmem:[%s867 + $0x10] sm:$0xf]
        %v873 = vld [vmem:[%s867 + $0x14] sm:$0xf]
        %v874 = vld [vmem:[%s867 + $0x18] sm:$0xf]
        %v875 = vld [vmem:[%s867 + $0x1c] sm:$0xf]
        %v876 = vld [vmem:[%s867 + $0x20] sm:$0xf]
        %v877 = vld [vmem:[%s867 + $0x24] sm:$0xf]
        %v878 = vld [vmem:[%s867 + $0x28] sm:$0xf]
        %v879 = vld [vmem:[%s867 + $0x2c] sm:$0xf]
        %v880 = vld [vmem:[%s867 + $0x30] sm:$0xf]
        %v881 = vld [vmem:[%s867 + $0x34] sm:$0xf]
        %v882 = vld [vmem:[%s867 + $0x38] sm:$0xf]
        %v883 = vld [vmem:[%s867 + $0x3c] sm:$0xf]
        %v900 = vunpack.c.l.b16 %v868
        %v901 = vunpack.c.l.b16 %v869
        %v902 = vunpack.c.l.b16 %v870
        %v903 = vunpack.c.l.b16 %v871
        %v904 = vunpack.c.l.b16 %v872
        %v905 = vunpack.c.l.b16 %v873
        %v906 = vunpack.c.l.b16 %v874
        %v907 = vunpack.c.l.b16 %v875
        %v908 = vunpack.c.l.b16 %v876
        %v909 = vunpack.c.l.b16 %v877
        %v910 = vunpack.c.l.b16 %v878
        %v911 = vunpack.c.l.b16 %v879
        %v912 = vunpack.c.l.b16 %v880
        %v913 = vunpack.c.l.b16 %v881
        %v914 = vunpack.c.l.b16 %v882
        %v915 = vunpack.c.l.b16 %v883
        %v916 = vpack.c.b16 %v901, %v900
        %v917 = vpack.c.b16 %v903, %v902
        %v918 = vpack.c.b16 %v905, %v904
        %v919 = vpack.c.b16 %v907, %v906
        %v920 = vpack.c.b16 %v909, %v908
        %v921 = vpack.c.b16 %v911, %v910
        %v922 = vpack.c.b16 %v913, %v912
        %v923 = vpack.c.b16 %v915, %v914
        %932 = vmatprep.subr.bf16.mxu0 0
        %933 = vmatpush1.bf16.msra.mxu0 %v916
        %934 = vmatprep.subr.bf16.mxu0 0
        %935 = vmatpush1.bf16.msra.mxu0 %v917
        %936 = vmatprep.subr.bf16.mxu0 0
        %937 = vmatpush1.bf16.msra.mxu0 %v918
        %938 = vmatprep.subr.bf16.mxu0 0
        %939 = vmatpush1.bf16.msra.mxu0 %v919
        %940 = vmatprep.subr.bf16.mxu0 0
        %941 = vmatpush1.bf16.msra.mxu0 %v920
        %942 = vmatprep.subr.bf16.mxu0 0
        %943 = vmatpush1.bf16.msra.mxu0 %v921
        %944 = vmatprep.subr.bf16.mxu0 0
        %945 = vmatpush1.bf16.msra.mxu0 %v922
        %946 = vmatprep.subr.bf16.mxu0 0
        %947 = vmatpush1.bf16.msra.mxu0 %v923
        %948 = vmatprep.subr.bf16.mxu0 0
        %949 = vmatpush1.bf16.msra.mxu0 0
        %950 = vmatprep.subr.bf16.mxu0 0
        %951 = vmatpush1.bf16.msra.mxu0 0
        %952 = vmatprep.subr.bf16.mxu0 0
        %953 = vmatpush1.bf16.msra.mxu0 0
        %954 = vmatprep.subr.bf16.mxu0 0
        %955 = vmatpush1.bf16.msra.mxu0 0
        %956 = vmatprep.subr.bf16.mxu0 0
        %957 = vmatpush1.bf16.msra.mxu0 0
        %958 = vmatprep.subr.bf16.mxu0 0
        %959 = vmatpush1.bf16.msra.mxu0 0
        %960 = vmatprep.subr.bf16.mxu0 0
        %961 = vmatpush1.bf16.msra.mxu0 0
        %962 = vmatprep.subr.bf16.mxu0 0
        %963 = vmatpush1.bf16.msra.mxu0 0
        %964 = vmatprep.mubr.bf16.mxu0 0
        %965 = vmatmul.mubr.bf16.gmra.mrb[0].mxu0 %v866
        %v966 = vpop.f32.mrb[0].mxu0
        %v967 = vadd.f32 0.0, %v966
        %v968 = vpop.f32.mrb[0].mxu0
        %v969 = vpop.f32.mrb[0].mxu0
        %v970 = vpop.f32.mrb[0].mxu0
        %971 = vdwg.mxu0
        %v972 = vadd.f32 %v861, %v967
        %v973 = vld [vmem:[%s865] sm:$0xf]
        %v974 = vld [vmem:[%s865 + $0x4] sm:$0x1]
        %s975 = scalar_lea.vmem %s1, 448
        %v976 = vld [vmem:[%s975] sm:$0xf]
        %v977 = vld [vmem:[%s975 + $0x4] sm:$0xf]
        %v978 = vld [vmem:[%s975 + $0x8] sm:$0xf]
        %v979 = vld [vmem:[%s975 + $0xc] sm:$0xf]
        %v980 = vld [vmem:[%s975 + $0x10] sm:$0xf]
        %v981 = vld [vmem:[%s975 + $0x14] sm:$0xf]
        %v982 = vld [vmem:[%s975 + $0x18] sm:$0xf]
        %v983 = vld [vmem:[%s975 + $0x1c] sm:$0xf]
        %v984 = vld [vmem:[%s975 + $0x20] sm:$0xf]
        %v985 = vld [vmem:[%s975 + $0x24] sm:$0xf]
        %v986 = vld [vmem:[%s975 + $0x28] sm:$0xf]
        %v987 = vld [vmem:[%s975 + $0x2c] sm:$0xf]
        %v988 = vld [vmem:[%s975 + $0x30] sm:$0xf]
        %v989 = vld [vmem:[%s975 + $0x34] sm:$0xf]
        %v990 = vld [vmem:[%s975 + $0x38] sm:$0xf]
        %v991 = vld [vmem:[%s975 + $0x3c] sm:$0xf]
        %v994 = vunpack.c.l.b16 %v973
        %v995 = vunpack.c.l.b16 %v974
        %v996 = vpack.c.b16 %v995, %v994
        %v998 = vshrl.u32 %v996, 16
        %v1000 = vshll.u32 %v996, 16
        %v1002 = vrot.slane %v1000, 1
        %v1003 = vor.u32 %v998, %v1002
        %v1021 = vunpack.c.l.b16 %v976
        %v1022 = vunpack.c.l.b16 %v977
        %v1023 = vunpack.c.l.b16 %v978
        %v1024 = vunpack.c.l.b16 %v979
        %v1025 = vunpack.c.l.b16 %v980
        %v1026 = vunpack.c.l.b16 %v981
        %v1027 = vunpack.c.l.b16 %v982
        %v1028 = vunpack.c.l.b16 %v983
        %v1029 = vunpack.c.l.b16 %v984
        %v1030 = vunpack.c.l.b16 %v985
        %v1031 = vunpack.c.l.b16 %v986
        %v1032 = vunpack.c.l.b16 %v987
        %v1033 = vunpack.c.l.b16 %v988
        %v1034 = vunpack.c.l.b16 %v989
        %v1035 = vunpack.c.l.b16 %v990
        %v1036 = vunpack.c.l.b16 %v991
        %v1037 = vpack.c.b16 %v1022, %v1021
        %v1038 = vpack.c.b16 %v1024, %v1023
        %v1039 = vpack.c.b16 %v1026, %v1025
        %v1040 = vpack.c.b16 %v1028, %v1027
        %v1041 = vpack.c.b16 %v1030, %v1029
        %v1042 = vpack.c.b16 %v1032, %v1031
        %v1043 = vpack.c.b16 %v1034, %v1033
        %v1044 = vpack.c.b16 %v1036, %v1035
        %1053 = vmatprep.subr.bf16.mxu0 0
        %1054 = vmatpush1.bf16.msra.mxu0 %v1037
        %1055 = vmatprep.subr.bf16.mxu0 0
        %1056 = vmatpush1.bf16.msra.mxu0 %v1038
        %1057 = vmatprep.subr.bf16.mxu0 0
        %1058 = vmatpush1.bf16.msra.mxu0 %v1039
        %1059 = vmatprep.subr.bf16.mxu0 0
        %1060 = vmatpush1.bf16.msra.mxu0 %v1040
        %1061 = vmatprep.subr.bf16.mxu0 0
        %1062 = vmatpush1.bf16.msra.mxu0 %v1041
        %1063 = vmatprep.subr.bf16.mxu0 0
        %1064 = vmatpush1.bf16.msra.mxu0 %v1042
        %1065 = vmatprep.subr.bf16.mxu0 0
        %1066 = vmatpush1.bf16.msra.mxu0 %v1043
        %1067 = vmatprep.subr.bf16.mxu0 0
        %1068 = vmatpush1.bf16.msra.mxu0 %v1044
        %1069 = vmatprep.subr.bf16.mxu0 0
        %1070 = vmatpush1.bf16.msra.mxu0 0
        %1071 = vmatprep.subr.bf16.mxu0 0
        %1072 = vmatpush1.bf16.msra.mxu0 0
        %1073 = vmatprep.subr.bf16.mxu0 0
        %1074 = vmatpush1.bf16.msra.mxu0 0
        %1075 = vmatprep.subr.bf16.mxu0 0
        %1076 = vmatpush1.bf16.msra.mxu0 0
        %1077 = vmatprep.subr.bf16.mxu0 0
        %1078 = vmatpush1.bf16.msra.mxu0 0
        %1079 = vmatprep.subr.bf16.mxu0 0
        %1080 = vmatpush1.bf16.msra.mxu0 0
        %1081 = vmatprep.subr.bf16.mxu0 0
        %1082 = vmatpush1.bf16.msra.mxu0 0
        %1083 = vmatprep.subr.bf16.mxu0 0
        %1084 = vmatpush1.bf16.msra.mxu0 0
        %1085 = vmatprep.mubr.bf16.mxu0 0
        %1086 = vmatmul.mubr.bf16.gmra.mrb[0].mxu0 %v1003
        %v1087 = vpop.f32.mrb[0].mxu0
        %v1088 = vadd.f32 0.0, %v1087
        %v1089 = vpop.f32.mrb[0].mxu0
        %v1090 = vpop.f32.mrb[0].mxu0
        %v1091 = vpop.f32.mrb[0].mxu0
        %1092 = vdwg.mxu0
        %v1093 = vadd.f32 %v972, %v1088
        %v1094 = vld [vmem:[%s865] sm:$0xe]
        %s1095 = scalar_lea.vmem %s1, 512
        %v1096 = vld [vmem:[%s1095] sm:$0xf]
        %v1097 = vld [vmem:[%s1095 + $0x4] sm:$0xf]
        %v1098 = vld [vmem:[%s1095 + $0x8] sm:$0xf]
        %v1099 = vld [vmem:[%s1095 + $0xc] sm:$0xf]
        %v1100 = vld [vmem:[%s1095 + $0x10] sm:$0xf]
        %v1101 = vld [vmem:[%s1095 + $0x14] sm:$0xf]
        %v1102 = vld [vmem:[%s1095 + $0x18] sm:$0xf]
        %v1103 = vld [vmem:[%s1095 + $0x1c] sm:$0xf]
        %v1104 = vld [vmem:[%s1095 + $0x20] sm:$0xf]
        %v1105 = vld [vmem:[%s1095 + $0x24] sm:$0xf]
        %v1106 = vld [vmem:[%s1095 + $0x28] sm:$0xf]
        %v1107 = vld [vmem:[%s1095 + $0x2c] sm:$0xf]
        %v1108 = vld [vmem:[%s1095 + $0x30] sm:$0xf]
        %v1109 = vld [vmem:[%s1095 + $0x34] sm:$0xf]
        %v1110 = vld [vmem:[%s1095 + $0x38] sm:$0xf]
        %v1111 = vld [vmem:[%s1095 + $0x3c] sm:$0xf]
        %v1113 = vunpack.c.l.b16 %v1094
        %v1114 = vpack.c.b16 %v995, %v1113
        %v1115 = vrot.slane %v1114, 1
        %v1133 = vunpack.c.l.b16 %v1096
        %v1134 = vunpack.c.l.b16 %v1097
        %v1135 = vunpack.c.l.b16 %v1098
        %v1136 = vunpack.c.l.b16 %v1099
        %v1137 = vunpack.c.l.b16 %v1100
        %v1138 = vunpack.c.l.b16 %v1101
        %v1139 = vunpack.c.l.b16 %v1102
        %v1140 = vunpack.c.l.b16 %v1103
        %v1141 = vunpack.c.l.b16 %v1104
        %v1142 = vunpack.c.l.b16 %v1105
        %v1143 = vunpack.c.l.b16 %v1106
        %v1144 = vunpack.c.l.b16 %v1107
        %v1145 = vunpack.c.l.b16 %v1108
        %v1146 = vunpack.c.l.b16 %v1109
        %v1147 = vunpack.c.l.b16 %v1110
        %v1148 = vunpack.c.l.b16 %v1111
        %v1149 = vpack.c.b16 %v1134, %v1133
        %v1150 = vpack.c.b16 %v1136, %v1135
        %v1151 = vpack.c.b16 %v1138, %v1137
        %v1152 = vpack.c.b16 %v1140, %v1139
        %v1153 = vpack.c.b16 %v1142, %v1141
        %v1154 = vpack.c.b16 %v1144, %v1143
        %v1155 = vpack.c.b16 %v1146, %v1145
        %v1156 = vpack.c.b16 %v1148, %v1147
        %1165 = vmatprep.subr.bf16.mxu0 0
        %1166 = vmatpush1.bf16.msra.mxu0 %v1149
        %1167 = vmatprep.subr.bf16.mxu0 0
        %1168 = vmatpush1.bf16.msra.mxu0 %v1150
        %1169 = vmatprep.subr.bf16.mxu0 0
        %1170 = vmatpush1.bf16.msra.mxu0 %v1151
        %1171 = vmatprep.subr.bf16.mxu0 0
        %1172 = vmatpush1.bf16.msra.mxu0 %v1152
        %1173 = vmatprep.subr.bf16.mxu0 0
        %1174 = vmatpush1.bf16.msra.mxu0 %v1153
        %1175 = vmatprep.subr.bf16.mxu0 0
        %1176 = vmatpush1.bf16.msra.mxu0 %v1154
        %1177 = vmatprep.subr.bf16.mxu0 0
        %1178 = vmatpush1.bf16.msra.mxu0 %v1155
        %1179 = vmatprep.subr.bf16.mxu0 0
        %1180 = vmatpush1.bf16.msra.mxu0 %v1156
        %1181 = vmatprep.subr.bf16.mxu0 0
        %1182 = vmatpush1.bf16.msra.mxu0 0
        %1183 = vmatprep.subr.bf16.mxu0 0
        %1184 = vmatpush1.bf16.msra.mxu0 0
        %1185 = vmatprep.subr.bf16.mxu0 0
        %1186 = vmatpush1.bf16.msra.mxu0 0
        %1187 = vmatprep.subr.bf16.mxu0 0
        %1188 = vmatpush1.bf16.msra.mxu0 0
        %1189 = vmatprep.subr.bf16.mxu0 0
        %1190 = vmatpush1.bf16.msra.mxu0 0
        %1191 = vmatprep.subr.bf16.mxu0 0
        %1192 = vmatpush1.bf16.msra.mxu0 0
        %1193 = vmatprep.subr.bf16.mxu0 0
        %1194 = vmatpush1.bf16.msra.mxu0 0
        %1195 = vmatprep.subr.bf16.mxu0 0
        %1196 = vmatpush1.bf16.msra.mxu0 0
        %1197 = vmatprep.mubr.bf16.mxu0 0
        %1198 = vmatmul.mubr.bf16.gmra.mrb[0].mxu0 %v1115
        %v1199 = vpop.f32.mrb[0].mxu0
        %v1200 = vadd.f32 0.0, %v1199
        %v1201 = vpop.f32.mrb[0].mxu0
        %v1202 = vpop.f32.mrb[0].mxu0
        %v1203 = vpop.f32.mrb[0].mxu0
        %1204 = vdwg.mxu0
        %v1205 = vadd.f32 %v1093, %v1200
        %v1207 = vlaneseq
        %v1208 = vshrl.u32 %v1207, 7
        %v1209 = vsub.s32 0, %v1208
        %v1210 = vrot.slane %v172, %v1209
        %v1212 = vadd.f32 %v1205, %v1210
        %v1213 = vmax.f32 %v1212, 0.0
        %v1214 = vpack.c.bf16 %v1213, %v1213
        %s1215 = smul.addr %s174, 4
        %s1216 = scalar_lea.vmem %s170, %s1215
        %1217 = vst [vmem:[%s1216] sm:$0xf] %v1214
      $region37: #{skelet_loss.15} parent=31 // loop_footer
        %s178 = sadd.s32 1, %s174
      $region38: #{skelet_loss.15} parent=31 // loop_footer_branch
        %173 = sbr.rel target = $region34
      $region39: #{skelet_loss.15} parent=31 // loop_exit
        _
      %p1218 = scmp.lt.s32.totalorder %s14, 3
      %s1219 = scalar_select %p1218, %s14, 3
      %s1220 = smul.addr %s1219, 8
      %s1221 = smul.addr %s1220, 4
      %s1222 = scalar_lea.vmem %s3, %s1221
      // Predicated region
      $region40: #{skelet_loss.15} parent=31 // pred_check
        %p1223 = pneg %p100
      $region41: #{skelet_loss.15} parent=31 // pred_check_branch
        %1225 = sbr.rel (%p1223) target = $region43
      $region42: #{skelet_loss.15} parent=31 // pred_region
        _
      $region43: #{skelet_loss.15} parent=31 // pred_fallthru
        _
    $region32: #{skelet_loss.15} parent=5 // pred_fallthru
      _
    %p1226 = scmp.le.s32.totalorder 2, %s9
    // Predicated region
    $region44: #{skelet_loss.15} parent=5 // pred_check
      %p1227 = pneg %p1226
    $region45: #{skelet_loss.15} parent=5 // pred_check_branch
      %1229 = sbr.rel (%p1227) target = $region47
    $region46: #{skelet_loss.15} parent=5 // pred_region
      %s1230 = ssub.s32 %s9, 2
      // Predicated region
      $region48: #{skelet_loss.15} parent=46 // pred_check
        %p1231 = pneg %p106
      $region49: #{skelet_loss.15} parent=46 // pred_check_branch
        %1233 = sbr.rel (%p1231) target = $region51
      $region50: #{skelet_loss.15} parent=46 // pred_region
        %p1234 = scmp.lt.s32.totalorder %s15, 3
        %s1235 = scalar_select %p1234, %s15, 3
        %s1236 = smul.addr %s1235, 8
        %s1237 = smul.addr %s1236, 4
        %s1238 = scalar_lea.vmem %s3, %s1237
      $region51: #{skelet_loss.15} parent=46 // pred_fallthru
        _
    $region47: #{skelet_loss.15} parent=5 // pred_fallthru
      _
  $region6: #{skelet_loss.15} parent=0 // loop_footer
    %s13 = sadd.s32 1, %s9
  $region7: #{skelet_loss.15} parent=0 // loop_footer_branch
    %8 = sbr.rel target = $region3
  $region8: #{skelet_loss.15} parent=0 // loop_exit
    _

// kernel: skelet_loss.16
$region0: #{skelet_loss.16}
  #allocation0 [shape = 'u32[]', space=smem, size = 0x4, offset = 0x4, fixed_abs, tag = 'smem constant byte address 0x4 - core index']
  #allocation1 [shape = 'u32[144,128]{1,0:T(1,128)}', space=vmem, size = 0x12000, scoped, tag = 'internal scratch']
  %s0 = inlined_call_operand.vmem [shape: bf16[4,6,6,128], index: 0, kind: input, shape index: {}]
  %s1 = inlined_call_operand.vmem [shape: bf16[9,128,256], index: 1, kind: input, shape index: {}]
  %s2 = inlined_call_operand.vmem [shape: f32[1,256], index: 2, kind: input, shape index: {}]
  %s3 = inlined_call_operand.vmem [shape: bf16[4,4,4,256], index: 3, kind: output, shape index: {}]
  %s4 = sld [smem:[#allocation0]]
  $region52: #{skelet_loss.16} parent=0
    _
  %s6 = ssub.s32 1, %s4
  %s7 = scalar_select 0, %s6, %s4
  loop: start=0, step=1, limit=6
  $region2: #{skelet_loss.16} parent=0 // loop_pre_header
    _
  $region3: #{skelet_loss.16} parent=0 // loop_header
    %s9 = sphi 0, %s13
    %p10 = scmp.ge.s32.totalorder %s9, 6
    %s19 = sphi 0, %s21
    %s22 = sphi 0, %s19
    %s23 = sphi 0, %s22
    %s39 = sphi 0, %s23
    %s43 = sphi 0, %s43
    %s45 = sphi 0, %s43
    %s46 = sphi 0, %s45
    %s60 = sphi 0, %s46
    %s64 = sphi 0, %s64
    %s66 = sphi 0, %s64
    %s67 = sphi 0, %s66
    %s81 = sphi 0, %s67
    %s87 = sphi 0, %s89
    %s90 = sphi 0, %s87
    %s91 = sphi 0, %s90
    %s107 = sphi 0, %s91
  $region4: #{skelet_loss.16} parent=0 // loop_header_branch
    %12 = sbr.rel (%p10) target = $region8
  $region5: #{skelet_loss.16} parent=0 // loop_body
    %s14 = ssub.s32 %s9, 1
    %s15 = ssub.s32 %s9, 2
    %s16 = sadd.s32 %s9, 1
    %s17 = ssub.s32 %s9, %s16
    %p18 = scmp.eq.s32.totalorder %s17, 0
    %s20 = sadd.s32 %s19, 1
    %s21 = scalar_select %p18, %s19, %s20
    %p24 = pneg %p18
    %p25 = scmp.eq.s32.totalorder %s9, 3
    %p26 = por %p24, %p25
    %p27 = scmp.ne.s32.totalorder %s19, %s22
    %p28 = scmp.eq.s32.totalorder %s9, 0
    %p29 = por %p27, %p28
    %p30 = scmp.ne.s32.totalorder %s19, %s22
    %p31 = scmp.eq.s32.totalorder %s14, 3
    %p32 = por %p30, %p31
    %p33 = scmp.ne.s32.totalorder %s22, %s23
    %p34 = scmp.eq.s32.totalorder %s14, 0
    %p35 = por %p33, %p34
    %p36 = scmp.ne.s32.totalorder %s22, %s23
    %p37 = scmp.eq.s32.totalorder %s15, 3
    %p38 = por %p36, %p37
    %p40 = scmp.ne.s32.totalorder %s23, %s39
    %p41 = scmp.eq.s32.totalorder %s15, 0
    %p42 = por %p40, %p41
    %s44 = sadd.s32 %s43, 1
    %p47 = scmp.eq.s32.totalorder %s9, 3
    %p48 = scmp.ne.s32.totalorder %s43, %s45
    %p49 = scmp.eq.s32.totalorder %s9, 0
    %p50 = por %p48, %p49
    %p51 = scmp.ne.s32.totalorder %s43, %s45
    %p52 = scmp.eq.s32.totalorder %s14, 3
    %p53 = por %p51, %p52
    %p54 = scmp.ne.s32.totalorder %s45, %s46
    %p55 = scmp.eq.s32.totalorder %s14, 0
    %p56 = por %p54, %p55
    %p57 = scmp.ne.s32.totalorder %s45, %s46
    %p58 = scmp.eq.s32.totalorder %s15, 3
    %p59 = por %p57, %p58
    %p61 = scmp.ne.s32.totalorder %s46, %s60
    %p62 = scmp.eq.s32.totalorder %s15, 0
    %p63 = por %p61, %p62
    %s65 = sadd.s32 %s64, 1
    %p68 = scmp.eq.s32.totalorder %s9, 3
    %p69 = scmp.ne.s32.totalorder %s64, %s66
    %p70 = scmp.eq.s32.totalorder %s9, 0
    %p71 = por %p69, %p70
    %p72 = scmp.ne.s32.totalorder %s64, %s66
    %p73 = scmp.eq.s32.totalorder %s14, 3
    %p74 = por %p72, %p73
    %p75 = scmp.ne.s32.totalorder %s66, %s67
    %p76 = scmp.eq.s32.totalorder %s14, 0
    %p77 = por %p75, %p76
    %p78 = scmp.ne.s32.totalorder %s66, %s67
    %p79 = scmp.eq.s32.totalorder %s15, 3
    %p80 = por %p78, %p79
    %p82 = scmp.ne.s32.totalorder %s67, %s81
    %p83 = scmp.eq.s32.totalorder %s15, 0
    %p84 = por %p82, %p83
    %s85 = ssub.s32 %s9, %s16
    %p86 = scmp.eq.s32.totalorder %s85, 0
    %s88 = sadd.s32 %s87, 1
    %s89 = scalar_select %p86, %s87, %s88
    %p92 = pneg %p86
    %p93 = scmp.eq.s32.totalorder %s9, 3
    %p94 = por %p92, %p93
    %p95 = scmp.ne.s32.totalorder %s87, %s90
    %p96 = scmp.eq.s32.totalorder %s9, 0
    %p97 = por %p95, %p96
    %p98 = scmp.ne.s32.totalorder %s87, %s90
    %p99 = scmp.eq.s32.totalorder %s14, 3
    %p100 = por %p98, %p99
    %p101 = scmp.ne.s32.totalorder %s90, %s91
    %p102 = scmp.eq.s32.totalorder %s14, 0
    %p103 = por %p101, %p102
    %p104 = scmp.ne.s32.totalorder %s90, %s91
    %p105 = scmp.eq.s32.totalorder %s15, 3
    %p106 = por %p104, %p105
    %p108 = scmp.ne.s32.totalorder %s91, %s107
    %p109 = scmp.eq.s32.totalorder %s15, 0
    %p110 = por %p108, %p109
    %p111 = scmp.le.s32.totalorder 1, %s9
    %p112 = scmp.lt.s32.totalorder %s9, 5
    %p113 = pnand %p111, %p112
    %p114 = pneg %p113
    // Predicated region
    $region9: #{skelet_loss.16} parent=5 // pred_check
      _
    $region10: #{skelet_loss.16} parent=5 // pred_check_branch
      %116 = sbr.rel (%p113) target = $region12
    $region11: #{skelet_loss.16} parent=5 // pred_region
      %s117 = ssub.s32 %s9, 1
      // Predicated region
      $region13: #{skelet_loss.16} parent=11 // pred_check
        %p118 = pneg %p56
      $region14: #{skelet_loss.16} parent=11 // pred_check_branch
        %120 = sbr.rel (%p118) target = $region16
      $region15: #{skelet_loss.16} parent=11 // pred_region
        _
      $region16: #{skelet_loss.16} parent=11 // pred_fallthru
        _
      // Predicated region
      $region17: #{skelet_loss.16} parent=11 // pred_check
        %p121 = pneg %p77
      $region18: #{skelet_loss.16} parent=11 // pred_check_branch
        %123 = sbr.rel (%p121) target = $region20
      $region19: #{skelet_loss.16} parent=11 // pred_region
        _
      $region20: #{skelet_loss.16} parent=11 // pred_fallthru
        _
    $region12: #{skelet_loss.16} parent=5 // pred_fallthru
      _
    %p124 = scmp.lt.s32.totalorder %s9, 4
    // Predicated region
    $region21: #{skelet_loss.16} parent=5 // pred_check
      %p125 = pneg %p124
    $region22: #{skelet_loss.16} parent=5 // pred_check_branch
      %127 = sbr.rel (%p125) target = $region24
    $region23: #{skelet_loss.16} parent=5 // pred_region
      // Predicated region
      $region25: #{skelet_loss.16} parent=23 // pred_check
        %p128 = pneg %p29
      $region26: #{skelet_loss.16} parent=23 // pred_check_branch
        %130 = sbr.rel (%p128) target = $region28
      $region27: #{skelet_loss.16} parent=23 // pred_region
        %p131 = scmp.lt.s32.totalorder %s9, 3
        %s132 = scalar_select %p131, %s9, 3
        %s133 = smul.addr %s132, 6
        %s134 = smul.addr %s133, 4
        %s135 = scalar_lea.vmem %s0, %s134
      $region28: #{skelet_loss.16} parent=23 // pred_fallthru
        _
    $region24: #{skelet_loss.16} parent=5 // pred_fallthru
      _
    %p136 = scmp.le.s32.totalorder 1, %s9
    %p137 = scmp.lt.s32.totalorder %s9, 5
    %p138 = pnand %p136, %p137
    %p139 = pneg %p138
    // Predicated region
    $region29: #{skelet_loss.16} parent=5 // pred_check
      _
    $region30: #{skelet_loss.16} parent=5 // pred_check_branch
      %141 = sbr.rel (%p138) target = $region32
    $region31: #{skelet_loss.16} parent=5 // pred_region
      %s142 = ssub.s32 %s9, 1
      %p143 = scmp.lt.s32.totalorder %s14, 3
      %s144 = scalar_select %p143, %s14, 3
      %s145 = smul.addr %s144, 6
      %s146 = smul.addr %s145, 4
      %s147 = scalar_lea.vmem %s0, %s146
      %p148 = pneg %p35
      %p149 = pneg %p32
      %p150 = pneg %p56
      %p151 = pneg %p53
      %p152 = pneg %p77
      %p153 = pneg %p74
      %p154 = pneg %p103
      %p155 = pneg %p100
      %p156 = scmp.lt.s32.totalorder %s14, 3
      %s157 = scalar_select %p156, %s14, 3
      %s158 = smul.addr %s157, 8
      %s159 = smul.addr %s158, 2
      %s160 = scalar_lea.vmem %s3, %s159
      %p161 = scmp.lt.s32.totalorder %s14, 3
      %s162 = scalar_select %p161, %s14, 3
      %s163 = smul.addr %s162, 6
      %s164 = smul.addr %s163, 4
      %s165 = scalar_lea.vmem %s0, %s164
      %p166 = scmp.lt.s32.totalorder %s14, 3
      %s167 = scalar_select %p166, %s14, 3
      %s168 = smul.addr %s167, 8
      %s169 = smul.addr %s168, 2
      %s170 = scalar_lea.vmem %s3, %s169
      %v172 = vld [vmem:[%s2] sm:$0x3]
      loop: start=0, step=1, limit=4
      $region33: #{skelet_loss.16} parent=31 // loop_pre_header
        _
      $region34: #{skelet_loss.16} parent=31 // loop_header
        %s174 = sphi 0, %s178
        %p175 = scmp.ge.s32.totalorder %s174, 4
      $region35: #{skelet_loss.16} parent=31 // loop_header_branch
        %177 = sbr.rel (%p175) target = $region39
      $region36: #{skelet_loss.16} parent=31 // loop_body
        %s179 = smul.addr %s174, 4
        %s180 = scalar_lea.vmem %s165, %s179
        %v181 = vld [vmem:[%s180] sm:$0x3]
        %v182 = vld [vmem:[%s1] sm:$0xff]
        %v183 = vld [vmem:[%s1 + $0x8] sm:$0xff]
        %v184 = vld [vmem:[%s1 + $0x10] sm:$0xff]
        %v185 = vld [vmem:[%s1 + $0x18] sm:$0xff]
        %v186 = vld [vmem:[%s1 + $0x20] sm:$0xff]
        %v187 = vld [vmem:[%s1 + $0x28] sm:$0xff]
        %v188 = vld [vmem:[%s1 + $0x30] sm:$0xff]
        %v189 = vld [vmem:[%s1 + $0x38] sm:$0xff]
        %v190 = vld [vmem:[%s1 + $0x40] sm:$0xff]
        %v191 = vld [vmem:[%s1 + $0x48] sm:$0xff]
        %v192 = vld [vmem:[%s1 + $0x50] sm:$0xff]
        %v193 = vld [vmem:[%s1 + $0x58] sm:$0xff]
        %v194 = vld [vmem:[%s1 + $0x60] sm:$0xff]
        %v195 = vld [vmem:[%s1 + $0x68] sm:$0xff]
        %v196 = vld [vmem:[%s1 + $0x70] sm:$0xff]
        %v197 = vld [vmem:[%s1 + $0x78] sm:$0xff]
        %v198 = vld [vmem:[%s180] sm:$0x7]
        %s199 = scalar_lea.vmem %s1, 128
        %v200 = vld [vmem:[%s199] sm:$0xff]
        %v201 = vld [vmem:[%s199 + $0x8] sm:$0xff]
        %v202 = vld [vmem:[%s199 + $0x10] sm:$0xff]
        %v203 = vld [vmem:[%s199 + $0x18] sm:$0xff]
        %v204 = vld [vmem:[%s199 + $0x20] sm:$0xff]
        %v205 = vld [vmem:[%s199 + $0x28] sm:$0xff]
        %v206 = vld [vmem:[%s199 + $0x30] sm:$0xff]
        %v207 = vld [vmem:[%s199 + $0x38] sm:$0xff]
        %v208 = vld [vmem:[%s199 + $0x40] sm:$0xff]
        %v209 = vld [vmem:[%s199 + $0x48] sm:$0xff]
        %v210 = vld [vmem:[%s199 + $0x50] sm:$0xff]
        %v211 = vld [vmem:[%s199 + $0x58] sm:$0xff]
        %v212 = vld [vmem:[%s199 + $0x60] sm:$0xff]
        %v213 = vld [vmem:[%s199 + $0x68] sm:$0xff]
        %v214 = vld [vmem:[%s199 + $0x70] sm:$0xff]
        %v215 = vld [vmem:[%s199 + $0x78] sm:$0xff]
        %v217 = vunpack.c.l.b16 %v198
        %v218 = vpack.c.b16 %v217, %v217
        %v220 = vshrl.u32 %v218, 16
        %v222 = vshll.u32 %v218, 16
        %v224 = vrot.slane %v222, 1
        %v225 = vor.u32 %v220, %v224
        %v243 = vunpack.c.l.b16 %v200
        %v244 = vunpack.c.h.b16 %v200
        %v245 = vunpack.c.l.b16 %v201
        %v246 = vunpack.c.h.b16 %v201
        %v247 = vunpack.c.l.b16 %v202
        %v248 = vunpack.c.h.b16 %v202
        %v249 = vunpack.c.l.b16 %v203
        %v250 = vunpack.c.h.b16 %v203
        %v251 = vunpack.c.l.b16 %v204
        %v252 = vunpack.c.h.b16 %v204
        %v253 = vunpack.c.l.b16 %v205
        %v254 = vunpack.c.h.b16 %v205
        %v255 = vunpack.c.l.b16 %v206
        %v256 = vunpack.c.h.b16 %v206
        %v257 = vunpack.c.l.b16 %v207
        %v258 = vunpack.c.h.b16 %v207
        %v259 = vunpack.c.l.b16 %v208
        %v260 = vunpack.c.h.b16 %v208
        %v261 = vunpack.c.l.b16 %v209
        %v262 = vunpack.c.h.b16 %v209
        %v263 = vunpack.c.l.b16 %v210
        %v264 = vunpack.c.h.b16 %v210
        %v265 = vunpack.c.l.b16 %v211
        %v266 = vunpack.c.h.b16 %v211
        %v267 = vunpack.c.l.b16 %v212
        %v268 = vunpack.c.h.b16 %v212
        %v269 = vunpack.c.l.b16 %v213
        %v270 = vunpack.c.h.b16 %v213
        %v271 = vunpack.c.l.b16 %v214
        %v272 = vunpack.c.h.b16 %v214
        %v273 = vunpack.c.l.b16 %v215
        %v274 = vunpack.c.h.b16 %v215
        %v275 = vpack.c.b16 %v245, %v243
        %v276 = vpack.c.b16 %v246, %v244
        %v277 = vpack.c.b16 %v249, %v247
        %v278 = vpack.c.b16 %v250, %v248
        %v279 = vpack.c.b16 %v253, %v251
        %v280 = vpack.c.b16 %v254, %v252
        %v281 = vpack.c.b16 %v257, %v255
        %v282 = vpack.c.b16 %v258, %v256
        %v283 = vpack.c.b16 %v261, %v259
        %v284 = vpack.c.b16 %v262, %v260
        %v285 = vpack.c.b16 %v265, %v263
        %v286 = vpack.c.b16 %v266, %v264
        %v287 = vpack.c.b16 %v269, %v267
        %v288 = vpack.c.b16 %v270, %v268
        %v289 = vpack.c.b16 %v273, %v271
        %v290 = vpack.c.b16 %v274, %v272
        %307 = vmatprep.subr.bf16.mxu0 %v276
        %308 = vmatpush1.bf16.msra.mxu0 %v275
        %309 = vmatprep.subr.bf16.mxu0 %v278
        %310 = vmatpush1.bf16.msra.mxu0 %v277
        %311 = vmatprep.subr.bf16.mxu0 %v280
        %312 = vmatpush1.bf16.msra.mxu0 %v279
        %313 = vmatprep.subr.bf16.mxu0 %v282
        %314 = vmatpush1.bf16.msra.mxu0 %v281
        %315 = vmatprep.subr.bf16.mxu0 %v284
        %316 = vmatpush1.bf16.msra.mxu0 %v283
        %317 = vmatprep.subr.bf16.mxu0 %v286
        %318 = vmatpush1.bf16.msra.mxu0 %v285
        %319 = vmatprep.subr.bf16.mxu0 %v288
        %320 = vmatpush1.bf16.msra.mxu0 %v287
        %321 = vmatprep.subr.bf16.mxu0 %v290
        %322 = vmatpush1.bf16.msra.mxu0 %v289
        %323 = vmatprep.subr.bf16.mxu0 0
        %324 = vmatpush1.bf16.msra.mxu0 0
        %325 = vmatprep.subr.bf16.mxu0 0
        %326 = vmatpush1.bf16.msra.mxu0 0
        %327 = vmatprep.subr.bf16.mxu0 0
        %328 = vmatpush1.bf16.msra.mxu0 0
        %329 = vmatprep.subr.bf16.mxu0 0
        %330 = vmatpush1.bf16.msra.mxu0 0
        %331 = vmatprep.subr.bf16.mxu0 0
        %332 = vmatpush1.bf16.msra.mxu0 0
        %333 = vmatprep.subr.bf16.mxu0 0
        %334 = vmatpush1.bf16.msra.mxu0 0
        %335 = vmatprep.subr.bf16.mxu0 0
        %336 = vmatpush1.bf16.msra.mxu0 0
        %337 = vmatprep.subr.bf16.mxu0 0
        %338 = vmatpush1.bf16.msra.mxu0 0
        %339 = vmatprep.mubr.bf16.mxu0 0
        %340 = vmatmul.mubr.bf16.gmra.mrb[0].mxu0 %v225
        %v341 = vpop.f32.mrb[0].mxu0
        %v342 = vadd.f32 0.0, %v341
        %v343 = vpop.f32.mrb[0].mxu0
        %v344 = vadd.f32 0.0, %v343
        %v345 = vpop.f32.mrb[0].mxu0
        %v346 = vpop.f32.mrb[0].mxu0
        %347 = vdwg.mxu0
        %v364 = vunpack.c.l.b16 %v182
        %v365 = vunpack.c.h.b16 %v182
        %v366 = vunpack.c.l.b16 %v183
        %v367 = vunpack.c.h.b16 %v183
        %v368 = vunpack.c.l.b16 %v184
        %v369 = vunpack.c.h.b16 %v184
        %v370 = vunpack.c.l.b16 %v185
        %v371 = vunpack.c.h.b16 %v185
        %v372 = vunpack.c.l.b16 %v186
        %v373 = vunpack.c.h.b16 %v186
        %v374 = vunpack.c.l.b16 %v187
        %v375 = vunpack.c.h.b16 %v187
        %v376 = vunpack.c.l.b16 %v188
        %v377 = vunpack.c.h.b16 %v188
        %v378 = vunpack.c.l.b16 %v189
        %v379 = vunpack.c.h.b16 %v189
        %v380 = vunpack.c.l.b16 %v190
        %v381 = vunpack.c.h.b16 %v190
        %v382 = vunpack.c.l.b16 %v191
        %v383 = vunpack.c.h.b16 %v191
        %v384 = vunpack.c.l.b16 %v192
        %v385 = vunpack.c.h.b16 %v192
        %v386 = vunpack.c.l.b16 %v193
        %v387 = vunpack.c.h.b16 %v193
        %v388 = vunpack.c.l.b16 %v194
        %v389 = vunpack.c.h.b16 %v194
        %v390 = vunpack.c.l.b16 %v195
        %v391 = vunpack.c.h.b16 %v195
        %v392 = vunpack.c.l.b16 %v196
        %v393 = vunpack.c.h.b16 %v196
        %v394 = vunpack.c.l.b16 %v197
        %v395 = vunpack.c.h.b16 %v197
        %v396 = vpack.c.b16 %v366, %v364
        %v397 = vpack.c.b16 %v367, %v365
        %v398 = vpack.c.b16 %v370, %v368
        %v399 = vpack.c.b16 %v371, %v369
        %v400 = vpack.c.b16 %v374, %v372
        %v401 = vpack.c.b16 %v375, %v373
        %v402 = vpack.c.b16 %v378, %v376
        %v403 = vpack.c.b16 %v379, %v377
        %v404 = vpack.c.b16 %v382, %v380
        %v405 = vpack.c.b16 %v383, %v381
        %v406 = vpack.c.b16 %v386, %v384
        %v407 = vpack.c.b16 %v387, %v385
        %v408 = vpack.c.b16 %v390, %v388
        %v409 = vpack.c.b16 %v391, %v389
        %v410 = vpack.c.b16 %v394, %v392
        %v411 = vpack.c.b16 %v395, %v393
        %428 = vmatprep.subr.bf16.mxu0 %v397
        %429 = vmatpush1.bf16.msra.mxu0 %v396
        %430 = vmatprep.subr.bf16.mxu0 %v399
        %431 = vmatpush1.bf16.msra.mxu0 %v398
        %432 = vmatprep.subr.bf16.mxu0 %v401
        %433 = vmatpush1.bf16.msra.mxu0 %v400
        %434 = vmatprep.subr.bf16.mxu0 %v403
        %435 = vmatpush1.bf16.msra.mxu0 %v402
        %436 = vmatprep.subr.bf16.mxu0 %v405
        %437 = vmatpush1.bf16.msra.mxu0 %v404
        %438 = vmatprep.subr.bf16.mxu0 %v407
        %439 = vmatpush1.bf16.msra.mxu0 %v406
        %440 = vmatprep.subr.bf16.mxu0 %v409
        %441 = vmatpush1.bf16.msra.mxu0 %v408
        %442 = vmatprep.subr.bf16.mxu0 %v411
        %443 = vmatpush1.bf16.msra.mxu0 %v410
        %444 = vmatprep.subr.bf16.mxu0 0
        %445 = vmatpush1.bf16.msra.mxu0 0
        %446 = vmatprep.subr.bf16.mxu0 0
        %447 = vmatpush1.bf16.msra.mxu0 0
        %448 = vmatprep.subr.bf16.mxu0 0
        %449 = vmatpush1.bf16.msra.mxu0 0
        %450 = vmatprep.subr.bf16.mxu0 0
        %451 = vmatpush1.bf16.msra.mxu0 0
        %452 = vmatprep.subr.bf16.mxu0 0
        %453 = vmatpush1.bf16.msra.mxu0 0
        %454 = vmatprep.subr.bf16.mxu0 0
        %455 = vmatpush1.bf16.msra.mxu0 0
        %456 = vmatprep.subr.bf16.mxu0 0
        %457 = vmatpush1.bf16.msra.mxu0 0
        %458 = vmatprep.subr.bf16.mxu0 0
        %459 = vmatpush1.bf16.msra.mxu0 0
        %460 = vmatprep.mubr.bf16.mxu0 0
        %461 = vmatmul.mubr.bf16.gmra.mrb[0].mxu0 %v181
        %v462 = vpop.f32.mrb[0].mxu0
        %v463 = vadd.f32 %v342, %v462
        %v464 = vpop.f32.mrb[0].mxu0
        %v465 = vadd.f32 %v344, %v464
        %v466 = vpop.f32.mrb[0].mxu0
        %v467 = vpop.f32.mrb[0].mxu0
        %468 = vdwg.mxu0
        %v469 = vld [vmem:[%s180] sm:$0x6]
        %s470 = scalar_lea.vmem %s1, 256
        %v471 = vld [vmem:[%s470] sm:$0xff]
        %v472 = vld [vmem:[%s470 + $0x8] sm:$0xff]
        %v473 = vld [vmem:[%s470 + $0x10] sm:$0xff]
        %v474 = vld [vmem:[%s470 + $0x18] sm:$0xff]
        %v475 = vld [vmem:[%s470 + $0x20] sm:$0xff]
        %v476 = vld [vmem:[%s470 + $0x28] sm:$0xff]
        %v477 = vld [vmem:[%s470 + $0x30] sm:$0xff]
        %v478 = vld [vmem:[%s470 + $0x38] sm:$0xff]
        %v479 = vld [vmem:[%s470 + $0x40] sm:$0xff]
        %v480 = vld [vmem:[%s470 + $0x48] sm:$0xff]
        %v481 = vld [vmem:[%s470 + $0x50] sm:$0xff]
        %v482 = vld [vmem:[%s470 + $0x58] sm:$0xff]
        %v483 = vld [vmem:[%s470 + $0x60] sm:$0xff]
        %v484 = vld [vmem:[%s470 + $0x68] sm:$0xff]
        %v485 = vld [vmem:[%s470 + $0x70] sm:$0xff]
        %v486 = vld [vmem:[%s470 + $0x78] sm:$0xff]
        %v488 = vunpack.c.l.b16 %v469
        %v489 = vpack.c.b16 %v488, %v488
        %v490 = vrot.slane %v489, 1
        %v508 = vunpack.c.l.b16 %v471
        %v509 = vunpack.c.h.b16 %v471
        %v510 = vunpack.c.l.b16 %v472
        %v511 = vunpack.c.h.b16 %v472
        %v512 = vunpack.c.l.b16 %v473
        %v513 = vunpack.c.h.b16 %v473
        %v514 = vunpack.c.l.b16 %v474
        %v515 = vunpack.c.h.b16 %v474
        %v516 = vunpack.c.l.b16 %v475
        %v517 = vunpack.c.h.b16 %v475
        %v518 = vunpack.c.l.b16 %v476
        %v519 = vunpack.c.h.b16 %v476
        %v520 = vunpack.c.l.b16 %v477
        %v521 = vunpack.c.h.b16 %v477
        %v522 = vunpack.c.l.b16 %v478
        %v523 = vunpack.c.h.b16 %v478
        %v524 = vunpack.c.l.b16 %v479
        %v525 = vunpack.c.h.b16 %v479
        %v526 = vunpack.c.l.b16 %v480
        %v527 = vunpack.c.h.b16 %v480
        %v528 = vunpack.c.l.b16 %v481
        %v529 = vunpack.c.h.b16 %v481
        %v530 = vunpack.c.l.b16 %v482
        %v531 = vunpack.c.h.b16 %v482
        %v532 = vunpack.c.l.b16 %v483
        %v533 = vunpack.c.h.b16 %v483
        %v534 = vunpack.c.l.b16 %v484
        %v535 = vunpack.c.h.b16 %v484
        %v536 = vunpack.c.l.b16 %v485
        %v537 = vunpack.c.h.b16 %v485
        %v538 = vunpack.c.l.b16 %v486
        %v539 = vunpack.c.h.b16 %v486
        %v540 = vpack.c.b16 %v510, %v508
        %v541 = vpack.c.b16 %v511, %v509
        %v542 = vpack.c.b16 %v514, %v512
        %v543 = vpack.c.b16 %v515, %v513
        %v544 = vpack.c.b16 %v518, %v516
        %v545 = vpack.c.b16 %v519, %v517
        %v546 = vpack.c.b16 %v522, %v520
        %v547 = vpack.c.b16 %v523, %v521
        %v548 = vpack.c.b16 %v526, %v524
        %v549 = vpack.c.b16 %v527, %v525
        %v550 = vpack.c.b16 %v530, %v528
        %v551 = vpack.c.b16 %v531, %v529
        %v552 = vpack.c.b16 %v534, %v532
        %v553 = vpack.c.b16 %v535, %v533
        %v554 = vpack.c.b16 %v538, %v536
        %v555 = vpack.c.b16 %v539, %v537
        %572 = vmatprep.subr.bf16.mxu0 %v541
        %573 = vmatpush1.bf16.msra.mxu0 %v540
        %574 = vmatprep.subr.bf16.mxu0 %v543
        %575 = vmatpush1.bf16.msra.mxu0 %v542
        %576 = vmatprep.subr.bf16.mxu0 %v545
        %577 = vmatpush1.bf16.msra.mxu0 %v544
        %578 = vmatprep.subr.bf16.mxu0 %v547
        %579 = vmatpush1.bf16.msra.mxu0 %v546
        %580 = vmatprep.subr.bf16.mxu0 %v549
        %581 = vmatpush1.bf16.msra.mxu0 %v548
        %582 = vmatprep.subr.bf16.mxu0 %v551
        %583 = vmatpush1.bf16.msra.mxu0 %v550
        %584 = vmatprep.subr.bf16.mxu0 %v553
        %585 = vmatpush1.bf16.msra.mxu0 %v552
        %586 = vmatprep.subr.bf16.mxu0 %v555
        %587 = vmatpush1.bf16.msra.mxu0 %v554
        %588 = vmatprep.subr.bf16.mxu0 0
        %589 = vmatpush1.bf16.msra.mxu0 0
        %590 = vmatprep.subr.bf16.mxu0 0
        %591 = vmatpush1.bf16.msra.mxu0 0
        %592 = vmatprep.subr.bf16.mxu0 0
        %593 = vmatpush1.bf16.msra.mxu0 0
        %594 = vmatprep.subr.bf16.mxu0 0
        %595 = vmatpush1.bf16.msra.mxu0 0
        %596 = vmatprep.subr.bf16.mxu0 0
        %597 = vmatpush1.bf16.msra.mxu0 0
        %598 = vmatprep.subr.bf16.mxu0 0
        %599 = vmatpush1.bf16.msra.mxu0 0
        %600 = vmatprep.subr.bf16.mxu0 0
        %601 = vmatpush1.bf16.msra.mxu0 0
        %602 = vmatprep.subr.bf16.mxu0 0
        %603 = vmatpush1.bf16.msra.mxu0 0
        %604 = vmatprep.mubr.bf16.mxu0 0
        %605 = vmatmul.mubr.bf16.gmra.mrb[0].mxu0 %v490
        %v606 = vpop.f32.mrb[0].mxu0
        %v607 = vadd.f32 0.0, %v606
        %v608 = vpop.f32.mrb[0].mxu0
        %v609 = vadd.f32 0.0, %v608
        %v610 = vpop.f32.mrb[0].mxu0
        %v611 = vpop.f32.mrb[0].mxu0
        %612 = vdwg.mxu0
        %v613 = vadd.f32 %v463, %v607
        %v614 = vadd.f32 %v465, %v609
        %s615 = sadd.s32 %s174, 1
        %s616 = smul.addr %s615, 4
        %s617 = scalar_lea.vmem %s165, %s616
        %v618 = vld [vmem:[%s617] sm:$0x3]
        %s619 = scalar_lea.vmem %s1, 384
        %v620 = vld [vmem:[%s619] sm:$0xff]
        %v621 = vld [vmem:[%s619 + $0x8] sm:$0xff]
        %v622 = vld [vmem:[%s619 + $0x10] sm:$0xff]
        %v623 = vld [vmem:[%s619 + $0x18] sm:$0xff]
        %v624 = vld [vmem:[%s619 + $0x20] sm:$0xff]
        %v625 = vld [vmem:[%s619 + $0x28] sm:$0xff]
        %v626 = vld [vmem:[%s619 + $0x30] sm:$0xff]
        %v627 = vld [vmem:[%s619 + $0x38] sm:$0xff]
        %v628 = vld [vmem:[%s619 + $0x40] sm:$0xff]
        %v629 = vld [vmem:[%s619 + $0x48] sm:$0xff]
        %v630 = vld [vmem:[%s619 + $0x50] sm:$0xff]
        %v631 = vld [vmem:[%s619 + $0x58] sm:$0xff]
        %v632 = vld [vmem:[%s619 + $0x60] sm:$0xff]
        %v633 = vld [vmem:[%s619 + $0x68] sm:$0xff]
        %v634 = vld [vmem:[%s619 + $0x70] sm:$0xff]
        %v635 = vld [vmem:[%s619 + $0x78] sm:$0xff]
        %v652 = vunpack.c.l.b16 %v620
        %v653 = vunpack.c.h.b16 %v620
        %v654 = vunpack.c.l.b16 %v621
        %v655 = vunpack.c.h.b16 %v621
        %v656 = vunpack.c.l.b16 %v622
        %v657 = vunpack.c.h.b16 %v622
        %v658 = vunpack.c.l.b16 %v623
        %v659 = vunpack.c.h.b16 %v623
        %v660 = vunpack.c.l.b16 %v624
        %v661 = vunpack.c.h.b16 %v624
        %v662 = vunpack.c.l.b16 %v625
        %v663 = vunpack.c.h.b16 %v625
        %v664 = vunpack.c.l.b16 %v626
        %v665 = vunpack.c.h.b16 %v626
        %v666 = vunpack.c.l.b16 %v627
        %v667 = vunpack.c.h.b16 %v627
        %v668 = vunpack.c.l.b16 %v628
        %v669 = vunpack.c.h.b16 %v628
        %v670 = vunpack.c.l.b16 %v629
        %v671 = vunpack.c.h.b16 %v629
        %v672 = vunpack.c.l.b16 %v630
        %v673 = vunpack.c.h.b16 %v630
        %v674 = vunpack.c.l.b16 %v631
        %v675 = vunpack.c.h.b16 %v631
        %v676 = vunpack.c.l.b16 %v632
        %v677 = vunpack.c.h.b16 %v632
        %v678 = vunpack.c.l.b16 %v633
        %v679 = vunpack.c.h.b16 %v633
        %v680 = vunpack.c.l.b16 %v634
        %v681 = vunpack.c.h.b16 %v634
        %v682 = vunpack.c.l.b16 %v635
        %v683 = vunpack.c.h.b16 %v635
        %v684 = vpack.c.b16 %v654, %v652
        %v685 = vpack.c.b16 %v655, %v653
        %v686 = vpack.c.b16 %v658, %v656
        %v687 = vpack.c.b16 %v659, %v657
        %v688 = vpack.c.b16 %v662, %v660
        %v689 = vpack.c.b16 %v663, %v661
        %v690 = vpack.c.b16 %v666, %v664
        %v691 = vpack.c.b16 %v667, %v665
        %v692 = vpack.c.b16 %v670, %v668
        %v693 = vpack.c.b16 %v671, %v669
        %v694 = vpack.c.b16 %v674, %v672
        %v695 = vpack.c.b16 %v675, %v673
        %v696 = vpack.c.b16 %v678, %v676
        %v697 = vpack.c.b16 %v679, %v677
        %v698 = vpack.c.b16 %v682, %v680
        %v699 = vpack.c.b16 %v683, %v681
        %716 = vmatprep.subr.bf16.mxu0 %v685
        %717 = vmatpush1.bf16.msra.mxu0 %v684
        %718 = vmatprep.subr.bf16.mxu0 %v687
        %719 = vmatpush1.bf16.msra.mxu0 %v686
        %720 = vmatprep.subr.bf16.mxu0 %v689
        %721 = vmatpush1.bf16.msra.mxu0 %v688
        %722 = vmatprep.subr.bf16.mxu0 %v691
        %723 = vmatpush1.bf16.msra.mxu0 %v690
        %724 = vmatprep.subr.bf16.mxu0 %v693
        %725 = vmatpush1.bf16.msra.mxu0 %v692
        %726 = vmatprep.subr.bf16.mxu0 %v695
        %727 = vmatpush1.bf16.msra.mxu0 %v694
        %728 = vmatprep.subr.bf16.mxu0 %v697
        %729 = vmatpush1.bf16.msra.mxu0 %v696
        %730 = vmatprep.subr.bf16.mxu0 %v699
        %731 = vmatpush1.bf16.msra.mxu0 %v698
        %732 = vmatprep.subr.bf16.mxu0 0
        %733 = vmatpush1.bf16.msra.mxu0 0
        %734 = vmatprep.subr.bf16.mxu0 0
        %735 = vmatpush1.bf16.msra.mxu0 0
        %736 = vmatprep.subr.bf16.mxu0 0
        %737 = vmatpush1.bf16.msra.mxu0 0
        %738 = vmatprep.subr.bf16.mxu0 0
        %739 = vmatpush1.bf16.msra.mxu0 0
        %740 = vmatprep.subr.bf16.mxu0 0
        %741 = vmatpush1.bf16.msra.mxu0 0
        %742 = vmatprep.subr.bf16.mxu0 0
        %743 = vmatpush1.bf16.msra.mxu0 0
        %744 = vmatprep.subr.bf16.mxu0 0
        %745 = vmatpush1.bf16.msra.mxu0 0
        %746 = vmatprep.subr.bf16.mxu0 0
        %747 = vmatpush1.bf16.msra.mxu0 0
        %748 = vmatprep.mubr.bf16.mxu0 0
        %749 = vmatmul.mubr.bf16.gmra.mrb[0].mxu0 %v618
        %v750 = vpop.f32.mrb[0].mxu0
        %v751 = vadd.f32 0.0, %v750
        %v752 = vpop.f32.mrb[0].mxu0
        %v753 = vadd.f32 0.0, %v752
        %v754 = vpop.f32.mrb[0].mxu0
        %v755 = vpop.f32.mrb[0].mxu0
        %756 = vdwg.mxu0
        %v757 = vadd.f32 %v613, %v751
        %v758 = vadd.f32 %v614, %v753
        %v759 = vld [vmem:[%s617] sm:$0x7]
        %s760 = scalar_lea.vmem %s1, 512
        %v761 = vld [vmem:[%s760] sm:$0xff]
        %v762 = vld [vmem:[%s760 + $0x8] sm:$0xff]
        %v763 = vld [vmem:[%s760 + $0x10] sm:$0xff]
        %v764 = vld [vmem:[%s760 + $0x18] sm:$0xff]
        %v765 = vld [vmem:[%s760 + $0x20] sm:$0xff]
        %v766 = vld [vmem:[%s760 + $0x28] sm:$0xff]
        %v767 = vld [vmem:[%s760 + $0x30] sm:$0xff]
        %v768 = vld [vmem:[%s760 + $0x38] sm:$0xff]
        %v769 = vld [vmem:[%s760 + $0x40] sm:$0xff]
        %v770 = vld [vmem:[%s760 + $0x48] sm:$0xff]
        %v771 = vld [vmem:[%s760 + $0x50] sm:$0xff]
        %v772 = vld [vmem:[%s760 + $0x58] sm:$0xff]
        %v773 = vld [vmem:[%s760 + $0x60] sm:$0xff]
        %v774 = vld [vmem:[%s760 + $0x68] sm:$0xff]
        %v775 = vld [vmem:[%s760 + $0x70] sm:$0xff]
        %v776 = vld [vmem:[%s760 + $0x78] sm:$0xff]
        %v778 = vunpack.c.l.b16 %v759
        %v779 = vpack.c.b16 %v778, %v778
        %v781 = vshrl.u32 %v779, 16
        %v783 = vshll.u32 %v779, 16
        %v785 = vrot.slane %v783, 1
        %v786 = vor.u32 %v781, %v785
        %v804 = vunpack.c.l.b16 %v761
        %v805 = vunpack.c.h.b16 %v761
        %v806 = vunpack.c.l.b16 %v762
        %v807 = vunpack.c.h.b16 %v762
        %v808 = vunpack.c.l.b16 %v763
        %v809 = vunpack.c.h.b16 %v763
        %v810 = vunpack.c.l.b16 %v764
        %v811 = vunpack.c.h.b16 %v764
        %v812 = vunpack.c.l.b16 %v765
        %v813 = vunpack.c.h.b16 %v765
        %v814 = vunpack.c.l.b16 %v766
        %v815 = vunpack.c.h.b16 %v766
        %v816 = vunpack.c.l.b16 %v767
        %v817 = vunpack.c.h.b16 %v767
        %v818 = vunpack.c.l.b16 %v768
        %v819 = vunpack.c.h.b16 %v768
        %v820 = vunpack.c.l.b16 %v769
        %v821 = vunpack.c.h.b16 %v769
        %v822 = vunpack.c.l.b16 %v770
        %v823 = vunpack.c.h.b16 %v770
        %v824 = vunpack.c.l.b16 %v771
        %v825 = vunpack.c.h.b16 %v771
        %v826 = vunpack.c.l.b16 %v772
        %v827 = vunpack.c.h.b16 %v772
        %v828 = vunpack.c.l.b16 %v773
        %v829 = vunpack.c.h.b16 %v773
        %v830 = vunpack.c.l.b16 %v774
        %v831 = vunpack.c.h.b16 %v774
        %v832 = vunpack.c.l.b16 %v775
        %v833 = vunpack.c.h.b16 %v775
        %v834 = vunpack.c.l.b16 %v776
        %v835 = vunpack.c.h.b16 %v776
        %v836 = vpack.c.b16 %v806, %v804
        %v837 = vpack.c.b16 %v807, %v805
        %v838 = vpack.c.b16 %v810, %v808
        %v839 = vpack.c.b16 %v811, %v809
        %v840 = vpack.c.b16 %v814, %v812
        %v841 = vpack.c.b16 %v815, %v813
        %v842 = vpack.c.b16 %v818, %v816
        %v843 = vpack.c.b16 %v819, %v817
        %v844 = vpack.c.b16 %v822, %v820
        %v845 = vpack.c.b16 %v823, %v821
        %v846 = vpack.c.b16 %v826, %v824
        %v847 = vpack.c.b16 %v827, %v825
        %v848 = vpack.c.b16 %v830, %v828
        %v849 = vpack.c.b16 %v831, %v829
        %v850 = vpack.c.b16 %v834, %v832
        %v851 = vpack.c.b16 %v835, %v833
        %868 = vmatprep.subr.bf16.mxu0 %v837
        %869 = vmatpush1.bf16.msra.mxu0 %v836
        %870 = vmatprep.subr.bf16.mxu0 %v839
        %871 = vmatpush1.bf16.msra.mxu0 %v838
        %872 = vmatprep.subr.bf16.mxu0 %v841
        %873 = vmatpush1.bf16.msra.mxu0 %v840
        %874 = vmatprep.subr.bf16.mxu0 %v843
        %875 = vmatpush1.bf16.msra.mxu0 %v842
        %876 = vmatprep.subr.bf16.mxu0 %v845
        %877 = vmatpush1.bf16.msra.mxu0 %v844
        %878 = vmatprep.subr.bf16.mxu0 %v847
        %879 = vmatpush1.bf16.msra.mxu0 %v846
        %880 = vmatprep.subr.bf16.mxu0 %v849
        %881 = vmatpush1.bf16.msra.mxu0 %v848
        %882 = vmatprep.subr.bf16.mxu0 %v851
        %883 = vmatpush1.bf16.msra.mxu0 %v850
        %884 = vmatprep.subr.bf16.mxu0 0
        %885 = vmatpush1.bf16.msra.mxu0 0
        %886 = vmatprep.subr.bf16.mxu0 0
        %887 = vmatpush1.bf16.msra.mxu0 0
        %888 = vmatprep.subr.bf16.mxu0 0
        %889 = vmatpush1.bf16.msra.mxu0 0
        %890 = vmatprep.subr.bf16.mxu0 0
        %891 = vmatpush1.bf16.msra.mxu0 0
        %892 = vmatprep.subr.bf16.mxu0 0
        %893 = vmatpush1.bf16.msra.mxu0 0
        %894 = vmatprep.subr.bf16.mxu0 0
        %895 = vmatpush1.bf16.msra.mxu0 0
        %896 = vmatprep.subr.bf16.mxu0 0
        %897 = vmatpush1.bf16.msra.mxu0 0
        %898 = vmatprep.subr.bf16.mxu0 0
        %899 = vmatpush1.bf16.msra.mxu0 0
        %900 = vmatprep.mubr.bf16.mxu0 0
        %901 = vmatmul.mubr.bf16.gmra.mrb[0].mxu0 %v786
        %v902 = vpop.f32.mrb[0].mxu0
        %v903 = vadd.f32 0.0, %v902
        %v904 = vpop.f32.mrb[0].mxu0
        %v905 = vadd.f32 0.0, %v904
        %v906 = vpop.f32.mrb[0].mxu0
        %v907 = vpop.f32.mrb[0].mxu0
        %908 = vdwg.mxu0
        %v909 = vadd.f32 %v757, %v903
        %v910 = vadd.f32 %v758, %v905
        %v911 = vld [vmem:[%s617] sm:$0x6]
        %s912 = scalar_lea.vmem %s1, 640
        %v913 = vld [vmem:[%s912] sm:$0xff]
        %v914 = vld [vmem:[%s912 + $0x8] sm:$0xff]
        %v915 = vld [vmem:[%s912 + $0x10] sm:$0xff]
        %v916 = vld [vmem:[%s912 + $0x18] sm:$0xff]
        %v917 = vld [vmem:[%s912 + $0x20] sm:$0xff]
        %v918 = vld [vmem:[%s912 + $0x28] sm:$0xff]
        %v919 = vld [vmem:[%s912 + $0x30] sm:$0xff]
        %v920 = vld [vmem:[%s912 + $0x38] sm:$0xff]
        %v921 = vld [vmem:[%s912 + $0x40] sm:$0xff]
        %v922 = vld [vmem:[%s912 + $0x48] sm:$0xff]
        %v923 = vld [vmem:[%s912 + $0x50] sm:$0xff]
        %v924 = vld [vmem:[%s912 + $0x58] sm:$0xff]
        %v925 = vld [vmem:[%s912 + $0x60] sm:$0xff]
        %v926 = vld [vmem:[%s912 + $0x68] sm:$0xff]
        %v927 = vld [vmem:[%s912 + $0x70] sm:$0xff]
        %v928 = vld [vmem:[%s912 + $0x78] sm:$0xff]
        %v930 = vunpack.c.l.b16 %v911
        %v931 = vpack.c.b16 %v930, %v930
        %v932 = vrot.slane %v931, 1
        %v950 = vunpack.c.l.b16 %v913
        %v951 = vunpack.c.h.b16 %v913
        %v952 = vunpack.c.l.b16 %v914
        %v953 = vunpack.c.h.b16 %v914
        %v954 = vunpack.c.l.b16 %v915
        %v955 = vunpack.c.h.b16 %v915
        %v956 = vunpack.c.l.b16 %v916
        %v957 = vunpack.c.h.b16 %v916
        %v958 = vunpack.c.l.b16 %v917
        %v959 = vunpack.c.h.b16 %v917
        %v960 = vunpack.c.l.b16 %v918
        %v961 = vunpack.c.h.b16 %v918
        %v962 = vunpack.c.l.b16 %v919
        %v963 = vunpack.c.h.b16 %v919
        %v964 = vunpack.c.l.b16 %v920
        %v965 = vunpack.c.h.b16 %v920
        %v966 = vunpack.c.l.b16 %v921
        %v967 = vunpack.c.h.b16 %v921
        %v968 = vunpack.c.l.b16 %v922
        %v969 = vunpack.c.h.b16 %v922
        %v970 = vunpack.c.l.b16 %v923
        %v971 = vunpack.c.h.b16 %v923
        %v972 = vunpack.c.l.b16 %v924
        %v973 = vunpack.c.h.b16 %v924
        %v974 = vunpack.c.l.b16 %v925
        %v975 = vunpack.c.h.b16 %v925
        %v976 = vunpack.c.l.b16 %v926
        %v977 = vunpack.c.h.b16 %v926
        %v978 = vunpack.c.l.b16 %v927
        %v979 = vunpack.c.h.b16 %v927
        %v980 = vunpack.c.l.b16 %v928
        %v981 = vunpack.c.h.b16 %v928
        %v982 = vpack.c.b16 %v952, %v950
        %v983 = vpack.c.b16 %v953, %v951
        %v984 = vpack.c.b16 %v956, %v954
        %v985 = vpack.c.b16 %v957, %v955
        %v986 = vpack.c.b16 %v960, %v958
        %v987 = vpack.c.b16 %v961, %v959
        %v988 = vpack.c.b16 %v964, %v962
        %v989 = vpack.c.b16 %v965, %v963
        %v990 = vpack.c.b16 %v968, %v966
        %v991 = vpack.c.b16 %v969, %v967
        %v992 = vpack.c.b16 %v972, %v970
        %v993 = vpack.c.b16 %v973, %v971
        %v994 = vpack.c.b16 %v976, %v974
        %v995 = vpack.c.b16 %v977, %v975
        %v996 = vpack.c.b16 %v980, %v978
        %v997 = vpack.c.b16 %v981, %v979
        %1014 = vmatprep.subr.bf16.mxu0 %v983
        %1015 = vmatpush1.bf16.msra.mxu0 %v982
        %1016 = vmatprep.subr.bf16.mxu0 %v985
        %1017 = vmatpush1.bf16.msra.mxu0 %v984
        %1018 = vmatprep.subr.bf16.mxu0 %v987
        %1019 = vmatpush1.bf16.msra.mxu0 %v986
        %1020 = vmatprep.subr.bf16.mxu0 %v989
        %1021 = vmatpush1.bf16.msra.mxu0 %v988
        %1022 = vmatprep.subr.bf16.mxu0 %v991
        %1023 = vmatpush1.bf16.msra.mxu0 %v990
        %1024 = vmatprep.subr.bf16.mxu0 %v993
        %1025 = vmatpush1.bf16.msra.mxu0 %v992
        %1026 = vmatprep.subr.bf16.mxu0 %v995
        %1027 = vmatpush1.bf16.msra.mxu0 %v994
        %1028 = vmatprep.subr.bf16.mxu0 %v997
        %1029 = vmatpush1.bf16.msra.mxu0 %v996
        %1030 = vmatprep.subr.bf16.mxu0 0
        %1031 = vmatpush1.bf16.msra.mxu0 0
        %1032 = vmatprep.subr.bf16.mxu0 0
        %1033 = vmatpush1.bf16.msra.mxu0 0
        %1034 = vmatprep.subr.bf16.mxu0 0
        %1035 = vmatpush1.bf16.msra.mxu0 0
        %1036 = vmatprep.subr.bf16.mxu0 0
        %1037 = vmatpush1.bf16.msra.mxu0 0
        %1038 = vmatprep.subr.bf16.mxu0 0
        %1039 = vmatpush1.bf16.msra.mxu0 0
        %1040 = vmatprep.subr.bf16.mxu0 0
        %1041 = vmatpush1.bf16.msra.mxu0 0
        %1042 = vmatprep.subr.bf16.mxu0 0
        %1043 = vmatpush1.bf16.msra.mxu0 0
        %1044 = vmatprep.subr.bf16.mxu0 0
        %1045 = vmatpush1.bf16.msra.mxu0 0
        %1046 = vmatprep.mubr.bf16.mxu0 0
        %1047 = vmatmul.mubr.bf16.gmra.mrb[0].mxu0 %v932
        %v1048 = vpop.f32.mrb[0].mxu0
        %v1049 = vadd.f32 0.0, %v1048
        %v1050 = vpop.f32.mrb[0].mxu0
        %v1051 = vadd.f32 0.0, %v1050
        %v1052 = vpop.f32.mrb[0].mxu0
        %v1053 = vpop.f32.mrb[0].mxu0
        %1054 = vdwg.mxu0
        %v1055 = vadd.f32 %v909, %v1049
        %v1056 = vadd.f32 %v910, %v1051
        %s1057 = sadd.s32 %s174, 2
        %s1058 = smul.addr %s1057, 4
        %s1059 = scalar_lea.vmem %s165, %s1058
        %v1060 = vld [vmem:[%s1059] sm:$0x3]
        %s1061 = scalar_lea.vmem %s1, 768
        %v1062 = vld [vmem:[%s1061] sm:$0xff]
        %v1063 = vld [vmem:[%s1061 + $0x8] sm:$0xff]
        %v1064 = vld [vmem:[%s1061 + $0x10] sm:$0xff]
        %v1065 = vld [vmem:[%s1061 + $0x18] sm:$0xff]
        %v1066 = vld [vmem:[%s1061 + $0x20] sm:$0xff]
        %v1067 = vld [vmem:[%s1061 + $0x28] sm:$0xff]
        %v1068 = vld [vmem:[%s1061 + $0x30] sm:$0xff]
        %v1069 = vld [vmem:[%s1061 + $0x38] sm:$0xff]
        %v1070 = vld [vmem:[%s1061 + $0x40] sm:$0xff]
        %v1071 = vld [vmem:[%s1061 + $0x48] sm:$0xff]
        %v1072 = vld [vmem:[%s1061 + $0x50] sm:$0xff]
        %v1073 = vld [vmem:[%s1061 + $0x58] sm:$0xff]
        %v1074 = vld [vmem:[%s1061 + $0x60] sm:$0xff]
        %v1075 = vld [vmem:[%s1061 + $0x68] sm:$0xff]
        %v1076 = vld [vmem:[%s1061 + $0x70] sm:$0xff]
        %v1077 = vld [vmem:[%s1061 + $0x78] sm:$0xff]
        %v1094 = vunpack.c.l.b16 %v1062
        %v1095 = vunpack.c.h.b16 %v1062
        %v1096 = vunpack.c.l.b16 %v1063
        %v1097 = vunpack.c.h.b16 %v1063
        %v1098 = vunpack.c.l.b16 %v1064
        %v1099 = vunpack.c.h.b16 %v1064
        %v1100 = vunpack.c.l.b16 %v1065
        %v1101 = vunpack.c.h.b16 %v1065
        %v1102 = vunpack.c.l.b16 %v1066
        %v1103 = vunpack.c.h.b16 %v1066
        %v1104 = vunpack.c.l.b16 %v1067
        %v1105 = vunpack.c.h.b16 %v1067
        %v1106 = vunpack.c.l.b16 %v1068
        %v1107 = vunpack.c.h.b16 %v1068
        %v1108 = vunpack.c.l.b16 %v1069
        %v1109 = vunpack.c.h.b16 %v1069
        %v1110 = vunpack.c.l.b16 %v1070
        %v1111 = vunpack.c.h.b16 %v1070
        %v1112 = vunpack.c.l.b16 %v1071
        %v1113 = vunpack.c.h.b16 %v1071
        %v1114 = vunpack.c.l.b16 %v1072
        %v1115 = vunpack.c.h.b16 %v1072
        %v1116 = vunpack.c.l.b16 %v1073
        %v1117 = vunpack.c.h.b16 %v1073
        %v1118 = vunpack.c.l.b16 %v1074
        %v1119 = vunpack.c.h.b16 %v1074
        %v1120 = vunpack.c.l.b16 %v1075
        %v1121 = vunpack.c.h.b16 %v1075
        %v1122 = vunpack.c.l.b16 %v1076
        %v1123 = vunpack.c.h.b16 %v1076
        %v1124 = vunpack.c.l.b16 %v1077
        %v1125 = vunpack.c.h.b16 %v1077
        %v1126 = vpack.c.b16 %v1096, %v1094
        %v1127 = vpack.c.b16 %v1097, %v1095
        %v1128 = vpack.c.b16 %v1100, %v1098
        %v1129 = vpack.c.b16 %v1101, %v1099
        %v1130 = vpack.c.b16 %v1104, %v1102
        %v1131 = vpack.c.b16 %v1105, %v1103
        %v1132 = vpack.c.b16 %v1108, %v1106
        %v1133 = vpack.c.b16 %v1109, %v1107
        %v1134 = vpack.c.b16 %v1112, %v1110
        %v1135 = vpack.c.b16 %v1113, %v1111
        %v1136 = vpack.c.b16 %v1116, %v1114
        %v1137 = vpack.c.b16 %v1117, %v1115
        %v1138 = vpack.c.b16 %v1120, %v1118
        %v1139 = vpack.c.b16 %v1121, %v1119
        %v1140 = vpack.c.b16 %v1124, %v1122
        %v1141 = vpack.c.b16 %v1125, %v1123
        %1158 = vmatprep.subr.bf16.mxu0 %v1127
        %1159 = vmatpush1.bf16.msra.mxu0 %v1126
        %1160 = vmatprep.subr.bf16.mxu0 %v1129
        %1161 = vmatpush1.bf16.msra.mxu0 %v1128
        %1162 = vmatprep.subr.bf16.mxu0 %v1131
        %1163 = vmatpush1.bf16.msra.mxu0 %v1130
        %1164 = vmatprep.subr.bf16.mxu0 %v1133
        %1165 = vmatpush1.bf16.msra.mxu0 %v1132
        %1166 = vmatprep.subr.bf16.mxu0 %v1135
        %1167 = vmatpush1.bf16.msra.mxu0 %v1134
        %1168 = vmatprep.subr.bf16.mxu0 %v1137
        %1169 = vmatpush1.bf16.msra.mxu0 %v1136
        %1170 = vmatprep.subr.bf16.mxu0 %v1139
        %1171 = vmatpush1.bf16.msra.mxu0 %v1138
        %1172 = vmatprep.subr.bf16.mxu0 %v1141
        %1173 = vmatpush1.bf16.msra.mxu0 %v1140
        %1174 = vmatprep.subr.bf16.mxu0 0
        %1175 = vmatpush1.bf16.msra.mxu0 0
        %1176 = vmatprep.subr.bf16.mxu0 0
        %1177 = vmatpush1.bf16.msra.mxu0 0
        %1178 = vmatprep.subr.bf16.mxu0 0
        %1179 = vmatpush1.bf16.msra.mxu0 0
        %1180 = vmatprep.subr.bf16.mxu0 0
        %1181 = vmatpush1.bf16.msra.mxu0 0
        %1182 = vmatprep.subr.bf16.mxu0 0
        %1183 = vmatpush1.bf16.msra.mxu0 0
        %1184 = vmatprep.subr.bf16.mxu0 0
        %1185 = vmatpush1.bf16.msra.mxu0 0
        %1186 = vmatprep.subr.bf16.mxu0 0
        %1187 = vmatpush1.bf16.msra.mxu0 0
        %1188 = vmatprep.subr.bf16.mxu0 0
        %1189 = vmatpush1.bf16.msra.mxu0 0
        %1190 = vmatprep.mubr.bf16.mxu0 0
        %1191 = vmatmul.mubr.bf16.gmra.mrb[0].mxu0 %v1060
        %v1192 = vpop.f32.mrb[0].mxu0
        %v1193 = vadd.f32 0.0, %v1192
        %v1194 = vpop.f32.mrb[0].mxu0
        %v1195 = vadd.f32 0.0, %v1194
        %v1196 = vpop.f32.mrb[0].mxu0
        %v1197 = vpop.f32.mrb[0].mxu0
        %1198 = vdwg.mxu0
        %v1199 = vadd.f32 %v1055, %v1193
        %v1200 = vadd.f32 %v1056, %v1195
        %v1201 = vld [vmem:[%s1059] sm:$0x7]
        %s1202 = scalar_lea.vmem %s1, 896
        %v1203 = vld [vmem:[%s1202] sm:$0xff]
        %v1204 = vld [vmem:[%s1202 + $0x8] sm:$0xff]
        %v1205 = vld [vmem:[%s1202 + $0x10] sm:$0xff]
        %v1206 = vld [vmem:[%s1202 + $0x18] sm:$0xff]
        %v1207 = vld [vmem:[%s1202 + $0x20] sm:$0xff]
        %v1208 = vld [vmem:[%s1202 + $0x28] sm:$0xff]
        %v1209 = vld [vmem:[%s1202 + $0x30] sm:$0xff]
        %v1210 = vld [vmem:[%s1202 + $0x38] sm:$0xff]
        %v1211 = vld [vmem:[%s1202 + $0x40] sm:$0xff]
        %v1212 = vld [vmem:[%s1202 + $0x48] sm:$0xff]
        %v1213 = vld [vmem:[%s1202 + $0x50] sm:$0xff]
        %v1214 = vld [vmem:[%s1202 + $0x58] sm:$0xff]
        %v1215 = vld [vmem:[%s1202 + $0x60] sm:$0xff]
        %v1216 = vld [vmem:[%s1202 + $0x68] sm:$0xff]
        %v1217 = vld [vmem:[%s1202 + $0x70] sm:$0xff]
        %v1218 = vld [vmem:[%s1202 + $0x78] sm:$0xff]
        %v1220 = vunpack.c.l.b16 %v1201
        %v1221 = vpack.c.b16 %v1220, %v1220
        %v1223 = vshrl.u32 %v1221, 16
        %v1225 = vshll.u32 %v1221, 16
        %v1227 = vrot.slane %v1225, 1
        %v1228 = vor.u32 %v1223, %v1227
        %v1246 = vunpack.c.l.b16 %v1203
        %v1247 = vunpack.c.h.b16 %v1203
        %v1248 = vunpack.c.l.b16 %v1204
        %v1249 = vunpack.c.h.b16 %v1204
        %v1250 = vunpack.c.l.b16 %v1205
        %v1251 = vunpack.c.h.b16 %v1205
        %v1252 = vunpack.c.l.b16 %v1206
        %v1253 = vunpack.c.h.b16 %v1206
        %v1254 = vunpack.c.l.b16 %v1207
        %v1255 = vunpack.c.h.b16 %v1207
        %v1256 = vunpack.c.l.b16 %v1208
        %v1257 = vunpack.c.h.b16 %v1208
        %v1258 = vunpack.c.l.b16 %v1209
        %v1259 = vunpack.c.h.b16 %v1209
        %v1260 = vunpack.c.l.b16 %v1210
        %v1261 = vunpack.c.h.b16 %v1210
        %v1262 = vunpack.c.l.b16 %v1211
        %v1263 = vunpack.c.h.b16 %v1211
        %v1264 = vunpack.c.l.b16 %v1212
        %v1265 = vunpack.c.h.b16 %v1212
        %v1266 = vunpack.c.l.b16 %v1213
        %v1267 = vunpack.c.h.b16 %v1213
        %v1268 = vunpack.c.l.b16 %v1214
        %v1269 = vunpack.c.h.b16 %v1214
        %v1270 = vunpack.c.l.b16 %v1215
        %v1271 = vunpack.c.h.b16 %v1215
        %v1272 = vunpack.c.l.b16 %v1216
        %v1273 = vunpack.c.h.b16 %v1216
        %v1274 = vunpack.c.l.b16 %v1217
        %v1275 = vunpack.c.h.b16 %v1217
        %v1276 = vunpack.c.l.b16 %v1218
        %v1277 = vunpack.c.h.b16 %v1218
        %v1278 = vpack.c.b16 %v1248, %v1246
        %v1279 = vpack.c.b16 %v1249, %v1247
        %v1280 = vpack.c.b16 %v1252, %v1250
        %v1281 = vpack.c.b16 %v1253, %v1251
        %v1282 = vpack.c.b16 %v1256, %v1254
        %v1283 = vpack.c.b16 %v1257, %v1255
        %v1284 = vpack.c.b16 %v1260, %v1258
        %v1285 = vpack.c.b16 %v1261, %v1259
        %v1286 = vpack.c.b16 %v1264, %v1262
        %v1287 = vpack.c.b16 %v1265, %v1263
        %v1288 = vpack.c.b16 %v1268, %v1266
        %v1289 = vpack.c.b16 %v1269, %v1267
        %v1290 = vpack.c.b16 %v1272, %v1270
        %v1291 = vpack.c.b16 %v1273, %v1271
        %v1292 = vpack.c.b16 %v1276, %v1274
        %v1293 = vpack.c.b16 %v1277, %v1275
        %1310 = vmatprep.subr.bf16.mxu0 %v1279
        %1311 = vmatpush1.bf16.msra.mxu0 %v1278
        %1312 = vmatprep.subr.bf16.mxu0 %v1281
        %1313 = vmatpush1.bf16.msra.mxu0 %v1280
        %1314 = vmatprep.subr.bf16.mxu0 %v1283
        %1315 = vmatpush1.bf16.msra.mxu0 %v1282
        %1316 = vmatprep.subr.bf16.mxu0 %v1285
        %1317 = vmatpush1.bf16.msra.mxu0 %v1284
        %1318 = vmatprep.subr.bf16.mxu0 %v1287
        %1319 = vmatpush1.bf16.msra.mxu0 %v1286
        %1320 = vmatprep.subr.bf16.mxu0 %v1289
        %1321 = vmatpush1.bf16.msra.mxu0 %v1288
        %1322 = vmatprep.subr.bf16.mxu0 %v1291
        %1323 = vmatpush1.bf16.msra.mxu0 %v1290
        %1324 = vmatprep.subr.bf16.mxu0 %v1293
        %1325 = vmatpush1.bf16.msra.mxu0 %v1292
        %1326 = vmatprep.subr.bf16.mxu0 0
        %1327 = vmatpush1.bf16.msra.mxu0 0
        %1328 = vmatprep.subr.bf16.mxu0 0
        %1329 = vmatpush1.bf16.msra.mxu0 0
        %1330 = vmatprep.subr.bf16.mxu0 0
        %1331 = vmatpush1.bf16.msra.mxu0 0
        %1332 = vmatprep.subr.bf16.mxu0 0
        %1333 = vmatpush1.bf16.msra.mxu0 0
        %1334 = vmatprep.subr.bf16.mxu0 0
        %1335 = vmatpush1.bf16.msra.mxu0 0
        %1336 = vmatprep.subr.bf16.mxu0 0
        %1337 = vmatpush1.bf16.msra.mxu0 0
        %1338 = vmatprep.subr.bf16.mxu0 0
        %1339 = vmatpush1.bf16.msra.mxu0 0
        %1340 = vmatprep.subr.bf16.mxu0 0
        %1341 = vmatpush1.bf16.msra.mxu0 0
        %1342 = vmatprep.mubr.bf16.mxu0 0
        %1343 = vmatmul.mubr.bf16.gmra.mrb[0].mxu0 %v1228
        %v1344 = vpop.f32.mrb[0].mxu0
        %v1345 = vadd.f32 0.0, %v1344
        %v1346 = vpop.f32.mrb[0].mxu0
        %v1347 = vadd.f32 0.0, %v1346
        %v1348 = vpop.f32.mrb[0].mxu0
        %v1349 = vpop.f32.mrb[0].mxu0
        %1350 = vdwg.mxu0
        %v1351 = vadd.f32 %v1199, %v1345
        %v1352 = vadd.f32 %v1200, %v1347
        %v1353 = vld [vmem:[%s1059] sm:$0x6]
        %s1354 = scalar_lea.vmem %s1, 1024
        %v1355 = vld [vmem:[%s1354] sm:$0xff]
        %v1356 = vld [vmem:[%s1354 + $0x8] sm:$0xff]
        %v1357 = vld [vmem:[%s1354 + $0x10] sm:$0xff]
        %v1358 = vld [vmem:[%s1354 + $0x18] sm:$0xff]
        %v1359 = vld [vmem:[%s1354 + $0x20] sm:$0xff]
        %v1360 = vld [vmem:[%s1354 + $0x28] sm:$0xff]
        %v1361 = vld [vmem:[%s1354 + $0x30] sm:$0xff]
        %v1362 = vld [vmem:[%s1354 + $0x38] sm:$0xff]
        %v1363 = vld [vmem:[%s1354 + $0x40] sm:$0xff]
        %v1364 = vld [vmem:[%s1354 + $0x48] sm:$0xff]
        %v1365 = vld [vmem:[%s1354 + $0x50] sm:$0xff]
        %v1366 = vld [vmem:[%s1354 + $0x58] sm:$0xff]
        %v1367 = vld [vmem:[%s1354 + $0x60] sm:$0xff]
        %v1368 = vld [vmem:[%s1354 + $0x68] sm:$0xff]
        %v1369 = vld [vmem:[%s1354 + $0x70] sm:$0xff]
        %v1370 = vld [vmem:[%s1354 + $0x78] sm:$0xff]
        %v1372 = vunpack.c.l.b16 %v1353
        %v1373 = vpack.c.b16 %v1372, %v1372
        %v1374 = vrot.slane %v1373, 1
        %v1392 = vunpack.c.l.b16 %v1355
        %v1393 = vunpack.c.h.b16 %v1355
        %v1394 = vunpack.c.l.b16 %v1356
        %v1395 = vunpack.c.h.b16 %v1356
        %v1396 = vunpack.c.l.b16 %v1357
        %v1397 = vunpack.c.h.b16 %v1357
        %v1398 = vunpack.c.l.b16 %v1358
        %v1399 = vunpack.c.h.b16 %v1358
        %v1400 = vunpack.c.l.b16 %v1359
        %v1401 = vunpack.c.h.b16 %v1359
        %v1402 = vunpack.c.l.b16 %v1360
        %v1403 = vunpack.c.h.b16 %v1360
        %v1404 = vunpack.c.l.b16 %v1361
        %v1405 = vunpack.c.h.b16 %v1361
        %v1406 = vunpack.c.l.b16 %v1362
        %v1407 = vunpack.c.h.b16 %v1362
        %v1408 = vunpack.c.l.b16 %v1363
        %v1409 = vunpack.c.h.b16 %v1363
        %v1410 = vunpack.c.l.b16 %v1364
        %v1411 = vunpack.c.h.b16 %v1364
        %v1412 = vunpack.c.l.b16 %v1365
        %v1413 = vunpack.c.h.b16 %v1365
        %v1414 = vunpack.c.l.b16 %v1366
        %v1415 = vunpack.c.h.b16 %v1366
        %v1416 = vunpack.c.l.b16 %v1367
        %v1417 = vunpack.c.h.b16 %v1367
        %v1418 = vunpack.c.l.b16 %v1368
        %v1419 = vunpack.c.h.b16 %v1368
        %v1420 = vunpack.c.l.b16 %v1369
        %v1421 = vunpack.c.h.b16 %v1369
        %v1422 = vunpack.c.l.b16 %v1370
        %v1423 = vunpack.c.h.b16 %v1370
        %v1424 = vpack.c.b16 %v1394, %v1392
        %v1425 = vpack.c.b16 %v1395, %v1393
        %v1426 = vpack.c.b16 %v1398, %v1396
        %v1427 = vpack.c.b16 %v1399, %v1397
        %v1428 = vpack.c.b16 %v1402, %v1400
        %v1429 = vpack.c.b16 %v1403, %v1401
        %v1430 = vpack.c.b16 %v1406, %v1404
        %v1431 = vpack.c.b16 %v1407, %v1405
        %v1432 = vpack.c.b16 %v1410, %v1408
        %v1433 = vpack.c.b16 %v1411, %v1409
        %v1434 = vpack.c.b16 %v1414, %v1412
        %v1435 = vpack.c.b16 %v1415, %v1413
        %v1436 = vpack.c.b16 %v1418, %v1416
        %v1437 = vpack.c.b16 %v1419, %v1417
        %v1438 = vpack.c.b16 %v1422, %v1420
        %v1439 = vpack.c.b16 %v1423, %v1421
        %1456 = vmatprep.subr.bf16.mxu0 %v1425
        %1457 = vmatpush1.bf16.msra.mxu0 %v1424
        %1458 = vmatprep.subr.bf16.mxu0 %v1427
        %1459 = vmatpush1.bf16.msra.mxu0 %v1426
        %1460 = vmatprep.subr.bf16.mxu0 %v1429
        %1461 = vmatpush1.bf16.msra.mxu0 %v1428
        %1462 = vmatprep.subr.bf16.mxu0 %v1431
        %1463 = vmatpush1.bf16.msra.mxu0 %v1430
        %1464 = vmatprep.subr.bf16.mxu0 %v1433
        %1465 = vmatpush1.bf16.msra.mxu0 %v1432
        %1466 = vmatprep.subr.bf16.mxu0 %v1435
        %1467 = vmatpush1.bf16.msra.mxu0 %v1434
        %1468 = vmatprep.subr.bf16.mxu0 %v1437
        %1469 = vmatpush1.bf16.msra.mxu0 %v1436
        %1470 = vmatprep.subr.bf16.mxu0 %v1439
        %1471 = vmatpush1.bf16.msra.mxu0 %v1438
        %1472 = vmatprep.subr.bf16.mxu0 0
        %1473 = vmatpush1.bf16.msra.mxu0 0
        %1474 = vmatprep.subr.bf16.mxu0 0
        %1475 = vmatpush1.bf16.msra.mxu0 0
        %1476 = vmatprep.subr.bf16.mxu0 0
        %1477 = vmatpush1.bf16.msra.mxu0 0
        %1478 = vmatprep.subr.bf16.mxu0 0
        %1479 = vmatpush1.bf16.msra.mxu0 0
        %1480 = vmatprep.subr.bf16.mxu0 0
        %1481 = vmatpush1.bf16.msra.mxu0 0
        %1482 = vmatprep.subr.bf16.mxu0 0
        %1483 = vmatpush1.bf16.msra.mxu0 0
        %1484 = vmatprep.subr.bf16.mxu0 0
        %1485 = vmatpush1.bf16.msra.mxu0 0
        %1486 = vmatprep.subr.bf16.mxu0 0
        %1487 = vmatpush1.bf16.msra.mxu0 0
        %1488 = vmatprep.mubr.bf16.mxu0 0
        %1489 = vmatmul.mubr.bf16.gmra.mrb[0].mxu0 %v1374
        %v1490 = vpop.f32.mrb[0].mxu0
        %v1491 = vadd.f32 0.0, %v1490
        %v1492 = vpop.f32.mrb[0].mxu0
        %v1493 = vadd.f32 0.0, %v1492
        %v1494 = vpop.f32.mrb[0].mxu0
        %v1495 = vpop.f32.mrb[0].mxu0
        %1496 = vdwg.mxu0
        %v1497 = vadd.f32 %v1351, %v1491
        %v1498 = vadd.f32 %v1352, %v1493
        %v1500 = vlaneseq
        %v1501 = vshrl.u32 %v1500, 7
        %v1502 = vsub.s32 0, %v1501
        %v1503 = vrot.slane %v172, %v1502
        %v1504 = vlaneseq
        %v1505 = vshrl.u32 %v1504, 7
        %v1506 = vsub.s32 1, %v1505
        %v1507 = vrot.slane %v172, %v1506
        %v1510 = vadd.f32 %v1497, %v1503
        %v1511 = vadd.f32 %v1498, %v1507
        %v1512 = vmax.f32 %v1510, 0.0
        %v1513 = vmax.f32 %v1511, 0.0
        %v1514 = vpack.c.bf16 %v1512, %v1512
        %v1515 = vpack.c.bf16 %v1513, %v1513
        %v1518 = vcombine.low %v1514, %v1515
        %v1520 = vunpack.c.l.s4 1983009808
        %v1521 = vunpack.c.0.s8 %v1520
        %v1522 = vlaneseq
        %v1523 = vshrl.u32 %v1522, 7
        %v1524 = vsub.s32 %v1521, %v1523
        %v1525 = vrot.slane %v1518, %v1524
        %s1527 = smul.u32 %s174, 2
        %s1528 = smul.addr %s1527, 2
        %s1529 = scalar_lea.vmem %s170, %s1528
        %1530 = vst [vmem:[%s1529] sm:$0xf] %v1525
      $region37: #{skelet_loss.16} parent=31 // loop_footer
        %s178 = sadd.s32 1, %s174
      $region38: #{skelet_loss.16} parent=31 // loop_footer_branch
        %173 = sbr.rel target = $region34
      $region39: #{skelet_loss.16} parent=31 // loop_exit
        _
      %p1531 = scmp.lt.s32.totalorder %s14, 3
      %s1532 = scalar_select %p1531, %s14, 3
      %s1533 = smul.addr %s1532, 8
      %s1534 = smul.addr %s1533, 2
      %s1535 = scalar_lea.vmem %s3, %s1534
      // Predicated region
      $region40: #{skelet_loss.16} parent=31 // pred_check
        %p1536 = pneg %p100
      $region41: #{skelet_loss.16} parent=31 // pred_check_branch
        %1538 = sbr.rel (%p1536) target = $region43
      $region42: #{skelet_loss.16} parent=31 // pred_region
        _
      $region43: #{skelet_loss.16} parent=31 // pred_fallthru
        _
    $region32: #{skelet_loss.16} parent=5 // pred_fallthru
      _
    %p1539 = scmp.le.s32.totalorder 2, %s9
    // Predicated region
    $region44: #{skelet_loss.16} parent=5 // pred_check
      %p1540 = pneg %p1539
    $region45: #{skelet_loss.16} parent=5 // pred_check_branch
      %1542 = sbr.rel (%p1540) target = $region47
    $region46: #{skelet_loss.16} parent=5 // pred_region
      %s1543 = ssub.s32 %s9, 2
      // Predicated region
      $region48: #{skelet_loss.16} parent=46 // pred_check
        %p1544 = pneg %p106
      $region49: #{skelet_loss.16} parent=46 // pred_check_branch
        %1546 = sbr.rel (%p1544) target = $region51
      $region50: #{skelet_loss.16} parent=46 // pred_region
        %p1547 = scmp.lt.s32.totalorder %s15, 3
        %s1548 = scalar_select %p1547, %s15, 3
        %s1549 = smul.addr %s1548, 8
        %s1550 = smul.addr %s1549, 2
        %s1551 = scalar_lea.vmem %s3, %s1550
      $region51: #{skelet_loss.16} parent=46 // pred_fallthru
        _
    $region47: #{skelet_loss.16} parent=5 // pred_fallthru
      _
  $region6: #{skelet_loss.16} parent=0 // loop_footer
    %s13 = sadd.s32 1, %s9
  $region7: #{skelet_loss.16} parent=0 // loop_footer_branch
    %8 = sbr.rel target = $region3
  $region8: #{skelet_loss.16} parent=0 // loop_exit
    _

// kernel: skelet_loss.20
$region0: #{skelet_loss.20}
  #allocation0 [shape = 'u32[]', space=smem, size = 0x4, offset = 0x4, fixed_abs, tag = 'smem constant byte address 0x4 - core index']
  #allocation1 [shape = 'u32[144,128]{1,0:T(1,128)}', space=vmem, size = 0x12000, scoped, tag = 'internal scratch']
  %s0 = inlined_call_operand.vmem [shape: bf16[8,512], index: 0, kind: input, shape index: {}]
  %s1 = inlined_call_operand.vmem [shape: bf16[8,512], index: 1, kind: input, shape index: {}]
  %s2 = inlined_call_operand.vmem [shape: f32[1,1,512], index: 2, kind: output, shape index: {}]
  %s3 = sld [smem:[#allocation0]]
  $region18: #{skelet_loss.20} parent=0
    _
  %s5 = ssub.s32 1, %s3
  %s6 = scalar_select 0, %s5, %s3
  // Predicated region
  $region2: #{skelet_loss.20} parent=0 // pred_check
    _
  $region3: #{skelet_loss.20} parent=0 // pred_check_branch
    %8 = sbr.rel (0) target = $region5
  $region4: #{skelet_loss.20} parent=0 // pred_region
    _
  $region5: #{skelet_loss.20} parent=0 // pred_fallthru
    _
  // Predicated region
  $region6: #{skelet_loss.20} parent=0 // pred_check
    _
  $region7: #{skelet_loss.20} parent=0 // pred_check_branch
    %10 = sbr.rel (0) target = $region9
  $region8: #{skelet_loss.20} parent=0 // pred_region
    _
  $region9: #{skelet_loss.20} parent=0 // pred_fallthru
    _
  %v11 = vld [vmem:[%s0] sm:$0xff]
  %v12 = vld [vmem:[%s0 + $0x8] sm:$0xff]
  %v13 = vunpack.c.l.bf16 %v11
  %v14 = vunpack.c.h.bf16 %v11
  %v15 = vunpack.c.l.bf16 %v12
  %v16 = vunpack.c.h.bf16 %v12
  %v17 = vld [vmem:[%s1] sm:$0xff]
  %v18 = vld [vmem:[%s1 + $0x8] sm:$0xff]
  %v19 = vunpack.c.l.bf16 %v17
  %v20 = vunpack.c.h.bf16 %v17
  %v21 = vunpack.c.l.bf16 %v18
  %v22 = vunpack.c.h.bf16 %v18
  %v23 = vsub.f32 %v13, %v19
  %v24 = vsub.f32 %v14, %v20
  %v25 = vsub.f32 %v15, %v21
  %v26 = vsub.f32 %v16, %v22
  %v27 = vmul.f32 %v23, %v23
  %v28 = vmul.f32 %v24, %v24
  %v29 = vmul.f32 %v25, %v25
  %v30 = vmul.f32 %v26, %v26
  %v31 = vrot.slane %v27, 4
  %v32 = vadd.f32 %v27, %v31
  %v33 = vrot.slane %v32, 2
  %v34 = vadd.f32 %v32, %v33
  %v35 = vrot.slane %v34, 1
  %v36 = vadd.f32 %v34, %v35
  %v37 = vrot.slane %v28, 4
  %v38 = vadd.f32 %v28, %v37
  %v39 = vrot.slane %v38, 2
  %v40 = vadd.f32 %v38, %v39
  %v41 = vrot.slane %v40, 1
  %v42 = vadd.f32 %v40, %v41
  %v43 = vrot.slane %v29, 4
  %v44 = vadd.f32 %v29, %v43
  %v45 = vrot.slane %v44, 2
  %v46 = vadd.f32 %v44, %v45
  %v47 = vrot.slane %v46, 1
  %v48 = vadd.f32 %v46, %v47
  %v49 = vrot.slane %v30, 4
  %v50 = vadd.f32 %v30, %v49
  %v51 = vrot.slane %v50, 2
  %v52 = vadd.f32 %v50, %v51
  %v53 = vrot.slane %v52, 1
  %v54 = vadd.f32 %v52, %v53
  %v59 = vcombine.low %v36, %v42
  %v60 = vcombine.low %v48, %v54
  %v62 = vunpack.c.l.s4 1966171168
  %v63 = vunpack.c.0.s8 %v62
  %v64 = vlaneseq
  %v65 = vshrl.u32 %v64, 7
  %v66 = vsub.s32 %v63, %v65
  %v67 = vrot.slane %v59, %v66
  %v69 = vunpack.c.l.s4 1966171168
  %v70 = vunpack.c.0.s8 %v69
  %v71 = vlaneseq
  %v72 = vshrl.u32 %v71, 7
  %v73 = vsub.s32 %v70, %v72
  %v74 = vrot.slane %v60, %v73
  %v75 = vcombine.low %v67, %v74
  %v77 = vunpack.c.l.s4 1966171168
  %v78 = vunpack.c.0.s8 %v77
  %v79 = vlaneseq
  %v80 = vshrl.u32 %v79, 7
  %v81 = vsub.s32 %v78, %v80
  %v82 = vrot.slane %v75, %v81
  %v84 = vlaneseq
  %vm85 = vcmp.ge.s32.totalorder %v84, 0
  %vm86 = vcmp.lt.s32.totalorder %v84, 512
  %vm87 = vmand %vm85, %vm86
  %88 = vst.msk [vmem:[%s2] sm:$0xf] %vm87, %v82
  // Predicated region
  $region10: #{skelet_loss.20} parent=0 // pred_check
    _
  $region11: #{skelet_loss.20} parent=0 // pred_check_branch
    %90 = sbr.rel (0) target = $region13
  $region12: #{skelet_loss.20} parent=0 // pred_region
    _
  $region13: #{skelet_loss.20} parent=0 // pred_fallthru
    _
  // Predicated region
  $region14: #{skelet_loss.20} parent=0 // pred_check
    _
  $region15: #{skelet_loss.20} parent=0 // pred_check_branch
    %92 = sbr.rel (0) target = $region17
  $region16: #{skelet_loss.20} parent=0 // pred_region
    _
  $region17: #{skelet_loss.20} parent=0 // pred_fallthru
    _

// kernel: skelet_loss.21
$region0: #{skelet_loss.21}
  #allocation0 [shape = 'u32[]', space=smem, size = 0x4, offset = 0x4, fixed_abs, tag = 'smem constant byte address 0x4 - core index']
  #allocation1 [shape = 'u32[144,128]{1,0:T(1,128)}', space=vmem, size = 0x12000, scoped, tag = 'internal scratch']
  %s0 = inlined_call_operand.vmem [shape: bf16[4,512], index: 0, kind: input, shape index: {}]
  %s1 = inlined_call_operand.vmem [shape: bf16[4,512], index: 1, kind: input, shape index: {}]
  %s2 = inlined_call_operand.vmem [shape: f32[1,1,512], index: 2, kind: output, shape index: {}]
  %s3 = sld [smem:[#allocation0]]
  $region18: #{skelet_loss.21} parent=0
    _
  %s5 = ssub.s32 1, %s3
  %s6 = scalar_select 0, %s5, %s3
  // Predicated region
  $region2: #{skelet_loss.21} parent=0 // pred_check
    _
  $region3: #{skelet_loss.21} parent=0 // pred_check_branch
    %8 = sbr.rel (0) target = $region5
  $region4: #{skelet_loss.21} parent=0 // pred_region
    _
  $region5: #{skelet_loss.21} parent=0 // pred_fallthru
    _
  // Predicated region
  $region6: #{skelet_loss.21} parent=0 // pred_check
    _
  $region7: #{skelet_loss.21} parent=0 // pred_check_branch
    %10 = sbr.rel (0) target = $region9
  $region8: #{skelet_loss.21} parent=0 // pred_region
    _
  $region9: #{skelet_loss.21} parent=0 // pred_fallthru
    _
  %v11 = vld [vmem:[%s0] sm:$0xff]
  %v12 = vunpack.c.l.bf16 %v11
  %v13 = vunpack.c.h.bf16 %v11
  %v14 = vld [vmem:[%s1] sm:$0xff]
  %v15 = vunpack.c.l.bf16 %v14
  %v16 = vunpack.c.h.bf16 %v14
  %v17 = vsub.f32 %v12, %v15
  %v18 = vsub.f32 %v13, %v16
  %v19 = vmul.f32 %v17, %v17
  %v20 = vmul.f32 %v18, %v18
  %v23 = vcombine.high %v19, %v19
  %v24 = vcombine.high %v20, %v20
  %vm27 = vcmask 1043456
  %v28 = vsel %vm27, %v19, 0.0
  %v29 = vrot.slane %v28, 4
  %v30 = vadd.f32 %v28, %v29
  %v31 = vrot.slane %v30, 2
  %v32 = vadd.f32 %v30, %v31
  %v33 = vrot.slane %v32, 1
  %v34 = vadd.f32 %v32, %v33
  %v35 = vsel %vm27, %v23, 0.0
  %v36 = vrot.slane %v35, 4
  %v37 = vadd.f32 %v35, %v36
  %v38 = vrot.slane %v37, 2
  %v39 = vadd.f32 %v37, %v38
  %v40 = vrot.slane %v39, 1
  %v41 = vadd.f32 %v39, %v40
  %v42 = vsel %vm27, %v20, 0.0
  %v43 = vrot.slane %v42, 4
  %v44 = vadd.f32 %v42, %v43
  %v45 = vrot.slane %v44, 2
  %v46 = vadd.f32 %v44, %v45
  %v47 = vrot.slane %v46, 1
  %v48 = vadd.f32 %v46, %v47
  %v49 = vsel %vm27, %v24, 0.0
  %v50 = vrot.slane %v49, 4
  %v51 = vadd.f32 %v49, %v50
  %v52 = vrot.slane %v51, 2
  %v53 = vadd.f32 %v51, %v52
  %v54 = vrot.slane %v53, 1
  %v55 = vadd.f32 %v53, %v54
  %v60 = vcombine.low %v34, %v41
  %v61 = vcombine.low %v48, %v55
  %v63 = vunpack.c.l.s4 1966171168
  %v64 = vunpack.c.0.s8 %v63
  %v65 = vlaneseq
  %v66 = vshrl.u32 %v65, 7
  %v67 = vsub.s32 %v64, %v66
  %v68 = vrot.slane %v60, %v67
  %v70 = vunpack.c.l.s4 1966171168
  %v71 = vunpack.c.0.s8 %v70
  %v72 = vlaneseq
  %v73 = vshrl.u32 %v72, 7
  %v74 = vsub.s32 %v71, %v73
  %v75 = vrot.slane %v61, %v74
  %v76 = vcombine.low %v68, %v75
  %v78 = vunpack.c.l.s4 1966171168
  %v79 = vunpack.c.0.s8 %v78
  %v80 = vlaneseq
  %v81 = vshrl.u32 %v80, 7
  %v82 = vsub.s32 %v79, %v81
  %v83 = vrot.slane %v76, %v82
  %v85 = vlaneseq
  %vm86 = vcmp.ge.s32.totalorder %v85, 0
  %vm87 = vcmp.lt.s32.totalorder %v85, 512
  %vm88 = vmand %vm86, %vm87
  %89 = vst.msk [vmem:[%s2] sm:$0xf] %vm88, %v83
  // Predicated region
  $region10: #{skelet_loss.21} parent=0 // pred_check
    _
  $region11: #{skelet_loss.21} parent=0 // pred_check_branch
    %91 = sbr.rel (0) target = $region13
  $region12: #{skelet_loss.21} parent=0 // pred_region
    _
  $region13: #{skelet_loss.21} parent=0 // pred_fallthru
    _
  // Predicated region
  $region14: #{skelet_loss.21} parent=0 // pred_check
    _
  $region15: #{skelet_loss.21} parent=0 // pred_check_branch
    %93 = sbr.rel (0) target = $region17
  $region16: #{skelet_loss.21} parent=0 // pred_region
    _
  $region17: #{skelet_loss.21} parent=0 // pred_fallthru
    _

// kernel: skelet_loss.17
$region0: #{skelet_loss.17}
  #allocation0 [shape = 'u32[]', space=smem, size = 0x4, offset = 0x4, fixed_abs, tag = 'smem constant byte address 0x4 - core index']
  #allocation1 [shape = 'u32[144,128]{1,0:T(1,128)}', space=vmem, size = 0x12000, scoped, tag = 'internal scratch']
  %s0 = inlined_call_operand.vmem [shape: bf16[4,6,6,256], index: 0, kind: input, shape index: {}]
  %s1 = inlined_call_operand.vmem [shape: bf16[9,256,256], index: 1, kind: input, shape index: {}]
  %s2 = inlined_call_operand.vmem [shape: f32[1,256], index: 2, kind: input, shape index: {}]
  %s3 = inlined_call_operand.vmem [shape: bf16[4,4,4,256], index: 3, kind: output, shape index: {}]
  %s4 = sld [smem:[#allocation0]]
  $region52: #{skelet_loss.17} parent=0
    _
  %s6 = ssub.s32 1, %s4
  %s7 = scalar_select 0, %s6, %s4
  loop: start=0, step=1, limit=6
  $region2: #{skelet_loss.17} parent=0 // loop_pre_header
    _
  $region3: #{skelet_loss.17} parent=0 // loop_header
    %s9 = sphi 0, %s13
    %p10 = scmp.ge.s32.totalorder %s9, 6
    %s19 = sphi 0, %s21
    %s22 = sphi 0, %s19
    %s23 = sphi 0, %s22
    %s39 = sphi 0, %s23
    %s43 = sphi 0, %s43
    %s45 = sphi 0, %s43
    %s46 = sphi 0, %s45
    %s60 = sphi 0, %s46
    %s64 = sphi 0, %s64
    %s66 = sphi 0, %s64
    %s67 = sphi 0, %s66
    %s81 = sphi 0, %s67
    %s87 = sphi 0, %s89
    %s90 = sphi 0, %s87
    %s91 = sphi 0, %s90
    %s107 = sphi 0, %s91
  $region4: #{skelet_loss.17} parent=0 // loop_header_branch
    %12 = sbr.rel (%p10) target = $region8
  $region5: #{skelet_loss.17} parent=0 // loop_body
    %s14 = ssub.s32 %s9, 1
    %s15 = ssub.s32 %s9, 2
    %s16 = sadd.s32 %s9, 1
    %s17 = ssub.s32 %s9, %s16
    %p18 = scmp.eq.s32.totalorder %s17, 0
    %s20 = sadd.s32 %s19, 1
    %s21 = scalar_select %p18, %s19, %s20
    %p24 = pneg %p18
    %p25 = scmp.eq.s32.totalorder %s9, 3
    %p26 = por %p24, %p25
    %p27 = scmp.ne.s32.totalorder %s19, %s22
    %p28 = scmp.eq.s32.totalorder %s9, 0
    %p29 = por %p27, %p28
    %p30 = scmp.ne.s32.totalorder %s19, %s22
    %p31 = scmp.eq.s32.totalorder %s14, 3
    %p32 = por %p30, %p31
    %p33 = scmp.ne.s32.totalorder %s22, %s23
    %p34 = scmp.eq.s32.totalorder %s14, 0
    %p35 = por %p33, %p34
    %p36 = scmp.ne.s32.totalorder %s22, %s23
    %p37 = scmp.eq.s32.totalorder %s15, 3
    %p38 = por %p36, %p37
    %p40 = scmp.ne.s32.totalorder %s23, %s39
    %p41 = scmp.eq.s32.totalorder %s15, 0
    %p42 = por %p40, %p41
    %s44 = sadd.s32 %s43, 1
    %p47 = scmp.eq.s32.totalorder %s9, 3
    %p48 = scmp.ne.s32.totalorder %s43, %s45
    %p49 = scmp.eq.s32.totalorder %s9, 0
    %p50 = por %p48, %p49
    %p51 = scmp.ne.s32.totalorder %s43, %s45
    %p52 = scmp.eq.s32.totalorder %s14, 3
    %p53 = por %p51, %p52
    %p54 = scmp.ne.s32.totalorder %s45, %s46
    %p55 = scmp.eq.s32.totalorder %s14, 0
    %p56 = por %p54, %p55
    %p57 = scmp.ne.s32.totalorder %s45, %s46
    %p58 = scmp.eq.s32.totalorder %s15, 3
    %p59 = por %p57, %p58
    %p61 = scmp.ne.s32.totalorder %s46, %s60
    %p62 = scmp.eq.s32.totalorder %s15, 0
    %p63 = por %p61, %p62
    %s65 = sadd.s32 %s64, 1
    %p68 = scmp.eq.s32.totalorder %s9, 3
    %p69 = scmp.ne.s32.totalorder %s64, %s66
    %p70 = scmp.eq.s32.totalorder %s9, 0
    %p71 = por %p69, %p70
    %p72 = scmp.ne.s32.totalorder %s64, %s66
    %p73 = scmp.eq.s32.totalorder %s14, 3
    %p74 = por %p72, %p73
    %p75 = scmp.ne.s32.totalorder %s66, %s67
    %p76 = scmp.eq.s32.totalorder %s14, 0
    %p77 = por %p75, %p76
    %p78 = scmp.ne.s32.totalorder %s66, %s67
    %p79 = scmp.eq.s32.totalorder %s15, 3
    %p80 = por %p78, %p79
    %p82 = scmp.ne.s32.totalorder %s67, %s81
    %p83 = scmp.eq.s32.totalorder %s15, 0
    %p84 = por %p82, %p83
    %s85 = ssub.s32 %s9, %s16
    %p86 = scmp.eq.s32.totalorder %s85, 0
    %s88 = sadd.s32 %s87, 1
    %s89 = scalar_select %p86, %s87, %s88
    %p92 = pneg %p86
    %p93 = scmp.eq.s32.totalorder %s9, 3
    %p94 = por %p92, %p93
    %p95 = scmp.ne.s32.totalorder %s87, %s90
    %p96 = scmp.eq.s32.totalorder %s9, 0
    %p97 = por %p95, %p96
    %p98 = scmp.ne.s32.totalorder %s87, %s90
    %p99 = scmp.eq.s32.totalorder %s14, 3
    %p100 = por %p98, %p99
    %p101 = scmp.ne.s32.totalorder %s90, %s91
    %p102 = scmp.eq.s32.totalorder %s14, 0
    %p103 = por %p101, %p102
    %p104 = scmp.ne.s32.totalorder %s90, %s91
    %p105 = scmp.eq.s32.totalorder %s15, 3
    %p106 = por %p104, %p105
    %p108 = scmp.ne.s32.totalorder %s91, %s107
    %p109 = scmp.eq.s32.totalorder %s15, 0
    %p110 = por %p108, %p109
    %p111 = scmp.le.s32.totalorder 1, %s9
    %p112 = scmp.lt.s32.totalorder %s9, 5
    %p113 = pnand %p111, %p112
    %p114 = pneg %p113
    // Predicated region
    $region9: #{skelet_loss.17} parent=5 // pred_check
      _
    $region10: #{skelet_loss.17} parent=5 // pred_check_branch
      %116 = sbr.rel (%p113) target = $region12
    $region11: #{skelet_loss.17} parent=5 // pred_region
      %s117 = ssub.s32 %s9, 1
      // Predicated region
      $region13: #{skelet_loss.17} parent=11 // pred_check
        %p118 = pneg %p56
      $region14: #{skelet_loss.17} parent=11 // pred_check_branch
        %120 = sbr.rel (%p118) target = $region16
      $region15: #{skelet_loss.17} parent=11 // pred_region
        _
      $region16: #{skelet_loss.17} parent=11 // pred_fallthru
        _
      // Predicated region
      $region17: #{skelet_loss.17} parent=11 // pred_check
        %p121 = pneg %p77
      $region18: #{skelet_loss.17} parent=11 // pred_check_branch
        %123 = sbr.rel (%p121) target = $region20
      $region19: #{skelet_loss.17} parent=11 // pred_region
        _
      $region20: #{skelet_loss.17} parent=11 // pred_fallthru
        _
    $region12: #{skelet_loss.17} parent=5 // pred_fallthru
      _
    %p124 = scmp.lt.s32.totalorder %s9, 4
    // Predicated region
    $region21: #{skelet_loss.17} parent=5 // pred_check
      %p125 = pneg %p124
    $region22: #{skelet_loss.17} parent=5 // pred_check_branch
      %127 = sbr.rel (%p125) target = $region24
    $region23: #{skelet_loss.17} parent=5 // pred_region
      // Predicated region
      $region25: #{skelet_loss.17} parent=23 // pred_check
        %p128 = pneg %p29
      $region26: #{skelet_loss.17} parent=23 // pred_check_branch
        %130 = sbr.rel (%p128) target = $region28
      $region27: #{skelet_loss.17} parent=23 // pred_region
        %p131 = scmp.lt.s32.totalorder %s9, 3
        %s132 = scalar_select %p131, %s9, 3
        %s133 = smul.addr %s132, 12
        %s134 = smul.addr %s133, 4
        %s135 = scalar_lea.vmem %s0, %s134
      $region28: #{skelet_loss.17} parent=23 // pred_fallthru
        _
    $region24: #{skelet_loss.17} parent=5 // pred_fallthru
      _
    %p136 = scmp.le.s32.totalorder 1, %s9
    %p137 = scmp.lt.s32.totalorder %s9, 5
    %p138 = pnand %p136, %p137
    %p139 = pneg %p138
    // Predicated region
    $region29: #{skelet_loss.17} parent=5 // pred_check
      _
    $region30: #{skelet_loss.17} parent=5 // pred_check_branch
      %141 = sbr.rel (%p138) target = $region32
    $region31: #{skelet_loss.17} parent=5 // pred_region
      %s142 = ssub.s32 %s9, 1
      %p143 = scmp.lt.s32.totalorder %s14, 3
      %s144 = scalar_select %p143, %s14, 3
      %s145 = smul.addr %s144, 12
      %s146 = smul.addr %s145, 4
      %s147 = scalar_lea.vmem %s0, %s146
      %p148 = pneg %p35
      %p149 = pneg %p32
      %p150 = pneg %p56
      %p151 = pneg %p53
      %p152 = pneg %p77
      %p153 = pneg %p74
      %p154 = pneg %p103
      %p155 = pneg %p100
      %p156 = scmp.lt.s32.totalorder %s14, 3
      %s157 = scalar_select %p156, %s14, 3
      %s158 = smul.addr %s157, 8
      %s159 = smul.addr %s158, 2
      %s160 = scalar_lea.vmem %s3, %s159
      %p161 = scmp.lt.s32.totalorder %s14, 3
      %s162 = scalar_select %p161, %s14, 3
      %s163 = smul.addr %s162, 12
      %s164 = smul.addr %s163, 4
      %s165 = scalar_lea.vmem %s0, %s164
      %p166 = scmp.lt.s32.totalorder %s14, 3
      %s167 = scalar_select %p166, %s14, 3
      %s168 = smul.addr %s167, 8
      %s169 = smul.addr %s168, 2
      %s170 = scalar_lea.vmem %s3, %s169
      %v171 = vld [vmem:[%s2] sm:$0x3]
      loop: start=0, step=1, limit=4
      $region33: #{skelet_loss.17} parent=31 // loop_pre_header
        _
      $region34: #{skelet_loss.17} parent=31 // loop_header
        %s173 = sphi 0, %s177
        %p174 = scmp.ge.s32.totalorder %s173, 4
      $region35: #{skelet_loss.17} parent=31 // loop_header_branch
        %176 = sbr.rel (%p174) target = $region39
      $region36: #{skelet_loss.17} parent=31 // loop_body
        %s178 = smul.u32 %s173, 2
        %s179 = smul.addr %s178, 4
        %s180 = scalar_lea.vmem %s165, %s179
        %v181 = vld [vmem:[%s180] sm:$0x33]
        %v182 = vld [vmem:[%s1] sm:$0xff]
        %v183 = vld [vmem:[%s1 + $0x8] sm:$0xff]
        %v184 = vld [vmem:[%s1 + $0x10] sm:$0xff]
        %v185 = vld [vmem:[%s1 + $0x18] sm:$0xff]
        %v186 = vld [vmem:[%s1 + $0x20] sm:$0xff]
        %v187 = vld [vmem:[%s1 + $0x28] sm:$0xff]
        %v188 = vld [vmem:[%s1 + $0x30] sm:$0xff]
        %v189 = vld [vmem:[%s1 + $0x38] sm:$0xff]
        %v190 = vld [vmem:[%s1 + $0x40] sm:$0xff]
        %v191 = vld [vmem:[%s1 + $0x48] sm:$0xff]
        %v192 = vld [vmem:[%s1 + $0x50] sm:$0xff]
        %v193 = vld [vmem:[%s1 + $0x58] sm:$0xff]
        %v194 = vld [vmem:[%s1 + $0x60] sm:$0xff]
        %v195 = vld [vmem:[%s1 + $0x68] sm:$0xff]
        %v196 = vld [vmem:[%s1 + $0x70] sm:$0xff]
        %v197 = vld [vmem:[%s1 + $0x78] sm:$0xff]
        %v198 = vld [vmem:[%s1 + $0x80] sm:$0xff]
        %v199 = vld [vmem:[%s1 + $0x88] sm:$0xff]
        %v200 = vld [vmem:[%s1 + $0x90] sm:$0xff]
        %v201 = vld [vmem:[%s1 + $0x98] sm:$0xff]
        %v202 = vld [vmem:[%s1 + $0xa0] sm:$0xff]
        %v203 = vld [vmem:[%s1 + $0xa8] sm:$0xff]
        %v204 = vld [vmem:[%s1 + $0xb0] sm:$0xff]
        %v205 = vld [vmem:[%s1 + $0xb8] sm:$0xff]
        %v206 = vld [vmem:[%s1 + $0xc0] sm:$0xff]
        %v207 = vld [vmem:[%s1 + $0xc8] sm:$0xff]
        %v208 = vld [vmem:[%s1 + $0xd0] sm:$0xff]
        %v209 = vld [vmem:[%s1 + $0xd8] sm:$0xff]
        %v210 = vld [vmem:[%s1 + $0xe0] sm:$0xff]
        %v211 = vld [vmem:[%s1 + $0xe8] sm:$0xff]
        %v212 = vld [vmem:[%s1 + $0xf0] sm:$0xff]
        %v213 = vld [vmem:[%s1 + $0xf8] sm:$0xff]
        %v214 = vld [vmem:[%s180] sm:$0x77]
        %s215 = scalar_lea.vmem %s1, 256
        %v216 = vld [vmem:[%s215] sm:$0xff]
        %v217 = vld [vmem:[%s215 + $0x8] sm:$0xff]
        %v218 = vld [vmem:[%s215 + $0x10] sm:$0xff]
        %v219 = vld [vmem:[%s215 + $0x18] sm:$0xff]
        %v220 = vld [vmem:[%s215 + $0x20] sm:$0xff]
        %v221 = vld [vmem:[%s215 + $0x28] sm:$0xff]
        %v222 = vld [vmem:[%s215 + $0x30] sm:$0xff]
        %v223 = vld [vmem:[%s215 + $0x38] sm:$0xff]
        %v224 = vld [vmem:[%s215 + $0x40] sm:$0xff]
        %v225 = vld [vmem:[%s215 + $0x48] sm:$0xff]
        %v226 = vld [vmem:[%s215 + $0x50] sm:$0xff]
        %v227 = vld [vmem:[%s215 + $0x58] sm:$0xff]
        %v228 = vld [vmem:[%s215 + $0x60] sm:$0xff]
        %v229 = vld [vmem:[%s215 + $0x68] sm:$0xff]
        %v230 = vld [vmem:[%s215 + $0x70] sm:$0xff]
        %v231 = vld [vmem:[%s215 + $0x78] sm:$0xff]
        %v232 = vld [vmem:[%s215 + $0x80] sm:$0xff]
        %v233 = vld [vmem:[%s215 + $0x88] sm:$0xff]
        %v234 = vld [vmem:[%s215 + $0x90] sm:$0xff]
        %v235 = vld [vmem:[%s215 + $0x98] sm:$0xff]
        %v236 = vld [vmem:[%s215 + $0xa0] sm:$0xff]
        %v237 = vld [vmem:[%s215 + $0xa8] sm:$0xff]
        %v238 = vld [vmem:[%s215 + $0xb0] sm:$0xff]
        %v239 = vld [vmem:[%s215 + $0xb8] sm:$0xff]
        %v240 = vld [vmem:[%s215 + $0xc0] sm:$0xff]
        %v241 = vld [vmem:[%s215 + $0xc8] sm:$0xff]
        %v242 = vld [vmem:[%s215 + $0xd0] sm:$0xff]
        %v243 = vld [vmem:[%s215 + $0xd8] sm:$0xff]
        %v244 = vld [vmem:[%s215 + $0xe0] sm:$0xff]
        %v245 = vld [vmem:[%s215 + $0xe8] sm:$0xff]
        %v246 = vld [vmem:[%s215 + $0xf0] sm:$0xff]
        %v247 = vld [vmem:[%s215 + $0xf8] sm:$0xff]
        %v249 = vunpack.c.l.b16 %v214
        %v250 = vunpack.c.h.b16 %v214
        %v251 = vpack.c.b16 %v249, %v249
        %v252 = vpack.c.b16 %v250, %v250
        %v254 = vshrl.u32 %v251, 16
        %v256 = vshll.u32 %v251, 16
        %v258 = vrot.slane %v256, 1
        %v259 = vor.u32 %v254, %v258
        %v261 = vshrl.u32 %v252, 16
        %v263 = vshll.u32 %v252, 16
        %v265 = vrot.slane %v263, 1
        %v266 = vor.u32 %v261, %v265
        %v301 = vunpack.c.l.b16 %v216
        %v302 = vunpack.c.h.b16 %v216
        %v303 = vunpack.c.l.b16 %v217
        %v304 = vunpack.c.h.b16 %v217
        %v305 = vunpack.c.l.b16 %v218
        %v306 = vunpack.c.h.b16 %v218
        %v307 = vunpack.c.l.b16 %v219
        %v308 = vunpack.c.h.b16 %v219
        %v309 = vunpack.c.l.b16 %v220
        %v310 = vunpack.c.h.b16 %v220
        %v311 = vunpack.c.l.b16 %v221
        %v312 = vunpack.c.h.b16 %v221
        %v313 = vunpack.c.l.b16 %v222
        %v314 = vunpack.c.h.b16 %v222
        %v315 = vunpack.c.l.b16 %v223
        %v316 = vunpack.c.h.b16 %v223
        %v317 = vunpack.c.l.b16 %v224
        %v318 = vunpack.c.h.b16 %v224
        %v319 = vunpack.c.l.b16 %v225
        %v320 = vunpack.c.h.b16 %v225
        %v321 = vunpack.c.l.b16 %v226
        %v322 = vunpack.c.h.b16 %v226
        %v323 = vunpack.c.l.b16 %v227
        %v324 = vunpack.c.h.b16 %v227
        %v325 = vunpack.c.l.b16 %v228
        %v326 = vunpack.c.h.b16 %v228
        %v327 = vunpack.c.l.b16 %v229
        %v328 = vunpack.c.h.b16 %v229
        %v329 = vunpack.c.l.b16 %v230
        %v330 = vunpack.c.h.b16 %v230
        %v331 = vunpack.c.l.b16 %v231
        %v332 = vunpack.c.h.b16 %v231
        %v333 = vunpack.c.l.b16 %v232
        %v334 = vunpack.c.h.b16 %v232
        %v335 = vunpack.c.l.b16 %v233
        %v336 = vunpack.c.h.b16 %v233
        %v337 = vunpack.c.l.b16 %v234
        %v338 = vunpack.c.h.b16 %v234
        %v339 = vunpack.c.l.b16 %v235
        %v340 = vunpack.c.h.b16 %v235
        %v341 = vunpack.c.l.b16 %v236
        %v342 = vunpack.c.h.b16 %v236
        %v343 = vunpack.c.l.b16 %v237
        %v344 = vunpack.c.h.b16 %v237
        %v345 = vunpack.c.l.b16 %v238
        %v346 = vunpack.c.h.b16 %v238
        %v347 = vunpack.c.l.b16 %v239
        %v348 = vunpack.c.h.b16 %v239
        %v349 = vunpack.c.l.b16 %v240
        %v350 = vunpack.c.h.b16 %v240
        %v351 = vunpack.c.l.b16 %v241
        %v352 = vunpack.c.h.b16 %v241
        %v353 = vunpack.c.l.b16 %v242
        %v354 = vunpack.c.h.b16 %v242
        %v355 = vunpack.c.l.b16 %v243
        %v356 = vunpack.c.h.b16 %v243
        %v357 = vunpack.c.l.b16 %v244
        %v358 = vunpack.c.h.b16 %v244
        %v359 = vunpack.c.l.b16 %v245
        %v360 = vunpack.c.h.b16 %v245
        %v361 = vunpack.c.l.b16 %v246
        %v362 = vunpack.c.h.b16 %v246
        %v363 = vunpack.c.l.b16 %v247
        %v364 = vunpack.c.h.b16 %v247
        %v365 = vpack.c.b16 %v303, %v301
        %v366 = vpack.c.b16 %v304, %v302
        %v367 = vpack.c.b16 %v307, %v305
        %v368 = vpack.c.b16 %v308, %v306
        %v369 = vpack.c.b16 %v311, %v309
        %v370 = vpack.c.b16 %v312, %v310
        %v371 = vpack.c.b16 %v315, %v313
        %v372 = vpack.c.b16 %v316, %v314
        %v373 = vpack.c.b16 %v319, %v317
        %v374 = vpack.c.b16 %v320, %v318
        %v375 = vpack.c.b16 %v323, %v321
        %v376 = vpack.c.b16 %v324, %v322
        %v377 = vpack.c.b16 %v327, %v325
        %v378 = vpack.c.b16 %v328, %v326
        %v379 = vpack.c.b16 %v331, %v329
        %v380 = vpack.c.b16 %v332, %v330
        %v381 = vpack.c.b16 %v335, %v333
        %v382 = vpack.c.b16 %v336, %v334
        %v383 = vpack.c.b16 %v339, %v337
        %v384 = vpack.c.b16 %v340, %v338
        %v385 = vpack.c.b16 %v343, %v341
        %v386 = vpack.c.b16 %v344, %v342
        %v387 = vpack.c.b16 %v347, %v345
        %v388 = vpack.c.b16 %v348, %v346
        %v389 = vpack.c.b16 %v351, %v349
        %v390 = vpack.c.b16 %v352, %v350
        %v391 = vpack.c.b16 %v355, %v353
        %v392 = vpack.c.b16 %v356, %v354
        %v393 = vpack.c.b16 %v359, %v357
        %v394 = vpack.c.b16 %v360, %v358
        %v395 = vpack.c.b16 %v363, %v361
        %v396 = vpack.c.b16 %v364, %v362
        %429 = vmatprep.subr.bf16.mxu0 %v366
        %430 = vmatpush1.bf16.msra.mxu0 %v365
        %431 = vmatprep.subr.bf16.mxu0 %v368
        %432 = vmatpush1.bf16.msra.mxu0 %v367
        %433 = vmatprep.subr.bf16.mxu0 %v370
        %434 = vmatpush1.bf16.msra.mxu0 %v369
        %435 = vmatprep.subr.bf16.mxu0 %v372
        %436 = vmatpush1.bf16.msra.mxu0 %v371
        %437 = vmatprep.subr.bf16.mxu0 %v374
        %438 = vmatpush1.bf16.msra.mxu0 %v373
        %439 = vmatprep.subr.bf16.mxu0 %v376
        %440 = vmatpush1.bf16.msra.mxu0 %v375
        %441 = vmatprep.subr.bf16.mxu0 %v378
        %442 = vmatpush1.bf16.msra.mxu0 %v377
        %443 = vmatprep.subr.bf16.mxu0 %v380
        %444 = vmatpush1.bf16.msra.mxu0 %v379
        %445 = vmatprep.subr.bf16.mxu0 %v382
        %446 = vmatpush1.bf16.msra.mxu0 %v381
        %447 = vmatprep.subr.bf16.mxu0 %v384
        %448 = vmatpush1.bf16.msra.mxu0 %v383
        %449 = vmatprep.subr.bf16.mxu0 %v386
        %450 = vmatpush1.bf16.msra.mxu0 %v385
        %451 = vmatprep.subr.bf16.mxu0 %v388
        %452 = vmatpush1.bf16.msra.mxu0 %v387
        %453 = vmatprep.subr.bf16.mxu0 %v390
        %454 = vmatpush1.bf16.msra.mxu0 %v389
        %455 = vmatprep.subr.bf16.mxu0 %v392
        %456 = vmatpush1.bf16.msra.mxu0 %v391
        %457 = vmatprep.subr.bf16.mxu0 %v394
        %458 = vmatpush1.bf16.msra.mxu0 %v393
        %459 = vmatprep.subr.bf16.mxu0 %v396
        %460 = vmatpush1.bf16.msra.mxu0 %v395
        %461 = vmatprep.mubr.bf16.mxu0 %v266
        %462 = vmatmul.mubr.bf16.gmra.mrb[0].mxu0 %v259
        %v463 = vpop.f32.mrb[0].mxu0
        %v464 = vadd.f32 0.0, %v463
        %v465 = vpop.f32.mrb[0].mxu0
        %v466 = vadd.f32 0.0, %v465
        %v467 = vpop.f32.mrb[0].mxu0
        %v468 = vpop.f32.mrb[0].mxu0
        %469 = vdwg.mxu0
        %v471 = vunpack.c.l.b16 %v181
        %v472 = vunpack.c.h.b16 %v181
        %v473 = vpack.c.b16 %v471, %v471
        %v474 = vpack.c.b16 %v472, %v472
        %v509 = vunpack.c.l.b16 %v182
        %v510 = vunpack.c.h.b16 %v182
        %v511 = vunpack.c.l.b16 %v183
        %v512 = vunpack.c.h.b16 %v183
        %v513 = vunpack.c.l.b16 %v184
        %v514 = vunpack.c.h.b16 %v184
        %v515 = vunpack.c.l.b16 %v185
        %v516 = vunpack.c.h.b16 %v185
        %v517 = vunpack.c.l.b16 %v186
        %v518 = vunpack.c.h.b16 %v186
        %v519 = vunpack.c.l.b16 %v187
        %v520 = vunpack.c.h.b16 %v187
        %v521 = vunpack.c.l.b16 %v188
        %v522 = vunpack.c.h.b16 %v188
        %v523 = vunpack.c.l.b16 %v189
        %v524 = vunpack.c.h.b16 %v189
        %v525 = vunpack.c.l.b16 %v190
        %v526 = vunpack.c.h.b16 %v190
        %v527 = vunpack.c.l.b16 %v191
        %v528 = vunpack.c.h.b16 %v191
        %v529 = vunpack.c.l.b16 %v192
        %v530 = vunpack.c.h.b16 %v192
        %v531 = vunpack.c.l.b16 %v193
        %v532 = vunpack.c.h.b16 %v193
        %v533 = vunpack.c.l.b16 %v194
        %v534 = vunpack.c.h.b16 %v194
        %v535 = vunpack.c.l.b16 %v195
        %v536 = vunpack.c.h.b16 %v195
        %v537 = vunpack.c.l.b16 %v196
        %v538 = vunpack.c.h.b16 %v196
        %v539 = vunpack.c.l.b16 %v197
        %v540 = vunpack.c.h.b16 %v197
        %v541 = vunpack.c.l.b16 %v198
        %v542 = vunpack.c.h.b16 %v198
        %v543 = vunpack.c.l.b16 %v199
        %v544 = vunpack.c.h.b16 %v199
        %v545 = vunpack.c.l.b16 %v200
        %v546 = vunpack.c.h.b16 %v200
        %v547 = vunpack.c.l.b16 %v201
        %v548 = vunpack.c.h.b16 %v201
        %v549 = vunpack.c.l.b16 %v202
        %v550 = vunpack.c.h.b16 %v202
        %v551 = vunpack.c.l.b16 %v203
        %v552 = vunpack.c.h.b16 %v203
        %v553 = vunpack.c.l.b16 %v204
        %v554 = vunpack.c.h.b16 %v204
        %v555 = vunpack.c.l.b16 %v205
        %v556 = vunpack.c.h.b16 %v205
        %v557 = vunpack.c.l.b16 %v206
        %v558 = vunpack.c.h.b16 %v206
        %v559 = vunpack.c.l.b16 %v207
        %v560 = vunpack.c.h.b16 %v207
        %v561 = vunpack.c.l.b16 %v208
        %v562 = vunpack.c.h.b16 %v208
        %v563 = vunpack.c.l.b16 %v209
        %v564 = vunpack.c.h.b16 %v209
        %v565 = vunpack.c.l.b16 %v210
        %v566 = vunpack.c.h.b16 %v210
        %v567 = vunpack.c.l.b16 %v211
        %v568 = vunpack.c.h.b16 %v211
        %v569 = vunpack.c.l.b16 %v212
        %v570 = vunpack.c.h.b16 %v212
        %v571 = vunpack.c.l.b16 %v213
        %v572 = vunpack.c.h.b16 %v213
        %v573 = vpack.c.b16 %v511, %v509
        %v574 = vpack.c.b16 %v512, %v510
        %v575 = vpack.c.b16 %v515, %v513
        %v576 = vpack.c.b16 %v516, %v514
        %v577 = vpack.c.b16 %v519, %v517
        %v578 = vpack.c.b16 %v520, %v518
        %v579 = vpack.c.b16 %v523, %v521
        %v580 = vpack.c.b16 %v524, %v522
        %v581 = vpack.c.b16 %v527, %v525
        %v582 = vpack.c.b16 %v528, %v526
        %v583 = vpack.c.b16 %v531, %v529
        %v584 = vpack.c.b16 %v532, %v530
        %v585 = vpack.c.b16 %v535, %v533
        %v586 = vpack.c.b16 %v536, %v534
        %v587 = vpack.c.b16 %v539, %v537
        %v588 = vpack.c.b16 %v540, %v538
        %v589 = vpack.c.b16 %v543, %v541
        %v590 = vpack.c.b16 %v544, %v542
        %v591 = vpack.c.b16 %v547, %v545
        %v592 = vpack.c.b16 %v548, %v546
        %v593 = vpack.c.b16 %v551, %v549
        %v594 = vpack.c.b16 %v552, %v550
        %v595 = vpack.c.b16 %v555, %v553
        %v596 = vpack.c.b16 %v556, %v554
        %v597 = vpack.c.b16 %v559, %v557
        %v598 = vpack.c.b16 %v560, %v558
        %v599 = vpack.c.b16 %v563, %v561
        %v600 = vpack.c.b16 %v564, %v562
        %v601 = vpack.c.b16 %v567, %v565
        %v602 = vpack.c.b16 %v568, %v566
        %v603 = vpack.c.b16 %v571, %v569
        %v604 = vpack.c.b16 %v572, %v570
        %637 = vmatprep.subr.bf16.mxu0 %v574
        %638 = vmatpush1.bf16.msra.mxu0 %v573
        %639 = vmatprep.subr.bf16.mxu0 %v576
        %640 = vmatpush1.bf16.msra.mxu0 %v575
        %641 = vmatprep.subr.bf16.mxu0 %v578
        %642 = vmatpush1.bf16.msra.mxu0 %v577
        %643 = vmatprep.subr.bf16.mxu0 %v580
        %644 = vmatpush1.bf16.msra.mxu0 %v579
        %645 = vmatprep.subr.bf16.mxu0 %v582
        %646 = vmatpush1.bf16.msra.mxu0 %v581
        %647 = vmatprep.subr.bf16.mxu0 %v584
        %648 = vmatpush1.bf16.msra.mxu0 %v583
        %649 = vmatprep.subr.bf16.mxu0 %v586
        %650 = vmatpush1.bf16.msra.mxu0 %v585
        %651 = vmatprep.subr.bf16.mxu0 %v588
        %652 = vmatpush1.bf16.msra.mxu0 %v587
        %653 = vmatprep.subr.bf16.mxu0 %v590
        %654 = vmatpush1.bf16.msra.mxu0 %v589
        %655 = vmatprep.subr.bf16.mxu0 %v592
        %656 = vmatpush1.bf16.msra.mxu0 %v591
        %657 = vmatprep.subr.bf16.mxu0 %v594
        %658 = vmatpush1.bf16.msra.mxu0 %v593
        %659 = vmatprep.subr.bf16.mxu0 %v596
        %660 = vmatpush1.bf16.msra.mxu0 %v595
        %661 = vmatprep.subr.bf16.mxu0 %v598
        %662 = vmatpush1.bf16.msra.mxu0 %v597
        %663 = vmatprep.subr.bf16.mxu0 %v600
        %664 = vmatpush1.bf16.msra.mxu0 %v599
        %665 = vmatprep.subr.bf16.mxu0 %v602
        %666 = vmatpush1.bf16.msra.mxu0 %v601
        %667 = vmatprep.subr.bf16.mxu0 %v604
        %668 = vmatpush1.bf16.msra.mxu0 %v603
        %669 = vmatprep.mubr.bf16.mxu0 %v474
        %670 = vmatmul.mubr.bf16.gmra.mrb[0].mxu0 %v473
        %v671 = vpop.f32.mrb[0].mxu0
        %v672 = vadd.f32 %v464, %v671
        %v673 = vpop.f32.mrb[0].mxu0
        %v674 = vadd.f32 %v466, %v673
        %v675 = vpop.f32.mrb[0].mxu0
        %v676 = vpop.f32.mrb[0].mxu0
        %677 = vdwg.mxu0
        %v678 = vld [vmem:[%s180] sm:$0x66]
        %s679 = scalar_lea.vmem %s1, 512
        %v680 = vld [vmem:[%s679] sm:$0xff]
        %v681 = vld [vmem:[%s679 + $0x8] sm:$0xff]
        %v682 = vld [vmem:[%s679 + $0x10] sm:$0xff]
        %v683 = vld [vmem:[%s679 + $0x18] sm:$0xff]
        %v684 = vld [vmem:[%s679 + $0x20] sm:$0xff]
        %v685 = vld [vmem:[%s679 + $0x28] sm:$0xff]
        %v686 = vld [vmem:[%s679 + $0x30] sm:$0xff]
        %v687 = vld [vmem:[%s679 + $0x38] sm:$0xff]
        %v688 = vld [vmem:[%s679 + $0x40] sm:$0xff]
        %v689 = vld [vmem:[%s679 + $0x48] sm:$0xff]
        %v690 = vld [vmem:[%s679 + $0x50] sm:$0xff]
        %v691 = vld [vmem:[%s679 + $0x58] sm:$0xff]
        %v692 = vld [vmem:[%s679 + $0x60] sm:$0xff]
        %v693 = vld [vmem:[%s679 + $0x68] sm:$0xff]
        %v694 = vld [vmem:[%s679 + $0x70] sm:$0xff]
        %v695 = vld [vmem:[%s679 + $0x78] sm:$0xff]
        %v696 = vld [vmem:[%s679 + $0x80] sm:$0xff]
        %v697 = vld [vmem:[%s679 + $0x88] sm:$0xff]
        %v698 = vld [vmem:[%s679 + $0x90] sm:$0xff]
        %v699 = vld [vmem:[%s679 + $0x98] sm:$0xff]
        %v700 = vld [vmem:[%s679 + $0xa0] sm:$0xff]
        %v701 = vld [vmem:[%s679 + $0xa8] sm:$0xff]
        %v702 = vld [vmem:[%s679 + $0xb0] sm:$0xff]
        %v703 = vld [vmem:[%s679 + $0xb8] sm:$0xff]
        %v704 = vld [vmem:[%s679 + $0xc0] sm:$0xff]
        %v705 = vld [vmem:[%s679 + $0xc8] sm:$0xff]
        %v706 = vld [vmem:[%s679 + $0xd0] sm:$0xff]
        %v707 = vld [vmem:[%s679 + $0xd8] sm:$0xff]
        %v708 = vld [vmem:[%s679 + $0xe0] sm:$0xff]
        %v709 = vld [vmem:[%s679 + $0xe8] sm:$0xff]
        %v710 = vld [vmem:[%s679 + $0xf0] sm:$0xff]
        %v711 = vld [vmem:[%s679 + $0xf8] sm:$0xff]
        %v713 = vunpack.c.l.b16 %v678
        %v714 = vunpack.c.h.b16 %v678
        %v715 = vpack.c.b16 %v713, %v713
        %v716 = vpack.c.b16 %v714, %v714
        %v717 = vrot.slane %v715, 1
        %v718 = vrot.slane %v716, 1
        %v753 = vunpack.c.l.b16 %v680
        %v754 = vunpack.c.h.b16 %v680
        %v755 = vunpack.c.l.b16 %v681
        %v756 = vunpack.c.h.b16 %v681
        %v757 = vunpack.c.l.b16 %v682
        %v758 = vunpack.c.h.b16 %v682
        %v759 = vunpack.c.l.b16 %v683
        %v760 = vunpack.c.h.b16 %v683
        %v761 = vunpack.c.l.b16 %v684
        %v762 = vunpack.c.h.b16 %v684
        %v763 = vunpack.c.l.b16 %v685
        %v764 = vunpack.c.h.b16 %v685
        %v765 = vunpack.c.l.b16 %v686
        %v766 = vunpack.c.h.b16 %v686
        %v767 = vunpack.c.l.b16 %v687
        %v768 = vunpack.c.h.b16 %v687
        %v769 = vunpack.c.l.b16 %v688
        %v770 = vunpack.c.h.b16 %v688
        %v771 = vunpack.c.l.b16 %v689
        %v772 = vunpack.c.h.b16 %v689
        %v773 = vunpack.c.l.b16 %v690
        %v774 = vunpack.c.h.b16 %v690
        %v775 = vunpack.c.l.b16 %v691
        %v776 = vunpack.c.h.b16 %v691
        %v777 = vunpack.c.l.b16 %v692
        %v778 = vunpack.c.h.b16 %v692
        %v779 = vunpack.c.l.b16 %v693
        %v780 = vunpack.c.h.b16 %v693
        %v781 = vunpack.c.l.b16 %v694
        %v782 = vunpack.c.h.b16 %v694
        %v783 = vunpack.c.l.b16 %v695
        %v784 = vunpack.c.h.b16 %v695
        %v785 = vunpack.c.l.b16 %v696
        %v786 = vunpack.c.h.b16 %v696
        %v787 = vunpack.c.l.b16 %v697
        %v788 = vunpack.c.h.b16 %v697
        %v789 = vunpack.c.l.b16 %v698
        %v790 = vunpack.c.h.b16 %v698
        %v791 = vunpack.c.l.b16 %v699
        %v792 = vunpack.c.h.b16 %v699
        %v793 = vunpack.c.l.b16 %v700
        %v794 = vunpack.c.h.b16 %v700
        %v795 = vunpack.c.l.b16 %v701
        %v796 = vunpack.c.h.b16 %v701
        %v797 = vunpack.c.l.b16 %v702
        %v798 = vunpack.c.h.b16 %v702
        %v799 = vunpack.c.l.b16 %v703
        %v800 = vunpack.c.h.b16 %v703
        %v801 = vunpack.c.l.b16 %v704
        %v802 = vunpack.c.h.b16 %v704
        %v803 = vunpack.c.l.b16 %v705
        %v804 = vunpack.c.h.b16 %v705
        %v805 = vunpack.c.l.b16 %v706
        %v806 = vunpack.c.h.b16 %v706
        %v807 = vunpack.c.l.b16 %v707
        %v808 = vunpack.c.h.b16 %v707
        %v809 = vunpack.c.l.b16 %v708
        %v810 = vunpack.c.h.b16 %v708
        %v811 = vunpack.c.l.b16 %v709
        %v812 = vunpack.c.h.b16 %v709
        %v813 = vunpack.c.l.b16 %v710
        %v814 = vunpack.c.h.b16 %v710
        %v815 = vunpack.c.l.b16 %v711
        %v816 = vunpack.c.h.b16 %v711
        %v817 = vpack.c.b16 %v755, %v753
        %v818 = vpack.c.b16 %v756, %v754
        %v819 = vpack.c.b16 %v759, %v757
        %v820 = vpack.c.b16 %v760, %v758
        %v821 = vpack.c.b16 %v763, %v761
        %v822 = vpack.c.b16 %v764, %v762
        %v823 = vpack.c.b16 %v767, %v765
        %v824 = vpack.c.b16 %v768, %v766
        %v825 = vpack.c.b16 %v771, %v769
        %v826 = vpack.c.b16 %v772, %v770
        %v827 = vpack.c.b16 %v775, %v773
        %v828 = vpack.c.b16 %v776, %v774
        %v829 = vpack.c.b16 %v779, %v777
        %v830 = vpack.c.b16 %v780, %v778
        %v831 = vpack.c.b16 %v783, %v781
        %v832 = vpack.c.b16 %v784, %v782
        %v833 = vpack.c.b16 %v787, %v785
        %v834 = vpack.c.b16 %v788, %v786
        %v835 = vpack.c.b16 %v791, %v789
        %v836 = vpack.c.b16 %v792, %v790
        %v837 = vpack.c.b16 %v795, %v793
        %v838 = vpack.c.b16 %v796, %v794
        %v839 = vpack.c.b16 %v799, %v797
        %v840 = vpack.c.b16 %v800, %v798
        %v841 = vpack.c.b16 %v803, %v801
        %v842 = vpack.c.b16 %v804, %v802
        %v843 = vpack.c.b16 %v807, %v805
        %v844 = vpack.c.b16 %v808, %v806
        %v845 = vpack.c.b16 %v811, %v809
        %v846 = vpack.c.b16 %v812, %v810
        %v847 = vpack.c.b16 %v815, %v813
        %v848 = vpack.c.b16 %v816, %v814
        %881 = vmatprep.subr.bf16.mxu0 %v818
        %882 = vmatpush1.bf16.msra.mxu0 %v817
        %883 = vmatprep.subr.bf16.mxu0 %v820
        %884 = vmatpush1.bf16.msra.mxu0 %v819
        %885 = vmatprep.subr.bf16.mxu0 %v822
        %886 = vmatpush1.bf16.msra.mxu0 %v821
        %887 = vmatprep.subr.bf16.mxu0 %v824
        %888 = vmatpush1.bf16.msra.mxu0 %v823
        %889 = vmatprep.subr.bf16.mxu0 %v826
        %890 = vmatpush1.bf16.msra.mxu0 %v825
        %891 = vmatprep.subr.bf16.mxu0 %v828
        %892 = vmatpush1.bf16.msra.mxu0 %v827
        %893 = vmatprep.subr.bf16.mxu0 %v830
        %894 = vmatpush1.bf16.msra.mxu0 %v829
        %895 = vmatprep.subr.bf16.mxu0 %v832
        %896 = vmatpush1.bf16.msra.mxu0 %v831
        %897 = vmatprep.subr.bf16.mxu0 %v834
        %898 = vmatpush1.bf16.msra.mxu0 %v833
        %899 = vmatprep.subr.bf16.mxu0 %v836
        %900 = vmatpush1.bf16.msra.mxu0 %v835
        %901 = vmatprep.subr.bf16.mxu0 %v838
        %902 = vmatpush1.bf16.msra.mxu0 %v837
        %903 = vmatprep.subr.bf16.mxu0 %v840
        %904 = vmatpush1.bf16.msra.mxu0 %v839
        %905 = vmatprep.subr.bf16.mxu0 %v842
        %906 = vmatpush1.bf16.msra.mxu0 %v841
        %907 = vmatprep.subr.bf16.mxu0 %v844
        %908 = vmatpush1.bf16.msra.mxu0 %v843
        %909 = vmatprep.subr.bf16.mxu0 %v846
        %910 = vmatpush1.bf16.msra.mxu0 %v845
        %911 = vmatprep.subr.bf16.mxu0 %v848
        %912 = vmatpush1.bf16.msra.mxu0 %v847
        %913 = vmatprep.mubr.bf16.mxu0 %v718
        %914 = vmatmul.mubr.bf16.gmra.mrb[0].mxu0 %v717
        %v915 = vpop.f32.mrb[0].mxu0
        %v916 = vadd.f32 0.0, %v915
        %v917 = vpop.f32.mrb[0].mxu0
        %v918 = vadd.f32 0.0, %v917
        %v919 = vpop.f32.mrb[0].mxu0
        %v920 = vpop.f32.mrb[0].mxu0
        %921 = vdwg.mxu0
        %v922 = vadd.f32 %v672, %v916
        %v923 = vadd.f32 %v674, %v918
        %s924 = sadd.s32 %s173, 1
        %s925 = smul.u32 %s924, 2
        %s926 = smul.addr %s925, 4
        %s927 = scalar_lea.vmem %s165, %s926
        %v928 = vld [vmem:[%s927] sm:$0x33]
        %s929 = scalar_lea.vmem %s1, 768
        %v930 = vld [vmem:[%s929] sm:$0xff]
        %v931 = vld [vmem:[%s929 + $0x8] sm:$0xff]
        %v932 = vld [vmem:[%s929 + $0x10] sm:$0xff]
        %v933 = vld [vmem:[%s929 + $0x18] sm:$0xff]
        %v934 = vld [vmem:[%s929 + $0x20] sm:$0xff]
        %v935 = vld [vmem:[%s929 + $0x28] sm:$0xff]
        %v936 = vld [vmem:[%s929 + $0x30] sm:$0xff]
        %v937 = vld [vmem:[%s929 + $0x38] sm:$0xff]
        %v938 = vld [vmem:[%s929 + $0x40] sm:$0xff]
        %v939 = vld [vmem:[%s929 + $0x48] sm:$0xff]
        %v940 = vld [vmem:[%s929 + $0x50] sm:$0xff]
        %v941 = vld [vmem:[%s929 + $0x58] sm:$0xff]
        %v942 = vld [vmem:[%s929 + $0x60] sm:$0xff]
        %v943 = vld [vmem:[%s929 + $0x68] sm:$0xff]
        %v944 = vld [vmem:[%s929 + $0x70] sm:$0xff]
        %v945 = vld [vmem:[%s929 + $0x78] sm:$0xff]
        %v946 = vld [vmem:[%s929 + $0x80] sm:$0xff]
        %v947 = vld [vmem:[%s929 + $0x88] sm:$0xff]
        %v948 = vld [vmem:[%s929 + $0x90] sm:$0xff]
        %v949 = vld [vmem:[%s929 + $0x98] sm:$0xff]
        %v950 = vld [vmem:[%s929 + $0xa0] sm:$0xff]
        %v951 = vld [vmem:[%s929 + $0xa8] sm:$0xff]
        %v952 = vld [vmem:[%s929 + $0xb0] sm:$0xff]
        %v953 = vld [vmem:[%s929 + $0xb8] sm:$0xff]
        %v954 = vld [vmem:[%s929 + $0xc0] sm:$0xff]
        %v955 = vld [vmem:[%s929 + $0xc8] sm:$0xff]
        %v956 = vld [vmem:[%s929 + $0xd0] sm:$0xff]
        %v957 = vld [vmem:[%s929 + $0xd8] sm:$0xff]
        %v958 = vld [vmem:[%s929 + $0xe0] sm:$0xff]
        %v959 = vld [vmem:[%s929 + $0xe8] sm:$0xff]
        %v960 = vld [vmem:[%s929 + $0xf0] sm:$0xff]
        %v961 = vld [vmem:[%s929 + $0xf8] sm:$0xff]
        %v963 = vunpack.c.l.b16 %v928
        %v964 = vunpack.c.h.b16 %v928
        %v965 = vpack.c.b16 %v963, %v963
        %v966 = vpack.c.b16 %v964, %v964
        %v1001 = vunpack.c.l.b16 %v930
        %v1002 = vunpack.c.h.b16 %v930
        %v1003 = vunpack.c.l.b16 %v931
        %v1004 = vunpack.c.h.b16 %v931
        %v1005 = vunpack.c.l.b16 %v932
        %v1006 = vunpack.c.h.b16 %v932
        %v1007 = vunpack.c.l.b16 %v933
        %v1008 = vunpack.c.h.b16 %v933
        %v1009 = vunpack.c.l.b16 %v934
        %v1010 = vunpack.c.h.b16 %v934
        %v1011 = vunpack.c.l.b16 %v935
        %v1012 = vunpack.c.h.b16 %v935
        %v1013 = vunpack.c.l.b16 %v936
        %v1014 = vunpack.c.h.b16 %v936
        %v1015 = vunpack.c.l.b16 %v937
        %v1016 = vunpack.c.h.b16 %v937
        %v1017 = vunpack.c.l.b16 %v938
        %v1018 = vunpack.c.h.b16 %v938
        %v1019 = vunpack.c.l.b16 %v939
        %v1020 = vunpack.c.h.b16 %v939
        %v1021 = vunpack.c.l.b16 %v940
        %v1022 = vunpack.c.h.b16 %v940
        %v1023 = vunpack.c.l.b16 %v941
        %v1024 = vunpack.c.h.b16 %v941
        %v1025 = vunpack.c.l.b16 %v942
        %v1026 = vunpack.c.h.b16 %v942
        %v1027 = vunpack.c.l.b16 %v943
        %v1028 = vunpack.c.h.b16 %v943
        %v1029 = vunpack.c.l.b16 %v944
        %v1030 = vunpack.c.h.b16 %v944
        %v1031 = vunpack.c.l.b16 %v945
        %v1032 = vunpack.c.h.b16 %v945
        %v1033 = vunpack.c.l.b16 %v946
        %v1034 = vunpack.c.h.b16 %v946
        %v1035 = vunpack.c.l.b16 %v947
        %v1036 = vunpack.c.h.b16 %v947
        %v1037 = vunpack.c.l.b16 %v948
        %v1038 = vunpack.c.h.b16 %v948
        %v1039 = vunpack.c.l.b16 %v949
        %v1040 = vunpack.c.h.b16 %v949
        %v1041 = vunpack.c.l.b16 %v950
        %v1042 = vunpack.c.h.b16 %v950
        %v1043 = vunpack.c.l.b16 %v951
        %v1044 = vunpack.c.h.b16 %v951
        %v1045 = vunpack.c.l.b16 %v952
        %v1046 = vunpack.c.h.b16 %v952
        %v1047 = vunpack.c.l.b16 %v953
        %v1048 = vunpack.c.h.b16 %v953
        %v1049 = vunpack.c.l.b16 %v954
        %v1050 = vunpack.c.h.b16 %v954
        %v1051 = vunpack.c.l.b16 %v955
        %v1052 = vunpack.c.h.b16 %v955
        %v1053 = vunpack.c.l.b16 %v956
        %v1054 = vunpack.c.h.b16 %v956
        %v1055 = vunpack.c.l.b16 %v957
        %v1056 = vunpack.c.h.b16 %v957
        %v1057 = vunpack.c.l.b16 %v958
        %v1058 = vunpack.c.h.b16 %v958
        %v1059 = vunpack.c.l.b16 %v959
        %v1060 = vunpack.c.h.b16 %v959
        %v1061 = vunpack.c.l.b16 %v960
        %v1062 = vunpack.c.h.b16 %v960
        %v1063 = vunpack.c.l.b16 %v961
        %v1064 = vunpack.c.h.b16 %v961
        %v1065 = vpack.c.b16 %v1003, %v1001
        %v1066 = vpack.c.b16 %v1004, %v1002
        %v1067 = vpack.c.b16 %v1007, %v1005
        %v1068 = vpack.c.b16 %v1008, %v1006
        %v1069 = vpack.c.b16 %v1011, %v1009
        %v1070 = vpack.c.b16 %v1012, %v1010
        %v1071 = vpack.c.b16 %v1015, %v1013
        %v1072 = vpack.c.b16 %v1016, %v1014
        %v1073 = vpack.c.b16 %v1019, %v1017
        %v1074 = vpack.c.b16 %v1020, %v1018
        %v1075 = vpack.c.b16 %v1023, %v1021
        %v1076 = vpack.c.b16 %v1024, %v1022
        %v1077 = vpack.c.b16 %v1027, %v1025
        %v1078 = vpack.c.b16 %v1028, %v1026
        %v1079 = vpack.c.b16 %v1031, %v1029
        %v1080 = vpack.c.b16 %v1032, %v1030
        %v1081 = vpack.c.b16 %v1035, %v1033
        %v1082 = vpack.c.b16 %v1036, %v1034
        %v1083 = vpack.c.b16 %v1039, %v1037
        %v1084 = vpack.c.b16 %v1040, %v1038
        %v1085 = vpack.c.b16 %v1043, %v1041
        %v1086 = vpack.c.b16 %v1044, %v1042
        %v1087 = vpack.c.b16 %v1047, %v1045
        %v1088 = vpack.c.b16 %v1048, %v1046
        %v1089 = vpack.c.b16 %v1051, %v1049
        %v1090 = vpack.c.b16 %v1052, %v1050
        %v1091 = vpack.c.b16 %v1055, %v1053
        %v1092 = vpack.c.b16 %v1056, %v1054
        %v1093 = vpack.c.b16 %v1059, %v1057
        %v1094 = vpack.c.b16 %v1060, %v1058
        %v1095 = vpack.c.b16 %v1063, %v1061
        %v1096 = vpack.c.b16 %v1064, %v1062
        %1129 = vmatprep.subr.bf16.mxu0 %v1066
        %1130 = vmatpush1.bf16.msra.mxu0 %v1065
        %1131 = vmatprep.subr.bf16.mxu0 %v1068
        %1132 = vmatpush1.bf16.msra.mxu0 %v1067
        %1133 = vmatprep.subr.bf16.mxu0 %v1070
        %1134 = vmatpush1.bf16.msra.mxu0 %v1069
        %1135 = vmatprep.subr.bf16.mxu0 %v1072
        %1136 = vmatpush1.bf16.msra.mxu0 %v1071
        %1137 = vmatprep.subr.bf16.mxu0 %v1074
        %1138 = vmatpush1.bf16.msra.mxu0 %v1073
        %1139 = vmatprep.subr.bf16.mxu0 %v1076
        %1140 = vmatpush1.bf16.msra.mxu0 %v1075
        %1141 = vmatprep.subr.bf16.mxu0 %v1078
        %1142 = vmatpush1.bf16.msra.mxu0 %v1077
        %1143 = vmatprep.subr.bf16.mxu0 %v1080
        %1144 = vmatpush1.bf16.msra.mxu0 %v1079
        %1145 = vmatprep.subr.bf16.mxu0 %v1082
        %1146 = vmatpush1.bf16.msra.mxu0 %v1081
        %1147 = vmatprep.subr.bf16.mxu0 %v1084
        %1148 = vmatpush1.bf16.msra.mxu0 %v1083
        %1149 = vmatprep.subr.bf16.mxu0 %v1086
        %1150 = vmatpush1.bf16.msra.mxu0 %v1085
        %1151 = vmatprep.subr.bf16.mxu0 %v1088
        %1152 = vmatpush1.bf16.msra.mxu0 %v1087
        %1153 = vmatprep.subr.bf16.mxu0 %v1090
        %1154 = vmatpush1.bf16.msra.mxu0 %v1089
        %1155 = vmatprep.subr.bf16.mxu0 %v1092
        %1156 = vmatpush1.bf16.msra.mxu0 %v1091
        %1157 = vmatprep.subr.bf16.mxu0 %v1094
        %1158 = vmatpush1.bf16.msra.mxu0 %v1093
        %1159 = vmatprep.subr.bf16.mxu0 %v1096
        %1160 = vmatpush1.bf16.msra.mxu0 %v1095
        %1161 = vmatprep.mubr.bf16.mxu0 %v966
        %1162 = vmatmul.mubr.bf16.gmra.mrb[0].mxu0 %v965
        %v1163 = vpop.f32.mrb[0].mxu0
        %v1164 = vadd.f32 0.0, %v1163
        %v1165 = vpop.f32.mrb[0].mxu0
        %v1166 = vadd.f32 0.0, %v1165
        %v1167 = vpop.f32.mrb[0].mxu0
        %v1168 = vpop.f32.mrb[0].mxu0
        %1169 = vdwg.mxu0
        %v1170 = vadd.f32 %v922, %v1164
        %v1171 = vadd.f32 %v923, %v1166
        %v1172 = vld [vmem:[%s927] sm:$0x77]
        %s1173 = scalar_lea.vmem %s1, 1024
        %v1174 = vld [vmem:[%s1173] sm:$0xff]
        %v1175 = vld [vmem:[%s1173 + $0x8] sm:$0xff]
        %v1176 = vld [vmem:[%s1173 + $0x10] sm:$0xff]
        %v1177 = vld [vmem:[%s1173 + $0x18] sm:$0xff]
        %v1178 = vld [vmem:[%s1173 + $0x20] sm:$0xff]
        %v1179 = vld [vmem:[%s1173 + $0x28] sm:$0xff]
        %v1180 = vld [vmem:[%s1173 + $0x30] sm:$0xff]
        %v1181 = vld [vmem:[%s1173 + $0x38] sm:$0xff]
        %v1182 = vld [vmem:[%s1173 + $0x40] sm:$0xff]
        %v1183 = vld [vmem:[%s1173 + $0x48] sm:$0xff]
        %v1184 = vld [vmem:[%s1173 + $0x50] sm:$0xff]
        %v1185 = vld [vmem:[%s1173 + $0x58] sm:$0xff]
        %v1186 = vld [vmem:[%s1173 + $0x60] sm:$0xff]
        %v1187 = vld [vmem:[%s1173 + $0x68] sm:$0xff]
        %v1188 = vld [vmem:[%s1173 + $0x70] sm:$0xff]
        %v1189 = vld [vmem:[%s1173 + $0x78] sm:$0xff]
        %v1190 = vld [vmem:[%s1173 + $0x80] sm:$0xff]
        %v1191 = vld [vmem:[%s1173 + $0x88] sm:$0xff]
        %v1192 = vld [vmem:[%s1173 + $0x90] sm:$0xff]
        %v1193 = vld [vmem:[%s1173 + $0x98] sm:$0xff]
        %v1194 = vld [vmem:[%s1173 + $0xa0] sm:$0xff]
        %v1195 = vld [vmem:[%s1173 + $0xa8] sm:$0xff]
        %v1196 = vld [vmem:[%s1173 + $0xb0] sm:$0xff]
        %v1197 = vld [vmem:[%s1173 + $0xb8] sm:$0xff]
        %v1198 = vld [vmem:[%s1173 + $0xc0] sm:$0xff]
        %v1199 = vld [vmem:[%s1173 + $0xc8] sm:$0xff]
        %v1200 = vld [vmem:[%s1173 + $0xd0] sm:$0xff]
        %v1201 = vld [vmem:[%s1173 + $0xd8] sm:$0xff]
        %v1202 = vld [vmem:[%s1173 + $0xe0] sm:$0xff]
        %v1203 = vld [vmem:[%s1173 + $0xe8] sm:$0xff]
        %v1204 = vld [vmem:[%s1173 + $0xf0] sm:$0xff]
        %v1205 = vld [vmem:[%s1173 + $0xf8] sm:$0xff]
        %v1207 = vunpack.c.l.b16 %v1172
        %v1208 = vunpack.c.h.b16 %v1172
        %v1209 = vpack.c.b16 %v1207, %v1207
        %v1210 = vpack.c.b16 %v1208, %v1208
        %v1212 = vshrl.u32 %v1209, 16
        %v1214 = vshll.u32 %v1209, 16
        %v1216 = vrot.slane %v1214, 1
        %v1217 = vor.u32 %v1212, %v1216
        %v1219 = vshrl.u32 %v1210, 16
        %v1221 = vshll.u32 %v1210, 16
        %v1223 = vrot.slane %v1221, 1
        %v1224 = vor.u32 %v1219, %v1223
        %v1259 = vunpack.c.l.b16 %v1174
        %v1260 = vunpack.c.h.b16 %v1174
        %v1261 = vunpack.c.l.b16 %v1175
        %v1262 = vunpack.c.h.b16 %v1175
        %v1263 = vunpack.c.l.b16 %v1176
        %v1264 = vunpack.c.h.b16 %v1176
        %v1265 = vunpack.c.l.b16 %v1177
        %v1266 = vunpack.c.h.b16 %v1177
        %v1267 = vunpack.c.l.b16 %v1178
        %v1268 = vunpack.c.h.b16 %v1178
        %v1269 = vunpack.c.l.b16 %v1179
        %v1270 = vunpack.c.h.b16 %v1179
        %v1271 = vunpack.c.l.b16 %v1180
        %v1272 = vunpack.c.h.b16 %v1180
        %v1273 = vunpack.c.l.b16 %v1181
        %v1274 = vunpack.c.h.b16 %v1181
        %v1275 = vunpack.c.l.b16 %v1182
        %v1276 = vunpack.c.h.b16 %v1182
        %v1277 = vunpack.c.l.b16 %v1183
        %v1278 = vunpack.c.h.b16 %v1183
        %v1279 = vunpack.c.l.b16 %v1184
        %v1280 = vunpack.c.h.b16 %v1184
        %v1281 = vunpack.c.l.b16 %v1185
        %v1282 = vunpack.c.h.b16 %v1185
        %v1283 = vunpack.c.l.b16 %v1186
        %v1284 = vunpack.c.h.b16 %v1186
        %v1285 = vunpack.c.l.b16 %v1187
        %v1286 = vunpack.c.h.b16 %v1187
        %v1287 = vunpack.c.l.b16 %v1188
        %v1288 = vunpack.c.h.b16 %v1188
        %v1289 = vunpack.c.l.b16 %v1189
        %v1290 = vunpack.c.h.b16 %v1189
        %v1291 = vunpack.c.l.b16 %v1190
        %v1292 = vunpack.c.h.b16 %v1190
        %v1293 = vunpack.c.l.b16 %v1191
        %v1294 = vunpack.c.h.b16 %v1191
        %v1295 = vunpack.c.l.b16 %v1192
        %v1296 = vunpack.c.h.b16 %v1192
        %v1297 = vunpack.c.l.b16 %v1193
        %v1298 = vunpack.c.h.b16 %v1193
        %v1299 = vunpack.c.l.b16 %v1194
        %v1300 = vunpack.c.h.b16 %v1194
        %v1301 = vunpack.c.l.b16 %v1195
        %v1302 = vunpack.c.h.b16 %v1195
        %v1303 = vunpack.c.l.b16 %v1196
        %v1304 = vunpack.c.h.b16 %v1196
        %v1305 = vunpack.c.l.b16 %v1197
        %v1306 = vunpack.c.h.b16 %v1197
        %v1307 = vunpack.c.l.b16 %v1198
        %v1308 = vunpack.c.h.b16 %v1198
        %v1309 = vunpack.c.l.b16 %v1199
        %v1310 = vunpack.c.h.b16 %v1199
        %v1311 = vunpack.c.l.b16 %v1200
        %v1312 = vunpack.c.h.b16 %v1200
        %v1313 = vunpack.c.l.b16 %v1201
        %v1314 = vunpack.c.h.b16 %v1201
        %v1315 = vunpack.c.l.b16 %v1202
        %v1316 = vunpack.c.h.b16 %v1202
        %v1317 = vunpack.c.l.b16 %v1203
        %v1318 = vunpack.c.h.b16 %v1203
        %v1319 = vunpack.c.l.b16 %v1204
        %v1320 = vunpack.c.h.b16 %v1204
        %v1321 = vunpack.c.l.b16 %v1205
        %v1322 = vunpack.c.h.b16 %v1205
        %v1323 = vpack.c.b16 %v1261, %v1259
        %v1324 = vpack.c.b16 %v1262, %v1260
        %v1325 = vpack.c.b16 %v1265, %v1263
        %v1326 = vpack.c.b16 %v1266, %v1264
        %v1327 = vpack.c.b16 %v1269, %v1267
        %v1328 = vpack.c.b16 %v1270, %v1268
        %v1329 = vpack.c.b16 %v1273, %v1271
        %v1330 = vpack.c.b16 %v1274, %v1272
        %v1331 = vpack.c.b16 %v1277, %v1275
        %v1332 = vpack.c.b16 %v1278, %v1276
        %v1333 = vpack.c.b16 %v1281, %v1279
        %v1334 = vpack.c.b16 %v1282, %v1280
        %v1335 = vpack.c.b16 %v1285, %v1283
        %v1336 = vpack.c.b16 %v1286, %v1284
        %v1337 = vpack.c.b16 %v1289, %v1287
        %v1338 = vpack.c.b16 %v1290, %v1288
        %v1339 = vpack.c.b16 %v1293, %v1291
        %v1340 = vpack.c.b16 %v1294, %v1292
        %v1341 = vpack.c.b16 %v1297, %v1295
        %v1342 = vpack.c.b16 %v1298, %v1296
        %v1343 = vpack.c.b16 %v1301, %v1299
        %v1344 = vpack.c.b16 %v1302, %v1300
        %v1345 = vpack.c.b16 %v1305, %v1303
        %v1346 = vpack.c.b16 %v1306, %v1304
        %v1347 = vpack.c.b16 %v1309, %v1307
        %v1348 = vpack.c.b16 %v1310, %v1308
        %v1349 = vpack.c.b16 %v1313, %v1311
        %v1350 = vpack.c.b16 %v1314, %v1312
        %v1351 = vpack.c.b16 %v1317, %v1315
        %v1352 = vpack.c.b16 %v1318, %v1316
        %v1353 = vpack.c.b16 %v1321, %v1319
        %v1354 = vpack.c.b16 %v1322, %v1320
        %1387 = vmatprep.subr.bf16.mxu0 %v1324
        %1388 = vmatpush1.bf16.msra.mxu0 %v1323
        %1389 = vmatprep.subr.bf16.mxu0 %v1326
        %1390 = vmatpush1.bf16.msra.mxu0 %v1325
        %1391 = vmatprep.subr.bf16.mxu0 %v1328
        %1392 = vmatpush1.bf16.msra.mxu0 %v1327
        %1393 = vmatprep.subr.bf16.mxu0 %v1330
        %1394 = vmatpush1.bf16.msra.mxu0 %v1329
        %1395 = vmatprep.subr.bf16.mxu0 %v1332
        %1396 = vmatpush1.bf16.msra.mxu0 %v1331
        %1397 = vmatprep.subr.bf16.mxu0 %v1334
        %1398 = vmatpush1.bf16.msra.mxu0 %v1333
        %1399 = vmatprep.subr.bf16.mxu0 %v1336
        %1400 = vmatpush1.bf16.msra.mxu0 %v1335
        %1401 = vmatprep.subr.bf16.mxu0 %v1338
        %1402 = vmatpush1.bf16.msra.mxu0 %v1337
        %1403 = vmatprep.subr.bf16.mxu0 %v1340
        %1404 = vmatpush1.bf16.msra.mxu0 %v1339
        %1405 = vmatprep.subr.bf16.mxu0 %v1342
        %1406 = vmatpush1.bf16.msra.mxu0 %v1341
        %1407 = vmatprep.subr.bf16.mxu0 %v1344
        %1408 = vmatpush1.bf16.msra.mxu0 %v1343
        %1409 = vmatprep.subr.bf16.mxu0 %v1346
        %1410 = vmatpush1.bf16.msra.mxu0 %v1345
        %1411 = vmatprep.subr.bf16.mxu0 %v1348
        %1412 = vmatpush1.bf16.msra.mxu0 %v1347
        %1413 = vmatprep.subr.bf16.mxu0 %v1350
        %1414 = vmatpush1.bf16.msra.mxu0 %v1349
        %1415 = vmatprep.subr.bf16.mxu0 %v1352
        %1416 = vmatpush1.bf16.msra.mxu0 %v1351
        %1417 = vmatprep.subr.bf16.mxu0 %v1354
        %1418 = vmatpush1.bf16.msra.mxu0 %v1353
        %1419 = vmatprep.mubr.bf16.mxu0 %v1224
        %1420 = vmatmul.mubr.bf16.gmra.mrb[0].mxu0 %v1217
        %v1421 = vpop.f32.mrb[0].mxu0
        %v1422 = vadd.f32 0.0, %v1421
        %v1423 = vpop.f32.mrb[0].mxu0
        %v1424 = vadd.f32 0.0, %v1423
        %v1425 = vpop.f32.mrb[0].mxu0
        %v1426 = vpop.f32.mrb[0].mxu0
        %1427 = vdwg.mxu0
        %v1428 = vadd.f32 %v1170, %v1422
        %v1429 = vadd.f32 %v1171, %v1424
        %v1430 = vld [vmem:[%s927] sm:$0x66]
        %s1431 = scalar_lea.vmem %s1, 1280
        %v1432 = vld [vmem:[%s1431] sm:$0xff]
        %v1433 = vld [vmem:[%s1431 + $0x8] sm:$0xff]
        %v1434 = vld [vmem:[%s1431 + $0x10] sm:$0xff]
        %v1435 = vld [vmem:[%s1431 + $0x18] sm:$0xff]
        %v1436 = vld [vmem:[%s1431 + $0x20] sm:$0xff]
        %v1437 = vld [vmem:[%s1431 + $0x28] sm:$0xff]
        %v1438 = vld [vmem:[%s1431 + $0x30] sm:$0xff]
        %v1439 = vld [vmem:[%s1431 + $0x38] sm:$0xff]
        %v1440 = vld [vmem:[%s1431 + $0x40] sm:$0xff]
        %v1441 = vld [vmem:[%s1431 + $0x48] sm:$0xff]
        %v1442 = vld [vmem:[%s1431 + $0x50] sm:$0xff]
        %v1443 = vld [vmem:[%s1431 + $0x58] sm:$0xff]
        %v1444 = vld [vmem:[%s1431 + $0x60] sm:$0xff]
        %v1445 = vld [vmem:[%s1431 + $0x68] sm:$0xff]
        %v1446 = vld [vmem:[%s1431 + $0x70] sm:$0xff]
        %v1447 = vld [vmem:[%s1431 + $0x78] sm:$0xff]
        %v1448 = vld [vmem:[%s1431 + $0x80] sm:$0xff]
        %v1449 = vld [vmem:[%s1431 + $0x88] sm:$0xff]
        %v1450 = vld [vmem:[%s1431 + $0x90] sm:$0xff]
        %v1451 = vld [vmem:[%s1431 + $0x98] sm:$0xff]
        %v1452 = vld [vmem:[%s1431 + $0xa0] sm:$0xff]
        %v1453 = vld [vmem:[%s1431 + $0xa8] sm:$0xff]
        %v1454 = vld [vmem:[%s1431 + $0xb0] sm:$0xff]
        %v1455 = vld [vmem:[%s1431 + $0xb8] sm:$0xff]
        %v1456 = vld [vmem:[%s1431 + $0xc0] sm:$0xff]
        %v1457 = vld [vmem:[%s1431 + $0xc8] sm:$0xff]
        %v1458 = vld [vmem:[%s1431 + $0xd0] sm:$0xff]
        %v1459 = vld [vmem:[%s1431 + $0xd8] sm:$0xff]
        %v1460 = vld [vmem:[%s1431 + $0xe0] sm:$0xff]
        %v1461 = vld [vmem:[%s1431 + $0xe8] sm:$0xff]
        %v1462 = vld [vmem:[%s1431 + $0xf0] sm:$0xff]
        %v1463 = vld [vmem:[%s1431 + $0xf8] sm:$0xff]
        %v1465 = vunpack.c.l.b16 %v1430
        %v1466 = vunpack.c.h.b16 %v1430
        %v1467 = vpack.c.b16 %v1465, %v1465
        %v1468 = vpack.c.b16 %v1466, %v1466
        %v1469 = vrot.slane %v1467, 1
        %v1470 = vrot.slane %v1468, 1
        %v1505 = vunpack.c.l.b16 %v1432
        %v1506 = vunpack.c.h.b16 %v1432
        %v1507 = vunpack.c.l.b16 %v1433
        %v1508 = vunpack.c.h.b16 %v1433
        %v1509 = vunpack.c.l.b16 %v1434
        %v1510 = vunpack.c.h.b16 %v1434
        %v1511 = vunpack.c.l.b16 %v1435
        %v1512 = vunpack.c.h.b16 %v1435
        %v1513 = vunpack.c.l.b16 %v1436
        %v1514 = vunpack.c.h.b16 %v1436
        %v1515 = vunpack.c.l.b16 %v1437
        %v1516 = vunpack.c.h.b16 %v1437
        %v1517 = vunpack.c.l.b16 %v1438
        %v1518 = vunpack.c.h.b16 %v1438
        %v1519 = vunpack.c.l.b16 %v1439
        %v1520 = vunpack.c.h.b16 %v1439
        %v1521 = vunpack.c.l.b16 %v1440
        %v1522 = vunpack.c.h.b16 %v1440
        %v1523 = vunpack.c.l.b16 %v1441
        %v1524 = vunpack.c.h.b16 %v1441
        %v1525 = vunpack.c.l.b16 %v1442
        %v1526 = vunpack.c.h.b16 %v1442
        %v1527 = vunpack.c.l.b16 %v1443
        %v1528 = vunpack.c.h.b16 %v1443
        %v1529 = vunpack.c.l.b16 %v1444
        %v1530 = vunpack.c.h.b16 %v1444
        %v1531 = vunpack.c.l.b16 %v1445
        %v1532 = vunpack.c.h.b16 %v1445
        %v1533 = vunpack.c.l.b16 %v1446
        %v1534 = vunpack.c.h.b16 %v1446
        %v1535 = vunpack.c.l.b16 %v1447
        %v1536 = vunpack.c.h.b16 %v1447
        %v1537 = vunpack.c.l.b16 %v1448
        %v1538 = vunpack.c.h.b16 %v1448
        %v1539 = vunpack.c.l.b16 %v1449
        %v1540 = vunpack.c.h.b16 %v1449
        %v1541 = vunpack.c.l.b16 %v1450
        %v1542 = vunpack.c.h.b16 %v1450
        %v1543 = vunpack.c.l.b16 %v1451
        %v1544 = vunpack.c.h.b16 %v1451
        %v1545 = vunpack.c.l.b16 %v1452
        %v1546 = vunpack.c.h.b16 %v1452
        %v1547 = vunpack.c.l.b16 %v1453
        %v1548 = vunpack.c.h.b16 %v1453
        %v1549 = vunpack.c.l.b16 %v1454
        %v1550 = vunpack.c.h.b16 %v1454
        %v1551 = vunpack.c.l.b16 %v1455
        %v1552 = vunpack.c.h.b16 %v1455
        %v1553 = vunpack.c.l.b16 %v1456
        %v1554 = vunpack.c.h.b16 %v1456
        %v1555 = vunpack.c.l.b16 %v1457
        %v1556 = vunpack.c.h.b16 %v1457
        %v1557 = vunpack.c.l.b16 %v1458
        %v1558 = vunpack.c.h.b16 %v1458
        %v1559 = vunpack.c.l.b16 %v1459
        %v1560 = vunpack.c.h.b16 %v1459
        %v1561 = vunpack.c.l.b16 %v1460
        %v1562 = vunpack.c.h.b16 %v1460
        %v1563 = vunpack.c.l.b16 %v1461
        %v1564 = vunpack.c.h.b16 %v1461
        %v1565 = vunpack.c.l.b16 %v1462
        %v1566 = vunpack.c.h.b16 %v1462
        %v1567 = vunpack.c.l.b16 %v1463
        %v1568 = vunpack.c.h.b16 %v1463
        %v1569 = vpack.c.b16 %v1507, %v1505
        %v1570 = vpack.c.b16 %v1508, %v1506
        %v1571 = vpack.c.b16 %v1511, %v1509
        %v1572 = vpack.c.b16 %v1512, %v1510
        %v1573 = vpack.c.b16 %v1515, %v1513
        %v1574 = vpack.c.b16 %v1516, %v1514
        %v1575 = vpack.c.b16 %v1519, %v1517
        %v1576 = vpack.c.b16 %v1520, %v1518
        %v1577 = vpack.c.b16 %v1523, %v1521
        %v1578 = vpack.c.b16 %v1524, %v1522
        %v1579 = vpack.c.b16 %v1527, %v1525
        %v1580 = vpack.c.b16 %v1528, %v1526
        %v1581 = vpack.c.b16 %v1531, %v1529
        %v1582 = vpack.c.b16 %v1532, %v1530
        %v1583 = vpack.c.b16 %v1535, %v1533
        %v1584 = vpack.c.b16 %v1536, %v1534
        %v1585 = vpack.c.b16 %v1539, %v1537
        %v1586 = vpack.c.b16 %v1540, %v1538
        %v1587 = vpack.c.b16 %v1543, %v1541
        %v1588 = vpack.c.b16 %v1544, %v1542
        %v1589 = vpack.c.b16 %v1547, %v1545
        %v1590 = vpack.c.b16 %v1548, %v1546
        %v1591 = vpack.c.b16 %v1551, %v1549
        %v1592 = vpack.c.b16 %v1552, %v1550
        %v1593 = vpack.c.b16 %v1555, %v1553
        %v1594 = vpack.c.b16 %v1556, %v1554
        %v1595 = vpack.c.b16 %v1559, %v1557
        %v1596 = vpack.c.b16 %v1560, %v1558
        %v1597 = vpack.c.b16 %v1563, %v1561
        %v1598 = vpack.c.b16 %v1564, %v1562
        %v1599 = vpack.c.b16 %v1567, %v1565
        %v1600 = vpack.c.b16 %v1568, %v1566
        %1633 = vmatprep.subr.bf16.mxu0 %v1570
        %1634 = vmatpush1.bf16.msra.mxu0 %v1569
        %1635 = vmatprep.subr.bf16.mxu0 %v1572
        %1636 = vmatpush1.bf16.msra.mxu0 %v1571
        %1637 = vmatprep.subr.bf16.mxu0 %v1574
        %1638 = vmatpush1.bf16.msra.mxu0 %v1573
        %1639 = vmatprep.subr.bf16.mxu0 %v1576
        %1640 = vmatpush1.bf16.msra.mxu0 %v1575
        %1641 = vmatprep.subr.bf16.mxu0 %v1578
        %1642 = vmatpush1.bf16.msra.mxu0 %v1577
        %1643 = vmatprep.subr.bf16.mxu0 %v1580
        %1644 = vmatpush1.bf16.msra.mxu0 %v1579
        %1645 = vmatprep.subr.bf16.mxu0 %v1582
        %1646 = vmatpush1.bf16.msra.mxu0 %v1581
        %1647 = vmatprep.subr.bf16.mxu0 %v1584
        %1648 = vmatpush1.bf16.msra.mxu0 %v1583
        %1649 = vmatprep.subr.bf16.mxu0 %v1586
        %1650 = vmatpush1.bf16.msra.mxu0 %v1585
        %1651 = vmatprep.subr.bf16.mxu0 %v1588
        %1652 = vmatpush1.bf16.msra.mxu0 %v1587
        %1653 = vmatprep.subr.bf16.mxu0 %v1590
        %1654 = vmatpush1.bf16.msra.mxu0 %v1589
        %1655 = vmatprep.subr.bf16.mxu0 %v1592
        %1656 = vmatpush1.bf16.msra.mxu0 %v1591
        %1657 = vmatprep.subr.bf16.mxu0 %v1594
        %1658 = vmatpush1.bf16.msra.mxu0 %v1593
        %1659 = vmatprep.subr.bf16.mxu0 %v1596
        %1660 = vmatpush1.bf16.msra.mxu0 %v1595
        %1661 = vmatprep.subr.bf16.mxu0 %v1598
        %1662 = vmatpush1.bf16.msra.mxu0 %v1597
        %1663 = vmatprep.subr.bf16.mxu0 %v1600
        %1664 = vmatpush1.bf16.msra.mxu0 %v1599
        %1665 = vmatprep.mubr.bf16.mxu0 %v1470
        %1666 = vmatmul.mubr.bf16.gmra.mrb[0].mxu0 %v1469
        %v1667 = vpop.f32.mrb[0].mxu0
        %v1668 = vadd.f32 0.0, %v1667
        %v1669 = vpop.f32.mrb[0].mxu0
        %v1670 = vadd.f32 0.0, %v1669
        %v1671 = vpop.f32.mrb[0].mxu0
        %v1672 = vpop.f32.mrb[0].mxu0
        %1673 = vdwg.mxu0
        %v1674 = vadd.f32 %v1428, %v1668
        %v1675 = vadd.f32 %v1429, %v1670
        %s1676 = sadd.s32 %s173, 2
        %s1677 = smul.u32 %s1676, 2
        %s1678 = smul.addr %s1677, 4
        %s1679 = scalar_lea.vmem %s165, %s1678
        %v1680 = vld [vmem:[%s1679] sm:$0x33]
        %s1681 = scalar_lea.vmem %s1, 1536
        %v1682 = vld [vmem:[%s1681] sm:$0xff]
        %v1683 = vld [vmem:[%s1681 + $0x8] sm:$0xff]
        %v1684 = vld [vmem:[%s1681 + $0x10] sm:$0xff]
        %v1685 = vld [vmem:[%s1681 + $0x18] sm:$0xff]
        %v1686 = vld [vmem:[%s1681 + $0x20] sm:$0xff]
        %v1687 = vld [vmem:[%s1681 + $0x28] sm:$0xff]
        %v1688 = vld [vmem:[%s1681 + $0x30] sm:$0xff]
        %v1689 = vld [vmem:[%s1681 + $0x38] sm:$0xff]
        %v1690 = vld [vmem:[%s1681 + $0x40] sm:$0xff]
        %v1691 = vld [vmem:[%s1681 + $0x48] sm:$0xff]
        %v1692 = vld [vmem:[%s1681 + $0x50] sm:$0xff]
        %v1693 = vld [vmem:[%s1681 + $0x58] sm:$0xff]
        %v1694 = vld [vmem:[%s1681 + $0x60] sm:$0xff]
        %v1695 = vld [vmem:[%s1681 + $0x68] sm:$0xff]
        %v1696 = vld [vmem:[%s1681 + $0x70] sm:$0xff]
        %v1697 = vld [vmem:[%s1681 + $0x78] sm:$0xff]
        %v1698 = vld [vmem:[%s1681 + $0x80] sm:$0xff]
        %v1699 = vld [vmem:[%s1681 + $0x88] sm:$0xff]
        %v1700 = vld [vmem:[%s1681 + $0x90] sm:$0xff]
        %v1701 = vld [vmem:[%s1681 + $0x98] sm:$0xff]
        %v1702 = vld [vmem:[%s1681 + $0xa0] sm:$0xff]
        %v1703 = vld [vmem:[%s1681 + $0xa8] sm:$0xff]
        %v1704 = vld [vmem:[%s1681 + $0xb0] sm:$0xff]
        %v1705 = vld [vmem:[%s1681 + $0xb8] sm:$0xff]
        %v1706 = vld [vmem:[%s1681 + $0xc0] sm:$0xff]
        %v1707 = vld [vmem:[%s1681 + $0xc8] sm:$0xff]
        %v1708 = vld [vmem:[%s1681 + $0xd0] sm:$0xff]
        %v1709 = vld [vmem:[%s1681 + $0xd8] sm:$0xff]
        %v1710 = vld [vmem:[%s1681 + $0xe0] sm:$0xff]
        %v1711 = vld [vmem:[%s1681 + $0xe8] sm:$0xff]
        %v1712 = vld [vmem:[%s1681 + $0xf0] sm:$0xff]
        %v1713 = vld [vmem:[%s1681 + $0xf8] sm:$0xff]
        %v1715 = vunpack.c.l.b16 %v1680
        %v1716 = vunpack.c.h.b16 %v1680
        %v1717 = vpack.c.b16 %v1715, %v1715
        %v1718 = vpack.c.b16 %v1716, %v1716
        %v1753 = vunpack.c.l.b16 %v1682
        %v1754 = vunpack.c.h.b16 %v1682
        %v1755 = vunpack.c.l.b16 %v1683
        %v1756 = vunpack.c.h.b16 %v1683
        %v1757 = vunpack.c.l.b16 %v1684
        %v1758 = vunpack.c.h.b16 %v1684
        %v1759 = vunpack.c.l.b16 %v1685
        %v1760 = vunpack.c.h.b16 %v1685
        %v1761 = vunpack.c.l.b16 %v1686
        %v1762 = vunpack.c.h.b16 %v1686
        %v1763 = vunpack.c.l.b16 %v1687
        %v1764 = vunpack.c.h.b16 %v1687
        %v1765 = vunpack.c.l.b16 %v1688
        %v1766 = vunpack.c.h.b16 %v1688
        %v1767 = vunpack.c.l.b16 %v1689
        %v1768 = vunpack.c.h.b16 %v1689
        %v1769 = vunpack.c.l.b16 %v1690
        %v1770 = vunpack.c.h.b16 %v1690
        %v1771 = vunpack.c.l.b16 %v1691
        %v1772 = vunpack.c.h.b16 %v1691
        %v1773 = vunpack.c.l.b16 %v1692
        %v1774 = vunpack.c.h.b16 %v1692
        %v1775 = vunpack.c.l.b16 %v1693
        %v1776 = vunpack.c.h.b16 %v1693
        %v1777 = vunpack.c.l.b16 %v1694
        %v1778 = vunpack.c.h.b16 %v1694
        %v1779 = vunpack.c.l.b16 %v1695
        %v1780 = vunpack.c.h.b16 %v1695
        %v1781 = vunpack.c.l.b16 %v1696
        %v1782 = vunpack.c.h.b16 %v1696
        %v1783 = vunpack.c.l.b16 %v1697
        %v1784 = vunpack.c.h.b16 %v1697
        %v1785 = vunpack.c.l.b16 %v1698
        %v1786 = vunpack.c.h.b16 %v1698
        %v1787 = vunpack.c.l.b16 %v1699
        %v1788 = vunpack.c.h.b16 %v1699
        %v1789 = vunpack.c.l.b16 %v1700
        %v1790 = vunpack.c.h.b16 %v1700
        %v1791 = vunpack.c.l.b16 %v1701
        %v1792 = vunpack.c.h.b16 %v1701
        %v1793 = vunpack.c.l.b16 %v1702
        %v1794 = vunpack.c.h.b16 %v1702
        %v1795 = vunpack.c.l.b16 %v1703
        %v1796 = vunpack.c.h.b16 %v1703
        %v1797 = vunpack.c.l.b16 %v1704
        %v1798 = vunpack.c.h.b16 %v1704
        %v1799 = vunpack.c.l.b16 %v1705
        %v1800 = vunpack.c.h.b16 %v1705
        %v1801 = vunpack.c.l.b16 %v1706
        %v1802 = vunpack.c.h.b16 %v1706
        %v1803 = vunpack.c.l.b16 %v1707
        %v1804 = vunpack.c.h.b16 %v1707
        %v1805 = vunpack.c.l.b16 %v1708
        %v1806 = vunpack.c.h.b16 %v1708
        %v1807 = vunpack.c.l.b16 %v1709
        %v1808 = vunpack.c.h.b16 %v1709
        %v1809 = vunpack.c.l.b16 %v1710
        %v1810 = vunpack.c.h.b16 %v1710
        %v1811 = vunpack.c.l.b16 %v1711
        %v1812 = vunpack.c.h.b16 %v1711
        %v1813 = vunpack.c.l.b16 %v1712
        %v1814 = vunpack.c.h.b16 %v1712
        %v1815 = vunpack.c.l.b16 %v1713
        %v1816 = vunpack.c.h.b16 %v1713
        %v1817 = vpack.c.b16 %v1755, %v1753
        %v1818 = vpack.c.b16 %v1756, %v1754
        %v1819 = vpack.c.b16 %v1759, %v1757
        %v1820 = vpack.c.b16 %v1760, %v1758
        %v1821 = vpack.c.b16 %v1763, %v1761
        %v1822 = vpack.c.b16 %v1764, %v1762
        %v1823 = vpack.c.b16 %v1767, %v1765
        %v1824 = vpack.c.b16 %v1768, %v1766
        %v1825 = vpack.c.b16 %v1771, %v1769
        %v1826 = vpack.c.b16 %v1772, %v1770
        %v1827 = vpack.c.b16 %v1775, %v1773
        %v1828 = vpack.c.b16 %v1776, %v1774
        %v1829 = vpack.c.b16 %v1779, %v1777
        %v1830 = vpack.c.b16 %v1780, %v1778
        %v1831 = vpack.c.b16 %v1783, %v1781
        %v1832 = vpack.c.b16 %v1784, %v1782
        %v1833 = vpack.c.b16 %v1787, %v1785
        %v1834 = vpack.c.b16 %v1788, %v1786
        %v1835 = vpack.c.b16 %v1791, %v1789
        %v1836 = vpack.c.b16 %v1792, %v1790
        %v1837 = vpack.c.b16 %v1795, %v1793
        %v1838 = vpack.c.b16 %v1796, %v1794
        %v1839 = vpack.c.b16 %v1799, %v1797
        %v1840 = vpack.c.b16 %v1800, %v1798
        %v1841 = vpack.c.b16 %v1803, %v1801
        %v1842 = vpack.c.b16 %v1804, %v1802
        %v1843 = vpack.c.b16 %v1807, %v1805
        %v1844 = vpack.c.b16 %v1808, %v1806
        %v1845 = vpack.c.b16 %v1811, %v1809
        %v1846 = vpack.c.b16 %v1812, %v1810
        %v1847 = vpack.c.b16 %v1815, %v1813
        %v1848 = vpack.c.b16 %v1816, %v1814
        %1881 = vmatprep.subr.bf16.mxu0 %v1818
        %1882 = vmatpush1.bf16.msra.mxu0 %v1817
        %1883 = vmatprep.subr.bf16.mxu0 %v1820
        %1884 = vmatpush1.bf16.msra.mxu0 %v1819
        %1885 = vmatprep.subr.bf16.mxu0 %v1822
        %1886 = vmatpush1.bf16.msra.mxu0 %v1821
        %1887 = vmatprep.subr.bf16.mxu0 %v1824
        %1888 = vmatpush1.bf16.msra.mxu0 %v1823
        %1889 = vmatprep.subr.bf16.mxu0 %v1826
        %1890 = vmatpush1.bf16.msra.mxu0 %v1825
        %1891 = vmatprep.subr.bf16.mxu0 %v1828
        %1892 = vmatpush1.bf16.msra.mxu0 %v1827
        %1893 = vmatprep.subr.bf16.mxu0 %v1830
        %1894 = vmatpush1.bf16.msra.mxu0 %v1829
        %1895 = vmatprep.subr.bf16.mxu0 %v1832
        %1896 = vmatpush1.bf16.msra.mxu0 %v1831
        %1897 = vmatprep.subr.bf16.mxu0 %v1834
        %1898 = vmatpush1.bf16.msra.mxu0 %v1833
        %1899 = vmatprep.subr.bf16.mxu0 %v1836
        %1900 = vmatpush1.bf16.msra.mxu0 %v1835
        %1901 = vmatprep.subr.bf16.mxu0 %v1838
        %1902 = vmatpush1.bf16.msra.mxu0 %v1837
        %1903 = vmatprep.subr.bf16.mxu0 %v1840
        %1904 = vmatpush1.bf16.msra.mxu0 %v1839
        %1905 = vmatprep.subr.bf16.mxu0 %v1842
        %1906 = vmatpush1.bf16.msra.mxu0 %v1841
        %1907 = vmatprep.subr.bf16.mxu0 %v1844
        %1908 = vmatpush1.bf16.msra.mxu0 %v1843
        %1909 = vmatprep.subr.bf16.mxu0 %v1846
        %1910 = vmatpush1.bf16.msra.mxu0 %v1845
        %1911 = vmatprep.subr.bf16.mxu0 %v1848
        %1912 = vmatpush1.bf16.msra.mxu0 %v1847
        %1913 = vmatprep.mubr.bf16.mxu0 %v1718
        %1914 = vmatmul.mubr.bf16.gmra.mrb[0].mxu0 %v1717
        %v1915 = vpop.f32.mrb[0].mxu0
        %v1916 = vadd.f32 0.0, %v1915
        %v1917 = vpop.f32.mrb[0].mxu0
        %v1918 = vadd.f32 0.0, %v1917
        %v1919 = vpop.f32.mrb[0].mxu0
        %v1920 = vpop.f32.mrb[0].mxu0
        %1921 = vdwg.mxu0
        %v1922 = vadd.f32 %v1674, %v1916
        %v1923 = vadd.f32 %v1675, %v1918
        %v1924 = vld [vmem:[%s1679] sm:$0x77]
        %s1925 = scalar_lea.vmem %s1, 1792
        %v1926 = vld [vmem:[%s1925] sm:$0xff]
        %v1927 = vld [vmem:[%s1925 + $0x8] sm:$0xff]
        %v1928 = vld [vmem:[%s1925 + $0x10] sm:$0xff]
        %v1929 = vld [vmem:[%s1925 + $0x18] sm:$0xff]
        %v1930 = vld [vmem:[%s1925 + $0x20] sm:$0xff]
        %v1931 = vld [vmem:[%s1925 + $0x28] sm:$0xff]
        %v1932 = vld [vmem:[%s1925 + $0x30] sm:$0xff]
        %v1933 = vld [vmem:[%s1925 + $0x38] sm:$0xff]
        %v1934 = vld [vmem:[%s1925 + $0x40] sm:$0xff]
        %v1935 = vld [vmem:[%s1925 + $0x48] sm:$0xff]
        %v1936 = vld [vmem:[%s1925 + $0x50] sm:$0xff]
        %v1937 = vld [vmem:[%s1925 + $0x58] sm:$0xff]
        %v1938 = vld [vmem:[%s1925 + $0x60] sm:$0xff]
        %v1939 = vld [vmem:[%s1925 + $0x68] sm:$0xff]
        %v1940 = vld [vmem:[%s1925 + $0x70] sm:$0xff]
        %v1941 = vld [vmem:[%s1925 + $0x78] sm:$0xff]
        %v1942 = vld [vmem:[%s1925 + $0x80] sm:$0xff]
        %v1943 = vld [vmem:[%s1925 + $0x88] sm:$0xff]
        %v1944 = vld [vmem:[%s1925 + $0x90] sm:$0xff]
        %v1945 = vld [vmem:[%s1925 + $0x98] sm:$0xff]
        %v1946 = vld [vmem:[%s1925 + $0xa0] sm:$0xff]
        %v1947 = vld [vmem:[%s1925 + $0xa8] sm:$0xff]
        %v1948 = vld [vmem:[%s1925 + $0xb0] sm:$0xff]
        %v1949 = vld [vmem:[%s1925 + $0xb8] sm:$0xff]
        %v1950 = vld [vmem:[%s1925 + $0xc0] sm:$0xff]
        %v1951 = vld [vmem:[%s1925 + $0xc8] sm:$0xff]
        %v1952 = vld [vmem:[%s1925 + $0xd0] sm:$0xff]
        %v1953 = vld [vmem:[%s1925 + $0xd8] sm:$0xff]
        %v1954 = vld [vmem:[%s1925 + $0xe0] sm:$0xff]
        %v1955 = vld [vmem:[%s1925 + $0xe8] sm:$0xff]
        %v1956 = vld [vmem:[%s1925 + $0xf0] sm:$0xff]
        %v1957 = vld [vmem:[%s1925 + $0xf8] sm:$0xff]
        %v1959 = vunpack.c.l.b16 %v1924
        %v1960 = vunpack.c.h.b16 %v1924
        %v1961 = vpack.c.b16 %v1959, %v1959
        %v1962 = vpack.c.b16 %v1960, %v1960
        %v1964 = vshrl.u32 %v1961, 16
        %v1966 = vshll.u32 %v1961, 16
        %v1968 = vrot.slane %v1966, 1
        %v1969 = vor.u32 %v1964, %v1968
        %v1971 = vshrl.u32 %v1962, 16
        %v1973 = vshll.u32 %v1962, 16
        %v1975 = vrot.slane %v1973, 1
        %v1976 = vor.u32 %v1971, %v1975
        %v2011 = vunpack.c.l.b16 %v1926
        %v2012 = vunpack.c.h.b16 %v1926
        %v2013 = vunpack.c.l.b16 %v1927
        %v2014 = vunpack.c.h.b16 %v1927
        %v2015 = vunpack.c.l.b16 %v1928
        %v2016 = vunpack.c.h.b16 %v1928
        %v2017 = vunpack.c.l.b16 %v1929
        %v2018 = vunpack.c.h.b16 %v1929
        %v2019 = vunpack.c.l.b16 %v1930
        %v2020 = vunpack.c.h.b16 %v1930
        %v2021 = vunpack.c.l.b16 %v1931
        %v2022 = vunpack.c.h.b16 %v1931
        %v2023 = vunpack.c.l.b16 %v1932
        %v2024 = vunpack.c.h.b16 %v1932
        %v2025 = vunpack.c.l.b16 %v1933
        %v2026 = vunpack.c.h.b16 %v1933
        %v2027 = vunpack.c.l.b16 %v1934
        %v2028 = vunpack.c.h.b16 %v1934
        %v2029 = vunpack.c.l.b16 %v1935
        %v2030 = vunpack.c.h.b16 %v1935
        %v2031 = vunpack.c.l.b16 %v1936
        %v2032 = vunpack.c.h.b16 %v1936
        %v2033 = vunpack.c.l.b16 %v1937
        %v2034 = vunpack.c.h.b16 %v1937
        %v2035 = vunpack.c.l.b16 %v1938
        %v2036 = vunpack.c.h.b16 %v1938
        %v2037 = vunpack.c.l.b16 %v1939
        %v2038 = vunpack.c.h.b16 %v1939
        %v2039 = vunpack.c.l.b16 %v1940
        %v2040 = vunpack.c.h.b16 %v1940
        %v2041 = vunpack.c.l.b16 %v1941
        %v2042 = vunpack.c.h.b16 %v1941
        %v2043 = vunpack.c.l.b16 %v1942
        %v2044 = vunpack.c.h.b16 %v1942
        %v2045 = vunpack.c.l.b16 %v1943
        %v2046 = vunpack.c.h.b16 %v1943
        %v2047 = vunpack.c.l.b16 %v1944
        %v2048 = vunpack.c.h.b16 %v1944
        %v2049 = vunpack.c.l.b16 %v1945
        %v2050 = vunpack.c.h.b16 %v1945
        %v2051 = vunpack.c.l.b16 %v1946
        %v2052 = vunpack.c.h.b16 %v1946
        %v2053 = vunpack.c.l.b16 %v1947
        %v2054 = vunpack.c.h.b16 %v1947
        %v2055 = vunpack.c.l.b16 %v1948
        %v2056 = vunpack.c.h.b16 %v1948
        %v2057 = vunpack.c.l.b16 %v1949
        %v2058 = vunpack.c.h.b16 %v1949
        %v2059 = vunpack.c.l.b16 %v1950
        %v2060 = vunpack.c.h.b16 %v1950
        %v2061 = vunpack.c.l.b16 %v1951
        %v2062 = vunpack.c.h.b16 %v1951
        %v2063 = vunpack.c.l.b16 %v1952
        %v2064 = vunpack.c.h.b16 %v1952
        %v2065 = vunpack.c.l.b16 %v1953
        %v2066 = vunpack.c.h.b16 %v1953
        %v2067 = vunpack.c.l.b16 %v1954
        %v2068 = vunpack.c.h.b16 %v1954
        %v2069 = vunpack.c.l.b16 %v1955
        %v2070 = vunpack.c.h.b16 %v1955
        %v2071 = vunpack.c.l.b16 %v1956
        %v2072 = vunpack.c.h.b16 %v1956
        %v2073 = vunpack.c.l.b16 %v1957
        %v2074 = vunpack.c.h.b16 %v1957
        %v2075 = vpack.c.b16 %v2013, %v2011
        %v2076 = vpack.c.b16 %v2014, %v2012
        %v2077 = vpack.c.b16 %v2017, %v2015
        %v2078 = vpack.c.b16 %v2018, %v2016
        %v2079 = vpack.c.b16 %v2021, %v2019
        %v2080 = vpack.c.b16 %v2022, %v2020
        %v2081 = vpack.c.b16 %v2025, %v2023
        %v2082 = vpack.c.b16 %v2026, %v2024
        %v2083 = vpack.c.b16 %v2029, %v2027
        %v2084 = vpack.c.b16 %v2030, %v2028
        %v2085 = vpack.c.b16 %v2033, %v2031
        %v2086 = vpack.c.b16 %v2034, %v2032
        %v2087 = vpack.c.b16 %v2037, %v2035
        %v2088 = vpack.c.b16 %v2038, %v2036
        %v2089 = vpack.c.b16 %v2041, %v2039
        %v2090 = vpack.c.b16 %v2042, %v2040
        %v2091 = vpack.c.b16 %v2045, %v2043
        %v2092 = vpack.c.b16 %v2046, %v2044
        %v2093 = vpack.c.b16 %v2049, %v2047
        %v2094 = vpack.c.b16 %v2050, %v2048
        %v2095 = vpack.c.b16 %v2053, %v2051
        %v2096 = vpack.c.b16 %v2054, %v2052
        %v2097 = vpack.c.b16 %v2057, %v2055
        %v2098 = vpack.c.b16 %v2058, %v2056
        %v2099 = vpack.c.b16 %v2061, %v2059
        %v2100 = vpack.c.b16 %v2062, %v2060
        %v2101 = vpack.c.b16 %v2065, %v2063
        %v2102 = vpack.c.b16 %v2066, %v2064
        %v2103 = vpack.c.b16 %v2069, %v2067
        %v2104 = vpack.c.b16 %v2070, %v2068
        %v2105 = vpack.c.b16 %v2073, %v2071
        %v2106 = vpack.c.b16 %v2074, %v2072
        %2139 = vmatprep.subr.bf16.mxu0 %v2076
        %2140 = vmatpush1.bf16.msra.mxu0 %v2075
        %2141 = vmatprep.subr.bf16.mxu0 %v2078
        %2142 = vmatpush1.bf16.msra.mxu0 %v2077
        %2143 = vmatprep.subr.bf16.mxu0 %v2080
        %2144 = vmatpush1.bf16.msra.mxu0 %v2079
        %2145 = vmatprep.subr.bf16.mxu0 %v2082
        %2146 = vmatpush1.bf16.msra.mxu0 %v2081
        %2147 = vmatprep.subr.bf16.mxu0 %v2084
        %2148 = vmatpush1.bf16.msra.mxu0 %v2083
        %2149 = vmatprep.subr.bf16.mxu0 %v2086
        %2150 = vmatpush1.bf16.msra.mxu0 %v2085
        %2151 = vmatprep.subr.bf16.mxu0 %v2088
        %2152 = vmatpush1.bf16.msra.mxu0 %v2087
        %2153 = vmatprep.subr.bf16.mxu0 %v2090
        %2154 = vmatpush1.bf16.msra.mxu0 %v2089
        %2155 = vmatprep.subr.bf16.mxu0 %v2092
        %2156 = vmatpush1.bf16.msra.mxu0 %v2091
        %2157 = vmatprep.subr.bf16.mxu0 %v2094
        %2158 = vmatpush1.bf16.msra.mxu0 %v2093
        %2159 = vmatprep.subr.bf16.mxu0 %v2096
        %2160 = vmatpush1.bf16.msra.mxu0 %v2095
        %2161 = vmatprep.subr.bf16.mxu0 %v2098
        %2162 = vmatpush1.bf16.msra.mxu0 %v2097
        %2163 = vmatprep.subr.bf16.mxu0 %v2100
        %2164 = vmatpush1.bf16.msra.mxu0 %v2099
        %2165 = vmatprep.subr.bf16.mxu0 %v2102
        %2166 = vmatpush1.bf16.msra.mxu0 %v2101
        %2167 = vmatprep.subr.bf16.mxu0 %v2104
        %2168 = vmatpush1.bf16.msra.mxu0 %v2103
        %2169 = vmatprep.subr.bf16.mxu0 %v2106
        %2170 = vmatpush1.bf16.msra.mxu0 %v2105
        %2171 = vmatprep.mubr.bf16.mxu0 %v1976
        %2172 = vmatmul.mubr.bf16.gmra.mrb[0].mxu0 %v1969
        %v2173 = vpop.f32.mrb[0].mxu0
        %v2174 = vadd.f32 0.0, %v2173
        %v2175 = vpop.f32.mrb[0].mxu0
        %v2176 = vadd.f32 0.0, %v2175
        %v2177 = vpop.f32.mrb[0].mxu0
        %v2178 = vpop.f32.mrb[0].mxu0
        %2179 = vdwg.mxu0
        %v2180 = vadd.f32 %v1922, %v2174
        %v2181 = vadd.f32 %v1923, %v2176
        %v2182 = vld [vmem:[%s1679] sm:$0x66]
        %s2183 = scalar_lea.vmem %s1, 2048
        %v2184 = vld [vmem:[%s2183] sm:$0xff]
        %v2185 = vld [vmem:[%s2183 + $0x8] sm:$0xff]
        %v2186 = vld [vmem:[%s2183 + $0x10] sm:$0xff]
        %v2187 = vld [vmem:[%s2183 + $0x18] sm:$0xff]
        %v2188 = vld [vmem:[%s2183 + $0x20] sm:$0xff]
        %v2189 = vld [vmem:[%s2183 + $0x28] sm:$0xff]
        %v2190 = vld [vmem:[%s2183 + $0x30] sm:$0xff]
        %v2191 = vld [vmem:[%s2183 + $0x38] sm:$0xff]
        %v2192 = vld [vmem:[%s2183 + $0x40] sm:$0xff]
        %v2193 = vld [vmem:[%s2183 + $0x48] sm:$0xff]
        %v2194 = vld [vmem:[%s2183 + $0x50] sm:$0xff]
        %v2195 = vld [vmem:[%s2183 + $0x58] sm:$0xff]
        %v2196 = vld [vmem:[%s2183 + $0x60] sm:$0xff]
        %v2197 = vld [vmem:[%s2183 + $0x68] sm:$0xff]
        %v2198 = vld [vmem:[%s2183 + $0x70] sm:$0xff]
        %v2199 = vld [vmem:[%s2183 + $0x78] sm:$0xff]
        %v2200 = vld [vmem:[%s2183 + $0x80] sm:$0xff]
        %v2201 = vld [vmem:[%s2183 + $0x88] sm:$0xff]
        %v2202 = vld [vmem:[%s2183 + $0x90] sm:$0xff]
        %v2203 = vld [vmem:[%s2183 + $0x98] sm:$0xff]
        %v2204 = vld [vmem:[%s2183 + $0xa0] sm:$0xff]
        %v2205 = vld [vmem:[%s2183 + $0xa8] sm:$0xff]
        %v2206 = vld [vmem:[%s2183 + $0xb0] sm:$0xff]
        %v2207 = vld [vmem:[%s2183 + $0xb8] sm:$0xff]
        %v2208 = vld [vmem:[%s2183 + $0xc0] sm:$0xff]
        %v2209 = vld [vmem:[%s2183 + $0xc8] sm:$0xff]
        %v2210 = vld [vmem:[%s2183 + $0xd0] sm:$0xff]
        %v2211 = vld [vmem:[%s2183 + $0xd8] sm:$0xff]
        %v2212 = vld [vmem:[%s2183 + $0xe0] sm:$0xff]
        %v2213 = vld [vmem:[%s2183 + $0xe8] sm:$0xff]
        %v2214 = vld [vmem:[%s2183 + $0xf0] sm:$0xff]
        %v2215 = vld [vmem:[%s2183 + $0xf8] sm:$0xff]
        %v2217 = vunpack.c.l.b16 %v2182
        %v2218 = vunpack.c.h.b16 %v2182
        %v2219 = vpack.c.b16 %v2217, %v2217
        %v2220 = vpack.c.b16 %v2218, %v2218
        %v2221 = vrot.slane %v2219, 1
        %v2222 = vrot.slane %v2220, 1
        %v2257 = vunpack.c.l.b16 %v2184
        %v2258 = vunpack.c.h.b16 %v2184
        %v2259 = vunpack.c.l.b16 %v2185
        %v2260 = vunpack.c.h.b16 %v2185
        %v2261 = vunpack.c.l.b16 %v2186
        %v2262 = vunpack.c.h.b16 %v2186
        %v2263 = vunpack.c.l.b16 %v2187
        %v2264 = vunpack.c.h.b16 %v2187
        %v2265 = vunpack.c.l.b16 %v2188
        %v2266 = vunpack.c.h.b16 %v2188
        %v2267 = vunpack.c.l.b16 %v2189
        %v2268 = vunpack.c.h.b16 %v2189
        %v2269 = vunpack.c.l.b16 %v2190
        %v2270 = vunpack.c.h.b16 %v2190
        %v2271 = vunpack.c.l.b16 %v2191
        %v2272 = vunpack.c.h.b16 %v2191
        %v2273 = vunpack.c.l.b16 %v2192
        %v2274 = vunpack.c.h.b16 %v2192
        %v2275 = vunpack.c.l.b16 %v2193
        %v2276 = vunpack.c.h.b16 %v2193
        %v2277 = vunpack.c.l.b16 %v2194
        %v2278 = vunpack.c.h.b16 %v2194
        %v2279 = vunpack.c.l.b16 %v2195
        %v2280 = vunpack.c.h.b16 %v2195
        %v2281 = vunpack.c.l.b16 %v2196
        %v2282 = vunpack.c.h.b16 %v2196
        %v2283 = vunpack.c.l.b16 %v2197
        %v2284 = vunpack.c.h.b16 %v2197
        %v2285 = vunpack.c.l.b16 %v2198
        %v2286 = vunpack.c.h.b16 %v2198
        %v2287 = vunpack.c.l.b16 %v2199
        %v2288 = vunpack.c.h.b16 %v2199
        %v2289 = vunpack.c.l.b16 %v2200
        %v2290 = vunpack.c.h.b16 %v2200
        %v2291 = vunpack.c.l.b16 %v2201
        %v2292 = vunpack.c.h.b16 %v2201
        %v2293 = vunpack.c.l.b16 %v2202
        %v2294 = vunpack.c.h.b16 %v2202
        %v2295 = vunpack.c.l.b16 %v2203
        %v2296 = vunpack.c.h.b16 %v2203
        %v2297 = vunpack.c.l.b16 %v2204
        %v2298 = vunpack.c.h.b16 %v2204
        %v2299 = vunpack.c.l.b16 %v2205
        %v2300 = vunpack.c.h.b16 %v2205
        %v2301 = vunpack.c.l.b16 %v2206
        %v2302 = vunpack.c.h.b16 %v2206
        %v2303 = vunpack.c.l.b16 %v2207
        %v2304 = vunpack.c.h.b16 %v2207
        %v2305 = vunpack.c.l.b16 %v2208
        %v2306 = vunpack.c.h.b16 %v2208
        %v2307 = vunpack.c.l.b16 %v2209
        %v2308 = vunpack.c.h.b16 %v2209
        %v2309 = vunpack.c.l.b16 %v2210
        %v2310 = vunpack.c.h.b16 %v2210
        %v2311 = vunpack.c.l.b16 %v2211
        %v2312 = vunpack.c.h.b16 %v2211
        %v2313 = vunpack.c.l.b16 %v2212
        %v2314 = vunpack.c.h.b16 %v2212
        %v2315 = vunpack.c.l.b16 %v2213
        %v2316 = vunpack.c.h.b16 %v2213
        %v2317 = vunpack.c.l.b16 %v2214
        %v2318 = vunpack.c.h.b16 %v2214
        %v2319 = vunpack.c.l.b16 %v2215
        %v2320 = vunpack.c.h.b16 %v2215
        %v2321 = vpack.c.b16 %v2259, %v2257
        %v2322 = vpack.c.b16 %v2260, %v2258
        %v2323 = vpack.c.b16 %v2263, %v2261
        %v2324 = vpack.c.b16 %v2264, %v2262
        %v2325 = vpack.c.b16 %v2267, %v2265
        %v2326 = vpack.c.b16 %v2268, %v2266
        %v2327 = vpack.c.b16 %v2271, %v2269
        %v2328 = vpack.c.b16 %v2272, %v2270
        %v2329 = vpack.c.b16 %v2275, %v2273
        %v2330 = vpack.c.b16 %v2276, %v2274
        %v2331 = vpack.c.b16 %v2279, %v2277
        %v2332 = vpack.c.b16 %v2280, %v2278
        %v2333 = vpack.c.b16 %v2283, %v2281
        %v2334 = vpack.c.b16 %v2284, %v2282
        %v2335 = vpack.c.b16 %v2287, %v2285
        %v2336 = vpack.c.b16 %v2288, %v2286
        %v2337 = vpack.c.b16 %v2291, %v2289
        %v2338 = vpack.c.b16 %v2292, %v2290
        %v2339 = vpack.c.b16 %v2295, %v2293
        %v2340 = vpack.c.b16 %v2296, %v2294
        %v2341 = vpack.c.b16 %v2299, %v2297
        %v2342 = vpack.c.b16 %v2300, %v2298
        %v2343 = vpack.c.b16 %v2303, %v2301
        %v2344 = vpack.c.b16 %v2304, %v2302
        %v2345 = vpack.c.b16 %v2307, %v2305
        %v2346 = vpack.c.b16 %v2308, %v2306
        %v2347 = vpack.c.b16 %v2311, %v2309
        %v2348 = vpack.c.b16 %v2312, %v2310
        %v2349 = vpack.c.b16 %v2315, %v2313
        %v2350 = vpack.c.b16 %v2316, %v2314
        %v2351 = vpack.c.b16 %v2319, %v2317
        %v2352 = vpack.c.b16 %v2320, %v2318
        %2385 = vmatprep.subr.bf16.mxu0 %v2322
        %2386 = vmatpush1.bf16.msra.mxu0 %v2321
        %2387 = vmatprep.subr.bf16.mxu0 %v2324
        %2388 = vmatpush1.bf16.msra.mxu0 %v2323
        %2389 = vmatprep.subr.bf16.mxu0 %v2326
        %2390 = vmatpush1.bf16.msra.mxu0 %v2325
        %2391 = vmatprep.subr.bf16.mxu0 %v2328
        %2392 = vmatpush1.bf16.msra.mxu0 %v2327
        %2393 = vmatprep.subr.bf16.mxu0 %v2330
        %2394 = vmatpush1.bf16.msra.mxu0 %v2329
        %2395 = vmatprep.subr.bf16.mxu0 %v2332
        %2396 = vmatpush1.bf16.msra.mxu0 %v2331
        %2397 = vmatprep.subr.bf16.mxu0 %v2334
        %2398 = vmatpush1.bf16.msra.mxu0 %v2333
        %2399 = vmatprep.subr.bf16.mxu0 %v2336
        %2400 = vmatpush1.bf16.msra.mxu0 %v2335
        %2401 = vmatprep.subr.bf16.mxu0 %v2338
        %2402 = vmatpush1.bf16.msra.mxu0 %v2337
        %2403 = vmatprep.subr.bf16.mxu0 %v2340
        %2404 = vmatpush1.bf16.msra.mxu0 %v2339
        %2405 = vmatprep.subr.bf16.mxu0 %v2342
        %2406 = vmatpush1.bf16.msra.mxu0 %v2341
        %2407 = vmatprep.subr.bf16.mxu0 %v2344
        %2408 = vmatpush1.bf16.msra.mxu0 %v2343
        %2409 = vmatprep.subr.bf16.mxu0 %v2346
        %2410 = vmatpush1.bf16.msra.mxu0 %v2345
        %2411 = vmatprep.subr.bf16.mxu0 %v2348
        %2412 = vmatpush1.bf16.msra.mxu0 %v2347
        %2413 = vmatprep.subr.bf16.mxu0 %v2350
        %2414 = vmatpush1.bf16.msra.mxu0 %v2349
        %2415 = vmatprep.subr.bf16.mxu0 %v2352
        %2416 = vmatpush1.bf16.msra.mxu0 %v2351
        %2417 = vmatprep.mubr.bf16.mxu0 %v2222
        %2418 = vmatmul.mubr.bf16.gmra.mrb[0].mxu0 %v2221
        %v2419 = vpop.f32.mrb[0].mxu0
        %v2420 = vadd.f32 0.0, %v2419
        %v2421 = vpop.f32.mrb[0].mxu0
        %v2422 = vadd.f32 0.0, %v2421
        %v2423 = vpop.f32.mrb[0].mxu0
        %v2424 = vpop.f32.mrb[0].mxu0
        %2425 = vdwg.mxu0
        %v2426 = vadd.f32 %v2180, %v2420
        %v2427 = vadd.f32 %v2181, %v2422
        %v2429 = vlaneseq
        %v2430 = vshrl.u32 %v2429, 7
        %v2431 = vsub.s32 0, %v2430
        %v2432 = vrot.slane %v171, %v2431
        %v2433 = vlaneseq
        %v2434 = vshrl.u32 %v2433, 7
        %v2435 = vsub.s32 1, %v2434
        %v2436 = vrot.slane %v171, %v2435
        %v2439 = vadd.f32 %v2426, %v2432
        %v2440 = vadd.f32 %v2427, %v2436
        %v2441 = vmax.f32 %v2439, 0.0
        %v2442 = vmax.f32 %v2440, 0.0
        %v2443 = vpack.c.bf16 %v2441, %v2441
        %v2444 = vpack.c.bf16 %v2442, %v2442
        %v2447 = vcombine.low %v2443, %v2444
        %v2449 = vunpack.c.l.s4 1983009808
        %v2450 = vunpack.c.0.s8 %v2449
        %v2451 = vlaneseq
        %v2452 = vshrl.u32 %v2451, 7
        %v2453 = vsub.s32 %v2450, %v2452
        %v2454 = vrot.slane %v2447, %v2453
        %s2456 = smul.addr %s178, 2
        %s2457 = scalar_lea.vmem %s170, %s2456
        %2458 = vst [vmem:[%s2457] sm:$0xf] %v2454
      $region37: #{skelet_loss.17} parent=31 // loop_footer
        %s177 = sadd.s32 1, %s173
      $region38: #{skelet_loss.17} parent=31 // loop_footer_branch
        %172 = sbr.rel target = $region34
      $region39: #{skelet_loss.17} parent=31 // loop_exit
        _
      %p2459 = scmp.lt.s32.totalorder %s14, 3
      %s2460 = scalar_select %p2459, %s14, 3
      %s2461 = smul.addr %s2460, 8
      %s2462 = smul.addr %s2461, 2
      %s2463 = scalar_lea.vmem %s3, %s2462
      // Predicated region
      $region40: #{skelet_loss.17} parent=31 // pred_check
        %p2464 = pneg %p100
      $region41: #{skelet_loss.17} parent=31 // pred_check_branch
        %2466 = sbr.rel (%p2464) target = $region43
      $region42: #{skelet_loss.17} parent=31 // pred_region
        _
      $region43: #{skelet_loss.17} parent=31 // pred_fallthru
        _
    $region32: #{skelet_loss.17} parent=5 // pred_fallthru
      _
    %p2467 = scmp.le.s32.totalorder 2, %s9
    // Predicated region
    $region44: #{skelet_loss.17} parent=5 // pred_check
      %p2468 = pneg %p2467
    $region45: #{skelet_loss.17} parent=5 // pred_check_branch
      %2470 = sbr.rel (%p2468) target = $region47
    $region46: #{skelet_loss.17} parent=5 // pred_region
      %s2471 = ssub.s32 %s9, 2
      // Predicated region
      $region48: #{skelet_loss.17} parent=46 // pred_check
        %p2472 = pneg %p106
      $region49: #{skelet_loss.17} parent=46 // pred_check_branch
        %2474 = sbr.rel (%p2472) target = $region51
      $region50: #{skelet_loss.17} parent=46 // pred_region
        %p2475 = scmp.lt.s32.totalorder %s15, 3
        %s2476 = scalar_select %p2475, %s15, 3
        %s2477 = smul.addr %s2476, 8
        %s2478 = smul.addr %s2477, 2
        %s2479 = scalar_lea.vmem %s3, %s2478
      $region51: #{skelet_loss.17} parent=46 // pred_fallthru
        _
    $region47: #{skelet_loss.17} parent=5 // pred_fallthru
      _
  $region6: #{skelet_loss.17} parent=0 // loop_footer
    %s13 = sadd.s32 1, %s9
  $region7: #{skelet_loss.17} parent=0 // loop_footer_branch
    %8 = sbr.rel target = $region3
  $region8: #{skelet_loss.17} parent=0 // loop_exit
    _

// kernel: skelet_loss.19
$region0: #{skelet_loss.19}
  #allocation0 [shape = 'u32[]', space=smem, size = 0x4, offset = 0x4, fixed_abs, tag = 'smem constant byte address 0x4 - core index']
  #allocation1 [shape = 'u32[144,128]{1,0:T(1,128)}', space=vmem, size = 0x12000, scoped, tag = 'internal scratch']
  %s0 = inlined_call_operand.vmem [shape: bf16[16,512], index: 0, kind: input, shape index: {}]
  %s1 = inlined_call_operand.vmem [shape: bf16[16,512], index: 1, kind: input, shape index: {}]
  %s2 = inlined_call_operand.vmem [shape: f32[1,1,512], index: 2, kind: output, shape index: {}]
  %s3 = sld [smem:[#allocation0]]
  $region18: #{skelet_loss.19} parent=0
    _
  %s5 = ssub.s32 1, %s3
  %s6 = scalar_select 0, %s5, %s3
  // Predicated region
  $region2: #{skelet_loss.19} parent=0 // pred_check
    _
  $region3: #{skelet_loss.19} parent=0 // pred_check_branch
    %8 = sbr.rel (0) target = $region5
  $region4: #{skelet_loss.19} parent=0 // pred_region
    _
  $region5: #{skelet_loss.19} parent=0 // pred_fallthru
    _
  // Predicated region
  $region6: #{skelet_loss.19} parent=0 // pred_check
    _
  $region7: #{skelet_loss.19} parent=0 // pred_check_branch
    %10 = sbr.rel (0) target = $region9
  $region8: #{skelet_loss.19} parent=0 // pred_region
    _
  $region9: #{skelet_loss.19} parent=0 // pred_fallthru
    _
  %v11 = vld [vmem:[%s0] sm:$0xff]
  %v12 = vld [vmem:[%s0 + $0x8] sm:$0xff]
  %v13 = vld [vmem:[%s0 + $0x10] sm:$0xff]
  %v14 = vld [vmem:[%s0 + $0x18] sm:$0xff]
  %v15 = vunpack.c.l.bf16 %v11
  %v16 = vunpack.c.h.bf16 %v11
  %v17 = vunpack.c.l.bf16 %v12
  %v18 = vunpack.c.h.bf16 %v12
  %v19 = vunpack.c.l.bf16 %v13
  %v20 = vunpack.c.h.bf16 %v13
  %v21 = vunpack.c.l.bf16 %v14
  %v22 = vunpack.c.h.bf16 %v14
  %v23 = vld [vmem:[%s1] sm:$0xff]
  %v24 = vld [vmem:[%s1 + $0x8] sm:$0xff]
  %v25 = vld [vmem:[%s1 + $0x10] sm:$0xff]
  %v26 = vld [vmem:[%s1 + $0x18] sm:$0xff]
  %v27 = vunpack.c.l.bf16 %v23
  %v28 = vunpack.c.h.bf16 %v23
  %v29 = vunpack.c.l.bf16 %v24
  %v30 = vunpack.c.h.bf16 %v24
  %v31 = vunpack.c.l.bf16 %v25
  %v32 = vunpack.c.h.bf16 %v25
  %v33 = vunpack.c.l.bf16 %v26
  %v34 = vunpack.c.h.bf16 %v26
  %v35 = vsub.f32 %v15, %v27
  %v36 = vsub.f32 %v16, %v28
  %v37 = vsub.f32 %v17, %v29
  %v38 = vsub.f32 %v18, %v30
  %v39 = vsub.f32 %v19, %v31
  %v40 = vsub.f32 %v20, %v32
  %v41 = vsub.f32 %v21, %v33
  %v42 = vsub.f32 %v22, %v34
  %v43 = vmul.f32 %v35, %v35
  %v44 = vmul.f32 %v36, %v36
  %v45 = vmul.f32 %v37, %v37
  %v46 = vmul.f32 %v38, %v38
  %v47 = vmul.f32 %v39, %v39
  %v48 = vmul.f32 %v40, %v40
  %v49 = vmul.f32 %v41, %v41
  %v50 = vmul.f32 %v42, %v42
  %v51 = vadd.f32 %v43, %v47
  %v52 = vrot.slane %v51, 4
  %v53 = vadd.f32 %v51, %v52
  %v54 = vrot.slane %v53, 2
  %v55 = vadd.f32 %v53, %v54
  %v56 = vrot.slane %v55, 1
  %v57 = vadd.f32 %v55, %v56
  %v58 = vadd.f32 %v44, %v48
  %v59 = vrot.slane %v58, 4
  %v60 = vadd.f32 %v58, %v59
  %v61 = vrot.slane %v60, 2
  %v62 = vadd.f32 %v60, %v61
  %v63 = vrot.slane %v62, 1
  %v64 = vadd.f32 %v62, %v63
  %v65 = vadd.f32 %v45, %v49
  %v66 = vrot.slane %v65, 4
  %v67 = vadd.f32 %v65, %v66
  %v68 = vrot.slane %v67, 2
  %v69 = vadd.f32 %v67, %v68
  %v70 = vrot.slane %v69, 1
  %v71 = vadd.f32 %v69, %v70
  %v72 = vadd.f32 %v46, %v50
  %v73 = vrot.slane %v72, 4
  %v74 = vadd.f32 %v72, %v73
  %v75 = vrot.slane %v74, 2
  %v76 = vadd.f32 %v74, %v75
  %v77 = vrot.slane %v76, 1
  %v78 = vadd.f32 %v76, %v77
  %v83 = vcombine.low %v57, %v64
  %v84 = vcombine.low %v71, %v78
  %v86 = vunpack.c.l.s4 1966171168
  %v87 = vunpack.c.0.s8 %v86
  %v88 = vlaneseq
  %v89 = vshrl.u32 %v88, 7
  %v90 = vsub.s32 %v87, %v89
  %v91 = vrot.slane %v83, %v90
  %v93 = vunpack.c.l.s4 1966171168
  %v94 = vunpack.c.0.s8 %v93
  %v95 = vlaneseq
  %v96 = vshrl.u32 %v95, 7
  %v97 = vsub.s32 %v94, %v96
  %v98 = vrot.slane %v84, %v97
  %v99 = vcombine.low %v91, %v98
  %v101 = vunpack.c.l.s4 1966171168
  %v102 = vunpack.c.0.s8 %v101
  %v103 = vlaneseq
  %v104 = vshrl.u32 %v103, 7
  %v105 = vsub.s32 %v102, %v104
  %v106 = vrot.slane %v99, %v105
  %v108 = vlaneseq
  %vm109 = vcmp.ge.s32.totalorder %v108, 0
  %vm110 = vcmp.lt.s32.totalorder %v108, 512
  %vm111 = vmand %vm109, %vm110
  %112 = vst.msk [vmem:[%s2] sm:$0xf] %vm111, %v106
  // Predicated region
  $region10: #{skelet_loss.19} parent=0 // pred_check
    _
  $region11: #{skelet_loss.19} parent=0 // pred_check_branch
    %114 = sbr.rel (0) target = $region13
  $region12: #{skelet_loss.19} parent=0 // pred_region
    _
  $region13: #{skelet_loss.19} parent=0 // pred_fallthru
    _
  // Predicated region
  $region14: #{skelet_loss.19} parent=0 // pred_check
    _
  $region15: #{skelet_loss.19} parent=0 // pred_check_branch
    %116 = sbr.rel (0) target = $region17
  $region16: #{skelet_loss.19} parent=0 // pred_region
    _
  $region17: #{skelet_loss.19} parent=0 // pred_fallthru
    _

// kernel: skelet_loss.11
$region0: #{skelet_loss.11}
  #allocation0 [shape = 'u32[]', space=smem, size = 0x4, offset = 0x4, fixed_abs, tag = 'smem constant byte address 0x4 - core index']
  #allocation1 [shape = 'u32[144,128]{1,0:T(1,128)}', space=vmem, size = 0x12000, scoped, tag = 'internal scratch']
  %s0 = inlined_call_operand.vmem [shape: f32[1,512], index: 0, kind: input, shape index: {}]
  %s1 = inlined_call_operand.vmem [shape: f32[1,512], index: 1, kind: input, shape index: {}]
  %s2 = inlined_call_operand.vmem [shape: f32[1,1,512], index: 2, kind: output, shape index: {}]
  %s3 = sld [smem:[#allocation0]]
  $region18: #{skelet_loss.11} parent=0
    _
  %s5 = ssub.s32 1, %s3
  %s6 = scalar_select 0, %s5, %s3
  // Predicated region
  $region2: #{skelet_loss.11} parent=0 // pred_check
    _
  $region3: #{skelet_loss.11} parent=0 // pred_check_branch
    %8 = sbr.rel (0) target = $region5
  $region4: #{skelet_loss.11} parent=0 // pred_region
    _
  $region5: #{skelet_loss.11} parent=0 // pred_fallthru
    _
  // Predicated region
  $region6: #{skelet_loss.11} parent=0 // pred_check
    _
  $region7: #{skelet_loss.11} parent=0 // pred_check_branch
    %10 = sbr.rel (0) target = $region9
  $region8: #{skelet_loss.11} parent=0 // pred_region
    _
  $region9: #{skelet_loss.11} parent=0 // pred_fallthru
    _
  %v11 = vld [vmem:[%s0] sm:$0xf]
  %v12 = vld [vmem:[%s1] sm:$0xf]
  %v13 = vsub.f32 %v11, %v12
  %v14 = vmul.f32 %v13, %v13
  %v15 = vadd.f32 %v14, 0.0
  %v16 = vlaneseq
  %vm17 = vcmp.ge.s32.totalorder %v16, 0
  %vm18 = vcmp.lt.s32.totalorder %v16, 512
  %vm19 = vmand %vm17, %vm18
  %20 = vst.msk [vmem:[%s2] sm:$0xf] %vm19, %v15
  // Predicated region
  $region10: #{skelet_loss.11} parent=0 // pred_check
    _
  $region11: #{skelet_loss.11} parent=0 // pred_check_branch
    %22 = sbr.rel (0) target = $region13
  $region12: #{skelet_loss.11} parent=0 // pred_region
    _
  $region13: #{skelet_loss.11} parent=0 // pred_fallthru
    _
  // Predicated region
  $region14: #{skelet_loss.11} parent=0 // pred_check
    _
  $region15: #{skelet_loss.11} parent=0 // pred_check_branch
    %24 = sbr.rel (0) target = $region17
  $region16: #{skelet_loss.11} parent=0 // pred_region
    _
  $region17: #{skelet_loss.11} parent=0 // pred_fallthru
    _

</llo_original>
